<compile_context>
chip_gen: v7x
topology: tpu7x:2x2x1
jax: 0.10.0
libtpu: 0.0.40
codegen_flags: <defaults>
</compile_context>

<pallas_src>
import jax
import jax.numpy as jnp
from jax.experimental import pallas as pl
from jax.experimental.pallas import tpu as pltpu


# Layer dims of the original PyTorch module: (in_features, out_features).
LAYER_DIMS = [(784, 784), (784, 1024), (1024, 20), (20, 20), (20, 20), (20, 10)]
LANE = 128                 # pad tiny feature dims up to one full lane group
TB_MAX_BLOCKS = 4          # max batch tile = 4 * 128 = 512 rows
OUT_PAD = LANE             # final layer padded 10 -> 128 for an unmasked store
NUM_CLASSES = 10


def _pad_dim(d):
    return d if d >= LANE else LANE


def _choose_batch_tile(batch):
    """Adaptive batch tile: multiple of 128, <= 512 rows, and guaranteeing
    >= 2 grid steps whenever batch > 128 so the 'parallel' batch axis keeps
    both v7x TensorCores busy (single tile for tiny batches)."""
    n_blocks = -(-batch // LANE)                       # cdiv(batch, 128)
    if n_blocks <= 1:
        return LANE
    blocks_per_tile = min(TB_MAX_BLOCKS, max(1, n_blocks // 2))
    return LANE * blocks_per_tile


# ----------------------------------------------------------------------------
# Kernel: fused 6-layer MLP forward for one (TB, 784) batch tile
# ----------------------------------------------------------------------------
def _fc_sigmoid_kernel(
    x_ref,
    w1_ref, b1_ref, w2_ref, b2_ref, w3_ref, b3_ref,
    w4_ref, b4_ref, w5_ref, b5_ref, w6_ref, b6_ref,
    o_ref,
):
    # Input already bf16 (cast in the wrapper) -> native MXU rate, f32 accum.
    h = x_ref[...]

    def linear(h, w_ref, b_ref):
        z = jnp.dot(h, w_ref[...], preferred_element_type=jnp.float32)
        return z + b_ref[...]                       # bias added in f32

    def linear_relu(h, w_ref, b_ref):
        return jnp.maximum(linear(h, w_ref, b_ref), 0.0).astype(jnp.bfloat16)

    h = linear_relu(h, w1_ref, b1_ref)   # 784  -> 784
    h = linear_relu(h, w2_ref, b2_ref)   # 784  -> 1024
    h = linear_relu(h, w3_ref, b3_ref)   # 1024 -> 128  (20 real + zero pad)
    h = linear_relu(h, w4_ref, b4_ref)   # 128  -> 128  (20 real + zero pad)
    h = linear_relu(h, w5_ref, b5_ref)   # 128  -> 128  (20 real + zero pad)
    z = linear(h, w6_ref, b6_ref)        # 128  -> 128  (10 real + zero pad)

    # Sigmoid: exp on EUP, reciprocal via approx EUP vrcp (keeps VALU slot clear).
    # Computed in f32, stored as bf16 (halves the padded output writeback).
    sig = pl.reciprocal(1.0 + jnp.exp(-z), approx=True)
    o_ref[...] = sig.astype(o_ref.dtype)


# ----------------------------------------------------------------------------
# Wrapper
# ----------------------------------------------------------------------------
@jax.jit
def fc_sigmoid_forward(x, kernel_params):
    """x: (B, 1, 28, 28) float32 (NCHW).  kernel_params: list of (w_bf16, b_f32)."""
    B = x.shape[0]
    # == torch x.view(x.size(0), -1); bf16 input halves the per-tile DMA bytes.
    x2d = x.reshape(B, -1).astype(jnp.bfloat16)
    in_dim = x2d.shape[1]

    # Adaptive batch tile + pad batch up to a multiple of it (extra rows discarded).
    tb = _choose_batch_tile(B)
    b_pad = -(-B // tb) * tb
    if b_pad != B:
        x2d = jnp.pad(x2d, ((0, b_pad - B), (0, 0)))
    n_tiles = b_pad // tb

    flat_params = []
    in_specs = [pl.BlockSpec((tb, in_dim), lambda i: (i, 0))]
    # Weights/biases have constant index_maps -> VMEM-resident across tiles;
    # single-buffer them to halve their resident VMEM footprint.
    resident = pl.Buffered(1)
    for (w, b) in kernel_params:
        flat_params.extend([w, b])
        in_specs.append(pl.BlockSpec(w.shape, lambda i: (0, 0), pipeline_mode=resident))
        in_specs.append(pl.BlockSpec(b.shape, lambda i: (0, 0), pipeline_mode=resident))

    out = pl.pallas_call(
        _fc_sigmoid_kernel,
        out_shape=jax.ShapeDtypeStruct((b_pad, OUT_PAD), jnp.bfloat16),
        grid=(n_tiles,),
        in_specs=in_specs,
        out_specs=pl.BlockSpec((tb, OUT_PAD), lambda i: (i, 0)),
        compiler_params=pltpu.CompilerParams(
            dimension_semantics=("parallel",),
            vmem_limit_bytes=32 * 1024 * 1024,
        ),
    )(x2d, *flat_params)

    return out[:B, :NUM_CLASSES].astype(jnp.float32)


# ----------------------------------------------------------------------------
# Parameter init (PyTorch nn.Linear default: U(-k, k), k = 1/sqrt(in_features)),
# kept in PyTorch convention (out, in) / (out,) in float32.
# ----------------------------------------------------------------------------
def init_params(key):
    params = []
    for i, (d_in, d_out) in enumerate(LAYER_DIMS):
        kw, kb = jax.random.split(jax.random.fold_in(key, i))
        bound = 1.0 / (d_in ** 0.5)
        w = jax.random.uniform(kw, (d_out, d_in), jnp.float32, -bound, bound)
        b = jax.random.uniform(kb, (d_out,), jnp.float32, -bound, bound)
        params.append((w, b))
    return params


def prepare_kernel_params(torch_params):
    """(out,in) f32 -> (in_pad, out_pad) bf16 weights; (1, out_pad) f32 biases."""
    kparams = []
    for (d_in, d_out), (w, b) in zip(LAYER_DIMS, torch_params):
        in_p, out_p = _pad_dim(d_in), _pad_dim(d_out)
        w_k = jnp.zeros((in_p, out_p), jnp.float32).at[:d_in, :d_out].set(w.T)
        b_k = jnp.zeros((1, out_p), jnp.float32).at[0, :d_out].set(b)
        kparams.append((w_k.astype(jnp.bfloat16), b_k))
    return kparams


# ----------------------------------------------------------------------------
# Reference (pure JAX, f32, unpadded) matching the PyTorch forward
# ----------------------------------------------------------------------------
def reference_forward(x, torch_params):
    h = x.reshape(x.shape[0], -1).astype(jnp.float32)
    for i, (w, b) in enumerate(torch_params):
        h = h @ w.T + b
        if i < len(torch_params) - 1:
            h = jnp.maximum(h, 0.0)
    return jax.nn.sigmoid(h)


if __name__ == "__main__":
    key = jax.random.PRNGKey(0)
    torch_params = init_params(key)
    kernel_params = prepare_kernel_params(torch_params)

    # batch=2: single-tile demo; batch=300: multi-tile grid + batch padding;
    # batch=1024: exercises the 512-row tile path (2 grid steps).
    for batch in (2, 300, 1024):
        x = jax.random.normal(
            jax.random.fold_in(key, 1000 + batch), (batch, 1, 28, 28), jnp.float32)

        out = jax.block_until_ready(fc_sigmoid_forward(x, kernel_params))
        ref = reference_forward(x, torch_params)

        assert out.shape == (batch, NUM_CLASSES), out.shape
        max_err = float(jnp.max(jnp.abs(out - ref)))
        # bf16 weights/activations (f32 accumulate) + bf16 output store vs. f32 reference.
        assert max_err < 2.5e-2, f"batch={batch}: max abs err = {max_err}"

    print("KERNEL_OK")
</pallas_src>

<mosaic_0001>
module attributes {stable_mosaic.version = 11 : i64} {
  func.func @_fc_sigmoid_kernel(%arg0: i32, %arg1: memref<128x784xbf16, #tpu.memory_space<vmem>>, %arg2: memref<784x784xbf16, #tpu.memory_space<vmem>>, %arg3: memref<1x784xf32, #tpu.memory_space<vmem>>, %arg4: memref<784x1024xbf16, #tpu.memory_space<vmem>>, %arg5: memref<1x1024xf32, #tpu.memory_space<vmem>>, %arg6: memref<1024x128xbf16, #tpu.memory_space<vmem>>, %arg7: memref<1x128xf32, #tpu.memory_space<vmem>>, %arg8: memref<128x128xbf16, #tpu.memory_space<vmem>>, %arg9: memref<1x128xf32, #tpu.memory_space<vmem>>, %arg10: memref<128x128xbf16, #tpu.memory_space<vmem>>, %arg11: memref<1x128xf32, #tpu.memory_space<vmem>>, %arg12: memref<128x128xbf16, #tpu.memory_space<vmem>>, %arg13: memref<1x128xf32, #tpu.memory_space<vmem>>, %arg14: memref<128x128xbf16, #tpu.memory_space<vmem>>) attributes {dimension_semantics = [#tpu.dimension_semantics<parallel>], iteration_bounds = array<i64: 1>, scalar_prefetch = 0 : i64, scratch_operands = 0 : i64, tpu.core_type = #tpu.core_type<tc>, window_params = [{transform_indices = @transform_0, window_bounds = array<i64: 128, 784>}, {pipeline_mode = #tpu.pipeline_mode<synchronous>, transform_indices = @transform_1, window_bounds = array<i64: 784, 784>}, {pipeline_mode = #tpu.pipeline_mode<synchronous>, transform_indices = @transform_2, window_bounds = array<i64: 1, 784>}, {pipeline_mode = #tpu.pipeline_mode<synchronous>, transform_indices = @transform_3, window_bounds = array<i64: 784, 1024>}, {pipeline_mode = #tpu.pipeline_mode<synchronous>, transform_indices = @transform_4, window_bounds = array<i64: 1, 1024>}, {pipeline_mode = #tpu.pipeline_mode<synchronous>, transform_indices = @transform_5, window_bounds = array<i64: 1024, 128>}, {pipeline_mode = #tpu.pipeline_mode<synchronous>, transform_indices = @transform_6, window_bounds = array<i64: 1, 128>}, {pipeline_mode = #tpu.pipeline_mode<synchronous>, transform_indices = @transform_7, window_bounds = array<i64: 128, 128>}, {pipeline_mode = #tpu.pipeline_mode<synchronous>, transform_indices = @transform_8, window_bounds = array<i64: 1, 128>}, {pipeline_mode = #tpu.pipeline_mode<synchronous>, transform_indices = @transform_9, window_bounds = array<i64: 128, 128>}, {pipeline_mode = #tpu.pipeline_mode<synchronous>, transform_indices = @transform_10, window_bounds = array<i64: 1, 128>}, {pipeline_mode = #tpu.pipeline_mode<synchronous>, transform_indices = @transform_11, window_bounds = array<i64: 128, 128>}, {pipeline_mode = #tpu.pipeline_mode<synchronous>, transform_indices = @transform_12, window_bounds = array<i64: 1, 128>}, {transform_indices = @transform_13, window_bounds = array<i64: 128, 128>}]} {
    %c0 = arith.constant 0 : index
    %c0_0 = arith.constant 0 : index
    %0 = vector.load %arg1[%c0, %c0_0] : memref<128x784xbf16, #tpu.memory_space<vmem>>, vector<128x784xbf16>
    %c0_1 = arith.constant 0 : index
    %c0_2 = arith.constant 0 : index
    %1 = vector.load %arg2[%c0_1, %c0_2] : memref<784x784xbf16, #tpu.memory_space<vmem>>, vector<784x784xbf16>
    %cst = arith.constant dense<0.000000e+00> : vector<128x784xf32>
    %2 = tpu.matmul %0, %1, %cst {dimension_numbers = #tpu.dot_dimension_numbers<[1], [0], [0], [1], [0, 0, 1, 1], [], []>} : vector<128x784xbf16>, vector<784x784xbf16>, vector<128x784xf32> -> vector<128x784xf32>
    %c0_3 = arith.constant 0 : index
    %c0_4 = arith.constant 0 : index
    %3 = vector.load %arg3[%c0_3, %c0_4] : memref<1x784xf32, #tpu.memory_space<vmem>>, vector<1x784xf32>
    %4 = vector.broadcast %3 : vector<1x784xf32> to vector<128x784xf32>
    %5 = arith.addf %2, %4 : vector<128x784xf32>
    %cst_5 = arith.constant 0.000000e+00 : f32
    %6 = vector.broadcast %cst_5 : f32 to vector<128x784xf32>
    %7 = arith.maximumf %5, %6 : vector<128x784xf32>
    %8 = arith.truncf %7 : vector<128x784xf32> to vector<128x784xbf16>
    %c0_6 = arith.constant 0 : index
    %c0_7 = arith.constant 0 : index
    %9 = vector.load %arg4[%c0_6, %c0_7] : memref<784x1024xbf16, #tpu.memory_space<vmem>>, vector<784x1024xbf16>
    %cst_8 = arith.constant dense<0.000000e+00> : vector<128x1024xf32>
    %10 = tpu.matmul %8, %9, %cst_8 {dimension_numbers = #tpu.dot_dimension_numbers<[1], [0], [0], [1], [0, 0, 1, 1], [], []>} : vector<128x784xbf16>, vector<784x1024xbf16>, vector<128x1024xf32> -> vector<128x1024xf32>
    %c0_9 = arith.constant 0 : index
    %c0_10 = arith.constant 0 : index
    %11 = vector.load %arg5[%c0_9, %c0_10] : memref<1x1024xf32, #tpu.memory_space<vmem>>, vector<1x1024xf32>
    %12 = vector.broadcast %11 : vector<1x1024xf32> to vector<128x1024xf32>
    %13 = arith.addf %10, %12 : vector<128x1024xf32>
    %cst_11 = arith.constant 0.000000e+00 : f32
    %14 = vector.broadcast %cst_11 : f32 to vector<128x1024xf32>
    %15 = arith.maximumf %13, %14 : vector<128x1024xf32>
    %16 = arith.truncf %15 : vector<128x1024xf32> to vector<128x1024xbf16>
    %c0_12 = arith.constant 0 : index
    %c0_13 = arith.constant 0 : index
    %17 = vector.load %arg6[%c0_12, %c0_13] : memref<1024x128xbf16, #tpu.memory_space<vmem>>, vector<1024x128xbf16>
    %cst_14 = arith.constant dense<0.000000e+00> : vector<128x128xf32>
    %18 = tpu.matmul %16, %17, %cst_14 {dimension_numbers = #tpu.dot_dimension_numbers<[1], [0], [0], [1], [0, 0, 1, 1], [], []>} : vector<128x1024xbf16>, vector<1024x128xbf16>, vector<128x128xf32> -> vector<128x128xf32>
    %c0_15 = arith.constant 0 : index
    %c0_16 = arith.constant 0 : index
    %19 = vector.load %arg7[%c0_15, %c0_16] : memref<1x128xf32, #tpu.memory_space<vmem>>, vector<1x128xf32>
    %20 = vector.broadcast %19 : vector<1x128xf32> to vector<128x128xf32>
    %21 = arith.addf %18, %20 : vector<128x128xf32>
    %cst_17 = arith.constant 0.000000e+00 : f32
    %22 = vector.broadcast %cst_17 : f32 to vector<128x128xf32>
    %23 = arith.maximumf %21, %22 : vector<128x128xf32>
    %24 = arith.truncf %23 : vector<128x128xf32> to vector<128x128xbf16>
    %c0_18 = arith.constant 0 : index
    %c0_19 = arith.constant 0 : index
    %25 = vector.load %arg8[%c0_18, %c0_19] : memref<128x128xbf16, #tpu.memory_space<vmem>>, vector<128x128xbf16>
    %cst_20 = arith.constant dense<0.000000e+00> : vector<128x128xf32>
    %26 = tpu.matmul %24, %25, %cst_20 {dimension_numbers = #tpu.dot_dimension_numbers<[1], [0], [0], [1], [0, 0, 1, 1], [], []>} : vector<128x128xbf16>, vector<128x128xbf16>, vector<128x128xf32> -> vector<128x128xf32>
    %c0_21 = arith.constant 0 : index
    %c0_22 = arith.constant 0 : index
    %27 = vector.load %arg9[%c0_21, %c0_22] : memref<1x128xf32, #tpu.memory_space<vmem>>, vector<1x128xf32>
    %28 = vector.broadcast %27 : vector<1x128xf32> to vector<128x128xf32>
    %29 = arith.addf %26, %28 : vector<128x128xf32>
    %cst_23 = arith.constant 0.000000e+00 : f32
    %30 = vector.broadcast %cst_23 : f32 to vector<128x128xf32>
    %31 = arith.maximumf %29, %30 : vector<128x128xf32>
    %32 = arith.truncf %31 : vector<128x128xf32> to vector<128x128xbf16>
    %c0_24 = arith.constant 0 : index
    %c0_25 = arith.constant 0 : index
    %33 = vector.load %arg10[%c0_24, %c0_25] : memref<128x128xbf16, #tpu.memory_space<vmem>>, vector<128x128xbf16>
    %cst_26 = arith.constant dense<0.000000e+00> : vector<128x128xf32>
    %34 = tpu.matmul %32, %33, %cst_26 {dimension_numbers = #tpu.dot_dimension_numbers<[1], [0], [0], [1], [0, 0, 1, 1], [], []>} : vector<128x128xbf16>, vector<128x128xbf16>, vector<128x128xf32> -> vector<128x128xf32>
    %c0_27 = arith.constant 0 : index
    %c0_28 = arith.constant 0 : index
    %35 = vector.load %arg11[%c0_27, %c0_28] : memref<1x128xf32, #tpu.memory_space<vmem>>, vector<1x128xf32>
    %36 = vector.broadcast %35 : vector<1x128xf32> to vector<128x128xf32>
    %37 = arith.addf %34, %36 : vector<128x128xf32>
    %cst_29 = arith.constant 0.000000e+00 : f32
    %38 = vector.broadcast %cst_29 : f32 to vector<128x128xf32>
    %39 = arith.maximumf %37, %38 : vector<128x128xf32>
    %40 = arith.truncf %39 : vector<128x128xf32> to vector<128x128xbf16>
    %c0_30 = arith.constant 0 : index
    %c0_31 = arith.constant 0 : index
    %41 = vector.load %arg12[%c0_30, %c0_31] : memref<128x128xbf16, #tpu.memory_space<vmem>>, vector<128x128xbf16>
    %cst_32 = arith.constant dense<0.000000e+00> : vector<128x128xf32>
    %42 = tpu.matmul %40, %41, %cst_32 {dimension_numbers = #tpu.dot_dimension_numbers<[1], [0], [0], [1], [0, 0, 1, 1], [], []>} : vector<128x128xbf16>, vector<128x128xbf16>, vector<128x128xf32> -> vector<128x128xf32>
    %c0_33 = arith.constant 0 : index
    %c0_34 = arith.constant 0 : index
    %43 = vector.load %arg13[%c0_33, %c0_34] : memref<1x128xf32, #tpu.memory_space<vmem>>, vector<1x128xf32>
    %44 = vector.broadcast %43 : vector<1x128xf32> to vector<128x128xf32>
    %45 = arith.addf %42, %44 : vector<128x128xf32>
    %cst_35 = arith.constant 0.000000e+00 : f32
    %46 = vector.broadcast %cst_35 : f32 to vector<128x128xf32>
    %47 = arith.subf %46, %45 : vector<128x128xf32>
    %48 = math.exp %47 : vector<128x128xf32>
    %cst_36 = arith.constant 1.000000e+00 : f32
    %49 = vector.broadcast %cst_36 : f32 to vector<128x128xf32>
    %50 = arith.addf %49, %48 : vector<128x128xf32>
    %51 = tpu.reciprocal %50 {approx = true} : vector<128x128xf32> -> vector<128x128xf32>
    %52 = arith.truncf %51 : vector<128x128xf32> to vector<128x128xbf16>
    %c0_37 = arith.constant 0 : index
    %c0_38 = arith.constant 0 : index
    %53 = vector.load %arg14[%c0_37, %c0_38] : memref<128x128xbf16, #tpu.memory_space<vmem>>, vector<128x128xbf16>
    tpu.vector_store %arg14[%c0_37, %c0_38], %52 {strides = array<i32>} : memref<128x128xbf16, #tpu.memory_space<vmem>>, vector<128x128xbf16>,
    return
  }
  func.func @transform_0(%arg0: i32) -> (i32, i32) {
    %c0_i32 = arith.constant 0 : i32
    %c0_i32_0 = arith.constant 0 : i32
    return %arg0, %c0_i32 : i32, i32
  }
  func.func @transform_1(%arg0: i32) -> (i32, i32) {
    %c0_i32 = arith.constant 0 : i32
    %c0_i32_0 = arith.constant 0 : i32
    %c0_i32_1 = arith.constant 0 : i32
    return %c0_i32, %c0_i32_0 : i32, i32
  }
  func.func @transform_2(%arg0: i32) -> (i32, i32) {
    %c0_i32 = arith.constant 0 : i32
    %c0_i32_0 = arith.constant 0 : i32
    %c0_i32_1 = arith.constant 0 : i32
    return %c0_i32, %c0_i32_0 : i32, i32
  }
  func.func @transform_3(%arg0: i32) -> (i32, i32) {
    %c0_i32 = arith.constant 0 : i32
    %c0_i32_0 = arith.constant 0 : i32
    %c0_i32_1 = arith.constant 0 : i32
    return %c0_i32, %c0_i32_0 : i32, i32
  }
  func.func @transform_4(%arg0: i32) -> (i32, i32) {
    %c0_i32 = arith.constant 0 : i32
    %c0_i32_0 = arith.constant 0 : i32
    %c0_i32_1 = arith.constant 0 : i32
    return %c0_i32, %c0_i32_0 : i32, i32
  }
  func.func @transform_5(%arg0: i32) -> (i32, i32) {
    %c0_i32 = arith.constant 0 : i32
    %c0_i32_0 = arith.constant 0 : i32
    %c0_i32_1 = arith.constant 0 : i32
    return %c0_i32, %c0_i32_0 : i32, i32
  }
  func.func @transform_6(%arg0: i32) -> (i32, i32) {
    %c0_i32 = arith.constant 0 : i32
    %c0_i32_0 = arith.constant 0 : i32
    %c0_i32_1 = arith.constant 0 : i32
    return %c0_i32, %c0_i32_0 : i32, i32
  }
  func.func @transform_7(%arg0: i32) -> (i32, i32) {
    %c0_i32 = arith.constant 0 : i32
    %c0_i32_0 = arith.constant 0 : i32
    %c0_i32_1 = arith.constant 0 : i32
    return %c0_i32, %c0_i32_0 : i32, i32
  }
  func.func @transform_8(%arg0: i32) -> (i32, i32) {
    %c0_i32 = arith.constant 0 : i32
    %c0_i32_0 = arith.constant 0 : i32
    %c0_i32_1 = arith.constant 0 : i32
    return %c0_i32, %c0_i32_0 : i32, i32
  }
  func.func @transform_9(%arg0: i32) -> (i32, i32) {
    %c0_i32 = arith.constant 0 : i32
    %c0_i32_0 = arith.constant 0 : i32
    %c0_i32_1 = arith.constant 0 : i32
    return %c0_i32, %c0_i32_0 : i32, i32
  }
  func.func @transform_10(%arg0: i32) -> (i32, i32) {
    %c0_i32 = arith.constant 0 : i32
    %c0_i32_0 = arith.constant 0 : i32
    %c0_i32_1 = arith.constant 0 : i32
    return %c0_i32, %c0_i32_0 : i32, i32
  }
  func.func @transform_11(%arg0: i32) -> (i32, i32) {
    %c0_i32 = arith.constant 0 : i32
    %c0_i32_0 = arith.constant 0 : i32
    %c0_i32_1 = arith.constant 0 : i32
    return %c0_i32, %c0_i32_0 : i32, i32
  }
  func.func @transform_12(%arg0: i32) -> (i32, i32) {
    %c0_i32 = arith.constant 0 : i32
    %c0_i32_0 = arith.constant 0 : i32
    %c0_i32_1 = arith.constant 0 : i32
    return %c0_i32, %c0_i32_0 : i32, i32
  }
  func.func @transform_13(%arg0: i32) -> (i32, i32) {
    %c0_i32 = arith.constant 0 : i32
    %c0_i32_0 = arith.constant 0 : i32
    return %arg0, %c0_i32 : i32, i32
  }
}

</mosaic_0001>

<llo_original>
// kernel: fc_sigmoid_forward.1
$region0: #{fc_sigmoid_forward.1}
  #allocation0 [shape = 'u32[]', space=smem, size = 0x4, offset = 0x4, fixed_abs, tag = 'smem constant byte address 0x4 - core index']
  #allocation1 [shape = 'u32[144,128]{1,0:T(1,128)}', space=vmem, size = 0x12000, scoped, tag = 'internal scratch']
  %s0 = inlined_call_operand.vmem [shape: bf16[128,784], index: 0, kind: input, shape index: {}]
  %s1 = inlined_call_operand.hbm [shape: bf16[784,784], index: 1, kind: input, shape index: {}]
  %s2 = inlined_call_operand.hbm [shape: f32[1,784], index: 2, kind: input, shape index: {}]
  %s3 = inlined_call_operand.hbm [shape: bf16[784,1024], index: 3, kind: input, shape index: {}]
  %s4 = inlined_call_operand.hbm [shape: f32[1,1024], index: 4, kind: input, shape index: {}]
  %s5 = inlined_call_operand.hbm [shape: bf16[1024,128], index: 5, kind: input, shape index: {}]
  %s6 = inlined_call_operand.hbm [shape: f32[1,128], index: 6, kind: input, shape index: {}]
  %s7 = inlined_call_operand.hbm [shape: bf16[128,128], index: 7, kind: input, shape index: {}]
  %s8 = inlined_call_operand.hbm [shape: f32[1,128], index: 8, kind: input, shape index: {}]
  %s9 = inlined_call_operand.hbm [shape: bf16[128,128], index: 9, kind: input, shape index: {}]
  %s10 = inlined_call_operand.hbm [shape: f32[1,128], index: 10, kind: input, shape index: {}]
  %s11 = inlined_call_operand.hbm [shape: bf16[128,128], index: 11, kind: input, shape index: {}]
  %s12 = inlined_call_operand.hbm [shape: f32[1,128], index: 12, kind: input, shape index: {}]
  %s13 = inlined_call_operand.vmem [shape: bf16[128,128], index: 13, kind: output, shape index: {}]
  %s14 = sld [smem:[#allocation0]]
  $region110: #{fc_sigmoid_forward.1} parent=0
    _
  %s16 = ssub.s32 1, %s14
  %s17 = scalar_select 0, %s16, %s14
  $region1: #{fc_sigmoid_forward.1} parent=0
    #allocation2 [shape = 'u8[1404928]{0}', space=vmem, size = 0x157000, scoped, tag = 'input window, operand 1, single buffered']
    #allocation3 [shape = 's32[1]{0}', space=sflag, size = 0x4, scoped, tag = 'scoped memory for fc_sigmoid_forward.1']
    #allocation4 [shape = 'u8[3584]{0}', space=vmem, size = 0x1000, scoped, tag = 'input window, operand 2, single buffered']
    #allocation5 [shape = 's32[1]{0}', space=sflag, size = 0x4, scoped, tag = 'scoped memory for fc_sigmoid_forward.1']
    #allocation6 [shape = 'u8[1605632]{0}', space=vmem, size = 0x188000, scoped, tag = 'input window, operand 3, single buffered']
    #allocation7 [shape = 'u8[4096]{0}', space=vmem, size = 0x1000, scoped, tag = 'input window, operand 4, single buffered']
    #allocation8 [shape = 's32[1]{0}', space=sflag, size = 0x4, scoped, tag = 'scoped memory for fc_sigmoid_forward.1']
    #allocation9 [shape = 'u8[262144]{0}', space=vmem, size = 0x40000, scoped, tag = 'input window, operand 5, single buffered']
    #allocation10 [shape = 'u8[512]{0}', space=vmem, size = 0x400, scoped, tag = 'input window, operand 6, single buffered']
    #allocation11 [shape = 's32[1]{0}', space=sflag, size = 0x4, scoped, tag = 'scoped memory for fc_sigmoid_forward.1']
    #allocation12 [shape = 'u8[32768]{0}', space=vmem, size = 0x8000, scoped, tag = 'input window, operand 7, single buffered']
    #allocation13 [shape = 'u8[512]{0}', space=vmem, size = 0x400, scoped, tag = 'input window, operand 8, single buffered']
    #allocation14 [shape = 's32[1]{0}', space=sflag, size = 0x4, scoped, tag = 'scoped memory for fc_sigmoid_forward.1']
    #allocation15 [shape = 'u8[32768]{0}', space=vmem, size = 0x8000, scoped, tag = 'input window, operand 9, single buffered']
    #allocation16 [shape = 'u8[512]{0}', space=vmem, size = 0x400, scoped, tag = 'input window, operand 10, single buffered']
    #allocation17 [shape = 's32[1]{0}', space=sflag, size = 0x4, scoped, tag = 'scoped memory for fc_sigmoid_forward.1']
    #allocation18 [shape = 'u8[32768]{0}', space=vmem, size = 0x8000, scoped, tag = 'input window, operand 11, single buffered']
    #allocation19 [shape = 'u8[512]{0}', space=vmem, size = 0x400, scoped, tag = 'input window, operand 12, single buffered']
    #allocation20 [shape = 's32[1]{0}', space=sflag, size = 0x4, scoped, tag = 'scoped memory for fc_sigmoid_forward.1']
    %18 = vsyncpa [#allocation3], 0
    %19 = vsyncpa [#allocation5], 0
    %20 = vsyncpa [#allocation8], 0
    %21 = vsyncpa [#allocation11], 0
    %22 = vsyncpa [#allocation14], 0
    %23 = vsyncpa [#allocation17], 0
    %24 = vsyncpa [#allocation20], 0
    // Predicated region
    $region2: #{fc_sigmoid_forward.1} parent=1 // pred_check
      _
    $region3: #{fc_sigmoid_forward.1} parent=1 // pred_check_branch
      %26 = sbr.rel (0) target = $region5
    $region4: #{fc_sigmoid_forward.1} parent=1 // pred_region
      _
    $region5: #{fc_sigmoid_forward.1} parent=1 // pred_fallthru
      _
    // Predicated region
    $region6: #{fc_sigmoid_forward.1} parent=1 // pred_check
      _
    $region7: #{fc_sigmoid_forward.1} parent=1 // pred_check_branch
      %28 = sbr.rel (0) target = $region9
    $region8: #{fc_sigmoid_forward.1} parent=1 // pred_region
      %s30 = ssub.s32 43904, 43904
      %31 = vsyncadd [#allocation3], %s30
      %s32 = sshll.u32 [#allocation2], 4
      %s33 = int_to_ptr.vmem [resolvable:$true] %s32
      %38 = dma.hbm_to_vmem [thread:$0]  %s1, 43904, %s33, [#allocation3], 448, 448, 28
    $region9: #{fc_sigmoid_forward.1} parent=1 // pred_fallthru
      _
    // Predicated region
    $region10: #{fc_sigmoid_forward.1} parent=1 // pred_check
      _
    $region11: #{fc_sigmoid_forward.1} parent=1 // pred_check_branch
      %40 = sbr.rel (0) target = $region13
    $region12: #{fc_sigmoid_forward.1} parent=1 // pred_region
      %s42 = ssub.s32 112, 112
      %43 = vsyncadd [#allocation5], %s42
      %s45 = sshll.u32 [#allocation4], 4
      %s46 = int_to_ptr.vmem [resolvable:$true] %s45
      %48 = dma.hbm_to_vmem [thread:$0]  %s2, 112, %s46, [#allocation5]
    $region13: #{fc_sigmoid_forward.1} parent=1 // pred_fallthru
      _
    // Predicated region
    $region14: #{fc_sigmoid_forward.1} parent=1 // pred_check
      _
    $region15: #{fc_sigmoid_forward.1} parent=1 // pred_check_branch
      %50 = sbr.rel (0) target = $region17
    $region16: #{fc_sigmoid_forward.1} parent=1 // pred_region
      %s52 = ssub.s32 50176, 50176
      %53 = vsyncadd [#allocation5], %s52
      %s54 = sshll.u32 [#allocation6], 4
      %s55 = int_to_ptr.vmem [resolvable:$true] %s54
      %60 = dma.hbm_to_vmem [thread:$0]  %s3, 50176, %s55, [#allocation5], 512, 512, 32
    $region17: #{fc_sigmoid_forward.1} parent=1 // pred_fallthru
      _
    // Predicated region
    $region18: #{fc_sigmoid_forward.1} parent=1 // pred_check
      _
    $region19: #{fc_sigmoid_forward.1} parent=1 // pred_check_branch
      %62 = sbr.rel (0) target = $region21
    $region20: #{fc_sigmoid_forward.1} parent=1 // pred_region
      %s64 = ssub.s32 128, 128
      %65 = vsyncadd [#allocation8], %s64
      %s67 = sshll.u32 [#allocation7], 4
      %s68 = int_to_ptr.vmem [resolvable:$true] %s67
      %70 = dma.hbm_to_vmem [thread:$0]  %s4, 128, %s68, [#allocation8]
    $region21: #{fc_sigmoid_forward.1} parent=1 // pred_fallthru
      _
    // Predicated region
    $region22: #{fc_sigmoid_forward.1} parent=1 // pred_check
      _
    $region23: #{fc_sigmoid_forward.1} parent=1 // pred_check_branch
      %72 = sbr.rel (0) target = $region25
    $region24: #{fc_sigmoid_forward.1} parent=1 // pred_region
      %s74 = ssub.s32 8192, 8192
      %75 = vsyncadd [#allocation8], %s74
      %s76 = sshll.u32 [#allocation9], 4
      %s77 = int_to_ptr.vmem [resolvable:$true] %s76
      %82 = dma.hbm_to_vmem [thread:$0]  %s5, 8192, %s77, [#allocation8], 64, 64, 4
    $region25: #{fc_sigmoid_forward.1} parent=1 // pred_fallthru
      _
    // Predicated region
    $region26: #{fc_sigmoid_forward.1} parent=1 // pred_check
      _
    $region27: #{fc_sigmoid_forward.1} parent=1 // pred_check_branch
      %84 = sbr.rel (0) target = $region29
    $region28: #{fc_sigmoid_forward.1} parent=1 // pred_region
      %s86 = ssub.s32 16, 16
      %87 = vsyncadd [#allocation11], %s86
      %s89 = sshll.u32 [#allocation10], 4
      %s90 = int_to_ptr.vmem [resolvable:$true] %s89
      %92 = dma.hbm_to_vmem [thread:$0]  %s6, 16, %s90, [#allocation11]
    $region29: #{fc_sigmoid_forward.1} parent=1 // pred_fallthru
      _
    // Predicated region
    $region30: #{fc_sigmoid_forward.1} parent=1 // pred_check
      _
    $region31: #{fc_sigmoid_forward.1} parent=1 // pred_check_branch
      %94 = sbr.rel (0) target = $region33
    $region32: #{fc_sigmoid_forward.1} parent=1 // pred_region
      %s96 = ssub.s32 1024, 1024
      %97 = vsyncadd [#allocation11], %s96
      %s98 = sshll.u32 [#allocation12], 4
      %s99 = int_to_ptr.vmem [resolvable:$true] %s98
      %104 = dma.hbm_to_vmem [thread:$0]  %s7, 1024, %s99, [#allocation11], 64, 64, 4
    $region33: #{fc_sigmoid_forward.1} parent=1 // pred_fallthru
      _
    // Predicated region
    $region34: #{fc_sigmoid_forward.1} parent=1 // pred_check
      _
    $region35: #{fc_sigmoid_forward.1} parent=1 // pred_check_branch
      %106 = sbr.rel (0) target = $region37
    $region36: #{fc_sigmoid_forward.1} parent=1 // pred_region
      %s108 = ssub.s32 16, 16
      %109 = vsyncadd [#allocation14], %s108
      %s111 = sshll.u32 [#allocation13], 4
      %s112 = int_to_ptr.vmem [resolvable:$true] %s111
      %114 = dma.hbm_to_vmem [thread:$0]  %s8, 16, %s112, [#allocation14]
    $region37: #{fc_sigmoid_forward.1} parent=1 // pred_fallthru
      _
    // Predicated region
    $region38: #{fc_sigmoid_forward.1} parent=1 // pred_check
      _
    $region39: #{fc_sigmoid_forward.1} parent=1 // pred_check_branch
      %116 = sbr.rel (0) target = $region41
    $region40: #{fc_sigmoid_forward.1} parent=1 // pred_region
      %s118 = ssub.s32 1024, 1024
      %119 = vsyncadd [#allocation14], %s118
      %s120 = sshll.u32 [#allocation15], 4
      %s121 = int_to_ptr.vmem [resolvable:$true] %s120
      %126 = dma.hbm_to_vmem [thread:$0]  %s9, 1024, %s121, [#allocation14], 64, 64, 4
    $region41: #{fc_sigmoid_forward.1} parent=1 // pred_fallthru
      _
    // Predicated region
    $region42: #{fc_sigmoid_forward.1} parent=1 // pred_check
      _
    $region43: #{fc_sigmoid_forward.1} parent=1 // pred_check_branch
      %128 = sbr.rel (0) target = $region45
    $region44: #{fc_sigmoid_forward.1} parent=1 // pred_region
      %s130 = ssub.s32 16, 16
      %131 = vsyncadd [#allocation17], %s130
      %s133 = sshll.u32 [#allocation16], 4
      %s134 = int_to_ptr.vmem [resolvable:$true] %s133
      %136 = dma.hbm_to_vmem [thread:$0]  %s10, 16, %s134, [#allocation17]
    $region45: #{fc_sigmoid_forward.1} parent=1 // pred_fallthru
      _
    // Predicated region
    $region46: #{fc_sigmoid_forward.1} parent=1 // pred_check
      _
    $region47: #{fc_sigmoid_forward.1} parent=1 // pred_check_branch
      %138 = sbr.rel (0) target = $region49
    $region48: #{fc_sigmoid_forward.1} parent=1 // pred_region
      %s140 = ssub.s32 1024, 1024
      %141 = vsyncadd [#allocation17], %s140
      %s142 = sshll.u32 [#allocation18], 4
      %s143 = int_to_ptr.vmem [resolvable:$true] %s142
      %148 = dma.hbm_to_vmem [thread:$0]  %s11, 1024, %s143, [#allocation17], 64, 64, 4
    $region49: #{fc_sigmoid_forward.1} parent=1 // pred_fallthru
      _
    // Predicated region
    $region50: #{fc_sigmoid_forward.1} parent=1 // pred_check
      _
    $region51: #{fc_sigmoid_forward.1} parent=1 // pred_check_branch
      %150 = sbr.rel (0) target = $region53
    $region52: #{fc_sigmoid_forward.1} parent=1 // pred_region
      %s152 = ssub.s32 16, 16
      %153 = vsyncadd [#allocation20], %s152
      %s155 = sshll.u32 [#allocation19], 4
      %s156 = int_to_ptr.vmem [resolvable:$true] %s155
      %158 = dma.hbm_to_vmem [thread:$0]  %s12, 16, %s156, [#allocation20]
    $region53: #{fc_sigmoid_forward.1} parent=1 // pred_fallthru
      _
    // Predicated region
    $region54: #{fc_sigmoid_forward.1} parent=1 // pred_check
      _
    $region55: #{fc_sigmoid_forward.1} parent=1 // pred_check_branch
      %160 = sbr.rel (0) target = $region57
    $region56: #{fc_sigmoid_forward.1} parent=1 // pred_region
      %161 = dma.done [#allocation3], 43904
    $region57: #{fc_sigmoid_forward.1} parent=1 // pred_fallthru
      _
    // Predicated region
    $region58: #{fc_sigmoid_forward.1} parent=1 // pred_check
      _
    $region59: #{fc_sigmoid_forward.1} parent=1 // pred_check_branch
      %163 = sbr.rel (0) target = $region61
    $region60: #{fc_sigmoid_forward.1} parent=1 // pred_region
      %164 = dma.done [#allocation5], 112
    $region61: #{fc_sigmoid_forward.1} parent=1 // pred_fallthru
      _
    // Predicated region
    $region62: #{fc_sigmoid_forward.1} parent=1 // pred_check
      _
    $region63: #{fc_sigmoid_forward.1} parent=1 // pred_check_branch
      %166 = sbr.rel (0) target = $region65
    $region64: #{fc_sigmoid_forward.1} parent=1 // pred_region
      %167 = dma.done [#allocation5], 50176
    $region65: #{fc_sigmoid_forward.1} parent=1 // pred_fallthru
      _
    // Predicated region
    $region66: #{fc_sigmoid_forward.1} parent=1 // pred_check
      _
    $region67: #{fc_sigmoid_forward.1} parent=1 // pred_check_branch
      %169 = sbr.rel (0) target = $region69
    $region68: #{fc_sigmoid_forward.1} parent=1 // pred_region
      %170 = dma.done [#allocation8], 128
    $region69: #{fc_sigmoid_forward.1} parent=1 // pred_fallthru
      _
    // Predicated region
    $region70: #{fc_sigmoid_forward.1} parent=1 // pred_check
      _
    $region71: #{fc_sigmoid_forward.1} parent=1 // pred_check_branch
      %172 = sbr.rel (0) target = $region73
    $region72: #{fc_sigmoid_forward.1} parent=1 // pred_region
      %173 = dma.done [#allocation8], 8192
    $region73: #{fc_sigmoid_forward.1} parent=1 // pred_fallthru
      _
    // Predicated region
    $region74: #{fc_sigmoid_forward.1} parent=1 // pred_check
      _
    $region75: #{fc_sigmoid_forward.1} parent=1 // pred_check_branch
      %175 = sbr.rel (0) target = $region77
    $region76: #{fc_sigmoid_forward.1} parent=1 // pred_region
      %176 = dma.done [#allocation11], 16
    $region77: #{fc_sigmoid_forward.1} parent=1 // pred_fallthru
      _
    // Predicated region
    $region78: #{fc_sigmoid_forward.1} parent=1 // pred_check
      _
    $region79: #{fc_sigmoid_forward.1} parent=1 // pred_check_branch
      %178 = sbr.rel (0) target = $region81
    $region80: #{fc_sigmoid_forward.1} parent=1 // pred_region
      %179 = dma.done [#allocation11], 1024
    $region81: #{fc_sigmoid_forward.1} parent=1 // pred_fallthru
      _
    // Predicated region
    $region82: #{fc_sigmoid_forward.1} parent=1 // pred_check
      _
    $region83: #{fc_sigmoid_forward.1} parent=1 // pred_check_branch
      %181 = sbr.rel (0) target = $region85
    $region84: #{fc_sigmoid_forward.1} parent=1 // pred_region
      %182 = dma.done [#allocation14], 16
    $region85: #{fc_sigmoid_forward.1} parent=1 // pred_fallthru
      _
    // Predicated region
    $region86: #{fc_sigmoid_forward.1} parent=1 // pred_check
      _
    $region87: #{fc_sigmoid_forward.1} parent=1 // pred_check_branch
      %184 = sbr.rel (0) target = $region89
    $region88: #{fc_sigmoid_forward.1} parent=1 // pred_region
      %185 = dma.done [#allocation14], 1024
    $region89: #{fc_sigmoid_forward.1} parent=1 // pred_fallthru
      _
    // Predicated region
    $region90: #{fc_sigmoid_forward.1} parent=1 // pred_check
      _
    $region91: #{fc_sigmoid_forward.1} parent=1 // pred_check_branch
      %187 = sbr.rel (0) target = $region93
    $region92: #{fc_sigmoid_forward.1} parent=1 // pred_region
      %188 = dma.done [#allocation17], 16
    $region93: #{fc_sigmoid_forward.1} parent=1 // pred_fallthru
      _
    // Predicated region
    $region94: #{fc_sigmoid_forward.1} parent=1 // pred_check
      _
    $region95: #{fc_sigmoid_forward.1} parent=1 // pred_check_branch
      %190 = sbr.rel (0) target = $region97
    $region96: #{fc_sigmoid_forward.1} parent=1 // pred_region
      %191 = dma.done [#allocation17], 1024
    $region97: #{fc_sigmoid_forward.1} parent=1 // pred_fallthru
      _
    // Predicated region
    $region98: #{fc_sigmoid_forward.1} parent=1 // pred_check
      _
    $region99: #{fc_sigmoid_forward.1} parent=1 // pred_check_branch
      %193 = sbr.rel (0) target = $region101
    $region100: #{fc_sigmoid_forward.1} parent=1 // pred_region
      %194 = dma.done [#allocation20], 16
    $region101: #{fc_sigmoid_forward.1} parent=1 // pred_fallthru
      _
    %v196 = vld [vmem:[%s0] sm:$0xff]
    %v197 = vld [vmem:[%s0 + $0x8] sm:$0xff]
    %v198 = vld [vmem:[%s0 + $0x10] sm:$0xff]
    %v199 = vld [vmem:[%s0 + $0x18] sm:$0xf]
    %v200 = vld [vmem:[%s0 + $0x1c] sm:$0xff]
    %v201 = vld [vmem:[%s0 + $0x24] sm:$0xff]
    %v202 = vld [vmem:[%s0 + $0x2c] sm:$0xff]
    %v203 = vld [vmem:[%s0 + $0x34] sm:$0xf]
    %v204 = vld [vmem:[%s0 + $0x38] sm:$0xff]
    %v205 = vld [vmem:[%s0 + $0x40] sm:$0xff]
    %v206 = vld [vmem:[%s0 + $0x48] sm:$0xff]
    %v207 = vld [vmem:[%s0 + $0x50] sm:$0xf]
    %v208 = vld [vmem:[%s0 + $0x54] sm:$0xff]
    %v209 = vld [vmem:[%s0 + $0x5c] sm:$0xff]
    %v210 = vld [vmem:[%s0 + $0x64] sm:$0xff]
    %v211 = vld [vmem:[%s0 + $0x6c] sm:$0xf]
    %v212 = vld [vmem:[%s0 + $0x70] sm:$0xff]
    %v213 = vld [vmem:[%s0 + $0x78] sm:$0xff]
    %v214 = vld [vmem:[%s0 + $0x80] sm:$0xff]
    %v215 = vld [vmem:[%s0 + $0x88] sm:$0xf]
    %v216 = vld [vmem:[%s0 + $0x8c] sm:$0xff]
    %v217 = vld [vmem:[%s0 + $0x94] sm:$0xff]
    %v218 = vld [vmem:[%s0 + $0x9c] sm:$0xff]
    %v219 = vld [vmem:[%s0 + $0xa4] sm:$0xf]
    %v220 = vld [vmem:[%s0 + $0xa8] sm:$0xff]
    %v221 = vld [vmem:[%s0 + $0xb0] sm:$0xff]
    %v222 = vld [vmem:[%s0 + $0xb8] sm:$0xff]
    %v223 = vld [vmem:[%s0 + $0xc0] sm:$0xf]
    %v224 = vld [vmem:[%s0 + $0xc4] sm:$0xff]
    %v225 = vld [vmem:[%s0 + $0xcc] sm:$0xff]
    %v226 = vld [vmem:[%s0 + $0xd4] sm:$0xff]
    %v227 = vld [vmem:[%s0 + $0xdc] sm:$0xf]
    %v228 = vld [vmem:[%s0 + $0xe0] sm:$0xff]
    %v229 = vld [vmem:[%s0 + $0xe8] sm:$0xff]
    %v230 = vld [vmem:[%s0 + $0xf0] sm:$0xff]
    %v231 = vld [vmem:[%s0 + $0xf8] sm:$0xf]
    %v232 = vld [vmem:[%s0 + $0xfc] sm:$0xff]
    %v233 = vld [vmem:[%s0 + $0x104] sm:$0xff]
    %v234 = vld [vmem:[%s0 + $0x10c] sm:$0xff]
    %v235 = vld [vmem:[%s0 + $0x114] sm:$0xf]
    %v236 = vld [vmem:[%s0 + $0x118] sm:$0xff]
    %v237 = vld [vmem:[%s0 + $0x120] sm:$0xff]
    %v238 = vld [vmem:[%s0 + $0x128] sm:$0xff]
    %v239 = vld [vmem:[%s0 + $0x130] sm:$0xf]
    %v240 = vld [vmem:[%s0 + $0x134] sm:$0xff]
    %v241 = vld [vmem:[%s0 + $0x13c] sm:$0xff]
    %v242 = vld [vmem:[%s0 + $0x144] sm:$0xff]
    %v243 = vld [vmem:[%s0 + $0x14c] sm:$0xf]
    %v244 = vld [vmem:[%s0 + $0x150] sm:$0xff]
    %v245 = vld [vmem:[%s0 + $0x158] sm:$0xff]
    %v246 = vld [vmem:[%s0 + $0x160] sm:$0xff]
    %v247 = vld [vmem:[%s0 + $0x168] sm:$0xf]
    %v248 = vld [vmem:[%s0 + $0x16c] sm:$0xff]
    %v249 = vld [vmem:[%s0 + $0x174] sm:$0xff]
    %v250 = vld [vmem:[%s0 + $0x17c] sm:$0xff]
    %v251 = vld [vmem:[%s0 + $0x184] sm:$0xf]
    %v252 = vld [vmem:[%s0 + $0x188] sm:$0xff]
    %v253 = vld [vmem:[%s0 + $0x190] sm:$0xff]
    %v254 = vld [vmem:[%s0 + $0x198] sm:$0xff]
    %v255 = vld [vmem:[%s0 + $0x1a0] sm:$0xf]
    %v256 = vld [vmem:[%s0 + $0x1a4] sm:$0xff]
    %v257 = vld [vmem:[%s0 + $0x1ac] sm:$0xff]
    %v258 = vld [vmem:[%s0 + $0x1b4] sm:$0xff]
    %v259 = vld [vmem:[%s0 + $0x1bc] sm:$0xf]
    %v260 = vld [vmem:[#allocation2] sm:$0xff]
    %v261 = vld [vmem:[#allocation2 + $0x8] sm:$0xff]
    %v262 = vld [vmem:[#allocation2 + $0x10] sm:$0xff]
    %v263 = vld [vmem:[#allocation2 + $0x18] sm:$0xf]
    %v264 = vld [vmem:[#allocation2 + $0x1c] sm:$0xff]
    %v265 = vld [vmem:[#allocation2 + $0x24] sm:$0xff]
    %v266 = vld [vmem:[#allocation2 + $0x2c] sm:$0xff]
    %v267 = vld [vmem:[#allocation2 + $0x34] sm:$0xf]
    %v268 = vld [vmem:[#allocation2 + $0x38] sm:$0xff]
    %v269 = vld [vmem:[#allocation2 + $0x40] sm:$0xff]
    %v270 = vld [vmem:[#allocation2 + $0x48] sm:$0xff]
    %v271 = vld [vmem:[#allocation2 + $0x50] sm:$0xf]
    %v272 = vld [vmem:[#allocation2 + $0x54] sm:$0xff]
    %v273 = vld [vmem:[#allocation2 + $0x5c] sm:$0xff]
    %v274 = vld [vmem:[#allocation2 + $0x64] sm:$0xff]
    %v275 = vld [vmem:[#allocation2 + $0x6c] sm:$0xf]
    %v276 = vld [vmem:[#allocation2 + $0x70] sm:$0xff]
    %v277 = vld [vmem:[#allocation2 + $0x78] sm:$0xff]
    %v278 = vld [vmem:[#allocation2 + $0x80] sm:$0xff]
    %v279 = vld [vmem:[#allocation2 + $0x88] sm:$0xf]
    %v280 = vld [vmem:[#allocation2 + $0x8c] sm:$0xff]
    %v281 = vld [vmem:[#allocation2 + $0x94] sm:$0xff]
    %v282 = vld [vmem:[#allocation2 + $0x9c] sm:$0xff]
    %v283 = vld [vmem:[#allocation2 + $0xa4] sm:$0xf]
    %v284 = vld [vmem:[#allocation2 + $0xa8] sm:$0xff]
    %v285 = vld [vmem:[#allocation2 + $0xb0] sm:$0xff]
    %v286 = vld [vmem:[#allocation2 + $0xb8] sm:$0xff]
    %v287 = vld [vmem:[#allocation2 + $0xc0] sm:$0xf]
    %v288 = vld [vmem:[#allocation2 + $0xc4] sm:$0xff]
    %v289 = vld [vmem:[#allocation2 + $0xcc] sm:$0xff]
    %v290 = vld [vmem:[#allocation2 + $0xd4] sm:$0xff]
    %v291 = vld [vmem:[#allocation2 + $0xdc] sm:$0xf]
    %v292 = vld [vmem:[#allocation2 + $0xe0] sm:$0xff]
    %v293 = vld [vmem:[#allocation2 + $0xe8] sm:$0xff]
    %v294 = vld [vmem:[#allocation2 + $0xf0] sm:$0xff]
    %v295 = vld [vmem:[#allocation2 + $0xf8] sm:$0xf]
    %v296 = vld [vmem:[#allocation2 + $0xfc] sm:$0xff]
    %v297 = vld [vmem:[#allocation2 + $0x104] sm:$0xff]
    %v298 = vld [vmem:[#allocation2 + $0x10c] sm:$0xff]
    %v299 = vld [vmem:[#allocation2 + $0x114] sm:$0xf]
    %v300 = vld [vmem:[#allocation2 + $0x118] sm:$0xff]
    %v301 = vld [vmem:[#allocation2 + $0x120] sm:$0xff]
    %v302 = vld [vmem:[#allocation2 + $0x128] sm:$0xff]
    %v303 = vld [vmem:[#allocation2 + $0x130] sm:$0xf]
    %v304 = vld [vmem:[#allocation2 + $0x134] sm:$0xff]
    %v305 = vld [vmem:[#allocation2 + $0x13c] sm:$0xff]
    %v306 = vld [vmem:[#allocation2 + $0x144] sm:$0xff]
    %v307 = vld [vmem:[#allocation2 + $0x14c] sm:$0xf]
    %v308 = vld [vmem:[#allocation2 + $0x150] sm:$0xff]
    %v309 = vld [vmem:[#allocation2 + $0x158] sm:$0xff]
    %v310 = vld [vmem:[#allocation2 + $0x160] sm:$0xff]
    %v311 = vld [vmem:[#allocation2 + $0x168] sm:$0xf]
    %v312 = vld [vmem:[#allocation2 + $0x16c] sm:$0xff]
    %v313 = vld [vmem:[#allocation2 + $0x174] sm:$0xff]
    %v314 = vld [vmem:[#allocation2 + $0x17c] sm:$0xff]
    %v315 = vld [vmem:[#allocation2 + $0x184] sm:$0xf]
    %v316 = vld [vmem:[#allocation2 + $0x188] sm:$0xff]
    %v317 = vld [vmem:[#allocation2 + $0x190] sm:$0xff]
    %v318 = vld [vmem:[#allocation2 + $0x198] sm:$0xff]
    %v319 = vld [vmem:[#allocation2 + $0x1a0] sm:$0xf]
    %v320 = vld [vmem:[#allocation2 + $0x1a4] sm:$0xff]
    %v321 = vld [vmem:[#allocation2 + $0x1ac] sm:$0xff]
    %v322 = vld [vmem:[#allocation2 + $0x1b4] sm:$0xff]
    %v323 = vld [vmem:[#allocation2 + $0x1bc] sm:$0xf]
    %v324 = vld [vmem:[#allocation2 + $0x1c0] sm:$0xff]
    %v325 = vld [vmem:[#allocation2 + $0x1c8] sm:$0xff]
    %v326 = vld [vmem:[#allocation2 + $0x1d0] sm:$0xff]
    %v327 = vld [vmem:[#allocation2 + $0x1d8] sm:$0xf]
    %v328 = vld [vmem:[#allocation2 + $0x1dc] sm:$0xff]
    %v329 = vld [vmem:[#allocation2 + $0x1e4] sm:$0xff]
    %v330 = vld [vmem:[#allocation2 + $0x1ec] sm:$0xff]
    %v331 = vld [vmem:[#allocation2 + $0x1f4] sm:$0xf]
    %v332 = vld [vmem:[#allocation2 + $0x1f8] sm:$0xff]
    %v333 = vld [vmem:[#allocation2 + $0x200] sm:$0xff]
    %v334 = vld [vmem:[#allocation2 + $0x208] sm:$0xff]
    %v335 = vld [vmem:[#allocation2 + $0x210] sm:$0xf]
    %v336 = vld [vmem:[#allocation2 + $0x214] sm:$0xff]
    %v337 = vld [vmem:[#allocation2 + $0x21c] sm:$0xff]
    %v338 = vld [vmem:[#allocation2 + $0x224] sm:$0xff]
    %v339 = vld [vmem:[#allocation2 + $0x22c] sm:$0xf]
    %v340 = vld [vmem:[#allocation2 + $0x230] sm:$0xff]
    %v341 = vld [vmem:[#allocation2 + $0x238] sm:$0xff]
    %v342 = vld [vmem:[#allocation2 + $0x240] sm:$0xff]
    %v343 = vld [vmem:[#allocation2 + $0x248] sm:$0xf]
    %v344 = vld [vmem:[#allocation2 + $0x24c] sm:$0xff]
    %v345 = vld [vmem:[#allocation2 + $0x254] sm:$0xff]
    %v346 = vld [vmem:[#allocation2 + $0x25c] sm:$0xff]
    %v347 = vld [vmem:[#allocation2 + $0x264] sm:$0xf]
    %v348 = vld [vmem:[#allocation2 + $0x268] sm:$0xff]
    %v349 = vld [vmem:[#allocation2 + $0x270] sm:$0xff]
    %v350 = vld [vmem:[#allocation2 + $0x278] sm:$0xff]
    %v351 = vld [vmem:[#allocation2 + $0x280] sm:$0xf]
    %v352 = vld [vmem:[#allocation2 + $0x284] sm:$0xff]
    %v353 = vld [vmem:[#allocation2 + $0x28c] sm:$0xff]
    %v354 = vld [vmem:[#allocation2 + $0x294] sm:$0xff]
    %v355 = vld [vmem:[#allocation2 + $0x29c] sm:$0xf]
    %v356 = vld [vmem:[#allocation2 + $0x2a0] sm:$0xff]
    %v357 = vld [vmem:[#allocation2 + $0x2a8] sm:$0xff]
    %v358 = vld [vmem:[#allocation2 + $0x2b0] sm:$0xff]
    %v359 = vld [vmem:[#allocation2 + $0x2b8] sm:$0xf]
    %v360 = vld [vmem:[#allocation2 + $0x2bc] sm:$0xff]
    %v361 = vld [vmem:[#allocation2 + $0x2c4] sm:$0xff]
    %v362 = vld [vmem:[#allocation2 + $0x2cc] sm:$0xff]
    %v363 = vld [vmem:[#allocation2 + $0x2d4] sm:$0xf]
    %v364 = vld [vmem:[#allocation2 + $0x2d8] sm:$0xff]
    %v365 = vld [vmem:[#allocation2 + $0x2e0] sm:$0xff]
    %v366 = vld [vmem:[#allocation2 + $0x2e8] sm:$0xff]
    %v367 = vld [vmem:[#allocation2 + $0x2f0] sm:$0xf]
    %v368 = vld [vmem:[#allocation2 + $0x2f4] sm:$0xff]
    %v369 = vld [vmem:[#allocation2 + $0x2fc] sm:$0xff]
    %v370 = vld [vmem:[#allocation2 + $0x304] sm:$0xff]
    %v371 = vld [vmem:[#allocation2 + $0x30c] sm:$0xf]
    %v372 = vld [vmem:[#allocation2 + $0x310] sm:$0xff]
    %v373 = vld [vmem:[#allocation2 + $0x318] sm:$0xff]
    %v374 = vld [vmem:[#allocation2 + $0x320] sm:$0xff]
    %v375 = vld [vmem:[#allocation2 + $0x328] sm:$0xf]
    %v376 = vld [vmem:[#allocation2 + $0x32c] sm:$0xff]
    %v377 = vld [vmem:[#allocation2 + $0x334] sm:$0xff]
    %v378 = vld [vmem:[#allocation2 + $0x33c] sm:$0xff]
    %v379 = vld [vmem:[#allocation2 + $0x344] sm:$0xf]
    %v380 = vld [vmem:[#allocation2 + $0x348] sm:$0xff]
    %v381 = vld [vmem:[#allocation2 + $0x350] sm:$0xff]
    %v382 = vld [vmem:[#allocation2 + $0x358] sm:$0xff]
    %v383 = vld [vmem:[#allocation2 + $0x360] sm:$0xf]
    %v384 = vld [vmem:[#allocation2 + $0x364] sm:$0xff]
    %v385 = vld [vmem:[#allocation2 + $0x36c] sm:$0xff]
    %v386 = vld [vmem:[#allocation2 + $0x374] sm:$0xff]
    %v387 = vld [vmem:[#allocation2 + $0x37c] sm:$0xf]
    %v388 = vld [vmem:[#allocation2 + $0x380] sm:$0xff]
    %v389 = vld [vmem:[#allocation2 + $0x388] sm:$0xff]
    %v390 = vld [vmem:[#allocation2 + $0x390] sm:$0xff]
    %v391 = vld [vmem:[#allocation2 + $0x398] sm:$0xf]
    %v392 = vld [vmem:[#allocation2 + $0x39c] sm:$0xff]
    %v393 = vld [vmem:[#allocation2 + $0x3a4] sm:$0xff]
    %v394 = vld [vmem:[#allocation2 + $0x3ac] sm:$0xff]
    %v395 = vld [vmem:[#allocation2 + $0x3b4] sm:$0xf]
    %v396 = vld [vmem:[#allocation2 + $0x3b8] sm:$0xff]
    %v397 = vld [vmem:[#allocation2 + $0x3c0] sm:$0xff]
    %v398 = vld [vmem:[#allocation2 + $0x3c8] sm:$0xff]
    %v399 = vld [vmem:[#allocation2 + $0x3d0] sm:$0xf]
    %v400 = vld [vmem:[#allocation2 + $0x3d4] sm:$0xff]
    %v401 = vld [vmem:[#allocation2 + $0x3dc] sm:$0xff]
    %v402 = vld [vmem:[#allocation2 + $0x3e4] sm:$0xff]
    %v403 = vld [vmem:[#allocation2 + $0x3ec] sm:$0xf]
    %v404 = vld [vmem:[#allocation2 + $0x3f0] sm:$0xff]
    %v405 = vld [vmem:[#allocation2 + $0x3f8] sm:$0xff]
    %v406 = vld [vmem:[#allocation2 + $0x400] sm:$0xff]
    %v407 = vld [vmem:[#allocation2 + $0x408] sm:$0xf]
    %v408 = vld [vmem:[#allocation2 + $0x40c] sm:$0xff]
    %v409 = vld [vmem:[#allocation2 + $0x414] sm:$0xff]
    %v410 = vld [vmem:[#allocation2 + $0x41c] sm:$0xff]
    %v411 = vld [vmem:[#allocation2 + $0x424] sm:$0xf]
    %v412 = vld [vmem:[#allocation2 + $0x428] sm:$0xff]
    %v413 = vld [vmem:[#allocation2 + $0x430] sm:$0xff]
    %v414 = vld [vmem:[#allocation2 + $0x438] sm:$0xff]
    %v415 = vld [vmem:[#allocation2 + $0x440] sm:$0xf]
    %v416 = vld [vmem:[#allocation2 + $0x444] sm:$0xff]
    %v417 = vld [vmem:[#allocation2 + $0x44c] sm:$0xff]
    %v418 = vld [vmem:[#allocation2 + $0x454] sm:$0xff]
    %v419 = vld [vmem:[#allocation2 + $0x45c] sm:$0xf]
    %v420 = vld [vmem:[#allocation2 + $0x460] sm:$0xff]
    %v421 = vld [vmem:[#allocation2 + $0x468] sm:$0xff]
    %v422 = vld [vmem:[#allocation2 + $0x470] sm:$0xff]
    %v423 = vld [vmem:[#allocation2 + $0x478] sm:$0xf]
    %v424 = vld [vmem:[#allocation2 + $0x47c] sm:$0xff]
    %v425 = vld [vmem:[#allocation2 + $0x484] sm:$0xff]
    %v426 = vld [vmem:[#allocation2 + $0x48c] sm:$0xff]
    %v427 = vld [vmem:[#allocation2 + $0x494] sm:$0xf]
    %v428 = vld [vmem:[#allocation2 + $0x498] sm:$0xff]
    %v429 = vld [vmem:[#allocation2 + $0x4a0] sm:$0xff]
    %v430 = vld [vmem:[#allocation2 + $0x4a8] sm:$0xff]
    %v431 = vld [vmem:[#allocation2 + $0x4b0] sm:$0xf]
    %v432 = vld [vmem:[#allocation2 + $0x4b4] sm:$0xff]
    %v433 = vld [vmem:[#allocation2 + $0x4bc] sm:$0xff]
    %v434 = vld [vmem:[#allocation2 + $0x4c4] sm:$0xff]
    %v435 = vld [vmem:[#allocation2 + $0x4cc] sm:$0xf]
    %v436 = vld [vmem:[#allocation2 + $0x4d0] sm:$0xff]
    %v437 = vld [vmem:[#allocation2 + $0x4d8] sm:$0xff]
    %v438 = vld [vmem:[#allocation2 + $0x4e0] sm:$0xff]
    %v439 = vld [vmem:[#allocation2 + $0x4e8] sm:$0xf]
    %v440 = vld [vmem:[#allocation2 + $0x4ec] sm:$0xff]
    %v441 = vld [vmem:[#allocation2 + $0x4f4] sm:$0xff]
    %v442 = vld [vmem:[#allocation2 + $0x4fc] sm:$0xff]
    %v443 = vld [vmem:[#allocation2 + $0x504] sm:$0xf]
    %v444 = vld [vmem:[#allocation2 + $0x508] sm:$0xff]
    %v445 = vld [vmem:[#allocation2 + $0x510] sm:$0xff]
    %v446 = vld [vmem:[#allocation2 + $0x518] sm:$0xff]
    %v447 = vld [vmem:[#allocation2 + $0x520] sm:$0xf]
    %v448 = vld [vmem:[#allocation2 + $0x524] sm:$0xff]
    %v449 = vld [vmem:[#allocation2 + $0x52c] sm:$0xff]
    %v450 = vld [vmem:[#allocation2 + $0x534] sm:$0xff]
    %v451 = vld [vmem:[#allocation2 + $0x53c] sm:$0xf]
    %v452 = vld [vmem:[#allocation2 + $0x540] sm:$0xff]
    %v453 = vld [vmem:[#allocation2 + $0x548] sm:$0xff]
    %v454 = vld [vmem:[#allocation2 + $0x550] sm:$0xff]
    %v455 = vld [vmem:[#allocation2 + $0x558] sm:$0xf]
    %v456 = vld [vmem:[#allocation2 + $0x55c] sm:$0xff]
    %v457 = vld [vmem:[#allocation2 + $0x564] sm:$0xff]
    %v458 = vld [vmem:[#allocation2 + $0x56c] sm:$0xff]
    %v459 = vld [vmem:[#allocation2 + $0x574] sm:$0xf]
    %v460 = vld [vmem:[#allocation2 + $0x578] sm:$0xff]
    %v461 = vld [vmem:[#allocation2 + $0x580] sm:$0xff]
    %v462 = vld [vmem:[#allocation2 + $0x588] sm:$0xff]
    %v463 = vld [vmem:[#allocation2 + $0x590] sm:$0xf]
    %v464 = vld [vmem:[#allocation2 + $0x594] sm:$0xff]
    %v465 = vld [vmem:[#allocation2 + $0x59c] sm:$0xff]
    %v466 = vld [vmem:[#allocation2 + $0x5a4] sm:$0xff]
    %v467 = vld [vmem:[#allocation2 + $0x5ac] sm:$0xf]
    %v468 = vld [vmem:[#allocation2 + $0x5b0] sm:$0xff]
    %v469 = vld [vmem:[#allocation2 + $0x5b8] sm:$0xff]
    %v470 = vld [vmem:[#allocation2 + $0x5c0] sm:$0xff]
    %v471 = vld [vmem:[#allocation2 + $0x5c8] sm:$0xf]
    %v472 = vld [vmem:[#allocation2 + $0x5cc] sm:$0xff]
    %v473 = vld [vmem:[#allocation2 + $0x5d4] sm:$0xff]
    %v474 = vld [vmem:[#allocation2 + $0x5dc] sm:$0xff]
    %v475 = vld [vmem:[#allocation2 + $0x5e4] sm:$0xf]
    %v476 = vld [vmem:[#allocation2 + $0x5e8] sm:$0xff]
    %v477 = vld [vmem:[#allocation2 + $0x5f0] sm:$0xff]
    %v478 = vld [vmem:[#allocation2 + $0x5f8] sm:$0xff]
    %v479 = vld [vmem:[#allocation2 + $0x600] sm:$0xf]
    %v480 = vld [vmem:[#allocation2 + $0x604] sm:$0xff]
    %v481 = vld [vmem:[#allocation2 + $0x60c] sm:$0xff]
    %v482 = vld [vmem:[#allocation2 + $0x614] sm:$0xff]
    %v483 = vld [vmem:[#allocation2 + $0x61c] sm:$0xf]
    %v484 = vld [vmem:[#allocation2 + $0x620] sm:$0xff]
    %v485 = vld [vmem:[#allocation2 + $0x628] sm:$0xff]
    %v486 = vld [vmem:[#allocation2 + $0x630] sm:$0xff]
    %v487 = vld [vmem:[#allocation2 + $0x638] sm:$0xf]
    %v488 = vld [vmem:[#allocation2 + $0x63c] sm:$0xff]
    %v489 = vld [vmem:[#allocation2 + $0x644] sm:$0xff]
    %v490 = vld [vmem:[#allocation2 + $0x64c] sm:$0xff]
    %v491 = vld [vmem:[#allocation2 + $0x654] sm:$0xf]
    %v492 = vld [vmem:[#allocation2 + $0x658] sm:$0xff]
    %v493 = vld [vmem:[#allocation2 + $0x660] sm:$0xff]
    %v494 = vld [vmem:[#allocation2 + $0x668] sm:$0xff]
    %v495 = vld [vmem:[#allocation2 + $0x670] sm:$0xf]
    %v496 = vld [vmem:[#allocation2 + $0x674] sm:$0xff]
    %v497 = vld [vmem:[#allocation2 + $0x67c] sm:$0xff]
    %v498 = vld [vmem:[#allocation2 + $0x684] sm:$0xff]
    %v499 = vld [vmem:[#allocation2 + $0x68c] sm:$0xf]
    %v500 = vld [vmem:[#allocation2 + $0x690] sm:$0xff]
    %v501 = vld [vmem:[#allocation2 + $0x698] sm:$0xff]
    %v502 = vld [vmem:[#allocation2 + $0x6a0] sm:$0xff]
    %v503 = vld [vmem:[#allocation2 + $0x6a8] sm:$0xf]
    %v504 = vld [vmem:[#allocation2 + $0x6ac] sm:$0xff]
    %v505 = vld [vmem:[#allocation2 + $0x6b4] sm:$0xff]
    %v506 = vld [vmem:[#allocation2 + $0x6bc] sm:$0xff]
    %v507 = vld [vmem:[#allocation2 + $0x6c4] sm:$0xf]
    %v508 = vld [vmem:[#allocation2 + $0x6c8] sm:$0xff]
    %v509 = vld [vmem:[#allocation2 + $0x6d0] sm:$0xff]
    %v510 = vld [vmem:[#allocation2 + $0x6d8] sm:$0xff]
    %v511 = vld [vmem:[#allocation2 + $0x6e0] sm:$0xf]
    %v512 = vld [vmem:[#allocation2 + $0x6e4] sm:$0xff]
    %v513 = vld [vmem:[#allocation2 + $0x6ec] sm:$0xff]
    %v514 = vld [vmem:[#allocation2 + $0x6f4] sm:$0xff]
    %v515 = vld [vmem:[#allocation2 + $0x6fc] sm:$0xf]
    %v516 = vld [vmem:[#allocation2 + $0x700] sm:$0xff]
    %v517 = vld [vmem:[#allocation2 + $0x708] sm:$0xff]
    %v518 = vld [vmem:[#allocation2 + $0x710] sm:$0xff]
    %v519 = vld [vmem:[#allocation2 + $0x718] sm:$0xf]
    %v520 = vld [vmem:[#allocation2 + $0x71c] sm:$0xff]
    %v521 = vld [vmem:[#allocation2 + $0x724] sm:$0xff]
    %v522 = vld [vmem:[#allocation2 + $0x72c] sm:$0xff]
    %v523 = vld [vmem:[#allocation2 + $0x734] sm:$0xf]
    %v524 = vld [vmem:[#allocation2 + $0x738] sm:$0xff]
    %v525 = vld [vmem:[#allocation2 + $0x740] sm:$0xff]
    %v526 = vld [vmem:[#allocation2 + $0x748] sm:$0xff]
    %v527 = vld [vmem:[#allocation2 + $0x750] sm:$0xf]
    %v528 = vld [vmem:[#allocation2 + $0x754] sm:$0xff]
    %v529 = vld [vmem:[#allocation2 + $0x75c] sm:$0xff]
    %v530 = vld [vmem:[#allocation2 + $0x764] sm:$0xff]
    %v531 = vld [vmem:[#allocation2 + $0x76c] sm:$0xf]
    %v532 = vld [vmem:[#allocation2 + $0x770] sm:$0xff]
    %v533 = vld [vmem:[#allocation2 + $0x778] sm:$0xff]
    %v534 = vld [vmem:[#allocation2 + $0x780] sm:$0xff]
    %v535 = vld [vmem:[#allocation2 + $0x788] sm:$0xf]
    %v536 = vld [vmem:[#allocation2 + $0x78c] sm:$0xff]
    %v537 = vld [vmem:[#allocation2 + $0x794] sm:$0xff]
    %v538 = vld [vmem:[#allocation2 + $0x79c] sm:$0xff]
    %v539 = vld [vmem:[#allocation2 + $0x7a4] sm:$0xf]
    %v540 = vld [vmem:[#allocation2 + $0x7a8] sm:$0xff]
    %v541 = vld [vmem:[#allocation2 + $0x7b0] sm:$0xff]
    %v542 = vld [vmem:[#allocation2 + $0x7b8] sm:$0xff]
    %v543 = vld [vmem:[#allocation2 + $0x7c0] sm:$0xf]
    %v544 = vld [vmem:[#allocation2 + $0x7c4] sm:$0xff]
    %v545 = vld [vmem:[#allocation2 + $0x7cc] sm:$0xff]
    %v546 = vld [vmem:[#allocation2 + $0x7d4] sm:$0xff]
    %v547 = vld [vmem:[#allocation2 + $0x7dc] sm:$0xf]
    %v548 = vld [vmem:[#allocation2 + $0x7e0] sm:$0xff]
    %v549 = vld [vmem:[#allocation2 + $0x7e8] sm:$0xff]
    %v550 = vld [vmem:[#allocation2 + $0x7f0] sm:$0xff]
    %v551 = vld [vmem:[#allocation2 + $0x7f8] sm:$0xf]
    %v552 = vld [vmem:[#allocation2 + $0x7fc] sm:$0xff]
    %v553 = vld [vmem:[#allocation2 + $0x804] sm:$0xff]
    %v554 = vld [vmem:[#allocation2 + $0x80c] sm:$0xff]
    %v555 = vld [vmem:[#allocation2 + $0x814] sm:$0xf]
    %v556 = vld [vmem:[#allocation2 + $0x818] sm:$0xff]
    %v557 = vld [vmem:[#allocation2 + $0x820] sm:$0xff]
    %v558 = vld [vmem:[#allocation2 + $0x828] sm:$0xff]
    %v559 = vld [vmem:[#allocation2 + $0x830] sm:$0xf]
    %v560 = vld [vmem:[#allocation2 + $0x834] sm:$0xff]
    %v561 = vld [vmem:[#allocation2 + $0x83c] sm:$0xff]
    %v562 = vld [vmem:[#allocation2 + $0x844] sm:$0xff]
    %v563 = vld [vmem:[#allocation2 + $0x84c] sm:$0xf]
    %v564 = vld [vmem:[#allocation2 + $0x850] sm:$0xff]
    %v565 = vld [vmem:[#allocation2 + $0x858] sm:$0xff]
    %v566 = vld [vmem:[#allocation2 + $0x860] sm:$0xff]
    %v567 = vld [vmem:[#allocation2 + $0x868] sm:$0xf]
    %v568 = vld [vmem:[#allocation2 + $0x86c] sm:$0xff]
    %v569 = vld [vmem:[#allocation2 + $0x874] sm:$0xff]
    %v570 = vld [vmem:[#allocation2 + $0x87c] sm:$0xff]
    %v571 = vld [vmem:[#allocation2 + $0x884] sm:$0xf]
    %v572 = vld [vmem:[#allocation2 + $0x888] sm:$0xff]
    %v573 = vld [vmem:[#allocation2 + $0x890] sm:$0xff]
    %v574 = vld [vmem:[#allocation2 + $0x898] sm:$0xff]
    %v575 = vld [vmem:[#allocation2 + $0x8a0] sm:$0xf]
    %v576 = vld [vmem:[#allocation2 + $0x8a4] sm:$0xff]
    %v577 = vld [vmem:[#allocation2 + $0x8ac] sm:$0xff]
    %v578 = vld [vmem:[#allocation2 + $0x8b4] sm:$0xff]
    %v579 = vld [vmem:[#allocation2 + $0x8bc] sm:$0xf]
    %v580 = vld [vmem:[#allocation2 + $0x8c0] sm:$0xff]
    %v581 = vld [vmem:[#allocation2 + $0x8c8] sm:$0xff]
    %v582 = vld [vmem:[#allocation2 + $0x8d0] sm:$0xff]
    %v583 = vld [vmem:[#allocation2 + $0x8d8] sm:$0xf]
    %v584 = vld [vmem:[#allocation2 + $0x8dc] sm:$0xff]
    %v585 = vld [vmem:[#allocation2 + $0x8e4] sm:$0xff]
    %v586 = vld [vmem:[#allocation2 + $0x8ec] sm:$0xff]
    %v587 = vld [vmem:[#allocation2 + $0x8f4] sm:$0xf]
    %v588 = vld [vmem:[#allocation2 + $0x8f8] sm:$0xff]
    %v589 = vld [vmem:[#allocation2 + $0x900] sm:$0xff]
    %v590 = vld [vmem:[#allocation2 + $0x908] sm:$0xff]
    %v591 = vld [vmem:[#allocation2 + $0x910] sm:$0xf]
    %v592 = vld [vmem:[#allocation2 + $0x914] sm:$0xff]
    %v593 = vld [vmem:[#allocation2 + $0x91c] sm:$0xff]
    %v594 = vld [vmem:[#allocation2 + $0x924] sm:$0xff]
    %v595 = vld [vmem:[#allocation2 + $0x92c] sm:$0xf]
    %v596 = vld [vmem:[#allocation2 + $0x930] sm:$0xff]
    %v597 = vld [vmem:[#allocation2 + $0x938] sm:$0xff]
    %v598 = vld [vmem:[#allocation2 + $0x940] sm:$0xff]
    %v599 = vld [vmem:[#allocation2 + $0x948] sm:$0xf]
    %v600 = vld [vmem:[#allocation2 + $0x94c] sm:$0xff]
    %v601 = vld [vmem:[#allocation2 + $0x954] sm:$0xff]
    %v602 = vld [vmem:[#allocation2 + $0x95c] sm:$0xff]
    %v603 = vld [vmem:[#allocation2 + $0x964] sm:$0xf]
    %v604 = vld [vmem:[#allocation2 + $0x968] sm:$0xff]
    %v605 = vld [vmem:[#allocation2 + $0x970] sm:$0xff]
    %v606 = vld [vmem:[#allocation2 + $0x978] sm:$0xff]
    %v607 = vld [vmem:[#allocation2 + $0x980] sm:$0xf]
    %v608 = vld [vmem:[#allocation2 + $0x984] sm:$0xff]
    %v609 = vld [vmem:[#allocation2 + $0x98c] sm:$0xff]
    %v610 = vld [vmem:[#allocation2 + $0x994] sm:$0xff]
    %v611 = vld [vmem:[#allocation2 + $0x99c] sm:$0xf]
    %v612 = vld [vmem:[#allocation2 + $0x9a0] sm:$0xff]
    %v613 = vld [vmem:[#allocation2 + $0x9a8] sm:$0xff]
    %v614 = vld [vmem:[#allocation2 + $0x9b0] sm:$0xff]
    %v615 = vld [vmem:[#allocation2 + $0x9b8] sm:$0xf]
    %v616 = vld [vmem:[#allocation2 + $0x9bc] sm:$0xff]
    %v617 = vld [vmem:[#allocation2 + $0x9c4] sm:$0xff]
    %v618 = vld [vmem:[#allocation2 + $0x9cc] sm:$0xff]
    %v619 = vld [vmem:[#allocation2 + $0x9d4] sm:$0xf]
    %v620 = vld [vmem:[#allocation2 + $0x9d8] sm:$0xff]
    %v621 = vld [vmem:[#allocation2 + $0x9e0] sm:$0xff]
    %v622 = vld [vmem:[#allocation2 + $0x9e8] sm:$0xff]
    %v623 = vld [vmem:[#allocation2 + $0x9f0] sm:$0xf]
    %v624 = vld [vmem:[#allocation2 + $0x9f4] sm:$0xff]
    %v625 = vld [vmem:[#allocation2 + $0x9fc] sm:$0xff]
    %v626 = vld [vmem:[#allocation2 + $0xa04] sm:$0xff]
    %v627 = vld [vmem:[#allocation2 + $0xa0c] sm:$0xf]
    %v628 = vld [vmem:[#allocation2 + $0xa10] sm:$0xff]
    %v629 = vld [vmem:[#allocation2 + $0xa18] sm:$0xff]
    %v630 = vld [vmem:[#allocation2 + $0xa20] sm:$0xff]
    %v631 = vld [vmem:[#allocation2 + $0xa28] sm:$0xf]
    %v632 = vld [vmem:[#allocation2 + $0xa2c] sm:$0xff]
    %v633 = vld [vmem:[#allocation2 + $0xa34] sm:$0xff]
    %v634 = vld [vmem:[#allocation2 + $0xa3c] sm:$0xff]
    %v635 = vld [vmem:[#allocation2 + $0xa44] sm:$0xf]
    %v636 = vld [vmem:[#allocation2 + $0xa48] sm:$0xff]
    %v637 = vld [vmem:[#allocation2 + $0xa50] sm:$0xff]
    %v638 = vld [vmem:[#allocation2 + $0xa58] sm:$0xff]
    %v639 = vld [vmem:[#allocation2 + $0xa60] sm:$0xf]
    %v640 = vld [vmem:[#allocation2 + $0xa64] sm:$0xff]
    %v641 = vld [vmem:[#allocation2 + $0xa6c] sm:$0xff]
    %v642 = vld [vmem:[#allocation2 + $0xa74] sm:$0xff]
    %v643 = vld [vmem:[#allocation2 + $0xa7c] sm:$0xf]
    %v644 = vld [vmem:[#allocation2 + $0xa80] sm:$0xff]
    %v645 = vld [vmem:[#allocation2 + $0xa88] sm:$0xff]
    %v646 = vld [vmem:[#allocation2 + $0xa90] sm:$0xff]
    %v647 = vld [vmem:[#allocation2 + $0xa98] sm:$0xf]
    %v648 = vld [vmem:[#allocation2 + $0xa9c] sm:$0xff]
    %v649 = vld [vmem:[#allocation2 + $0xaa4] sm:$0xff]
    %v650 = vld [vmem:[#allocation2 + $0xaac] sm:$0xff]
    %v651 = vld [vmem:[#allocation2 + $0xab4] sm:$0xf]
    %v652 = vld [vmem:[#allocation4] sm:$0x7f]
    %v654 = vlaneseq
    %v655 = vshrl.u32 %v654, 7
    %v656 = vsub.s32 0, %v655
    %v657 = vrot.slane %v652, %v656
    %v658 = vlaneseq
    %v659 = vshrl.u32 %v658, 7
    %v660 = vsub.s32 1, %v659
    %v661 = vrot.slane %v652, %v660
    %v662 = vlaneseq
    %v663 = vshrl.u32 %v662, 7
    %v664 = vsub.s32 2, %v663
    %v665 = vrot.slane %v652, %v664
    %v666 = vlaneseq
    %v667 = vshrl.u32 %v666, 7
    %v668 = vsub.s32 3, %v667
    %v669 = vrot.slane %v652, %v668
    %v670 = vlaneseq
    %v671 = vshrl.u32 %v670, 7
    %v672 = vsub.s32 4, %v671
    %v673 = vrot.slane %v652, %v672
    %v674 = vlaneseq
    %v675 = vshrl.u32 %v674, 7
    %v676 = vsub.s32 5, %v675
    %v677 = vrot.slane %v652, %v676
    %v678 = vlaneseq
    %v679 = vshrl.u32 %v678, 7
    %v680 = vsub.s32 6, %v679
    %v681 = vrot.slane %v652, %v680
    %v753 = vunpack.c.l.b16 %v196
    %v754 = vunpack.c.h.b16 %v196
    %v755 = vunpack.c.l.b16 %v197
    %v756 = vunpack.c.h.b16 %v197
    %v757 = vunpack.c.l.b16 %v198
    %v758 = vunpack.c.h.b16 %v198
    %v759 = vunpack.c.l.b16 %v199
    %v760 = vunpack.c.l.b16 %v200
    %v761 = vunpack.c.h.b16 %v200
    %v762 = vunpack.c.l.b16 %v201
    %v763 = vunpack.c.h.b16 %v201
    %v764 = vunpack.c.l.b16 %v202
    %v765 = vunpack.c.h.b16 %v202
    %v766 = vunpack.c.l.b16 %v203
    %v767 = vunpack.c.l.b16 %v204
    %v768 = vunpack.c.h.b16 %v204
    %v769 = vunpack.c.l.b16 %v205
    %v770 = vunpack.c.h.b16 %v205
    %v771 = vunpack.c.l.b16 %v206
    %v772 = vunpack.c.h.b16 %v206
    %v773 = vunpack.c.l.b16 %v207
    %v774 = vunpack.c.l.b16 %v208
    %v775 = vunpack.c.h.b16 %v208
    %v776 = vunpack.c.l.b16 %v209
    %v777 = vunpack.c.h.b16 %v209
    %v778 = vunpack.c.l.b16 %v210
    %v779 = vunpack.c.h.b16 %v210
    %v780 = vunpack.c.l.b16 %v211
    %v781 = vunpack.c.l.b16 %v212
    %v782 = vunpack.c.h.b16 %v212
    %v783 = vunpack.c.l.b16 %v213
    %v784 = vunpack.c.h.b16 %v213
    %v785 = vunpack.c.l.b16 %v214
    %v786 = vunpack.c.h.b16 %v214
    %v787 = vunpack.c.l.b16 %v215
    %v788 = vunpack.c.l.b16 %v216
    %v789 = vunpack.c.h.b16 %v216
    %v790 = vunpack.c.l.b16 %v217
    %v791 = vunpack.c.h.b16 %v217
    %v792 = vunpack.c.l.b16 %v218
    %v793 = vunpack.c.h.b16 %v218
    %v794 = vunpack.c.l.b16 %v219
    %v795 = vunpack.c.l.b16 %v220
    %v796 = vunpack.c.h.b16 %v220
    %v797 = vunpack.c.l.b16 %v221
    %v798 = vunpack.c.h.b16 %v221
    %v799 = vunpack.c.l.b16 %v222
    %v800 = vunpack.c.h.b16 %v222
    %v801 = vunpack.c.l.b16 %v223
    %v802 = vunpack.c.l.b16 %v224
    %v803 = vunpack.c.h.b16 %v224
    %v804 = vunpack.c.l.b16 %v225
    %v805 = vunpack.c.h.b16 %v225
    %v806 = vunpack.c.l.b16 %v226
    %v807 = vunpack.c.h.b16 %v226
    %v808 = vunpack.c.l.b16 %v227
    %v809 = vunpack.c.l.b16 %v228
    %v810 = vunpack.c.h.b16 %v228
    %v811 = vunpack.c.l.b16 %v229
    %v812 = vunpack.c.h.b16 %v229
    %v813 = vunpack.c.l.b16 %v230
    %v814 = vunpack.c.h.b16 %v230
    %v815 = vunpack.c.l.b16 %v231
    %v816 = vunpack.c.l.b16 %v232
    %v817 = vunpack.c.h.b16 %v232
    %v818 = vunpack.c.l.b16 %v233
    %v819 = vunpack.c.h.b16 %v233
    %v820 = vunpack.c.l.b16 %v234
    %v821 = vunpack.c.h.b16 %v234
    %v822 = vunpack.c.l.b16 %v235
    %v823 = vunpack.c.l.b16 %v236
    %v824 = vunpack.c.h.b16 %v236
    %v825 = vunpack.c.l.b16 %v237
    %v826 = vunpack.c.h.b16 %v237
    %v827 = vunpack.c.l.b16 %v238
    %v828 = vunpack.c.h.b16 %v238
    %v829 = vunpack.c.l.b16 %v239
    %v830 = vunpack.c.l.b16 %v240
    %v831 = vunpack.c.h.b16 %v240
    %v832 = vunpack.c.l.b16 %v241
    %v833 = vunpack.c.h.b16 %v241
    %v834 = vunpack.c.l.b16 %v242
    %v835 = vunpack.c.h.b16 %v242
    %v836 = vunpack.c.l.b16 %v243
    %v837 = vunpack.c.l.b16 %v244
    %v838 = vunpack.c.h.b16 %v244
    %v839 = vunpack.c.l.b16 %v245
    %v840 = vunpack.c.h.b16 %v245
    %v841 = vunpack.c.l.b16 %v246
    %v842 = vunpack.c.h.b16 %v246
    %v843 = vunpack.c.l.b16 %v247
    %v844 = vunpack.c.l.b16 %v248
    %v845 = vunpack.c.h.b16 %v248
    %v846 = vunpack.c.l.b16 %v249
    %v847 = vunpack.c.h.b16 %v249
    %v848 = vunpack.c.l.b16 %v250
    %v849 = vunpack.c.h.b16 %v250
    %v850 = vunpack.c.l.b16 %v251
    %v851 = vunpack.c.l.b16 %v252
    %v852 = vunpack.c.h.b16 %v252
    %v853 = vunpack.c.l.b16 %v253
    %v854 = vunpack.c.h.b16 %v253
    %v855 = vunpack.c.l.b16 %v254
    %v856 = vunpack.c.h.b16 %v254
    %v857 = vunpack.c.l.b16 %v255
    %v858 = vunpack.c.l.b16 %v256
    %v859 = vunpack.c.h.b16 %v256
    %v860 = vunpack.c.l.b16 %v257
    %v861 = vunpack.c.h.b16 %v257
    %v862 = vunpack.c.l.b16 %v258
    %v863 = vunpack.c.h.b16 %v258
    %v864 = vunpack.c.l.b16 %v259
    %v865 = vpack.c.b16 %v760, %v753
    %v866 = vpack.c.b16 %v761, %v754
    %v867 = vpack.c.b16 %v762, %v755
    %v868 = vpack.c.b16 %v763, %v756
    %v869 = vpack.c.b16 %v764, %v757
    %v870 = vpack.c.b16 %v765, %v758
    %v871 = vpack.c.b16 %v766, %v759
    %v872 = vpack.c.b16 %v774, %v767
    %v873 = vpack.c.b16 %v775, %v768
    %v874 = vpack.c.b16 %v776, %v769
    %v875 = vpack.c.b16 %v777, %v770
    %v876 = vpack.c.b16 %v778, %v771
    %v877 = vpack.c.b16 %v779, %v772
    %v878 = vpack.c.b16 %v780, %v773
    %v879 = vpack.c.b16 %v788, %v781
    %v880 = vpack.c.b16 %v789, %v782
    %v881 = vpack.c.b16 %v790, %v783
    %v882 = vpack.c.b16 %v791, %v784
    %v883 = vpack.c.b16 %v792, %v785
    %v884 = vpack.c.b16 %v793, %v786
    %v885 = vpack.c.b16 %v794, %v787
    %v886 = vpack.c.b16 %v802, %v795
    %v887 = vpack.c.b16 %v803, %v796
    %v888 = vpack.c.b16 %v804, %v797
    %v889 = vpack.c.b16 %v805, %v798
    %v890 = vpack.c.b16 %v806, %v799
    %v891 = vpack.c.b16 %v807, %v800
    %v892 = vpack.c.b16 %v808, %v801
    %v893 = vpack.c.b16 %v816, %v809
    %v894 = vpack.c.b16 %v817, %v810
    %v895 = vpack.c.b16 %v818, %v811
    %v896 = vpack.c.b16 %v819, %v812
    %v897 = vpack.c.b16 %v820, %v813
    %v898 = vpack.c.b16 %v821, %v814
    %v899 = vpack.c.b16 %v822, %v815
    %v900 = vpack.c.b16 %v830, %v823
    %v901 = vpack.c.b16 %v831, %v824
    %v902 = vpack.c.b16 %v832, %v825
    %v903 = vpack.c.b16 %v833, %v826
    %v904 = vpack.c.b16 %v834, %v827
    %v905 = vpack.c.b16 %v835, %v828
    %v906 = vpack.c.b16 %v836, %v829
    %v907 = vpack.c.b16 %v844, %v837
    %v908 = vpack.c.b16 %v845, %v838
    %v909 = vpack.c.b16 %v846, %v839
    %v910 = vpack.c.b16 %v847, %v840
    %v911 = vpack.c.b16 %v848, %v841
    %v912 = vpack.c.b16 %v849, %v842
    %v913 = vpack.c.b16 %v850, %v843
    %v914 = vpack.c.b16 %v858, %v851
    %v915 = vpack.c.b16 %v859, %v852
    %v916 = vpack.c.b16 %v860, %v853
    %v917 = vpack.c.b16 %v861, %v854
    %v918 = vpack.c.b16 %v862, %v855
    %v919 = vpack.c.b16 %v863, %v856
    %v920 = vpack.c.b16 %v864, %v857
    %v1361 = vunpack.c.l.b16 %v260
    %v1362 = vunpack.c.h.b16 %v260
    %v1363 = vunpack.c.l.b16 %v261
    %v1364 = vunpack.c.h.b16 %v261
    %v1365 = vunpack.c.l.b16 %v262
    %v1366 = vunpack.c.h.b16 %v262
    %v1367 = vunpack.c.l.b16 %v263
    %v1368 = vunpack.c.l.b16 %v264
    %v1369 = vunpack.c.h.b16 %v264
    %v1370 = vunpack.c.l.b16 %v265
    %v1371 = vunpack.c.h.b16 %v265
    %v1372 = vunpack.c.l.b16 %v266
    %v1373 = vunpack.c.h.b16 %v266
    %v1374 = vunpack.c.l.b16 %v267
    %v1375 = vunpack.c.l.b16 %v268
    %v1376 = vunpack.c.h.b16 %v268
    %v1377 = vunpack.c.l.b16 %v269
    %v1378 = vunpack.c.h.b16 %v269
    %v1379 = vunpack.c.l.b16 %v270
    %v1380 = vunpack.c.h.b16 %v270
    %v1381 = vunpack.c.l.b16 %v271
    %v1382 = vunpack.c.l.b16 %v272
    %v1383 = vunpack.c.h.b16 %v272
    %v1384 = vunpack.c.l.b16 %v273
    %v1385 = vunpack.c.h.b16 %v273
    %v1386 = vunpack.c.l.b16 %v274
    %v1387 = vunpack.c.h.b16 %v274
    %v1388 = vunpack.c.l.b16 %v275
    %v1389 = vunpack.c.l.b16 %v276
    %v1390 = vunpack.c.h.b16 %v276
    %v1391 = vunpack.c.l.b16 %v277
    %v1392 = vunpack.c.h.b16 %v277
    %v1393 = vunpack.c.l.b16 %v278
    %v1394 = vunpack.c.h.b16 %v278
    %v1395 = vunpack.c.l.b16 %v279
    %v1396 = vunpack.c.l.b16 %v280
    %v1397 = vunpack.c.h.b16 %v280
    %v1398 = vunpack.c.l.b16 %v281
    %v1399 = vunpack.c.h.b16 %v281
    %v1400 = vunpack.c.l.b16 %v282
    %v1401 = vunpack.c.h.b16 %v282
    %v1402 = vunpack.c.l.b16 %v283
    %v1403 = vunpack.c.l.b16 %v284
    %v1404 = vunpack.c.h.b16 %v284
    %v1405 = vunpack.c.l.b16 %v285
    %v1406 = vunpack.c.h.b16 %v285
    %v1407 = vunpack.c.l.b16 %v286
    %v1408 = vunpack.c.h.b16 %v286
    %v1409 = vunpack.c.l.b16 %v287
    %v1410 = vunpack.c.l.b16 %v288
    %v1411 = vunpack.c.h.b16 %v288
    %v1412 = vunpack.c.l.b16 %v289
    %v1413 = vunpack.c.h.b16 %v289
    %v1414 = vunpack.c.l.b16 %v290
    %v1415 = vunpack.c.h.b16 %v290
    %v1416 = vunpack.c.l.b16 %v291
    %v1417 = vunpack.c.l.b16 %v292
    %v1418 = vunpack.c.h.b16 %v292
    %v1419 = vunpack.c.l.b16 %v293
    %v1420 = vunpack.c.h.b16 %v293
    %v1421 = vunpack.c.l.b16 %v294
    %v1422 = vunpack.c.h.b16 %v294
    %v1423 = vunpack.c.l.b16 %v295
    %v1424 = vunpack.c.l.b16 %v296
    %v1425 = vunpack.c.h.b16 %v296
    %v1426 = vunpack.c.l.b16 %v297
    %v1427 = vunpack.c.h.b16 %v297
    %v1428 = vunpack.c.l.b16 %v298
    %v1429 = vunpack.c.h.b16 %v298
    %v1430 = vunpack.c.l.b16 %v299
    %v1431 = vunpack.c.l.b16 %v300
    %v1432 = vunpack.c.h.b16 %v300
    %v1433 = vunpack.c.l.b16 %v301
    %v1434 = vunpack.c.h.b16 %v301
    %v1435 = vunpack.c.l.b16 %v302
    %v1436 = vunpack.c.h.b16 %v302
    %v1437 = vunpack.c.l.b16 %v303
    %v1438 = vunpack.c.l.b16 %v304
    %v1439 = vunpack.c.h.b16 %v304
    %v1440 = vunpack.c.l.b16 %v305
    %v1441 = vunpack.c.h.b16 %v305
    %v1442 = vunpack.c.l.b16 %v306
    %v1443 = vunpack.c.h.b16 %v306
    %v1444 = vunpack.c.l.b16 %v307
    %v1445 = vunpack.c.l.b16 %v308
    %v1446 = vunpack.c.h.b16 %v308
    %v1447 = vunpack.c.l.b16 %v309
    %v1448 = vunpack.c.h.b16 %v309
    %v1449 = vunpack.c.l.b16 %v310
    %v1450 = vunpack.c.h.b16 %v310
    %v1451 = vunpack.c.l.b16 %v311
    %v1452 = vunpack.c.l.b16 %v312
    %v1453 = vunpack.c.h.b16 %v312
    %v1454 = vunpack.c.l.b16 %v313
    %v1455 = vunpack.c.h.b16 %v313
    %v1456 = vunpack.c.l.b16 %v314
    %v1457 = vunpack.c.h.b16 %v314
    %v1458 = vunpack.c.l.b16 %v315
    %v1459 = vunpack.c.l.b16 %v316
    %v1460 = vunpack.c.h.b16 %v316
    %v1461 = vunpack.c.l.b16 %v317
    %v1462 = vunpack.c.h.b16 %v317
    %v1463 = vunpack.c.l.b16 %v318
    %v1464 = vunpack.c.h.b16 %v318
    %v1465 = vunpack.c.l.b16 %v319
    %v1466 = vunpack.c.l.b16 %v320
    %v1467 = vunpack.c.h.b16 %v320
    %v1468 = vunpack.c.l.b16 %v321
    %v1469 = vunpack.c.h.b16 %v321
    %v1470 = vunpack.c.l.b16 %v322
    %v1471 = vunpack.c.h.b16 %v322
    %v1472 = vunpack.c.l.b16 %v323
    %v1473 = vunpack.c.l.b16 %v324
    %v1474 = vunpack.c.h.b16 %v324
    %v1475 = vunpack.c.l.b16 %v325
    %v1476 = vunpack.c.h.b16 %v325
    %v1477 = vunpack.c.l.b16 %v326
    %v1478 = vunpack.c.h.b16 %v326
    %v1479 = vunpack.c.l.b16 %v327
    %v1480 = vunpack.c.l.b16 %v328
    %v1481 = vunpack.c.h.b16 %v328
    %v1482 = vunpack.c.l.b16 %v329
    %v1483 = vunpack.c.h.b16 %v329
    %v1484 = vunpack.c.l.b16 %v330
    %v1485 = vunpack.c.h.b16 %v330
    %v1486 = vunpack.c.l.b16 %v331
    %v1487 = vunpack.c.l.b16 %v332
    %v1488 = vunpack.c.h.b16 %v332
    %v1489 = vunpack.c.l.b16 %v333
    %v1490 = vunpack.c.h.b16 %v333
    %v1491 = vunpack.c.l.b16 %v334
    %v1492 = vunpack.c.h.b16 %v334
    %v1493 = vunpack.c.l.b16 %v335
    %v1494 = vunpack.c.l.b16 %v336
    %v1495 = vunpack.c.h.b16 %v336
    %v1496 = vunpack.c.l.b16 %v337
    %v1497 = vunpack.c.h.b16 %v337
    %v1498 = vunpack.c.l.b16 %v338
    %v1499 = vunpack.c.h.b16 %v338
    %v1500 = vunpack.c.l.b16 %v339
    %v1501 = vunpack.c.l.b16 %v340
    %v1502 = vunpack.c.h.b16 %v340
    %v1503 = vunpack.c.l.b16 %v341
    %v1504 = vunpack.c.h.b16 %v341
    %v1505 = vunpack.c.l.b16 %v342
    %v1506 = vunpack.c.h.b16 %v342
    %v1507 = vunpack.c.l.b16 %v343
    %v1508 = vunpack.c.l.b16 %v344
    %v1509 = vunpack.c.h.b16 %v344
    %v1510 = vunpack.c.l.b16 %v345
    %v1511 = vunpack.c.h.b16 %v345
    %v1512 = vunpack.c.l.b16 %v346
    %v1513 = vunpack.c.h.b16 %v346
    %v1514 = vunpack.c.l.b16 %v347
    %v1515 = vunpack.c.l.b16 %v348
    %v1516 = vunpack.c.h.b16 %v348
    %v1517 = vunpack.c.l.b16 %v349
    %v1518 = vunpack.c.h.b16 %v349
    %v1519 = vunpack.c.l.b16 %v350
    %v1520 = vunpack.c.h.b16 %v350
    %v1521 = vunpack.c.l.b16 %v351
    %v1522 = vunpack.c.l.b16 %v352
    %v1523 = vunpack.c.h.b16 %v352
    %v1524 = vunpack.c.l.b16 %v353
    %v1525 = vunpack.c.h.b16 %v353
    %v1526 = vunpack.c.l.b16 %v354
    %v1527 = vunpack.c.h.b16 %v354
    %v1528 = vunpack.c.l.b16 %v355
    %v1529 = vunpack.c.l.b16 %v356
    %v1530 = vunpack.c.h.b16 %v356
    %v1531 = vunpack.c.l.b16 %v357
    %v1532 = vunpack.c.h.b16 %v357
    %v1533 = vunpack.c.l.b16 %v358
    %v1534 = vunpack.c.h.b16 %v358
    %v1535 = vunpack.c.l.b16 %v359
    %v1536 = vunpack.c.l.b16 %v360
    %v1537 = vunpack.c.h.b16 %v360
    %v1538 = vunpack.c.l.b16 %v361
    %v1539 = vunpack.c.h.b16 %v361
    %v1540 = vunpack.c.l.b16 %v362
    %v1541 = vunpack.c.h.b16 %v362
    %v1542 = vunpack.c.l.b16 %v363
    %v1543 = vunpack.c.l.b16 %v364
    %v1544 = vunpack.c.h.b16 %v364
    %v1545 = vunpack.c.l.b16 %v365
    %v1546 = vunpack.c.h.b16 %v365
    %v1547 = vunpack.c.l.b16 %v366
    %v1548 = vunpack.c.h.b16 %v366
    %v1549 = vunpack.c.l.b16 %v367
    %v1550 = vunpack.c.l.b16 %v368
    %v1551 = vunpack.c.h.b16 %v368
    %v1552 = vunpack.c.l.b16 %v369
    %v1553 = vunpack.c.h.b16 %v369
    %v1554 = vunpack.c.l.b16 %v370
    %v1555 = vunpack.c.h.b16 %v370
    %v1556 = vunpack.c.l.b16 %v371
    %v1557 = vunpack.c.l.b16 %v372
    %v1558 = vunpack.c.h.b16 %v372
    %v1559 = vunpack.c.l.b16 %v373
    %v1560 = vunpack.c.h.b16 %v373
    %v1561 = vunpack.c.l.b16 %v374
    %v1562 = vunpack.c.h.b16 %v374
    %v1563 = vunpack.c.l.b16 %v375
    %v1564 = vunpack.c.l.b16 %v376
    %v1565 = vunpack.c.h.b16 %v376
    %v1566 = vunpack.c.l.b16 %v377
    %v1567 = vunpack.c.h.b16 %v377
    %v1568 = vunpack.c.l.b16 %v378
    %v1569 = vunpack.c.h.b16 %v378
    %v1570 = vunpack.c.l.b16 %v379
    %v1571 = vunpack.c.l.b16 %v380
    %v1572 = vunpack.c.h.b16 %v380
    %v1573 = vunpack.c.l.b16 %v381
    %v1574 = vunpack.c.h.b16 %v381
    %v1575 = vunpack.c.l.b16 %v382
    %v1576 = vunpack.c.h.b16 %v382
    %v1577 = vunpack.c.l.b16 %v383
    %v1578 = vunpack.c.l.b16 %v384
    %v1579 = vunpack.c.h.b16 %v384
    %v1580 = vunpack.c.l.b16 %v385
    %v1581 = vunpack.c.h.b16 %v385
    %v1582 = vunpack.c.l.b16 %v386
    %v1583 = vunpack.c.h.b16 %v386
    %v1584 = vunpack.c.l.b16 %v387
    %v1585 = vunpack.c.l.b16 %v388
    %v1586 = vunpack.c.h.b16 %v388
    %v1587 = vunpack.c.l.b16 %v389
    %v1588 = vunpack.c.h.b16 %v389
    %v1589 = vunpack.c.l.b16 %v390
    %v1590 = vunpack.c.h.b16 %v390
    %v1591 = vunpack.c.l.b16 %v391
    %v1592 = vunpack.c.l.b16 %v392
    %v1593 = vunpack.c.h.b16 %v392
    %v1594 = vunpack.c.l.b16 %v393
    %v1595 = vunpack.c.h.b16 %v393
    %v1596 = vunpack.c.l.b16 %v394
    %v1597 = vunpack.c.h.b16 %v394
    %v1598 = vunpack.c.l.b16 %v395
    %v1599 = vunpack.c.l.b16 %v396
    %v1600 = vunpack.c.h.b16 %v396
    %v1601 = vunpack.c.l.b16 %v397
    %v1602 = vunpack.c.h.b16 %v397
    %v1603 = vunpack.c.l.b16 %v398
    %v1604 = vunpack.c.h.b16 %v398
    %v1605 = vunpack.c.l.b16 %v399
    %v1606 = vunpack.c.l.b16 %v400
    %v1607 = vunpack.c.h.b16 %v400
    %v1608 = vunpack.c.l.b16 %v401
    %v1609 = vunpack.c.h.b16 %v401
    %v1610 = vunpack.c.l.b16 %v402
    %v1611 = vunpack.c.h.b16 %v402
    %v1612 = vunpack.c.l.b16 %v403
    %v1613 = vunpack.c.l.b16 %v404
    %v1614 = vunpack.c.h.b16 %v404
    %v1615 = vunpack.c.l.b16 %v405
    %v1616 = vunpack.c.h.b16 %v405
    %v1617 = vunpack.c.l.b16 %v406
    %v1618 = vunpack.c.h.b16 %v406
    %v1619 = vunpack.c.l.b16 %v407
    %v1620 = vunpack.c.l.b16 %v408
    %v1621 = vunpack.c.h.b16 %v408
    %v1622 = vunpack.c.l.b16 %v409
    %v1623 = vunpack.c.h.b16 %v409
    %v1624 = vunpack.c.l.b16 %v410
    %v1625 = vunpack.c.h.b16 %v410
    %v1626 = vunpack.c.l.b16 %v411
    %v1627 = vunpack.c.l.b16 %v412
    %v1628 = vunpack.c.h.b16 %v412
    %v1629 = vunpack.c.l.b16 %v413
    %v1630 = vunpack.c.h.b16 %v413
    %v1631 = vunpack.c.l.b16 %v414
    %v1632 = vunpack.c.h.b16 %v414
    %v1633 = vunpack.c.l.b16 %v415
    %v1634 = vunpack.c.l.b16 %v416
    %v1635 = vunpack.c.h.b16 %v416
    %v1636 = vunpack.c.l.b16 %v417
    %v1637 = vunpack.c.h.b16 %v417
    %v1638 = vunpack.c.l.b16 %v418
    %v1639 = vunpack.c.h.b16 %v418
    %v1640 = vunpack.c.l.b16 %v419
    %v1641 = vunpack.c.l.b16 %v420
    %v1642 = vunpack.c.h.b16 %v420
    %v1643 = vunpack.c.l.b16 %v421
    %v1644 = vunpack.c.h.b16 %v421
    %v1645 = vunpack.c.l.b16 %v422
    %v1646 = vunpack.c.h.b16 %v422
    %v1647 = vunpack.c.l.b16 %v423
    %v1648 = vunpack.c.l.b16 %v424
    %v1649 = vunpack.c.h.b16 %v424
    %v1650 = vunpack.c.l.b16 %v425
    %v1651 = vunpack.c.h.b16 %v425
    %v1652 = vunpack.c.l.b16 %v426
    %v1653 = vunpack.c.h.b16 %v426
    %v1654 = vunpack.c.l.b16 %v427
    %v1655 = vunpack.c.l.b16 %v428
    %v1656 = vunpack.c.h.b16 %v428
    %v1657 = vunpack.c.l.b16 %v429
    %v1658 = vunpack.c.h.b16 %v429
    %v1659 = vunpack.c.l.b16 %v430
    %v1660 = vunpack.c.h.b16 %v430
    %v1661 = vunpack.c.l.b16 %v431
    %v1662 = vunpack.c.l.b16 %v432
    %v1663 = vunpack.c.h.b16 %v432
    %v1664 = vunpack.c.l.b16 %v433
    %v1665 = vunpack.c.h.b16 %v433
    %v1666 = vunpack.c.l.b16 %v434
    %v1667 = vunpack.c.h.b16 %v434
    %v1668 = vunpack.c.l.b16 %v435
    %v1669 = vunpack.c.l.b16 %v436
    %v1670 = vunpack.c.h.b16 %v436
    %v1671 = vunpack.c.l.b16 %v437
    %v1672 = vunpack.c.h.b16 %v437
    %v1673 = vunpack.c.l.b16 %v438
    %v1674 = vunpack.c.h.b16 %v438
    %v1675 = vunpack.c.l.b16 %v439
    %v1676 = vunpack.c.l.b16 %v440
    %v1677 = vunpack.c.h.b16 %v440
    %v1678 = vunpack.c.l.b16 %v441
    %v1679 = vunpack.c.h.b16 %v441
    %v1680 = vunpack.c.l.b16 %v442
    %v1681 = vunpack.c.h.b16 %v442
    %v1682 = vunpack.c.l.b16 %v443
    %v1683 = vunpack.c.l.b16 %v444
    %v1684 = vunpack.c.h.b16 %v444
    %v1685 = vunpack.c.l.b16 %v445
    %v1686 = vunpack.c.h.b16 %v445
    %v1687 = vunpack.c.l.b16 %v446
    %v1688 = vunpack.c.h.b16 %v446
    %v1689 = vunpack.c.l.b16 %v447
    %v1690 = vunpack.c.l.b16 %v448
    %v1691 = vunpack.c.h.b16 %v448
    %v1692 = vunpack.c.l.b16 %v449
    %v1693 = vunpack.c.h.b16 %v449
    %v1694 = vunpack.c.l.b16 %v450
    %v1695 = vunpack.c.h.b16 %v450
    %v1696 = vunpack.c.l.b16 %v451
    %v1697 = vunpack.c.l.b16 %v452
    %v1698 = vunpack.c.h.b16 %v452
    %v1699 = vunpack.c.l.b16 %v453
    %v1700 = vunpack.c.h.b16 %v453
    %v1701 = vunpack.c.l.b16 %v454
    %v1702 = vunpack.c.h.b16 %v454
    %v1703 = vunpack.c.l.b16 %v455
    %v1704 = vunpack.c.l.b16 %v456
    %v1705 = vunpack.c.h.b16 %v456
    %v1706 = vunpack.c.l.b16 %v457
    %v1707 = vunpack.c.h.b16 %v457
    %v1708 = vunpack.c.l.b16 %v458
    %v1709 = vunpack.c.h.b16 %v458
    %v1710 = vunpack.c.l.b16 %v459
    %v1711 = vunpack.c.l.b16 %v460
    %v1712 = vunpack.c.h.b16 %v460
    %v1713 = vunpack.c.l.b16 %v461
    %v1714 = vunpack.c.h.b16 %v461
    %v1715 = vunpack.c.l.b16 %v462
    %v1716 = vunpack.c.h.b16 %v462
    %v1717 = vunpack.c.l.b16 %v463
    %v1718 = vunpack.c.l.b16 %v464
    %v1719 = vunpack.c.h.b16 %v464
    %v1720 = vunpack.c.l.b16 %v465
    %v1721 = vunpack.c.h.b16 %v465
    %v1722 = vunpack.c.l.b16 %v466
    %v1723 = vunpack.c.h.b16 %v466
    %v1724 = vunpack.c.l.b16 %v467
    %v1725 = vunpack.c.l.b16 %v468
    %v1726 = vunpack.c.h.b16 %v468
    %v1727 = vunpack.c.l.b16 %v469
    %v1728 = vunpack.c.h.b16 %v469
    %v1729 = vunpack.c.l.b16 %v470
    %v1730 = vunpack.c.h.b16 %v470
    %v1731 = vunpack.c.l.b16 %v471
    %v1732 = vunpack.c.l.b16 %v472
    %v1733 = vunpack.c.h.b16 %v472
    %v1734 = vunpack.c.l.b16 %v473
    %v1735 = vunpack.c.h.b16 %v473
    %v1736 = vunpack.c.l.b16 %v474
    %v1737 = vunpack.c.h.b16 %v474
    %v1738 = vunpack.c.l.b16 %v475
    %v1739 = vunpack.c.l.b16 %v476
    %v1740 = vunpack.c.h.b16 %v476
    %v1741 = vunpack.c.l.b16 %v477
    %v1742 = vunpack.c.h.b16 %v477
    %v1743 = vunpack.c.l.b16 %v478
    %v1744 = vunpack.c.h.b16 %v478
    %v1745 = vunpack.c.l.b16 %v479
    %v1746 = vunpack.c.l.b16 %v480
    %v1747 = vunpack.c.h.b16 %v480
    %v1748 = vunpack.c.l.b16 %v481
    %v1749 = vunpack.c.h.b16 %v481
    %v1750 = vunpack.c.l.b16 %v482
    %v1751 = vunpack.c.h.b16 %v482
    %v1752 = vunpack.c.l.b16 %v483
    %v1753 = vunpack.c.l.b16 %v484
    %v1754 = vunpack.c.h.b16 %v484
    %v1755 = vunpack.c.l.b16 %v485
    %v1756 = vunpack.c.h.b16 %v485
    %v1757 = vunpack.c.l.b16 %v486
    %v1758 = vunpack.c.h.b16 %v486
    %v1759 = vunpack.c.l.b16 %v487
    %v1760 = vunpack.c.l.b16 %v488
    %v1761 = vunpack.c.h.b16 %v488
    %v1762 = vunpack.c.l.b16 %v489
    %v1763 = vunpack.c.h.b16 %v489
    %v1764 = vunpack.c.l.b16 %v490
    %v1765 = vunpack.c.h.b16 %v490
    %v1766 = vunpack.c.l.b16 %v491
    %v1767 = vunpack.c.l.b16 %v492
    %v1768 = vunpack.c.h.b16 %v492
    %v1769 = vunpack.c.l.b16 %v493
    %v1770 = vunpack.c.h.b16 %v493
    %v1771 = vunpack.c.l.b16 %v494
    %v1772 = vunpack.c.h.b16 %v494
    %v1773 = vunpack.c.l.b16 %v495
    %v1774 = vunpack.c.l.b16 %v496
    %v1775 = vunpack.c.h.b16 %v496
    %v1776 = vunpack.c.l.b16 %v497
    %v1777 = vunpack.c.h.b16 %v497
    %v1778 = vunpack.c.l.b16 %v498
    %v1779 = vunpack.c.h.b16 %v498
    %v1780 = vunpack.c.l.b16 %v499
    %v1781 = vunpack.c.l.b16 %v500
    %v1782 = vunpack.c.h.b16 %v500
    %v1783 = vunpack.c.l.b16 %v501
    %v1784 = vunpack.c.h.b16 %v501
    %v1785 = vunpack.c.l.b16 %v502
    %v1786 = vunpack.c.h.b16 %v502
    %v1787 = vunpack.c.l.b16 %v503
    %v1788 = vunpack.c.l.b16 %v504
    %v1789 = vunpack.c.h.b16 %v504
    %v1790 = vunpack.c.l.b16 %v505
    %v1791 = vunpack.c.h.b16 %v505
    %v1792 = vunpack.c.l.b16 %v506
    %v1793 = vunpack.c.h.b16 %v506
    %v1794 = vunpack.c.l.b16 %v507
    %v1795 = vunpack.c.l.b16 %v508
    %v1796 = vunpack.c.h.b16 %v508
    %v1797 = vunpack.c.l.b16 %v509
    %v1798 = vunpack.c.h.b16 %v509
    %v1799 = vunpack.c.l.b16 %v510
    %v1800 = vunpack.c.h.b16 %v510
    %v1801 = vunpack.c.l.b16 %v511
    %v1802 = vunpack.c.l.b16 %v512
    %v1803 = vunpack.c.h.b16 %v512
    %v1804 = vunpack.c.l.b16 %v513
    %v1805 = vunpack.c.h.b16 %v513
    %v1806 = vunpack.c.l.b16 %v514
    %v1807 = vunpack.c.h.b16 %v514
    %v1808 = vunpack.c.l.b16 %v515
    %v1809 = vunpack.c.l.b16 %v516
    %v1810 = vunpack.c.h.b16 %v516
    %v1811 = vunpack.c.l.b16 %v517
    %v1812 = vunpack.c.h.b16 %v517
    %v1813 = vunpack.c.l.b16 %v518
    %v1814 = vunpack.c.h.b16 %v518
    %v1815 = vunpack.c.l.b16 %v519
    %v1816 = vunpack.c.l.b16 %v520
    %v1817 = vunpack.c.h.b16 %v520
    %v1818 = vunpack.c.l.b16 %v521
    %v1819 = vunpack.c.h.b16 %v521
    %v1820 = vunpack.c.l.b16 %v522
    %v1821 = vunpack.c.h.b16 %v522
    %v1822 = vunpack.c.l.b16 %v523
    %v1823 = vunpack.c.l.b16 %v524
    %v1824 = vunpack.c.h.b16 %v524
    %v1825 = vunpack.c.l.b16 %v525
    %v1826 = vunpack.c.h.b16 %v525
    %v1827 = vunpack.c.l.b16 %v526
    %v1828 = vunpack.c.h.b16 %v526
    %v1829 = vunpack.c.l.b16 %v527
    %v1830 = vunpack.c.l.b16 %v528
    %v1831 = vunpack.c.h.b16 %v528
    %v1832 = vunpack.c.l.b16 %v529
    %v1833 = vunpack.c.h.b16 %v529
    %v1834 = vunpack.c.l.b16 %v530
    %v1835 = vunpack.c.h.b16 %v530
    %v1836 = vunpack.c.l.b16 %v531
    %v1837 = vunpack.c.l.b16 %v532
    %v1838 = vunpack.c.h.b16 %v532
    %v1839 = vunpack.c.l.b16 %v533
    %v1840 = vunpack.c.h.b16 %v533
    %v1841 = vunpack.c.l.b16 %v534
    %v1842 = vunpack.c.h.b16 %v534
    %v1843 = vunpack.c.l.b16 %v535
    %v1844 = vunpack.c.l.b16 %v536
    %v1845 = vunpack.c.h.b16 %v536
    %v1846 = vunpack.c.l.b16 %v537
    %v1847 = vunpack.c.h.b16 %v537
    %v1848 = vunpack.c.l.b16 %v538
    %v1849 = vunpack.c.h.b16 %v538
    %v1850 = vunpack.c.l.b16 %v539
    %v1851 = vunpack.c.l.b16 %v540
    %v1852 = vunpack.c.h.b16 %v540
    %v1853 = vunpack.c.l.b16 %v541
    %v1854 = vunpack.c.h.b16 %v541
    %v1855 = vunpack.c.l.b16 %v542
    %v1856 = vunpack.c.h.b16 %v542
    %v1857 = vunpack.c.l.b16 %v543
    %v1858 = vunpack.c.l.b16 %v544
    %v1859 = vunpack.c.h.b16 %v544
    %v1860 = vunpack.c.l.b16 %v545
    %v1861 = vunpack.c.h.b16 %v545
    %v1862 = vunpack.c.l.b16 %v546
    %v1863 = vunpack.c.h.b16 %v546
    %v1864 = vunpack.c.l.b16 %v547
    %v1865 = vunpack.c.l.b16 %v548
    %v1866 = vunpack.c.h.b16 %v548
    %v1867 = vunpack.c.l.b16 %v549
    %v1868 = vunpack.c.h.b16 %v549
    %v1869 = vunpack.c.l.b16 %v550
    %v1870 = vunpack.c.h.b16 %v550
    %v1871 = vunpack.c.l.b16 %v551
    %v1872 = vunpack.c.l.b16 %v552
    %v1873 = vunpack.c.h.b16 %v552
    %v1874 = vunpack.c.l.b16 %v553
    %v1875 = vunpack.c.h.b16 %v553
    %v1876 = vunpack.c.l.b16 %v554
    %v1877 = vunpack.c.h.b16 %v554
    %v1878 = vunpack.c.l.b16 %v555
    %v1879 = vunpack.c.l.b16 %v556
    %v1880 = vunpack.c.h.b16 %v556
    %v1881 = vunpack.c.l.b16 %v557
    %v1882 = vunpack.c.h.b16 %v557
    %v1883 = vunpack.c.l.b16 %v558
    %v1884 = vunpack.c.h.b16 %v558
    %v1885 = vunpack.c.l.b16 %v559
    %v1886 = vunpack.c.l.b16 %v560
    %v1887 = vunpack.c.h.b16 %v560
    %v1888 = vunpack.c.l.b16 %v561
    %v1889 = vunpack.c.h.b16 %v561
    %v1890 = vunpack.c.l.b16 %v562
    %v1891 = vunpack.c.h.b16 %v562
    %v1892 = vunpack.c.l.b16 %v563
    %v1893 = vunpack.c.l.b16 %v564
    %v1894 = vunpack.c.h.b16 %v564
    %v1895 = vunpack.c.l.b16 %v565
    %v1896 = vunpack.c.h.b16 %v565
    %v1897 = vunpack.c.l.b16 %v566
    %v1898 = vunpack.c.h.b16 %v566
    %v1899 = vunpack.c.l.b16 %v567
    %v1900 = vunpack.c.l.b16 %v568
    %v1901 = vunpack.c.h.b16 %v568
    %v1902 = vunpack.c.l.b16 %v569
    %v1903 = vunpack.c.h.b16 %v569
    %v1904 = vunpack.c.l.b16 %v570
    %v1905 = vunpack.c.h.b16 %v570
    %v1906 = vunpack.c.l.b16 %v571
    %v1907 = vunpack.c.l.b16 %v572
    %v1908 = vunpack.c.h.b16 %v572
    %v1909 = vunpack.c.l.b16 %v573
    %v1910 = vunpack.c.h.b16 %v573
    %v1911 = vunpack.c.l.b16 %v574
    %v1912 = vunpack.c.h.b16 %v574
    %v1913 = vunpack.c.l.b16 %v575
    %v1914 = vunpack.c.l.b16 %v576
    %v1915 = vunpack.c.h.b16 %v576
    %v1916 = vunpack.c.l.b16 %v577
    %v1917 = vunpack.c.h.b16 %v577
    %v1918 = vunpack.c.l.b16 %v578
    %v1919 = vunpack.c.h.b16 %v578
    %v1920 = vunpack.c.l.b16 %v579
    %v1921 = vunpack.c.l.b16 %v580
    %v1922 = vunpack.c.h.b16 %v580
    %v1923 = vunpack.c.l.b16 %v581
    %v1924 = vunpack.c.h.b16 %v581
    %v1925 = vunpack.c.l.b16 %v582
    %v1926 = vunpack.c.h.b16 %v582
    %v1927 = vunpack.c.l.b16 %v583
    %v1928 = vunpack.c.l.b16 %v584
    %v1929 = vunpack.c.h.b16 %v584
    %v1930 = vunpack.c.l.b16 %v585
    %v1931 = vunpack.c.h.b16 %v585
    %v1932 = vunpack.c.l.b16 %v586
    %v1933 = vunpack.c.h.b16 %v586
    %v1934 = vunpack.c.l.b16 %v587
    %v1935 = vunpack.c.l.b16 %v588
    %v1936 = vunpack.c.h.b16 %v588
    %v1937 = vunpack.c.l.b16 %v589
    %v1938 = vunpack.c.h.b16 %v589
    %v1939 = vunpack.c.l.b16 %v590
    %v1940 = vunpack.c.h.b16 %v590
    %v1941 = vunpack.c.l.b16 %v591
    %v1942 = vunpack.c.l.b16 %v592
    %v1943 = vunpack.c.h.b16 %v592
    %v1944 = vunpack.c.l.b16 %v593
    %v1945 = vunpack.c.h.b16 %v593
    %v1946 = vunpack.c.l.b16 %v594
    %v1947 = vunpack.c.h.b16 %v594
    %v1948 = vunpack.c.l.b16 %v595
    %v1949 = vunpack.c.l.b16 %v596
    %v1950 = vunpack.c.h.b16 %v596
    %v1951 = vunpack.c.l.b16 %v597
    %v1952 = vunpack.c.h.b16 %v597
    %v1953 = vunpack.c.l.b16 %v598
    %v1954 = vunpack.c.h.b16 %v598
    %v1955 = vunpack.c.l.b16 %v599
    %v1956 = vunpack.c.l.b16 %v600
    %v1957 = vunpack.c.h.b16 %v600
    %v1958 = vunpack.c.l.b16 %v601
    %v1959 = vunpack.c.h.b16 %v601
    %v1960 = vunpack.c.l.b16 %v602
    %v1961 = vunpack.c.h.b16 %v602
    %v1962 = vunpack.c.l.b16 %v603
    %v1963 = vunpack.c.l.b16 %v604
    %v1964 = vunpack.c.h.b16 %v604
    %v1965 = vunpack.c.l.b16 %v605
    %v1966 = vunpack.c.h.b16 %v605
    %v1967 = vunpack.c.l.b16 %v606
    %v1968 = vunpack.c.h.b16 %v606
    %v1969 = vunpack.c.l.b16 %v607
    %v1970 = vunpack.c.l.b16 %v608
    %v1971 = vunpack.c.h.b16 %v608
    %v1972 = vunpack.c.l.b16 %v609
    %v1973 = vunpack.c.h.b16 %v609
    %v1974 = vunpack.c.l.b16 %v610
    %v1975 = vunpack.c.h.b16 %v610
    %v1976 = vunpack.c.l.b16 %v611
    %v1977 = vunpack.c.l.b16 %v612
    %v1978 = vunpack.c.h.b16 %v612
    %v1979 = vunpack.c.l.b16 %v613
    %v1980 = vunpack.c.h.b16 %v613
    %v1981 = vunpack.c.l.b16 %v614
    %v1982 = vunpack.c.h.b16 %v614
    %v1983 = vunpack.c.l.b16 %v615
    %v1984 = vunpack.c.l.b16 %v616
    %v1985 = vunpack.c.h.b16 %v616
    %v1986 = vunpack.c.l.b16 %v617
    %v1987 = vunpack.c.h.b16 %v617
    %v1988 = vunpack.c.l.b16 %v618
    %v1989 = vunpack.c.h.b16 %v618
    %v1990 = vunpack.c.l.b16 %v619
    %v1991 = vunpack.c.l.b16 %v620
    %v1992 = vunpack.c.h.b16 %v620
    %v1993 = vunpack.c.l.b16 %v621
    %v1994 = vunpack.c.h.b16 %v621
    %v1995 = vunpack.c.l.b16 %v622
    %v1996 = vunpack.c.h.b16 %v622
    %v1997 = vunpack.c.l.b16 %v623
    %v1998 = vunpack.c.l.b16 %v624
    %v1999 = vunpack.c.h.b16 %v624
    %v2000 = vunpack.c.l.b16 %v625
    %v2001 = vunpack.c.h.b16 %v625
    %v2002 = vunpack.c.l.b16 %v626
    %v2003 = vunpack.c.h.b16 %v626
    %v2004 = vunpack.c.l.b16 %v627
    %v2005 = vunpack.c.l.b16 %v628
    %v2006 = vunpack.c.h.b16 %v628
    %v2007 = vunpack.c.l.b16 %v629
    %v2008 = vunpack.c.h.b16 %v629
    %v2009 = vunpack.c.l.b16 %v630
    %v2010 = vunpack.c.h.b16 %v630
    %v2011 = vunpack.c.l.b16 %v631
    %v2012 = vunpack.c.l.b16 %v632
    %v2013 = vunpack.c.h.b16 %v632
    %v2014 = vunpack.c.l.b16 %v633
    %v2015 = vunpack.c.h.b16 %v633
    %v2016 = vunpack.c.l.b16 %v634
    %v2017 = vunpack.c.h.b16 %v634
    %v2018 = vunpack.c.l.b16 %v635
    %v2019 = vunpack.c.l.b16 %v636
    %v2020 = vunpack.c.h.b16 %v636
    %v2021 = vunpack.c.l.b16 %v637
    %v2022 = vunpack.c.h.b16 %v637
    %v2023 = vunpack.c.l.b16 %v638
    %v2024 = vunpack.c.h.b16 %v638
    %v2025 = vunpack.c.l.b16 %v639
    %v2026 = vunpack.c.l.b16 %v640
    %v2027 = vunpack.c.h.b16 %v640
    %v2028 = vunpack.c.l.b16 %v641
    %v2029 = vunpack.c.h.b16 %v641
    %v2030 = vunpack.c.l.b16 %v642
    %v2031 = vunpack.c.h.b16 %v642
    %v2032 = vunpack.c.l.b16 %v643
    %v2033 = vunpack.c.l.b16 %v644
    %v2034 = vunpack.c.h.b16 %v644
    %v2035 = vunpack.c.l.b16 %v645
    %v2036 = vunpack.c.h.b16 %v645
    %v2037 = vunpack.c.l.b16 %v646
    %v2038 = vunpack.c.h.b16 %v646
    %v2039 = vunpack.c.l.b16 %v647
    %v2040 = vunpack.c.l.b16 %v648
    %v2041 = vunpack.c.h.b16 %v648
    %v2042 = vunpack.c.l.b16 %v649
    %v2043 = vunpack.c.h.b16 %v649
    %v2044 = vunpack.c.l.b16 %v650
    %v2045 = vunpack.c.h.b16 %v650
    %v2046 = vunpack.c.l.b16 %v651
    %v2047 = vpack.c.b16 %v1368, %v1361
    %v2048 = vpack.c.b16 %v1369, %v1362
    %v2049 = vpack.c.b16 %v1370, %v1363
    %v2050 = vpack.c.b16 %v1371, %v1364
    %v2051 = vpack.c.b16 %v1372, %v1365
    %v2052 = vpack.c.b16 %v1373, %v1366
    %v2053 = vpack.c.b16 %v1374, %v1367
    %v2054 = vpack.c.b16 %v1382, %v1375
    %v2055 = vpack.c.b16 %v1383, %v1376
    %v2056 = vpack.c.b16 %v1384, %v1377
    %v2057 = vpack.c.b16 %v1385, %v1378
    %v2058 = vpack.c.b16 %v1386, %v1379
    %v2059 = vpack.c.b16 %v1387, %v1380
    %v2060 = vpack.c.b16 %v1388, %v1381
    %v2061 = vpack.c.b16 %v1396, %v1389
    %v2062 = vpack.c.b16 %v1397, %v1390
    %v2063 = vpack.c.b16 %v1398, %v1391
    %v2064 = vpack.c.b16 %v1399, %v1392
    %v2065 = vpack.c.b16 %v1400, %v1393
    %v2066 = vpack.c.b16 %v1401, %v1394
    %v2067 = vpack.c.b16 %v1402, %v1395
    %v2068 = vpack.c.b16 %v1410, %v1403
    %v2069 = vpack.c.b16 %v1411, %v1404
    %v2070 = vpack.c.b16 %v1412, %v1405
    %v2071 = vpack.c.b16 %v1413, %v1406
    %v2072 = vpack.c.b16 %v1414, %v1407
    %v2073 = vpack.c.b16 %v1415, %v1408
    %v2074 = vpack.c.b16 %v1416, %v1409
    %v2075 = vpack.c.b16 %v1424, %v1417
    %v2076 = vpack.c.b16 %v1425, %v1418
    %v2077 = vpack.c.b16 %v1426, %v1419
    %v2078 = vpack.c.b16 %v1427, %v1420
    %v2079 = vpack.c.b16 %v1428, %v1421
    %v2080 = vpack.c.b16 %v1429, %v1422
    %v2081 = vpack.c.b16 %v1430, %v1423
    %v2082 = vpack.c.b16 %v1438, %v1431
    %v2083 = vpack.c.b16 %v1439, %v1432
    %v2084 = vpack.c.b16 %v1440, %v1433
    %v2085 = vpack.c.b16 %v1441, %v1434
    %v2086 = vpack.c.b16 %v1442, %v1435
    %v2087 = vpack.c.b16 %v1443, %v1436
    %v2088 = vpack.c.b16 %v1444, %v1437
    %v2089 = vpack.c.b16 %v1452, %v1445
    %v2090 = vpack.c.b16 %v1453, %v1446
    %v2091 = vpack.c.b16 %v1454, %v1447
    %v2092 = vpack.c.b16 %v1455, %v1448
    %v2093 = vpack.c.b16 %v1456, %v1449
    %v2094 = vpack.c.b16 %v1457, %v1450
    %v2095 = vpack.c.b16 %v1458, %v1451
    %v2096 = vpack.c.b16 %v1466, %v1459
    %v2097 = vpack.c.b16 %v1467, %v1460
    %v2098 = vpack.c.b16 %v1468, %v1461
    %v2099 = vpack.c.b16 %v1469, %v1462
    %v2100 = vpack.c.b16 %v1470, %v1463
    %v2101 = vpack.c.b16 %v1471, %v1464
    %v2102 = vpack.c.b16 %v1472, %v1465
    %v2103 = vpack.c.b16 %v1480, %v1473
    %v2104 = vpack.c.b16 %v1481, %v1474
    %v2105 = vpack.c.b16 %v1482, %v1475
    %v2106 = vpack.c.b16 %v1483, %v1476
    %v2107 = vpack.c.b16 %v1484, %v1477
    %v2108 = vpack.c.b16 %v1485, %v1478
    %v2109 = vpack.c.b16 %v1486, %v1479
    %v2110 = vpack.c.b16 %v1494, %v1487
    %v2111 = vpack.c.b16 %v1495, %v1488
    %v2112 = vpack.c.b16 %v1496, %v1489
    %v2113 = vpack.c.b16 %v1497, %v1490
    %v2114 = vpack.c.b16 %v1498, %v1491
    %v2115 = vpack.c.b16 %v1499, %v1492
    %v2116 = vpack.c.b16 %v1500, %v1493
    %v2117 = vpack.c.b16 %v1508, %v1501
    %v2118 = vpack.c.b16 %v1509, %v1502
    %v2119 = vpack.c.b16 %v1510, %v1503
    %v2120 = vpack.c.b16 %v1511, %v1504
    %v2121 = vpack.c.b16 %v1512, %v1505
    %v2122 = vpack.c.b16 %v1513, %v1506
    %v2123 = vpack.c.b16 %v1514, %v1507
    %v2124 = vpack.c.b16 %v1522, %v1515
    %v2125 = vpack.c.b16 %v1523, %v1516
    %v2126 = vpack.c.b16 %v1524, %v1517
    %v2127 = vpack.c.b16 %v1525, %v1518
    %v2128 = vpack.c.b16 %v1526, %v1519
    %v2129 = vpack.c.b16 %v1527, %v1520
    %v2130 = vpack.c.b16 %v1528, %v1521
    %v2131 = vpack.c.b16 %v1536, %v1529
    %v2132 = vpack.c.b16 %v1537, %v1530
    %v2133 = vpack.c.b16 %v1538, %v1531
    %v2134 = vpack.c.b16 %v1539, %v1532
    %v2135 = vpack.c.b16 %v1540, %v1533
    %v2136 = vpack.c.b16 %v1541, %v1534
    %v2137 = vpack.c.b16 %v1542, %v1535
    %v2138 = vpack.c.b16 %v1550, %v1543
    %v2139 = vpack.c.b16 %v1551, %v1544
    %v2140 = vpack.c.b16 %v1552, %v1545
    %v2141 = vpack.c.b16 %v1553, %v1546
    %v2142 = vpack.c.b16 %v1554, %v1547
    %v2143 = vpack.c.b16 %v1555, %v1548
    %v2144 = vpack.c.b16 %v1556, %v1549
    %v2145 = vpack.c.b16 %v1564, %v1557
    %v2146 = vpack.c.b16 %v1565, %v1558
    %v2147 = vpack.c.b16 %v1566, %v1559
    %v2148 = vpack.c.b16 %v1567, %v1560
    %v2149 = vpack.c.b16 %v1568, %v1561
    %v2150 = vpack.c.b16 %v1569, %v1562
    %v2151 = vpack.c.b16 %v1570, %v1563
    %v2152 = vpack.c.b16 %v1578, %v1571
    %v2153 = vpack.c.b16 %v1579, %v1572
    %v2154 = vpack.c.b16 %v1580, %v1573
    %v2155 = vpack.c.b16 %v1581, %v1574
    %v2156 = vpack.c.b16 %v1582, %v1575
    %v2157 = vpack.c.b16 %v1583, %v1576
    %v2158 = vpack.c.b16 %v1584, %v1577
    %v2159 = vpack.c.b16 %v1592, %v1585
    %v2160 = vpack.c.b16 %v1593, %v1586
    %v2161 = vpack.c.b16 %v1594, %v1587
    %v2162 = vpack.c.b16 %v1595, %v1588
    %v2163 = vpack.c.b16 %v1596, %v1589
    %v2164 = vpack.c.b16 %v1597, %v1590
    %v2165 = vpack.c.b16 %v1598, %v1591
    %v2166 = vpack.c.b16 %v1606, %v1599
    %v2167 = vpack.c.b16 %v1607, %v1600
    %v2168 = vpack.c.b16 %v1608, %v1601
    %v2169 = vpack.c.b16 %v1609, %v1602
    %v2170 = vpack.c.b16 %v1610, %v1603
    %v2171 = vpack.c.b16 %v1611, %v1604
    %v2172 = vpack.c.b16 %v1612, %v1605
    %v2173 = vpack.c.b16 %v1620, %v1613
    %v2174 = vpack.c.b16 %v1621, %v1614
    %v2175 = vpack.c.b16 %v1622, %v1615
    %v2176 = vpack.c.b16 %v1623, %v1616
    %v2177 = vpack.c.b16 %v1624, %v1617
    %v2178 = vpack.c.b16 %v1625, %v1618
    %v2179 = vpack.c.b16 %v1626, %v1619
    %v2180 = vpack.c.b16 %v1634, %v1627
    %v2181 = vpack.c.b16 %v1635, %v1628
    %v2182 = vpack.c.b16 %v1636, %v1629
    %v2183 = vpack.c.b16 %v1637, %v1630
    %v2184 = vpack.c.b16 %v1638, %v1631
    %v2185 = vpack.c.b16 %v1639, %v1632
    %v2186 = vpack.c.b16 %v1640, %v1633
    %v2187 = vpack.c.b16 %v1648, %v1641
    %v2188 = vpack.c.b16 %v1649, %v1642
    %v2189 = vpack.c.b16 %v1650, %v1643
    %v2190 = vpack.c.b16 %v1651, %v1644
    %v2191 = vpack.c.b16 %v1652, %v1645
    %v2192 = vpack.c.b16 %v1653, %v1646
    %v2193 = vpack.c.b16 %v1654, %v1647
    %v2194 = vpack.c.b16 %v1662, %v1655
    %v2195 = vpack.c.b16 %v1663, %v1656
    %v2196 = vpack.c.b16 %v1664, %v1657
    %v2197 = vpack.c.b16 %v1665, %v1658
    %v2198 = vpack.c.b16 %v1666, %v1659
    %v2199 = vpack.c.b16 %v1667, %v1660
    %v2200 = vpack.c.b16 %v1668, %v1661
    %v2201 = vpack.c.b16 %v1676, %v1669
    %v2202 = vpack.c.b16 %v1677, %v1670
    %v2203 = vpack.c.b16 %v1678, %v1671
    %v2204 = vpack.c.b16 %v1679, %v1672
    %v2205 = vpack.c.b16 %v1680, %v1673
    %v2206 = vpack.c.b16 %v1681, %v1674
    %v2207 = vpack.c.b16 %v1682, %v1675
    %v2208 = vpack.c.b16 %v1690, %v1683
    %v2209 = vpack.c.b16 %v1691, %v1684
    %v2210 = vpack.c.b16 %v1692, %v1685
    %v2211 = vpack.c.b16 %v1693, %v1686
    %v2212 = vpack.c.b16 %v1694, %v1687
    %v2213 = vpack.c.b16 %v1695, %v1688
    %v2214 = vpack.c.b16 %v1696, %v1689
    %v2215 = vpack.c.b16 %v1704, %v1697
    %v2216 = vpack.c.b16 %v1705, %v1698
    %v2217 = vpack.c.b16 %v1706, %v1699
    %v2218 = vpack.c.b16 %v1707, %v1700
    %v2219 = vpack.c.b16 %v1708, %v1701
    %v2220 = vpack.c.b16 %v1709, %v1702
    %v2221 = vpack.c.b16 %v1710, %v1703
    %v2222 = vpack.c.b16 %v1718, %v1711
    %v2223 = vpack.c.b16 %v1719, %v1712
    %v2224 = vpack.c.b16 %v1720, %v1713
    %v2225 = vpack.c.b16 %v1721, %v1714
    %v2226 = vpack.c.b16 %v1722, %v1715
    %v2227 = vpack.c.b16 %v1723, %v1716
    %v2228 = vpack.c.b16 %v1724, %v1717
    %v2229 = vpack.c.b16 %v1732, %v1725
    %v2230 = vpack.c.b16 %v1733, %v1726
    %v2231 = vpack.c.b16 %v1734, %v1727
    %v2232 = vpack.c.b16 %v1735, %v1728
    %v2233 = vpack.c.b16 %v1736, %v1729
    %v2234 = vpack.c.b16 %v1737, %v1730
    %v2235 = vpack.c.b16 %v1738, %v1731
    %v2236 = vpack.c.b16 %v1746, %v1739
    %v2237 = vpack.c.b16 %v1747, %v1740
    %v2238 = vpack.c.b16 %v1748, %v1741
    %v2239 = vpack.c.b16 %v1749, %v1742
    %v2240 = vpack.c.b16 %v1750, %v1743
    %v2241 = vpack.c.b16 %v1751, %v1744
    %v2242 = vpack.c.b16 %v1752, %v1745
    %v2243 = vpack.c.b16 %v1760, %v1753
    %v2244 = vpack.c.b16 %v1761, %v1754
    %v2245 = vpack.c.b16 %v1762, %v1755
    %v2246 = vpack.c.b16 %v1763, %v1756
    %v2247 = vpack.c.b16 %v1764, %v1757
    %v2248 = vpack.c.b16 %v1765, %v1758
    %v2249 = vpack.c.b16 %v1766, %v1759
    %v2250 = vpack.c.b16 %v1774, %v1767
    %v2251 = vpack.c.b16 %v1775, %v1768
    %v2252 = vpack.c.b16 %v1776, %v1769
    %v2253 = vpack.c.b16 %v1777, %v1770
    %v2254 = vpack.c.b16 %v1778, %v1771
    %v2255 = vpack.c.b16 %v1779, %v1772
    %v2256 = vpack.c.b16 %v1780, %v1773
    %v2257 = vpack.c.b16 %v1788, %v1781
    %v2258 = vpack.c.b16 %v1789, %v1782
    %v2259 = vpack.c.b16 %v1790, %v1783
    %v2260 = vpack.c.b16 %v1791, %v1784
    %v2261 = vpack.c.b16 %v1792, %v1785
    %v2262 = vpack.c.b16 %v1793, %v1786
    %v2263 = vpack.c.b16 %v1794, %v1787
    %v2264 = vpack.c.b16 %v1802, %v1795
    %v2265 = vpack.c.b16 %v1803, %v1796
    %v2266 = vpack.c.b16 %v1804, %v1797
    %v2267 = vpack.c.b16 %v1805, %v1798
    %v2268 = vpack.c.b16 %v1806, %v1799
    %v2269 = vpack.c.b16 %v1807, %v1800
    %v2270 = vpack.c.b16 %v1808, %v1801
    %v2271 = vpack.c.b16 %v1816, %v1809
    %v2272 = vpack.c.b16 %v1817, %v1810
    %v2273 = vpack.c.b16 %v1818, %v1811
    %v2274 = vpack.c.b16 %v1819, %v1812
    %v2275 = vpack.c.b16 %v1820, %v1813
    %v2276 = vpack.c.b16 %v1821, %v1814
    %v2277 = vpack.c.b16 %v1822, %v1815
    %v2278 = vpack.c.b16 %v1830, %v1823
    %v2279 = vpack.c.b16 %v1831, %v1824
    %v2280 = vpack.c.b16 %v1832, %v1825
    %v2281 = vpack.c.b16 %v1833, %v1826
    %v2282 = vpack.c.b16 %v1834, %v1827
    %v2283 = vpack.c.b16 %v1835, %v1828
    %v2284 = vpack.c.b16 %v1836, %v1829
    %v2285 = vpack.c.b16 %v1844, %v1837
    %v2286 = vpack.c.b16 %v1845, %v1838
    %v2287 = vpack.c.b16 %v1846, %v1839
    %v2288 = vpack.c.b16 %v1847, %v1840
    %v2289 = vpack.c.b16 %v1848, %v1841
    %v2290 = vpack.c.b16 %v1849, %v1842
    %v2291 = vpack.c.b16 %v1850, %v1843
    %v2292 = vpack.c.b16 %v1858, %v1851
    %v2293 = vpack.c.b16 %v1859, %v1852
    %v2294 = vpack.c.b16 %v1860, %v1853
    %v2295 = vpack.c.b16 %v1861, %v1854
    %v2296 = vpack.c.b16 %v1862, %v1855
    %v2297 = vpack.c.b16 %v1863, %v1856
    %v2298 = vpack.c.b16 %v1864, %v1857
    %v2299 = vpack.c.b16 %v1872, %v1865
    %v2300 = vpack.c.b16 %v1873, %v1866
    %v2301 = vpack.c.b16 %v1874, %v1867
    %v2302 = vpack.c.b16 %v1875, %v1868
    %v2303 = vpack.c.b16 %v1876, %v1869
    %v2304 = vpack.c.b16 %v1877, %v1870
    %v2305 = vpack.c.b16 %v1878, %v1871
    %v2306 = vpack.c.b16 %v1886, %v1879
    %v2307 = vpack.c.b16 %v1887, %v1880
    %v2308 = vpack.c.b16 %v1888, %v1881
    %v2309 = vpack.c.b16 %v1889, %v1882
    %v2310 = vpack.c.b16 %v1890, %v1883
    %v2311 = vpack.c.b16 %v1891, %v1884
    %v2312 = vpack.c.b16 %v1892, %v1885
    %v2313 = vpack.c.b16 %v1900, %v1893
    %v2314 = vpack.c.b16 %v1901, %v1894
    %v2315 = vpack.c.b16 %v1902, %v1895
    %v2316 = vpack.c.b16 %v1903, %v1896
    %v2317 = vpack.c.b16 %v1904, %v1897
    %v2318 = vpack.c.b16 %v1905, %v1898
    %v2319 = vpack.c.b16 %v1906, %v1899
    %v2320 = vpack.c.b16 %v1914, %v1907
    %v2321 = vpack.c.b16 %v1915, %v1908
    %v2322 = vpack.c.b16 %v1916, %v1909
    %v2323 = vpack.c.b16 %v1917, %v1910
    %v2324 = vpack.c.b16 %v1918, %v1911
    %v2325 = vpack.c.b16 %v1919, %v1912
    %v2326 = vpack.c.b16 %v1920, %v1913
    %v2327 = vpack.c.b16 %v1928, %v1921
    %v2328 = vpack.c.b16 %v1929, %v1922
    %v2329 = vpack.c.b16 %v1930, %v1923
    %v2330 = vpack.c.b16 %v1931, %v1924
    %v2331 = vpack.c.b16 %v1932, %v1925
    %v2332 = vpack.c.b16 %v1933, %v1926
    %v2333 = vpack.c.b16 %v1934, %v1927
    %v2334 = vpack.c.b16 %v1942, %v1935
    %v2335 = vpack.c.b16 %v1943, %v1936
    %v2336 = vpack.c.b16 %v1944, %v1937
    %v2337 = vpack.c.b16 %v1945, %v1938
    %v2338 = vpack.c.b16 %v1946, %v1939
    %v2339 = vpack.c.b16 %v1947, %v1940
    %v2340 = vpack.c.b16 %v1948, %v1941
    %v2341 = vpack.c.b16 %v1956, %v1949
    %v2342 = vpack.c.b16 %v1957, %v1950
    %v2343 = vpack.c.b16 %v1958, %v1951
    %v2344 = vpack.c.b16 %v1959, %v1952
    %v2345 = vpack.c.b16 %v1960, %v1953
    %v2346 = vpack.c.b16 %v1961, %v1954
    %v2347 = vpack.c.b16 %v1962, %v1955
    %v2348 = vpack.c.b16 %v1970, %v1963
    %v2349 = vpack.c.b16 %v1971, %v1964
    %v2350 = vpack.c.b16 %v1972, %v1965
    %v2351 = vpack.c.b16 %v1973, %v1966
    %v2352 = vpack.c.b16 %v1974, %v1967
    %v2353 = vpack.c.b16 %v1975, %v1968
    %v2354 = vpack.c.b16 %v1976, %v1969
    %v2355 = vpack.c.b16 %v1984, %v1977
    %v2356 = vpack.c.b16 %v1985, %v1978
    %v2357 = vpack.c.b16 %v1986, %v1979
    %v2358 = vpack.c.b16 %v1987, %v1980
    %v2359 = vpack.c.b16 %v1988, %v1981
    %v2360 = vpack.c.b16 %v1989, %v1982
    %v2361 = vpack.c.b16 %v1990, %v1983
    %v2362 = vpack.c.b16 %v1998, %v1991
    %v2363 = vpack.c.b16 %v1999, %v1992
    %v2364 = vpack.c.b16 %v2000, %v1993
    %v2365 = vpack.c.b16 %v2001, %v1994
    %v2366 = vpack.c.b16 %v2002, %v1995
    %v2367 = vpack.c.b16 %v2003, %v1996
    %v2368 = vpack.c.b16 %v2004, %v1997
    %v2369 = vpack.c.b16 %v2012, %v2005
    %v2370 = vpack.c.b16 %v2013, %v2006
    %v2371 = vpack.c.b16 %v2014, %v2007
    %v2372 = vpack.c.b16 %v2015, %v2008
    %v2373 = vpack.c.b16 %v2016, %v2009
    %v2374 = vpack.c.b16 %v2017, %v2010
    %v2375 = vpack.c.b16 %v2018, %v2011
    %v2376 = vpack.c.b16 %v2026, %v2019
    %v2377 = vpack.c.b16 %v2027, %v2020
    %v2378 = vpack.c.b16 %v2028, %v2021
    %v2379 = vpack.c.b16 %v2029, %v2022
    %v2380 = vpack.c.b16 %v2030, %v2023
    %v2381 = vpack.c.b16 %v2031, %v2024
    %v2382 = vpack.c.b16 %v2032, %v2025
    %v2383 = vpack.c.b16 %v2040, %v2033
    %v2384 = vpack.c.b16 %v2041, %v2034
    %v2385 = vpack.c.b16 %v2042, %v2035
    %v2386 = vpack.c.b16 %v2043, %v2036
    %v2387 = vpack.c.b16 %v2044, %v2037
    %v2388 = vpack.c.b16 %v2045, %v2038
    %v2389 = vpack.c.b16 %v2046, %v2039
    %vm2733 = vcmask 130048
    %v2735 = vsel %vm2733, %v871, 0
    %v2738 = vsel %vm2733, %v878, 0
    %v2741 = vsel %vm2733, %v885, 0
    %v2744 = vsel %vm2733, %v892, 0
    %v2747 = vsel %vm2733, %v899, 0
    %v2750 = vsel %vm2733, %v906, 0
    %v2753 = vsel %vm2733, %v913, 0
    %v2756 = vsel %vm2733, %v920, 0
    %2758 = vmatprep.subr.bf16.mxu0 %v2048
    %2759 = vmatpush1.bf16.msra.mxu0 %v2047
    %2760 = vmatprep.subr.bf16.mxu0 %v2055
    %2761 = vmatpush1.bf16.msra.mxu0 %v2054
    %2762 = vmatprep.subr.bf16.mxu0 %v2062
    %2763 = vmatpush1.bf16.msra.mxu0 %v2061
    %2764 = vmatprep.subr.bf16.mxu0 %v2069
    %2765 = vmatpush1.bf16.msra.mxu0 %v2068
    %2766 = vmatprep.subr.bf16.mxu0 %v2076
    %2767 = vmatpush1.bf16.msra.mxu0 %v2075
    %2768 = vmatprep.subr.bf16.mxu0 %v2083
    %2769 = vmatpush1.bf16.msra.mxu0 %v2082
    %2770 = vmatprep.subr.bf16.mxu0 %v2090
    %2771 = vmatpush1.bf16.msra.mxu0 %v2089
    %2772 = vmatprep.subr.bf16.mxu0 %v2097
    %2773 = vmatpush1.bf16.msra.mxu0 %v2096
    %2774 = vmatprep.subr.bf16.mxu0 %v2104
    %2775 = vmatpush1.bf16.msra.mxu0 %v2103
    %2776 = vmatprep.subr.bf16.mxu0 %v2111
    %2777 = vmatpush1.bf16.msra.mxu0 %v2110
    %2778 = vmatprep.subr.bf16.mxu0 %v2118
    %2779 = vmatpush1.bf16.msra.mxu0 %v2117
    %2780 = vmatprep.subr.bf16.mxu0 %v2125
    %2781 = vmatpush1.bf16.msra.mxu0 %v2124
    %2782 = vmatprep.subr.bf16.mxu0 %v2132
    %2783 = vmatpush1.bf16.msra.mxu0 %v2131
    %2784 = vmatprep.subr.bf16.mxu0 %v2139
    %2785 = vmatpush1.bf16.msra.mxu0 %v2138
    %2786 = vmatprep.subr.bf16.mxu0 %v2146
    %2787 = vmatpush1.bf16.msra.mxu0 %v2145
    %2788 = vmatprep.subr.bf16.mxu0 %v2153
    %2789 = vmatpush1.bf16.msra.mxu0 %v2152
    %2790 = vmatprep.mubr.bf16.mxu0 %v866
    %2791 = vmatmul.mubr.bf16.gmra.mrb[0].mxu0 %v865
    %v2792 = vpop.f32.mrb[0].mxu0
    %v2793 = vadd.f32 %v657, %v2792
    %v2794 = vpop.f32.mrb[0].mxu0
    %v2795 = vadd.f32 %v661, %v2794
    %v2796 = vpop.f32.mrb[0].mxu0
    %v2797 = vadd.f32 %v657, %v2796
    %v2798 = vpop.f32.mrb[0].mxu0
    %v2799 = vadd.f32 %v661, %v2798
    %2800 = vmatprep.mubr.bf16.mxu0 %v873
    %2801 = vmatmul.mubr.bf16.gmra.mrb[0].mxu0 %v872
    %v2802 = vpop.f32.mrb[0].mxu0
    %v2803 = vadd.f32 %v657, %v2802
    %v2804 = vpop.f32.mrb[0].mxu0
    %v2805 = vadd.f32 %v661, %v2804
    %v2806 = vpop.f32.mrb[0].mxu0
    %v2807 = vadd.f32 %v657, %v2806
    %v2808 = vpop.f32.mrb[0].mxu0
    %v2809 = vadd.f32 %v661, %v2808
    %2810 = vmatprep.mubr.bf16.mxu0 %v880
    %2811 = vmatmul.mubr.bf16.gmra.mrb[0].mxu0 %v879
    %v2812 = vpop.f32.mrb[0].mxu0
    %v2813 = vadd.f32 %v657, %v2812
    %v2814 = vpop.f32.mrb[0].mxu0
    %v2815 = vadd.f32 %v661, %v2814
    %v2816 = vpop.f32.mrb[0].mxu0
    %v2817 = vadd.f32 %v657, %v2816
    %v2818 = vpop.f32.mrb[0].mxu0
    %v2819 = vadd.f32 %v661, %v2818
    %2820 = vmatprep.mubr.bf16.mxu0 %v887
    %2821 = vmatmul.mubr.bf16.gmra.mrb[0].mxu0 %v886
    %v2822 = vpop.f32.mrb[0].mxu0
    %v2823 = vadd.f32 %v657, %v2822
    %v2824 = vpop.f32.mrb[0].mxu0
    %v2825 = vadd.f32 %v661, %v2824
    %v2826 = vpop.f32.mrb[0].mxu0
    %v2827 = vadd.f32 %v657, %v2826
    %v2828 = vpop.f32.mrb[0].mxu0
    %v2829 = vadd.f32 %v661, %v2828
    %2830 = vmatprep.mubr.bf16.mxu0 %v894
    %2831 = vmatmul.mubr.bf16.gmra.mrb[0].mxu0 %v893
    %v2832 = vpop.f32.mrb[0].mxu0
    %v2833 = vadd.f32 %v657, %v2832
    %v2834 = vpop.f32.mrb[0].mxu0
    %v2835 = vadd.f32 %v661, %v2834
    %v2836 = vpop.f32.mrb[0].mxu0
    %v2837 = vadd.f32 %v657, %v2836
    %v2838 = vpop.f32.mrb[0].mxu0
    %v2839 = vadd.f32 %v661, %v2838
    %2840 = vmatprep.mubr.bf16.mxu0 %v901
    %2841 = vmatmul.mubr.bf16.gmra.mrb[0].mxu0 %v900
    %v2842 = vpop.f32.mrb[0].mxu0
    %v2843 = vadd.f32 %v657, %v2842
    %v2844 = vpop.f32.mrb[0].mxu0
    %v2845 = vadd.f32 %v661, %v2844
    %v2846 = vpop.f32.mrb[0].mxu0
    %v2847 = vadd.f32 %v657, %v2846
    %v2848 = vpop.f32.mrb[0].mxu0
    %v2849 = vadd.f32 %v661, %v2848
    %2850 = vmatprep.mubr.bf16.mxu0 %v908
    %2851 = vmatmul.mubr.bf16.gmra.mrb[0].mxu0 %v907
    %v2852 = vpop.f32.mrb[0].mxu0
    %v2853 = vadd.f32 %v657, %v2852
    %v2854 = vpop.f32.mrb[0].mxu0
    %v2855 = vadd.f32 %v661, %v2854
    %v2856 = vpop.f32.mrb[0].mxu0
    %v2857 = vadd.f32 %v657, %v2856
    %v2858 = vpop.f32.mrb[0].mxu0
    %v2859 = vadd.f32 %v661, %v2858
    %2860 = vmatprep.mubr.bf16.mxu0 %v915
    %2861 = vmatmul.mubr.bf16.gmra.mrb[0].mxu0 %v914
    %v2862 = vpop.f32.mrb[0].mxu0
    %v2863 = vadd.f32 %v657, %v2862
    %v2864 = vpop.f32.mrb[0].mxu0
    %v2865 = vadd.f32 %v661, %v2864
    %v2866 = vpop.f32.mrb[0].mxu0
    %v2867 = vadd.f32 %v657, %v2866
    %v2868 = vpop.f32.mrb[0].mxu0
    %v2869 = vadd.f32 %v661, %v2868
    %2870 = vdwg.mxu0
    %2871 = vmatprep.subr.bf16.mxu0 %v2160
    %2872 = vmatpush1.bf16.msra.mxu0 %v2159
    %2873 = vmatprep.subr.bf16.mxu0 %v2167
    %2874 = vmatpush1.bf16.msra.mxu0 %v2166
    %2875 = vmatprep.subr.bf16.mxu0 %v2174
    %2876 = vmatpush1.bf16.msra.mxu0 %v2173
    %2877 = vmatprep.subr.bf16.mxu0 %v2181
    %2878 = vmatpush1.bf16.msra.mxu0 %v2180
    %2879 = vmatprep.subr.bf16.mxu0 %v2188
    %2880 = vmatpush1.bf16.msra.mxu0 %v2187
    %2881 = vmatprep.subr.bf16.mxu0 %v2195
    %2882 = vmatpush1.bf16.msra.mxu0 %v2194
    %2883 = vmatprep.subr.bf16.mxu0 %v2202
    %2884 = vmatpush1.bf16.msra.mxu0 %v2201
    %2885 = vmatprep.subr.bf16.mxu0 %v2209
    %2886 = vmatpush1.bf16.msra.mxu0 %v2208
    %2887 = vmatprep.subr.bf16.mxu0 %v2216
    %2888 = vmatpush1.bf16.msra.mxu0 %v2215
    %2889 = vmatprep.subr.bf16.mxu0 %v2223
    %2890 = vmatpush1.bf16.msra.mxu0 %v2222
    %2891 = vmatprep.subr.bf16.mxu0 %v2230
    %2892 = vmatpush1.bf16.msra.mxu0 %v2229
    %2893 = vmatprep.subr.bf16.mxu0 %v2237
    %2894 = vmatpush1.bf16.msra.mxu0 %v2236
    %2895 = vmatprep.subr.bf16.mxu0 %v2244
    %2896 = vmatpush1.bf16.msra.mxu0 %v2243
    %2897 = vmatprep.subr.bf16.mxu0 %v2251
    %2898 = vmatpush1.bf16.msra.mxu0 %v2250
    %2899 = vmatprep.subr.bf16.mxu0 %v2258
    %2900 = vmatpush1.bf16.msra.mxu0 %v2257
    %2901 = vmatprep.subr.bf16.mxu0 %v2265
    %2902 = vmatpush1.bf16.msra.mxu0 %v2264
    %2903 = vmatprep.mubr.bf16.mxu0 %v868
    %2904 = vmatmul.mubr.bf16.gmra.mrb[0].mxu0 %v867
    %v2905 = vpop.f32.mrb[0].mxu0
    %v2906 = vadd.f32 %v2793, %v2905
    %v2907 = vpop.f32.mrb[0].mxu0
    %v2908 = vadd.f32 %v2795, %v2907
    %v2909 = vpop.f32.mrb[0].mxu0
    %v2910 = vadd.f32 %v2797, %v2909
    %v2911 = vpop.f32.mrb[0].mxu0
    %v2912 = vadd.f32 %v2799, %v2911
    %2913 = vmatprep.mubr.bf16.mxu0 %v875
    %2914 = vmatmul.mubr.bf16.gmra.mrb[0].mxu0 %v874
    %v2915 = vpop.f32.mrb[0].mxu0
    %v2916 = vadd.f32 %v2803, %v2915
    %v2917 = vpop.f32.mrb[0].mxu0
    %v2918 = vadd.f32 %v2805, %v2917
    %v2919 = vpop.f32.mrb[0].mxu0
    %v2920 = vadd.f32 %v2807, %v2919
    %v2921 = vpop.f32.mrb[0].mxu0
    %v2922 = vadd.f32 %v2809, %v2921
    %2923 = vmatprep.mubr.bf16.mxu0 %v882
    %2924 = vmatmul.mubr.bf16.gmra.mrb[0].mxu0 %v881
    %v2925 = vpop.f32.mrb[0].mxu0
    %v2926 = vadd.f32 %v2813, %v2925
    %v2927 = vpop.f32.mrb[0].mxu0
    %v2928 = vadd.f32 %v2815, %v2927
    %v2929 = vpop.f32.mrb[0].mxu0
    %v2930 = vadd.f32 %v2817, %v2929
    %v2931 = vpop.f32.mrb[0].mxu0
    %v2932 = vadd.f32 %v2819, %v2931
    %2933 = vmatprep.mubr.bf16.mxu0 %v889
    %2934 = vmatmul.mubr.bf16.gmra.mrb[0].mxu0 %v888
    %v2935 = vpop.f32.mrb[0].mxu0
    %v2936 = vadd.f32 %v2823, %v2935
    %v2937 = vpop.f32.mrb[0].mxu0
    %v2938 = vadd.f32 %v2825, %v2937
    %v2939 = vpop.f32.mrb[0].mxu0
    %v2940 = vadd.f32 %v2827, %v2939
    %v2941 = vpop.f32.mrb[0].mxu0
    %v2942 = vadd.f32 %v2829, %v2941
    %2943 = vmatprep.mubr.bf16.mxu0 %v896
    %2944 = vmatmul.mubr.bf16.gmra.mrb[0].mxu0 %v895
    %v2945 = vpop.f32.mrb[0].mxu0
    %v2946 = vadd.f32 %v2833, %v2945
    %v2947 = vpop.f32.mrb[0].mxu0
    %v2948 = vadd.f32 %v2835, %v2947
    %v2949 = vpop.f32.mrb[0].mxu0
    %v2950 = vadd.f32 %v2837, %v2949
    %v2951 = vpop.f32.mrb[0].mxu0
    %v2952 = vadd.f32 %v2839, %v2951
    %2953 = vmatprep.mubr.bf16.mxu0 %v903
    %2954 = vmatmul.mubr.bf16.gmra.mrb[0].mxu0 %v902
    %v2955 = vpop.f32.mrb[0].mxu0
    %v2956 = vadd.f32 %v2843, %v2955
    %v2957 = vpop.f32.mrb[0].mxu0
    %v2958 = vadd.f32 %v2845, %v2957
    %v2959 = vpop.f32.mrb[0].mxu0
    %v2960 = vadd.f32 %v2847, %v2959
    %v2961 = vpop.f32.mrb[0].mxu0
    %v2962 = vadd.f32 %v2849, %v2961
    %2963 = vmatprep.mubr.bf16.mxu0 %v910
    %2964 = vmatmul.mubr.bf16.gmra.mrb[0].mxu0 %v909
    %v2965 = vpop.f32.mrb[0].mxu0
    %v2966 = vadd.f32 %v2853, %v2965
    %v2967 = vpop.f32.mrb[0].mxu0
    %v2968 = vadd.f32 %v2855, %v2967
    %v2969 = vpop.f32.mrb[0].mxu0
    %v2970 = vadd.f32 %v2857, %v2969
    %v2971 = vpop.f32.mrb[0].mxu0
    %v2972 = vadd.f32 %v2859, %v2971
    %2973 = vmatprep.mubr.bf16.mxu0 %v917
    %2974 = vmatmul.mubr.bf16.gmra.mrb[0].mxu0 %v916
    %v2975 = vpop.f32.mrb[0].mxu0
    %v2976 = vadd.f32 %v2863, %v2975
    %v2977 = vpop.f32.mrb[0].mxu0
    %v2978 = vadd.f32 %v2865, %v2977
    %v2979 = vpop.f32.mrb[0].mxu0
    %v2980 = vadd.f32 %v2867, %v2979
    %v2981 = vpop.f32.mrb[0].mxu0
    %v2982 = vadd.f32 %v2869, %v2981
    %2983 = vdwg.mxu0
    %2984 = vmatprep.subr.bf16.mxu0 %v2272
    %2985 = vmatpush1.bf16.msra.mxu0 %v2271
    %2986 = vmatprep.subr.bf16.mxu0 %v2279
    %2987 = vmatpush1.bf16.msra.mxu0 %v2278
    %2988 = vmatprep.subr.bf16.mxu0 %v2286
    %2989 = vmatpush1.bf16.msra.mxu0 %v2285
    %2990 = vmatprep.subr.bf16.mxu0 %v2293
    %2991 = vmatpush1.bf16.msra.mxu0 %v2292
    %2992 = vmatprep.subr.bf16.mxu0 %v2300
    %2993 = vmatpush1.bf16.msra.mxu0 %v2299
    %2994 = vmatprep.subr.bf16.mxu0 %v2307
    %2995 = vmatpush1.bf16.msra.mxu0 %v2306
    %2996 = vmatprep.subr.bf16.mxu0 %v2314
    %2997 = vmatpush1.bf16.msra.mxu0 %v2313
    %2998 = vmatprep.subr.bf16.mxu0 %v2321
    %2999 = vmatpush1.bf16.msra.mxu0 %v2320
    %3000 = vmatprep.subr.bf16.mxu0 %v2328
    %3001 = vmatpush1.bf16.msra.mxu0 %v2327
    %3002 = vmatprep.subr.bf16.mxu0 %v2335
    %3003 = vmatpush1.bf16.msra.mxu0 %v2334
    %3004 = vmatprep.subr.bf16.mxu0 %v2342
    %3005 = vmatpush1.bf16.msra.mxu0 %v2341
    %3006 = vmatprep.subr.bf16.mxu0 %v2349
    %3007 = vmatpush1.bf16.msra.mxu0 %v2348
    %3008 = vmatprep.subr.bf16.mxu0 %v2356
    %3009 = vmatpush1.bf16.msra.mxu0 %v2355
    %3010 = vmatprep.subr.bf16.mxu0 %v2363
    %3011 = vmatpush1.bf16.msra.mxu0 %v2362
    %3012 = vmatprep.subr.bf16.mxu0 %v2370
    %3013 = vmatpush1.bf16.msra.mxu0 %v2369
    %3014 = vmatprep.subr.bf16.mxu0 %v2377
    %3015 = vmatpush1.bf16.msra.mxu0 %v2376
    %3016 = vmatprep.mubr.bf16.mxu0 %v870
    %3017 = vmatmul.mubr.bf16.gmra.mrb[0].mxu0 %v869
    %v3018 = vpop.f32.mrb[0].mxu0
    %v3019 = vadd.f32 %v2906, %v3018
    %v3020 = vpop.f32.mrb[0].mxu0
    %v3021 = vadd.f32 %v2908, %v3020
    %v3022 = vpop.f32.mrb[0].mxu0
    %v3023 = vadd.f32 %v2910, %v3022
    %v3024 = vpop.f32.mrb[0].mxu0
    %v3025 = vadd.f32 %v2912, %v3024
    %3026 = vmatprep.mubr.bf16.mxu0 %v877
    %3027 = vmatmul.mubr.bf16.gmra.mrb[0].mxu0 %v876
    %v3028 = vpop.f32.mrb[0].mxu0
    %v3029 = vadd.f32 %v2916, %v3028
    %v3030 = vpop.f32.mrb[0].mxu0
    %v3031 = vadd.f32 %v2918, %v3030
    %v3032 = vpop.f32.mrb[0].mxu0
    %v3033 = vadd.f32 %v2920, %v3032
    %v3034 = vpop.f32.mrb[0].mxu0
    %v3035 = vadd.f32 %v2922, %v3034
    %3036 = vmatprep.mubr.bf16.mxu0 %v884
    %3037 = vmatmul.mubr.bf16.gmra.mrb[0].mxu0 %v883
    %v3038 = vpop.f32.mrb[0].mxu0
    %v3039 = vadd.f32 %v2926, %v3038
    %v3040 = vpop.f32.mrb[0].mxu0
    %v3041 = vadd.f32 %v2928, %v3040
    %v3042 = vpop.f32.mrb[0].mxu0
    %v3043 = vadd.f32 %v2930, %v3042
    %v3044 = vpop.f32.mrb[0].mxu0
    %v3045 = vadd.f32 %v2932, %v3044
    %3046 = vmatprep.mubr.bf16.mxu0 %v891
    %3047 = vmatmul.mubr.bf16.gmra.mrb[0].mxu0 %v890
    %v3048 = vpop.f32.mrb[0].mxu0
    %v3049 = vadd.f32 %v2936, %v3048
    %v3050 = vpop.f32.mrb[0].mxu0
    %v3051 = vadd.f32 %v2938, %v3050
    %v3052 = vpop.f32.mrb[0].mxu0
    %v3053 = vadd.f32 %v2940, %v3052
    %v3054 = vpop.f32.mrb[0].mxu0
    %v3055 = vadd.f32 %v2942, %v3054
    %3056 = vmatprep.mubr.bf16.mxu0 %v898
    %3057 = vmatmul.mubr.bf16.gmra.mrb[0].mxu0 %v897
    %v3058 = vpop.f32.mrb[0].mxu0
    %v3059 = vadd.f32 %v2946, %v3058
    %v3060 = vpop.f32.mrb[0].mxu0
    %v3061 = vadd.f32 %v2948, %v3060
    %v3062 = vpop.f32.mrb[0].mxu0
    %v3063 = vadd.f32 %v2950, %v3062
    %v3064 = vpop.f32.mrb[0].mxu0
    %v3065 = vadd.f32 %v2952, %v3064
    %3066 = vmatprep.mubr.bf16.mxu0 %v905
    %3067 = vmatmul.mubr.bf16.gmra.mrb[0].mxu0 %v904
    %v3068 = vpop.f32.mrb[0].mxu0
    %v3069 = vadd.f32 %v2956, %v3068
    %v3070 = vpop.f32.mrb[0].mxu0
    %v3071 = vadd.f32 %v2958, %v3070
    %v3072 = vpop.f32.mrb[0].mxu0
    %v3073 = vadd.f32 %v2960, %v3072
    %v3074 = vpop.f32.mrb[0].mxu0
    %v3075 = vadd.f32 %v2962, %v3074
    %3076 = vmatprep.mubr.bf16.mxu0 %v912
    %3077 = vmatmul.mubr.bf16.gmra.mrb[0].mxu0 %v911
    %v3078 = vpop.f32.mrb[0].mxu0
    %v3079 = vadd.f32 %v2966, %v3078
    %v3080 = vpop.f32.mrb[0].mxu0
    %v3081 = vadd.f32 %v2968, %v3080
    %v3082 = vpop.f32.mrb[0].mxu0
    %v3083 = vadd.f32 %v2970, %v3082
    %v3084 = vpop.f32.mrb[0].mxu0
    %v3085 = vadd.f32 %v2972, %v3084
    %3086 = vmatprep.mubr.bf16.mxu0 %v919
    %3087 = vmatmul.mubr.bf16.gmra.mrb[0].mxu0 %v918
    %v3088 = vpop.f32.mrb[0].mxu0
    %v3089 = vadd.f32 %v2976, %v3088
    %v3090 = vpop.f32.mrb[0].mxu0
    %v3091 = vadd.f32 %v2978, %v3090
    %v3092 = vpop.f32.mrb[0].mxu0
    %v3093 = vadd.f32 %v2980, %v3092
    %v3094 = vpop.f32.mrb[0].mxu0
    %v3095 = vadd.f32 %v2982, %v3094
    %3096 = vdwg.mxu0
    %3097 = vmatprep.subr.bf16.mxu0 %v2384
    %3098 = vmatpush1.bf16.msra.mxu0 %v2383
    %3099 = vmatprep.subr.bf16.mxu0 0
    %3100 = vmatpush1.bf16.msra.mxu0 0
    %3101 = vmatprep.subr.bf16.mxu0 0
    %3102 = vmatpush1.bf16.msra.mxu0 0
    %3103 = vmatprep.subr.bf16.mxu0 0
    %3104 = vmatpush1.bf16.msra.mxu0 0
    %3105 = vmatprep.subr.bf16.mxu0 0
    %3106 = vmatpush1.bf16.msra.mxu0 0
    %3107 = vmatprep.subr.bf16.mxu0 0
    %3108 = vmatpush1.bf16.msra.mxu0 0
    %3109 = vmatprep.subr.bf16.mxu0 0
    %3110 = vmatpush1.bf16.msra.mxu0 0
    %3111 = vmatprep.subr.bf16.mxu0 0
    %3112 = vmatpush1.bf16.msra.mxu0 0
    %3113 = vmatprep.subr.bf16.mxu0 0
    %3114 = vmatpush1.bf16.msra.mxu0 0
    %3115 = vmatprep.subr.bf16.mxu0 0
    %3116 = vmatpush1.bf16.msra.mxu0 0
    %3117 = vmatprep.subr.bf16.mxu0 0
    %3118 = vmatpush1.bf16.msra.mxu0 0
    %3119 = vmatprep.subr.bf16.mxu0 0
    %3120 = vmatpush1.bf16.msra.mxu0 0
    %3121 = vmatprep.subr.bf16.mxu0 0
    %3122 = vmatpush1.bf16.msra.mxu0 0
    %3123 = vmatprep.subr.bf16.mxu0 0
    %3124 = vmatpush1.bf16.msra.mxu0 0
    %3125 = vmatprep.subr.bf16.mxu0 0
    %3126 = vmatpush1.bf16.msra.mxu0 0
    %3127 = vmatprep.subr.bf16.mxu0 0
    %3128 = vmatpush1.bf16.msra.mxu0 0
    %3129 = vmatprep.mubr.bf16.mxu0 0
    %3130 = vmatmul.mubr.bf16.gmra.mrb[0].mxu0 %v2735
    %v3131 = vpop.f32.mrb[0].mxu0
    %v3132 = vadd.f32 %v3019, %v3131
    %v3133 = vpop.f32.mrb[0].mxu0
    %v3134 = vadd.f32 %v3021, %v3133
    %v3135 = vpop.f32.mrb[0].mxu0
    %v3136 = vadd.f32 %v3023, %v3135
    %v3137 = vpop.f32.mrb[0].mxu0
    %v3138 = vadd.f32 %v3025, %v3137
    %3139 = vmatprep.mubr.bf16.mxu0 0
    %3140 = vmatmul.mubr.bf16.gmra.mrb[0].mxu0 %v2738
    %v3141 = vpop.f32.mrb[0].mxu0
    %v3142 = vadd.f32 %v3029, %v3141
    %v3143 = vpop.f32.mrb[0].mxu0
    %v3144 = vadd.f32 %v3031, %v3143
    %v3145 = vpop.f32.mrb[0].mxu0
    %v3146 = vadd.f32 %v3033, %v3145
    %v3147 = vpop.f32.mrb[0].mxu0
    %v3148 = vadd.f32 %v3035, %v3147
    %3149 = vmatprep.mubr.bf16.mxu0 0
    %3150 = vmatmul.mubr.bf16.gmra.mrb[0].mxu0 %v2741
    %v3151 = vpop.f32.mrb[0].mxu0
    %v3152 = vadd.f32 %v3039, %v3151
    %v3153 = vpop.f32.mrb[0].mxu0
    %v3154 = vadd.f32 %v3041, %v3153
    %v3155 = vpop.f32.mrb[0].mxu0
    %v3156 = vadd.f32 %v3043, %v3155
    %v3157 = vpop.f32.mrb[0].mxu0
    %v3158 = vadd.f32 %v3045, %v3157
    %3159 = vmatprep.mubr.bf16.mxu0 0
    %3160 = vmatmul.mubr.bf16.gmra.mrb[0].mxu0 %v2744
    %v3161 = vpop.f32.mrb[0].mxu0
    %v3162 = vadd.f32 %v3049, %v3161
    %v3163 = vpop.f32.mrb[0].mxu0
    %v3164 = vadd.f32 %v3051, %v3163
    %v3165 = vpop.f32.mrb[0].mxu0
    %v3166 = vadd.f32 %v3053, %v3165
    %v3167 = vpop.f32.mrb[0].mxu0
    %v3168 = vadd.f32 %v3055, %v3167
    %3169 = vmatprep.mubr.bf16.mxu0 0
    %3170 = vmatmul.mubr.bf16.gmra.mrb[0].mxu0 %v2747
    %v3171 = vpop.f32.mrb[0].mxu0
    %v3172 = vadd.f32 %v3059, %v3171
    %v3173 = vpop.f32.mrb[0].mxu0
    %v3174 = vadd.f32 %v3061, %v3173
    %v3175 = vpop.f32.mrb[0].mxu0
    %v3176 = vadd.f32 %v3063, %v3175
    %v3177 = vpop.f32.mrb[0].mxu0
    %v3178 = vadd.f32 %v3065, %v3177
    %3179 = vmatprep.mubr.bf16.mxu0 0
    %3180 = vmatmul.mubr.bf16.gmra.mrb[0].mxu0 %v2750
    %v3181 = vpop.f32.mrb[0].mxu0
    %v3182 = vadd.f32 %v3069, %v3181
    %v3183 = vpop.f32.mrb[0].mxu0
    %v3184 = vadd.f32 %v3071, %v3183
    %v3185 = vpop.f32.mrb[0].mxu0
    %v3186 = vadd.f32 %v3073, %v3185
    %v3187 = vpop.f32.mrb[0].mxu0
    %v3188 = vadd.f32 %v3075, %v3187
    %3189 = vmatprep.mubr.bf16.mxu0 0
    %3190 = vmatmul.mubr.bf16.gmra.mrb[0].mxu0 %v2753
    %v3191 = vpop.f32.mrb[0].mxu0
    %v3192 = vadd.f32 %v3079, %v3191
    %v3193 = vpop.f32.mrb[0].mxu0
    %v3194 = vadd.f32 %v3081, %v3193
    %v3195 = vpop.f32.mrb[0].mxu0
    %v3196 = vadd.f32 %v3083, %v3195
    %v3197 = vpop.f32.mrb[0].mxu0
    %v3198 = vadd.f32 %v3085, %v3197
    %3199 = vmatprep.mubr.bf16.mxu0 0
    %3200 = vmatmul.mubr.bf16.gmra.mrb[0].mxu0 %v2756
    %v3201 = vpop.f32.mrb[0].mxu0
    %v3202 = vadd.f32 %v3089, %v3201
    %v3203 = vpop.f32.mrb[0].mxu0
    %v3204 = vadd.f32 %v3091, %v3203
    %v3205 = vpop.f32.mrb[0].mxu0
    %v3206 = vadd.f32 %v3093, %v3205
    %v3207 = vpop.f32.mrb[0].mxu0
    %v3208 = vadd.f32 %v3095, %v3207
    %3209 = vdwg.mxu0
    %3210 = vmatprep.subr.bf16.mxu0 %v2050
    %3211 = vmatpush1.bf16.msra.mxu0 %v2049
    %3212 = vmatprep.subr.bf16.mxu0 %v2057
    %3213 = vmatpush1.bf16.msra.mxu0 %v2056
    %3214 = vmatprep.subr.bf16.mxu0 %v2064
    %3215 = vmatpush1.bf16.msra.mxu0 %v2063
    %3216 = vmatprep.subr.bf16.mxu0 %v2071
    %3217 = vmatpush1.bf16.msra.mxu0 %v2070
    %3218 = vmatprep.subr.bf16.mxu0 %v2078
    %3219 = vmatpush1.bf16.msra.mxu0 %v2077
    %3220 = vmatprep.subr.bf16.mxu0 %v2085
    %3221 = vmatpush1.bf16.msra.mxu0 %v2084
    %3222 = vmatprep.subr.bf16.mxu0 %v2092
    %3223 = vmatpush1.bf16.msra.mxu0 %v2091
    %3224 = vmatprep.subr.bf16.mxu0 %v2099
    %3225 = vmatpush1.bf16.msra.mxu0 %v2098
    %3226 = vmatprep.subr.bf16.mxu0 %v2106
    %3227 = vmatpush1.bf16.msra.mxu0 %v2105
    %3228 = vmatprep.subr.bf16.mxu0 %v2113
    %3229 = vmatpush1.bf16.msra.mxu0 %v2112
    %3230 = vmatprep.subr.bf16.mxu0 %v2120
    %3231 = vmatpush1.bf16.msra.mxu0 %v2119
    %3232 = vmatprep.subr.bf16.mxu0 %v2127
    %3233 = vmatpush1.bf16.msra.mxu0 %v2126
    %3234 = vmatprep.subr.bf16.mxu0 %v2134
    %3235 = vmatpush1.bf16.msra.mxu0 %v2133
    %3236 = vmatprep.subr.bf16.mxu0 %v2141
    %3237 = vmatpush1.bf16.msra.mxu0 %v2140
    %3238 = vmatprep.subr.bf16.mxu0 %v2148
    %3239 = vmatpush1.bf16.msra.mxu0 %v2147
    %3240 = vmatprep.subr.bf16.mxu0 %v2155
    %3241 = vmatpush1.bf16.msra.mxu0 %v2154
    %3242 = vmatprep.mubr.bf16.mxu0 %v866
    %3243 = vmatmul.mubr.bf16.gmra.mrb[0].mxu0 %v865
    %v3244 = vpop.f32.mrb[0].mxu0
    %v3245 = vadd.f32 %v665, %v3244
    %v3246 = vpop.f32.mrb[0].mxu0
    %v3247 = vadd.f32 %v669, %v3246
    %v3248 = vpop.f32.mrb[0].mxu0
    %v3249 = vadd.f32 %v665, %v3248
    %v3250 = vpop.f32.mrb[0].mxu0
    %v3251 = vadd.f32 %v669, %v3250
    %3252 = vmatprep.mubr.bf16.mxu0 %v873
    %3253 = vmatmul.mubr.bf16.gmra.mrb[0].mxu0 %v872
    %v3254 = vpop.f32.mrb[0].mxu0
    %v3255 = vadd.f32 %v665, %v3254
    %v3256 = vpop.f32.mrb[0].mxu0
    %v3257 = vadd.f32 %v669, %v3256
    %v3258 = vpop.f32.mrb[0].mxu0
    %v3259 = vadd.f32 %v665, %v3258
    %v3260 = vpop.f32.mrb[0].mxu0
    %v3261 = vadd.f32 %v669, %v3260
    %3262 = vmatprep.mubr.bf16.mxu0 %v880
    %3263 = vmatmul.mubr.bf16.gmra.mrb[0].mxu0 %v879
    %v3264 = vpop.f32.mrb[0].mxu0
    %v3265 = vadd.f32 %v665, %v3264
    %v3266 = vpop.f32.mrb[0].mxu0
    %v3267 = vadd.f32 %v669, %v3266
    %v3268 = vpop.f32.mrb[0].mxu0
    %v3269 = vadd.f32 %v665, %v3268
    %v3270 = vpop.f32.mrb[0].mxu0
    %v3271 = vadd.f32 %v669, %v3270
    %3272 = vmatprep.mubr.bf16.mxu0 %v887
    %3273 = vmatmul.mubr.bf16.gmra.mrb[0].mxu0 %v886
    %v3274 = vpop.f32.mrb[0].mxu0
    %v3275 = vadd.f32 %v665, %v3274
    %v3276 = vpop.f32.mrb[0].mxu0
    %v3277 = vadd.f32 %v669, %v3276
    %v3278 = vpop.f32.mrb[0].mxu0
    %v3279 = vadd.f32 %v665, %v3278
    %v3280 = vpop.f32.mrb[0].mxu0
    %v3281 = vadd.f32 %v669, %v3280
    %3282 = vmatprep.mubr.bf16.mxu0 %v894
    %3283 = vmatmul.mubr.bf16.gmra.mrb[0].mxu0 %v893
    %v3284 = vpop.f32.mrb[0].mxu0
    %v3285 = vadd.f32 %v665, %v3284
    %v3286 = vpop.f32.mrb[0].mxu0
    %v3287 = vadd.f32 %v669, %v3286
    %v3288 = vpop.f32.mrb[0].mxu0
    %v3289 = vadd.f32 %v665, %v3288
    %v3290 = vpop.f32.mrb[0].mxu0
    %v3291 = vadd.f32 %v669, %v3290
    %3292 = vmatprep.mubr.bf16.mxu0 %v901
    %3293 = vmatmul.mubr.bf16.gmra.mrb[0].mxu0 %v900
    %v3294 = vpop.f32.mrb[0].mxu0
    %v3295 = vadd.f32 %v665, %v3294
    %v3296 = vpop.f32.mrb[0].mxu0
    %v3297 = vadd.f32 %v669, %v3296
    %v3298 = vpop.f32.mrb[0].mxu0
    %v3299 = vadd.f32 %v665, %v3298
    %v3300 = vpop.f32.mrb[0].mxu0
    %v3301 = vadd.f32 %v669, %v3300
    %3302 = vmatprep.mubr.bf16.mxu0 %v908
    %3303 = vmatmul.mubr.bf16.gmra.mrb[0].mxu0 %v907
    %v3304 = vpop.f32.mrb[0].mxu0
    %v3305 = vadd.f32 %v665, %v3304
    %v3306 = vpop.f32.mrb[0].mxu0
    %v3307 = vadd.f32 %v669, %v3306
    %v3308 = vpop.f32.mrb[0].mxu0
    %v3309 = vadd.f32 %v665, %v3308
    %v3310 = vpop.f32.mrb[0].mxu0
    %v3311 = vadd.f32 %v669, %v3310
    %3312 = vmatprep.mubr.bf16.mxu0 %v915
    %3313 = vmatmul.mubr.bf16.gmra.mrb[0].mxu0 %v914
    %v3314 = vpop.f32.mrb[0].mxu0
    %v3315 = vadd.f32 %v665, %v3314
    %v3316 = vpop.f32.mrb[0].mxu0
    %v3317 = vadd.f32 %v669, %v3316
    %v3318 = vpop.f32.mrb[0].mxu0
    %v3319 = vadd.f32 %v665, %v3318
    %v3320 = vpop.f32.mrb[0].mxu0
    %v3321 = vadd.f32 %v669, %v3320
    %3322 = vdwg.mxu0
    %3323 = vmatprep.subr.bf16.mxu0 %v2162
    %3324 = vmatpush1.bf16.msra.mxu0 %v2161
    %3325 = vmatprep.subr.bf16.mxu0 %v2169
    %3326 = vmatpush1.bf16.msra.mxu0 %v2168
    %3327 = vmatprep.subr.bf16.mxu0 %v2176
    %3328 = vmatpush1.bf16.msra.mxu0 %v2175
    %3329 = vmatprep.subr.bf16.mxu0 %v2183
    %3330 = vmatpush1.bf16.msra.mxu0 %v2182
    %3331 = vmatprep.subr.bf16.mxu0 %v2190
    %3332 = vmatpush1.bf16.msra.mxu0 %v2189
    %3333 = vmatprep.subr.bf16.mxu0 %v2197
    %3334 = vmatpush1.bf16.msra.mxu0 %v2196
    %3335 = vmatprep.subr.bf16.mxu0 %v2204
    %3336 = vmatpush1.bf16.msra.mxu0 %v2203
    %3337 = vmatprep.subr.bf16.mxu0 %v2211
    %3338 = vmatpush1.bf16.msra.mxu0 %v2210
    %3339 = vmatprep.subr.bf16.mxu0 %v2218
    %3340 = vmatpush1.bf16.msra.mxu0 %v2217
    %3341 = vmatprep.subr.bf16.mxu0 %v2225
    %3342 = vmatpush1.bf16.msra.mxu0 %v2224
    %3343 = vmatprep.subr.bf16.mxu0 %v2232
    %3344 = vmatpush1.bf16.msra.mxu0 %v2231
    %3345 = vmatprep.subr.bf16.mxu0 %v2239
    %3346 = vmatpush1.bf16.msra.mxu0 %v2238
    %3347 = vmatprep.subr.bf16.mxu0 %v2246
    %3348 = vmatpush1.bf16.msra.mxu0 %v2245
    %3349 = vmatprep.subr.bf16.mxu0 %v2253
    %3350 = vmatpush1.bf16.msra.mxu0 %v2252
    %3351 = vmatprep.subr.bf16.mxu0 %v2260
    %3352 = vmatpush1.bf16.msra.mxu0 %v2259
    %3353 = vmatprep.subr.bf16.mxu0 %v2267
    %3354 = vmatpush1.bf16.msra.mxu0 %v2266
    %3355 = vmatprep.mubr.bf16.mxu0 %v868
    %3356 = vmatmul.mubr.bf16.gmra.mrb[0].mxu0 %v867
    %v3357 = vpop.f32.mrb[0].mxu0
    %v3358 = vadd.f32 %v3245, %v3357
    %v3359 = vpop.f32.mrb[0].mxu0
    %v3360 = vadd.f32 %v3247, %v3359
    %v3361 = vpop.f32.mrb[0].mxu0
    %v3362 = vadd.f32 %v3249, %v3361
    %v3363 = vpop.f32.mrb[0].mxu0
    %v3364 = vadd.f32 %v3251, %v3363
    %3365 = vmatprep.mubr.bf16.mxu0 %v875
    %3366 = vmatmul.mubr.bf16.gmra.mrb[0].mxu0 %v874
    %v3367 = vpop.f32.mrb[0].mxu0
    %v3368 = vadd.f32 %v3255, %v3367
    %v3369 = vpop.f32.mrb[0].mxu0
    %v3370 = vadd.f32 %v3257, %v3369
    %v3371 = vpop.f32.mrb[0].mxu0
    %v3372 = vadd.f32 %v3259, %v3371
    %v3373 = vpop.f32.mrb[0].mxu0
    %v3374 = vadd.f32 %v3261, %v3373
    %3375 = vmatprep.mubr.bf16.mxu0 %v882
    %3376 = vmatmul.mubr.bf16.gmra.mrb[0].mxu0 %v881
    %v3377 = vpop.f32.mrb[0].mxu0
    %v3378 = vadd.f32 %v3265, %v3377
    %v3379 = vpop.f32.mrb[0].mxu0
    %v3380 = vadd.f32 %v3267, %v3379
    %v3381 = vpop.f32.mrb[0].mxu0
    %v3382 = vadd.f32 %v3269, %v3381
    %v3383 = vpop.f32.mrb[0].mxu0
    %v3384 = vadd.f32 %v3271, %v3383
    %3385 = vmatprep.mubr.bf16.mxu0 %v889
    %3386 = vmatmul.mubr.bf16.gmra.mrb[0].mxu0 %v888
    %v3387 = vpop.f32.mrb[0].mxu0
    %v3388 = vadd.f32 %v3275, %v3387
    %v3389 = vpop.f32.mrb[0].mxu0
    %v3390 = vadd.f32 %v3277, %v3389
    %v3391 = vpop.f32.mrb[0].mxu0
    %v3392 = vadd.f32 %v3279, %v3391
    %v3393 = vpop.f32.mrb[0].mxu0
    %v3394 = vadd.f32 %v3281, %v3393
    %3395 = vmatprep.mubr.bf16.mxu0 %v896
    %3396 = vmatmul.mubr.bf16.gmra.mrb[0].mxu0 %v895
    %v3397 = vpop.f32.mrb[0].mxu0
    %v3398 = vadd.f32 %v3285, %v3397
    %v3399 = vpop.f32.mrb[0].mxu0
    %v3400 = vadd.f32 %v3287, %v3399
    %v3401 = vpop.f32.mrb[0].mxu0
    %v3402 = vadd.f32 %v3289, %v3401
    %v3403 = vpop.f32.mrb[0].mxu0
    %v3404 = vadd.f32 %v3291, %v3403
    %3405 = vmatprep.mubr.bf16.mxu0 %v903
    %3406 = vmatmul.mubr.bf16.gmra.mrb[0].mxu0 %v902
    %v3407 = vpop.f32.mrb[0].mxu0
    %v3408 = vadd.f32 %v3295, %v3407
    %v3409 = vpop.f32.mrb[0].mxu0
    %v3410 = vadd.f32 %v3297, %v3409
    %v3411 = vpop.f32.mrb[0].mxu0
    %v3412 = vadd.f32 %v3299, %v3411
    %v3413 = vpop.f32.mrb[0].mxu0
    %v3414 = vadd.f32 %v3301, %v3413
    %3415 = vmatprep.mubr.bf16.mxu0 %v910
    %3416 = vmatmul.mubr.bf16.gmra.mrb[0].mxu0 %v909
    %v3417 = vpop.f32.mrb[0].mxu0
    %v3418 = vadd.f32 %v3305, %v3417
    %v3419 = vpop.f32.mrb[0].mxu0
    %v3420 = vadd.f32 %v3307, %v3419
    %v3421 = vpop.f32.mrb[0].mxu0
    %v3422 = vadd.f32 %v3309, %v3421
    %v3423 = vpop.f32.mrb[0].mxu0
    %v3424 = vadd.f32 %v3311, %v3423
    %3425 = vmatprep.mubr.bf16.mxu0 %v917
    %3426 = vmatmul.mubr.bf16.gmra.mrb[0].mxu0 %v916
    %v3427 = vpop.f32.mrb[0].mxu0
    %v3428 = vadd.f32 %v3315, %v3427
    %v3429 = vpop.f32.mrb[0].mxu0
    %v3430 = vadd.f32 %v3317, %v3429
    %v3431 = vpop.f32.mrb[0].mxu0
    %v3432 = vadd.f32 %v3319, %v3431
    %v3433 = vpop.f32.mrb[0].mxu0
    %v3434 = vadd.f32 %v3321, %v3433
    %3435 = vdwg.mxu0
    %3436 = vmatprep.subr.bf16.mxu0 %v2274
    %3437 = vmatpush1.bf16.msra.mxu0 %v2273
    %3438 = vmatprep.subr.bf16.mxu0 %v2281
    %3439 = vmatpush1.bf16.msra.mxu0 %v2280
    %3440 = vmatprep.subr.bf16.mxu0 %v2288
    %3441 = vmatpush1.bf16.msra.mxu0 %v2287
    %3442 = vmatprep.subr.bf16.mxu0 %v2295
    %3443 = vmatpush1.bf16.msra.mxu0 %v2294
    %3444 = vmatprep.subr.bf16.mxu0 %v2302
    %3445 = vmatpush1.bf16.msra.mxu0 %v2301
    %3446 = vmatprep.subr.bf16.mxu0 %v2309
    %3447 = vmatpush1.bf16.msra.mxu0 %v2308
    %3448 = vmatprep.subr.bf16.mxu0 %v2316
    %3449 = vmatpush1.bf16.msra.mxu0 %v2315
    %3450 = vmatprep.subr.bf16.mxu0 %v2323
    %3451 = vmatpush1.bf16.msra.mxu0 %v2322
    %3452 = vmatprep.subr.bf16.mxu0 %v2330
    %3453 = vmatpush1.bf16.msra.mxu0 %v2329
    %3454 = vmatprep.subr.bf16.mxu0 %v2337
    %3455 = vmatpush1.bf16.msra.mxu0 %v2336
    %3456 = vmatprep.subr.bf16.mxu0 %v2344
    %3457 = vmatpush1.bf16.msra.mxu0 %v2343
    %3458 = vmatprep.subr.bf16.mxu0 %v2351
    %3459 = vmatpush1.bf16.msra.mxu0 %v2350
    %3460 = vmatprep.subr.bf16.mxu0 %v2358
    %3461 = vmatpush1.bf16.msra.mxu0 %v2357
    %3462 = vmatprep.subr.bf16.mxu0 %v2365
    %3463 = vmatpush1.bf16.msra.mxu0 %v2364
    %3464 = vmatprep.subr.bf16.mxu0 %v2372
    %3465 = vmatpush1.bf16.msra.mxu0 %v2371
    %3466 = vmatprep.subr.bf16.mxu0 %v2379
    %3467 = vmatpush1.bf16.msra.mxu0 %v2378
    %3468 = vmatprep.mubr.bf16.mxu0 %v870
    %3469 = vmatmul.mubr.bf16.gmra.mrb[0].mxu0 %v869
    %v3470 = vpop.f32.mrb[0].mxu0
    %v3471 = vadd.f32 %v3358, %v3470
    %v3472 = vpop.f32.mrb[0].mxu0
    %v3473 = vadd.f32 %v3360, %v3472
    %v3474 = vpop.f32.mrb[0].mxu0
    %v3475 = vadd.f32 %v3362, %v3474
    %v3476 = vpop.f32.mrb[0].mxu0
    %v3477 = vadd.f32 %v3364, %v3476
    %3478 = vmatprep.mubr.bf16.mxu0 %v877
    %3479 = vmatmul.mubr.bf16.gmra.mrb[0].mxu0 %v876
    %v3480 = vpop.f32.mrb[0].mxu0
    %v3481 = vadd.f32 %v3368, %v3480
    %v3482 = vpop.f32.mrb[0].mxu0
    %v3483 = vadd.f32 %v3370, %v3482
    %v3484 = vpop.f32.mrb[0].mxu0
    %v3485 = vadd.f32 %v3372, %v3484
    %v3486 = vpop.f32.mrb[0].mxu0
    %v3487 = vadd.f32 %v3374, %v3486
    %3488 = vmatprep.mubr.bf16.mxu0 %v884
    %3489 = vmatmul.mubr.bf16.gmra.mrb[0].mxu0 %v883
    %v3490 = vpop.f32.mrb[0].mxu0
    %v3491 = vadd.f32 %v3378, %v3490
    %v3492 = vpop.f32.mrb[0].mxu0
    %v3493 = vadd.f32 %v3380, %v3492
    %v3494 = vpop.f32.mrb[0].mxu0
    %v3495 = vadd.f32 %v3382, %v3494
    %v3496 = vpop.f32.mrb[0].mxu0
    %v3497 = vadd.f32 %v3384, %v3496
    %3498 = vmatprep.mubr.bf16.mxu0 %v891
    %3499 = vmatmul.mubr.bf16.gmra.mrb[0].mxu0 %v890
    %v3500 = vpop.f32.mrb[0].mxu0
    %v3501 = vadd.f32 %v3388, %v3500
    %v3502 = vpop.f32.mrb[0].mxu0
    %v3503 = vadd.f32 %v3390, %v3502
    %v3504 = vpop.f32.mrb[0].mxu0
    %v3505 = vadd.f32 %v3392, %v3504
    %v3506 = vpop.f32.mrb[0].mxu0
    %v3507 = vadd.f32 %v3394, %v3506
    %3508 = vmatprep.mubr.bf16.mxu0 %v898
    %3509 = vmatmul.mubr.bf16.gmra.mrb[0].mxu0 %v897
    %v3510 = vpop.f32.mrb[0].mxu0
    %v3511 = vadd.f32 %v3398, %v3510
    %v3512 = vpop.f32.mrb[0].mxu0
    %v3513 = vadd.f32 %v3400, %v3512
    %v3514 = vpop.f32.mrb[0].mxu0
    %v3515 = vadd.f32 %v3402, %v3514
    %v3516 = vpop.f32.mrb[0].mxu0
    %v3517 = vadd.f32 %v3404, %v3516
    %3518 = vmatprep.mubr.bf16.mxu0 %v905
    %3519 = vmatmul.mubr.bf16.gmra.mrb[0].mxu0 %v904
    %v3520 = vpop.f32.mrb[0].mxu0
    %v3521 = vadd.f32 %v3408, %v3520
    %v3522 = vpop.f32.mrb[0].mxu0
    %v3523 = vadd.f32 %v3410, %v3522
    %v3524 = vpop.f32.mrb[0].mxu0
    %v3525 = vadd.f32 %v3412, %v3524
    %v3526 = vpop.f32.mrb[0].mxu0
    %v3527 = vadd.f32 %v3414, %v3526
    %3528 = vmatprep.mubr.bf16.mxu0 %v912
    %3529 = vmatmul.mubr.bf16.gmra.mrb[0].mxu0 %v911
    %v3530 = vpop.f32.mrb[0].mxu0
    %v3531 = vadd.f32 %v3418, %v3530
    %v3532 = vpop.f32.mrb[0].mxu0
    %v3533 = vadd.f32 %v3420, %v3532
    %v3534 = vpop.f32.mrb[0].mxu0
    %v3535 = vadd.f32 %v3422, %v3534
    %v3536 = vpop.f32.mrb[0].mxu0
    %v3537 = vadd.f32 %v3424, %v3536
    %3538 = vmatprep.mubr.bf16.mxu0 %v919
    %3539 = vmatmul.mubr.bf16.gmra.mrb[0].mxu0 %v918
    %v3540 = vpop.f32.mrb[0].mxu0
    %v3541 = vadd.f32 %v3428, %v3540
    %v3542 = vpop.f32.mrb[0].mxu0
    %v3543 = vadd.f32 %v3430, %v3542
    %v3544 = vpop.f32.mrb[0].mxu0
    %v3545 = vadd.f32 %v3432, %v3544
    %v3546 = vpop.f32.mrb[0].mxu0
    %v3547 = vadd.f32 %v3434, %v3546
    %3548 = vdwg.mxu0
    %3549 = vmatprep.subr.bf16.mxu0 %v2386
    %3550 = vmatpush1.bf16.msra.mxu0 %v2385
    %3551 = vmatprep.subr.bf16.mxu0 0
    %3552 = vmatpush1.bf16.msra.mxu0 0
    %3553 = vmatprep.subr.bf16.mxu0 0
    %3554 = vmatpush1.bf16.msra.mxu0 0
    %3555 = vmatprep.subr.bf16.mxu0 0
    %3556 = vmatpush1.bf16.msra.mxu0 0
    %3557 = vmatprep.subr.bf16.mxu0 0
    %3558 = vmatpush1.bf16.msra.mxu0 0
    %3559 = vmatprep.subr.bf16.mxu0 0
    %3560 = vmatpush1.bf16.msra.mxu0 0
    %3561 = vmatprep.subr.bf16.mxu0 0
    %3562 = vmatpush1.bf16.msra.mxu0 0
    %3563 = vmatprep.subr.bf16.mxu0 0
    %3564 = vmatpush1.bf16.msra.mxu0 0
    %3565 = vmatprep.subr.bf16.mxu0 0
    %3566 = vmatpush1.bf16.msra.mxu0 0
    %3567 = vmatprep.subr.bf16.mxu0 0
    %3568 = vmatpush1.bf16.msra.mxu0 0
    %3569 = vmatprep.subr.bf16.mxu0 0
    %3570 = vmatpush1.bf16.msra.mxu0 0
    %3571 = vmatprep.subr.bf16.mxu0 0
    %3572 = vmatpush1.bf16.msra.mxu0 0
    %3573 = vmatprep.subr.bf16.mxu0 0
    %3574 = vmatpush1.bf16.msra.mxu0 0
    %3575 = vmatprep.subr.bf16.mxu0 0
    %3576 = vmatpush1.bf16.msra.mxu0 0
    %3577 = vmatprep.subr.bf16.mxu0 0
    %3578 = vmatpush1.bf16.msra.mxu0 0
    %3579 = vmatprep.subr.bf16.mxu0 0
    %3580 = vmatpush1.bf16.msra.mxu0 0
    %3581 = vmatprep.mubr.bf16.mxu0 0
    %3582 = vmatmul.mubr.bf16.gmra.mrb[0].mxu0 %v2735
    %v3583 = vpop.f32.mrb[0].mxu0
    %v3584 = vadd.f32 %v3471, %v3583
    %v3585 = vpop.f32.mrb[0].mxu0
    %v3586 = vadd.f32 %v3473, %v3585
    %v3587 = vpop.f32.mrb[0].mxu0
    %v3588 = vadd.f32 %v3475, %v3587
    %v3589 = vpop.f32.mrb[0].mxu0
    %v3590 = vadd.f32 %v3477, %v3589
    %3591 = vmatprep.mubr.bf16.mxu0 0
    %3592 = vmatmul.mubr.bf16.gmra.mrb[0].mxu0 %v2738
    %v3593 = vpop.f32.mrb[0].mxu0
    %v3594 = vadd.f32 %v3481, %v3593
    %v3595 = vpop.f32.mrb[0].mxu0
    %v3596 = vadd.f32 %v3483, %v3595
    %v3597 = vpop.f32.mrb[0].mxu0
    %v3598 = vadd.f32 %v3485, %v3597
    %v3599 = vpop.f32.mrb[0].mxu0
    %v3600 = vadd.f32 %v3487, %v3599
    %3601 = vmatprep.mubr.bf16.mxu0 0
    %3602 = vmatmul.mubr.bf16.gmra.mrb[0].mxu0 %v2741
    %v3603 = vpop.f32.mrb[0].mxu0
    %v3604 = vadd.f32 %v3491, %v3603
    %v3605 = vpop.f32.mrb[0].mxu0
    %v3606 = vadd.f32 %v3493, %v3605
    %v3607 = vpop.f32.mrb[0].mxu0
    %v3608 = vadd.f32 %v3495, %v3607
    %v3609 = vpop.f32.mrb[0].mxu0
    %v3610 = vadd.f32 %v3497, %v3609
    %3611 = vmatprep.mubr.bf16.mxu0 0
    %3612 = vmatmul.mubr.bf16.gmra.mrb[0].mxu0 %v2744
    %v3613 = vpop.f32.mrb[0].mxu0
    %v3614 = vadd.f32 %v3501, %v3613
    %v3615 = vpop.f32.mrb[0].mxu0
    %v3616 = vadd.f32 %v3503, %v3615
    %v3617 = vpop.f32.mrb[0].mxu0
    %v3618 = vadd.f32 %v3505, %v3617
    %v3619 = vpop.f32.mrb[0].mxu0
    %v3620 = vadd.f32 %v3507, %v3619
    %3621 = vmatprep.mubr.bf16.mxu0 0
    %3622 = vmatmul.mubr.bf16.gmra.mrb[0].mxu0 %v2747
    %v3623 = vpop.f32.mrb[0].mxu0
    %v3624 = vadd.f32 %v3511, %v3623
    %v3625 = vpop.f32.mrb[0].mxu0
    %v3626 = vadd.f32 %v3513, %v3625
    %v3627 = vpop.f32.mrb[0].mxu0
    %v3628 = vadd.f32 %v3515, %v3627
    %v3629 = vpop.f32.mrb[0].mxu0
    %v3630 = vadd.f32 %v3517, %v3629
    %3631 = vmatprep.mubr.bf16.mxu0 0
    %3632 = vmatmul.mubr.bf16.gmra.mrb[0].mxu0 %v2750
    %v3633 = vpop.f32.mrb[0].mxu0
    %v3634 = vadd.f32 %v3521, %v3633
    %v3635 = vpop.f32.mrb[0].mxu0
    %v3636 = vadd.f32 %v3523, %v3635
    %v3637 = vpop.f32.mrb[0].mxu0
    %v3638 = vadd.f32 %v3525, %v3637
    %v3639 = vpop.f32.mrb[0].mxu0
    %v3640 = vadd.f32 %v3527, %v3639
    %3641 = vmatprep.mubr.bf16.mxu0 0
    %3642 = vmatmul.mubr.bf16.gmra.mrb[0].mxu0 %v2753
    %v3643 = vpop.f32.mrb[0].mxu0
    %v3644 = vadd.f32 %v3531, %v3643
    %v3645 = vpop.f32.mrb[0].mxu0
    %v3646 = vadd.f32 %v3533, %v3645
    %v3647 = vpop.f32.mrb[0].mxu0
    %v3648 = vadd.f32 %v3535, %v3647
    %v3649 = vpop.f32.mrb[0].mxu0
    %v3650 = vadd.f32 %v3537, %v3649
    %3651 = vmatprep.mubr.bf16.mxu0 0
    %3652 = vmatmul.mubr.bf16.gmra.mrb[0].mxu0 %v2756
    %v3653 = vpop.f32.mrb[0].mxu0
    %v3654 = vadd.f32 %v3541, %v3653
    %v3655 = vpop.f32.mrb[0].mxu0
    %v3656 = vadd.f32 %v3543, %v3655
    %v3657 = vpop.f32.mrb[0].mxu0
    %v3658 = vadd.f32 %v3545, %v3657
    %v3659 = vpop.f32.mrb[0].mxu0
    %v3660 = vadd.f32 %v3547, %v3659
    %3661 = vdwg.mxu0
    %3662 = vmatprep.subr.bf16.mxu0 %v2052
    %3663 = vmatpush1.bf16.msra.mxu0 %v2051
    %3664 = vmatprep.subr.bf16.mxu0 %v2059
    %3665 = vmatpush1.bf16.msra.mxu0 %v2058
    %3666 = vmatprep.subr.bf16.mxu0 %v2066
    %3667 = vmatpush1.bf16.msra.mxu0 %v2065
    %3668 = vmatprep.subr.bf16.mxu0 %v2073
    %3669 = vmatpush1.bf16.msra.mxu0 %v2072
    %3670 = vmatprep.subr.bf16.mxu0 %v2080
    %3671 = vmatpush1.bf16.msra.mxu0 %v2079
    %3672 = vmatprep.subr.bf16.mxu0 %v2087
    %3673 = vmatpush1.bf16.msra.mxu0 %v2086
    %3674 = vmatprep.subr.bf16.mxu0 %v2094
    %3675 = vmatpush1.bf16.msra.mxu0 %v2093
    %3676 = vmatprep.subr.bf16.mxu0 %v2101
    %3677 = vmatpush1.bf16.msra.mxu0 %v2100
    %3678 = vmatprep.subr.bf16.mxu0 %v2108
    %3679 = vmatpush1.bf16.msra.mxu0 %v2107
    %3680 = vmatprep.subr.bf16.mxu0 %v2115
    %3681 = vmatpush1.bf16.msra.mxu0 %v2114
    %3682 = vmatprep.subr.bf16.mxu0 %v2122
    %3683 = vmatpush1.bf16.msra.mxu0 %v2121
    %3684 = vmatprep.subr.bf16.mxu0 %v2129
    %3685 = vmatpush1.bf16.msra.mxu0 %v2128
    %3686 = vmatprep.subr.bf16.mxu0 %v2136
    %3687 = vmatpush1.bf16.msra.mxu0 %v2135
    %3688 = vmatprep.subr.bf16.mxu0 %v2143
    %3689 = vmatpush1.bf16.msra.mxu0 %v2142
    %3690 = vmatprep.subr.bf16.mxu0 %v2150
    %3691 = vmatpush1.bf16.msra.mxu0 %v2149
    %3692 = vmatprep.subr.bf16.mxu0 %v2157
    %3693 = vmatpush1.bf16.msra.mxu0 %v2156
    %3694 = vmatprep.mubr.bf16.mxu0 %v866
    %3695 = vmatmul.mubr.bf16.gmra.mrb[0].mxu0 %v865
    %v3696 = vpop.f32.mrb[0].mxu0
    %v3697 = vadd.f32 %v673, %v3696
    %v3698 = vpop.f32.mrb[0].mxu0
    %v3699 = vadd.f32 %v677, %v3698
    %v3700 = vpop.f32.mrb[0].mxu0
    %v3701 = vadd.f32 %v673, %v3700
    %v3702 = vpop.f32.mrb[0].mxu0
    %v3703 = vadd.f32 %v677, %v3702
    %3704 = vmatprep.mubr.bf16.mxu0 %v873
    %3705 = vmatmul.mubr.bf16.gmra.mrb[0].mxu0 %v872
    %v3706 = vpop.f32.mrb[0].mxu0
    %v3707 = vadd.f32 %v673, %v3706
    %v3708 = vpop.f32.mrb[0].mxu0
    %v3709 = vadd.f32 %v677, %v3708
    %v3710 = vpop.f32.mrb[0].mxu0
    %v3711 = vadd.f32 %v673, %v3710
    %v3712 = vpop.f32.mrb[0].mxu0
    %v3713 = vadd.f32 %v677, %v3712
    %3714 = vmatprep.mubr.bf16.mxu0 %v880
    %3715 = vmatmul.mubr.bf16.gmra.mrb[0].mxu0 %v879
    %v3716 = vpop.f32.mrb[0].mxu0
    %v3717 = vadd.f32 %v673, %v3716
    %v3718 = vpop.f32.mrb[0].mxu0
    %v3719 = vadd.f32 %v677, %v3718
    %v3720 = vpop.f32.mrb[0].mxu0
    %v3721 = vadd.f32 %v673, %v3720
    %v3722 = vpop.f32.mrb[0].mxu0
    %v3723 = vadd.f32 %v677, %v3722
    %3724 = vmatprep.mubr.bf16.mxu0 %v887
    %3725 = vmatmul.mubr.bf16.gmra.mrb[0].mxu0 %v886
    %v3726 = vpop.f32.mrb[0].mxu0
    %v3727 = vadd.f32 %v673, %v3726
    %v3728 = vpop.f32.mrb[0].mxu0
    %v3729 = vadd.f32 %v677, %v3728
    %v3730 = vpop.f32.mrb[0].mxu0
    %v3731 = vadd.f32 %v673, %v3730
    %v3732 = vpop.f32.mrb[0].mxu0
    %v3733 = vadd.f32 %v677, %v3732
    %3734 = vmatprep.mubr.bf16.mxu0 %v894
    %3735 = vmatmul.mubr.bf16.gmra.mrb[0].mxu0 %v893
    %v3736 = vpop.f32.mrb[0].mxu0
    %v3737 = vadd.f32 %v673, %v3736
    %v3738 = vpop.f32.mrb[0].mxu0
    %v3739 = vadd.f32 %v677, %v3738
    %v3740 = vpop.f32.mrb[0].mxu0
    %v3741 = vadd.f32 %v673, %v3740
    %v3742 = vpop.f32.mrb[0].mxu0
    %v3743 = vadd.f32 %v677, %v3742
    %3744 = vmatprep.mubr.bf16.mxu0 %v901
    %3745 = vmatmul.mubr.bf16.gmra.mrb[0].mxu0 %v900
    %v3746 = vpop.f32.mrb[0].mxu0
    %v3747 = vadd.f32 %v673, %v3746
    %v3748 = vpop.f32.mrb[0].mxu0
    %v3749 = vadd.f32 %v677, %v3748
    %v3750 = vpop.f32.mrb[0].mxu0
    %v3751 = vadd.f32 %v673, %v3750
    %v3752 = vpop.f32.mrb[0].mxu0
    %v3753 = vadd.f32 %v677, %v3752
    %3754 = vmatprep.mubr.bf16.mxu0 %v908
    %3755 = vmatmul.mubr.bf16.gmra.mrb[0].mxu0 %v907
    %v3756 = vpop.f32.mrb[0].mxu0
    %v3757 = vadd.f32 %v673, %v3756
    %v3758 = vpop.f32.mrb[0].mxu0
    %v3759 = vadd.f32 %v677, %v3758
    %v3760 = vpop.f32.mrb[0].mxu0
    %v3761 = vadd.f32 %v673, %v3760
    %v3762 = vpop.f32.mrb[0].mxu0
    %v3763 = vadd.f32 %v677, %v3762
    %3764 = vmatprep.mubr.bf16.mxu0 %v915
    %3765 = vmatmul.mubr.bf16.gmra.mrb[0].mxu0 %v914
    %v3766 = vpop.f32.mrb[0].mxu0
    %v3767 = vadd.f32 %v673, %v3766
    %v3768 = vpop.f32.mrb[0].mxu0
    %v3769 = vadd.f32 %v677, %v3768
    %v3770 = vpop.f32.mrb[0].mxu0
    %v3771 = vadd.f32 %v673, %v3770
    %v3772 = vpop.f32.mrb[0].mxu0
    %v3773 = vadd.f32 %v677, %v3772
    %3774 = vdwg.mxu0
    %3775 = vmatprep.subr.bf16.mxu0 %v2164
    %3776 = vmatpush1.bf16.msra.mxu0 %v2163
    %3777 = vmatprep.subr.bf16.mxu0 %v2171
    %3778 = vmatpush1.bf16.msra.mxu0 %v2170
    %3779 = vmatprep.subr.bf16.mxu0 %v2178
    %3780 = vmatpush1.bf16.msra.mxu0 %v2177
    %3781 = vmatprep.subr.bf16.mxu0 %v2185
    %3782 = vmatpush1.bf16.msra.mxu0 %v2184
    %3783 = vmatprep.subr.bf16.mxu0 %v2192
    %3784 = vmatpush1.bf16.msra.mxu0 %v2191
    %3785 = vmatprep.subr.bf16.mxu0 %v2199
    %3786 = vmatpush1.bf16.msra.mxu0 %v2198
    %3787 = vmatprep.subr.bf16.mxu0 %v2206
    %3788 = vmatpush1.bf16.msra.mxu0 %v2205
    %3789 = vmatprep.subr.bf16.mxu0 %v2213
    %3790 = vmatpush1.bf16.msra.mxu0 %v2212
    %3791 = vmatprep.subr.bf16.mxu0 %v2220
    %3792 = vmatpush1.bf16.msra.mxu0 %v2219
    %3793 = vmatprep.subr.bf16.mxu0 %v2227
    %3794 = vmatpush1.bf16.msra.mxu0 %v2226
    %3795 = vmatprep.subr.bf16.mxu0 %v2234
    %3796 = vmatpush1.bf16.msra.mxu0 %v2233
    %3797 = vmatprep.subr.bf16.mxu0 %v2241
    %3798 = vmatpush1.bf16.msra.mxu0 %v2240
    %3799 = vmatprep.subr.bf16.mxu0 %v2248
    %3800 = vmatpush1.bf16.msra.mxu0 %v2247
    %3801 = vmatprep.subr.bf16.mxu0 %v2255
    %3802 = vmatpush1.bf16.msra.mxu0 %v2254
    %3803 = vmatprep.subr.bf16.mxu0 %v2262
    %3804 = vmatpush1.bf16.msra.mxu0 %v2261
    %3805 = vmatprep.subr.bf16.mxu0 %v2269
    %3806 = vmatpush1.bf16.msra.mxu0 %v2268
    %3807 = vmatprep.mubr.bf16.mxu0 %v868
    %3808 = vmatmul.mubr.bf16.gmra.mrb[0].mxu0 %v867
    %v3809 = vpop.f32.mrb[0].mxu0
    %v3810 = vadd.f32 %v3697, %v3809
    %v3811 = vpop.f32.mrb[0].mxu0
    %v3812 = vadd.f32 %v3699, %v3811
    %v3813 = vpop.f32.mrb[0].mxu0
    %v3814 = vadd.f32 %v3701, %v3813
    %v3815 = vpop.f32.mrb[0].mxu0
    %v3816 = vadd.f32 %v3703, %v3815
    %3817 = vmatprep.mubr.bf16.mxu0 %v875
    %3818 = vmatmul.mubr.bf16.gmra.mrb[0].mxu0 %v874
    %v3819 = vpop.f32.mrb[0].mxu0
    %v3820 = vadd.f32 %v3707, %v3819
    %v3821 = vpop.f32.mrb[0].mxu0
    %v3822 = vadd.f32 %v3709, %v3821
    %v3823 = vpop.f32.mrb[0].mxu0
    %v3824 = vadd.f32 %v3711, %v3823
    %v3825 = vpop.f32.mrb[0].mxu0
    %v3826 = vadd.f32 %v3713, %v3825
    %3827 = vmatprep.mubr.bf16.mxu0 %v882
    %3828 = vmatmul.mubr.bf16.gmra.mrb[0].mxu0 %v881
    %v3829 = vpop.f32.mrb[0].mxu0
    %v3830 = vadd.f32 %v3717, %v3829
    %v3831 = vpop.f32.mrb[0].mxu0
    %v3832 = vadd.f32 %v3719, %v3831
    %v3833 = vpop.f32.mrb[0].mxu0
    %v3834 = vadd.f32 %v3721, %v3833
    %v3835 = vpop.f32.mrb[0].mxu0
    %v3836 = vadd.f32 %v3723, %v3835
    %3837 = vmatprep.mubr.bf16.mxu0 %v889
    %3838 = vmatmul.mubr.bf16.gmra.mrb[0].mxu0 %v888
    %v3839 = vpop.f32.mrb[0].mxu0
    %v3840 = vadd.f32 %v3727, %v3839
    %v3841 = vpop.f32.mrb[0].mxu0
    %v3842 = vadd.f32 %v3729, %v3841
    %v3843 = vpop.f32.mrb[0].mxu0
    %v3844 = vadd.f32 %v3731, %v3843
    %v3845 = vpop.f32.mrb[0].mxu0
    %v3846 = vadd.f32 %v3733, %v3845
    %3847 = vmatprep.mubr.bf16.mxu0 %v896
    %3848 = vmatmul.mubr.bf16.gmra.mrb[0].mxu0 %v895
    %v3849 = vpop.f32.mrb[0].mxu0
    %v3850 = vadd.f32 %v3737, %v3849
    %v3851 = vpop.f32.mrb[0].mxu0
    %v3852 = vadd.f32 %v3739, %v3851
    %v3853 = vpop.f32.mrb[0].mxu0
    %v3854 = vadd.f32 %v3741, %v3853
    %v3855 = vpop.f32.mrb[0].mxu0
    %v3856 = vadd.f32 %v3743, %v3855
    %3857 = vmatprep.mubr.bf16.mxu0 %v903
    %3858 = vmatmul.mubr.bf16.gmra.mrb[0].mxu0 %v902
    %v3859 = vpop.f32.mrb[0].mxu0
    %v3860 = vadd.f32 %v3747, %v3859
    %v3861 = vpop.f32.mrb[0].mxu0
    %v3862 = vadd.f32 %v3749, %v3861
    %v3863 = vpop.f32.mrb[0].mxu0
    %v3864 = vadd.f32 %v3751, %v3863
    %v3865 = vpop.f32.mrb[0].mxu0
    %v3866 = vadd.f32 %v3753, %v3865
    %3867 = vmatprep.mubr.bf16.mxu0 %v910
    %3868 = vmatmul.mubr.bf16.gmra.mrb[0].mxu0 %v909
    %v3869 = vpop.f32.mrb[0].mxu0
    %v3870 = vadd.f32 %v3757, %v3869
    %v3871 = vpop.f32.mrb[0].mxu0
    %v3872 = vadd.f32 %v3759, %v3871
    %v3873 = vpop.f32.mrb[0].mxu0
    %v3874 = vadd.f32 %v3761, %v3873
    %v3875 = vpop.f32.mrb[0].mxu0
    %v3876 = vadd.f32 %v3763, %v3875
    %3877 = vmatprep.mubr.bf16.mxu0 %v917
    %3878 = vmatmul.mubr.bf16.gmra.mrb[0].mxu0 %v916
    %v3879 = vpop.f32.mrb[0].mxu0
    %v3880 = vadd.f32 %v3767, %v3879
    %v3881 = vpop.f32.mrb[0].mxu0
    %v3882 = vadd.f32 %v3769, %v3881
    %v3883 = vpop.f32.mrb[0].mxu0
    %v3884 = vadd.f32 %v3771, %v3883
    %v3885 = vpop.f32.mrb[0].mxu0
    %v3886 = vadd.f32 %v3773, %v3885
    %3887 = vdwg.mxu0
    %3888 = vmatprep.subr.bf16.mxu0 %v2276
    %3889 = vmatpush1.bf16.msra.mxu0 %v2275
    %3890 = vmatprep.subr.bf16.mxu0 %v2283
    %3891 = vmatpush1.bf16.msra.mxu0 %v2282
    %3892 = vmatprep.subr.bf16.mxu0 %v2290
    %3893 = vmatpush1.bf16.msra.mxu0 %v2289
    %3894 = vmatprep.subr.bf16.mxu0 %v2297
    %3895 = vmatpush1.bf16.msra.mxu0 %v2296
    %3896 = vmatprep.subr.bf16.mxu0 %v2304
    %3897 = vmatpush1.bf16.msra.mxu0 %v2303
    %3898 = vmatprep.subr.bf16.mxu0 %v2311
    %3899 = vmatpush1.bf16.msra.mxu0 %v2310
    %3900 = vmatprep.subr.bf16.mxu0 %v2318
    %3901 = vmatpush1.bf16.msra.mxu0 %v2317
    %3902 = vmatprep.subr.bf16.mxu0 %v2325
    %3903 = vmatpush1.bf16.msra.mxu0 %v2324
    %3904 = vmatprep.subr.bf16.mxu0 %v2332
    %3905 = vmatpush1.bf16.msra.mxu0 %v2331
    %3906 = vmatprep.subr.bf16.mxu0 %v2339
    %3907 = vmatpush1.bf16.msra.mxu0 %v2338
    %3908 = vmatprep.subr.bf16.mxu0 %v2346
    %3909 = vmatpush1.bf16.msra.mxu0 %v2345
    %3910 = vmatprep.subr.bf16.mxu0 %v2353
    %3911 = vmatpush1.bf16.msra.mxu0 %v2352
    %3912 = vmatprep.subr.bf16.mxu0 %v2360
    %3913 = vmatpush1.bf16.msra.mxu0 %v2359
    %3914 = vmatprep.subr.bf16.mxu0 %v2367
    %3915 = vmatpush1.bf16.msra.mxu0 %v2366
    %3916 = vmatprep.subr.bf16.mxu0 %v2374
    %3917 = vmatpush1.bf16.msra.mxu0 %v2373
    %3918 = vmatprep.subr.bf16.mxu0 %v2381
    %3919 = vmatpush1.bf16.msra.mxu0 %v2380
    %3920 = vmatprep.mubr.bf16.mxu0 %v870
    %3921 = vmatmul.mubr.bf16.gmra.mrb[0].mxu0 %v869
    %v3922 = vpop.f32.mrb[0].mxu0
    %v3923 = vadd.f32 %v3810, %v3922
    %v3924 = vpop.f32.mrb[0].mxu0
    %v3925 = vadd.f32 %v3812, %v3924
    %v3926 = vpop.f32.mrb[0].mxu0
    %v3927 = vadd.f32 %v3814, %v3926
    %v3928 = vpop.f32.mrb[0].mxu0
    %v3929 = vadd.f32 %v3816, %v3928
    %3930 = vmatprep.mubr.bf16.mxu0 %v877
    %3931 = vmatmul.mubr.bf16.gmra.mrb[0].mxu0 %v876
    %v3932 = vpop.f32.mrb[0].mxu0
    %v3933 = vadd.f32 %v3820, %v3932
    %v3934 = vpop.f32.mrb[0].mxu0
    %v3935 = vadd.f32 %v3822, %v3934
    %v3936 = vpop.f32.mrb[0].mxu0
    %v3937 = vadd.f32 %v3824, %v3936
    %v3938 = vpop.f32.mrb[0].mxu0
    %v3939 = vadd.f32 %v3826, %v3938
    %3940 = vmatprep.mubr.bf16.mxu0 %v884
    %3941 = vmatmul.mubr.bf16.gmra.mrb[0].mxu0 %v883
    %v3942 = vpop.f32.mrb[0].mxu0
    %v3943 = vadd.f32 %v3830, %v3942
    %v3944 = vpop.f32.mrb[0].mxu0
    %v3945 = vadd.f32 %v3832, %v3944
    %v3946 = vpop.f32.mrb[0].mxu0
    %v3947 = vadd.f32 %v3834, %v3946
    %v3948 = vpop.f32.mrb[0].mxu0
    %v3949 = vadd.f32 %v3836, %v3948
    %3950 = vmatprep.mubr.bf16.mxu0 %v891
    %3951 = vmatmul.mubr.bf16.gmra.mrb[0].mxu0 %v890
    %v3952 = vpop.f32.mrb[0].mxu0
    %v3953 = vadd.f32 %v3840, %v3952
    %v3954 = vpop.f32.mrb[0].mxu0
    %v3955 = vadd.f32 %v3842, %v3954
    %v3956 = vpop.f32.mrb[0].mxu0
    %v3957 = vadd.f32 %v3844, %v3956
    %v3958 = vpop.f32.mrb[0].mxu0
    %v3959 = vadd.f32 %v3846, %v3958
    %3960 = vmatprep.mubr.bf16.mxu0 %v898
    %3961 = vmatmul.mubr.bf16.gmra.mrb[0].mxu0 %v897
    %v3962 = vpop.f32.mrb[0].mxu0
    %v3963 = vadd.f32 %v3850, %v3962
    %v3964 = vpop.f32.mrb[0].mxu0
    %v3965 = vadd.f32 %v3852, %v3964
    %v3966 = vpop.f32.mrb[0].mxu0
    %v3967 = vadd.f32 %v3854, %v3966
    %v3968 = vpop.f32.mrb[0].mxu0
    %v3969 = vadd.f32 %v3856, %v3968
    %3970 = vmatprep.mubr.bf16.mxu0 %v905
    %3971 = vmatmul.mubr.bf16.gmra.mrb[0].mxu0 %v904
    %v3972 = vpop.f32.mrb[0].mxu0
    %v3973 = vadd.f32 %v3860, %v3972
    %v3974 = vpop.f32.mrb[0].mxu0
    %v3975 = vadd.f32 %v3862, %v3974
    %v3976 = vpop.f32.mrb[0].mxu0
    %v3977 = vadd.f32 %v3864, %v3976
    %v3978 = vpop.f32.mrb[0].mxu0
    %v3979 = vadd.f32 %v3866, %v3978
    %3980 = vmatprep.mubr.bf16.mxu0 %v912
    %3981 = vmatmul.mubr.bf16.gmra.mrb[0].mxu0 %v911
    %v3982 = vpop.f32.mrb[0].mxu0
    %v3983 = vadd.f32 %v3870, %v3982
    %v3984 = vpop.f32.mrb[0].mxu0
    %v3985 = vadd.f32 %v3872, %v3984
    %v3986 = vpop.f32.mrb[0].mxu0
    %v3987 = vadd.f32 %v3874, %v3986
    %v3988 = vpop.f32.mrb[0].mxu0
    %v3989 = vadd.f32 %v3876, %v3988
    %3990 = vmatprep.mubr.bf16.mxu0 %v919
    %3991 = vmatmul.mubr.bf16.gmra.mrb[0].mxu0 %v918
    %v3992 = vpop.f32.mrb[0].mxu0
    %v3993 = vadd.f32 %v3880, %v3992
    %v3994 = vpop.f32.mrb[0].mxu0
    %v3995 = vadd.f32 %v3882, %v3994
    %v3996 = vpop.f32.mrb[0].mxu0
    %v3997 = vadd.f32 %v3884, %v3996
    %v3998 = vpop.f32.mrb[0].mxu0
    %v3999 = vadd.f32 %v3886, %v3998
    %4000 = vdwg.mxu0
    %4001 = vmatprep.subr.bf16.mxu0 %v2388
    %4002 = vmatpush1.bf16.msra.mxu0 %v2387
    %4003 = vmatprep.subr.bf16.mxu0 0
    %4004 = vmatpush1.bf16.msra.mxu0 0
    %4005 = vmatprep.subr.bf16.mxu0 0
    %4006 = vmatpush1.bf16.msra.mxu0 0
    %4007 = vmatprep.subr.bf16.mxu0 0
    %4008 = vmatpush1.bf16.msra.mxu0 0
    %4009 = vmatprep.subr.bf16.mxu0 0
    %4010 = vmatpush1.bf16.msra.mxu0 0
    %4011 = vmatprep.subr.bf16.mxu0 0
    %4012 = vmatpush1.bf16.msra.mxu0 0
    %4013 = vmatprep.subr.bf16.mxu0 0
    %4014 = vmatpush1.bf16.msra.mxu0 0
    %4015 = vmatprep.subr.bf16.mxu0 0
    %4016 = vmatpush1.bf16.msra.mxu0 0
    %4017 = vmatprep.subr.bf16.mxu0 0
    %4018 = vmatpush1.bf16.msra.mxu0 0
    %4019 = vmatprep.subr.bf16.mxu0 0
    %4020 = vmatpush1.bf16.msra.mxu0 0
    %4021 = vmatprep.subr.bf16.mxu0 0
    %4022 = vmatpush1.bf16.msra.mxu0 0
    %4023 = vmatprep.subr.bf16.mxu0 0
    %4024 = vmatpush1.bf16.msra.mxu0 0
    %4025 = vmatprep.subr.bf16.mxu0 0
    %4026 = vmatpush1.bf16.msra.mxu0 0
    %4027 = vmatprep.subr.bf16.mxu0 0
    %4028 = vmatpush1.bf16.msra.mxu0 0
    %4029 = vmatprep.subr.bf16.mxu0 0
    %4030 = vmatpush1.bf16.msra.mxu0 0
    %4031 = vmatprep.subr.bf16.mxu0 0
    %4032 = vmatpush1.bf16.msra.mxu0 0
    %4033 = vmatprep.mubr.bf16.mxu0 0
    %4034 = vmatmul.mubr.bf16.gmra.mrb[0].mxu0 %v2735
    %v4035 = vpop.f32.mrb[0].mxu0
    %v4036 = vadd.f32 %v3923, %v4035
    %v4037 = vpop.f32.mrb[0].mxu0
    %v4038 = vadd.f32 %v3925, %v4037
    %v4039 = vpop.f32.mrb[0].mxu0
    %v4040 = vadd.f32 %v3927, %v4039
    %v4041 = vpop.f32.mrb[0].mxu0
    %v4042 = vadd.f32 %v3929, %v4041
    %4043 = vmatprep.mubr.bf16.mxu0 0
    %4044 = vmatmul.mubr.bf16.gmra.mrb[0].mxu0 %v2738
    %v4045 = vpop.f32.mrb[0].mxu0
    %v4046 = vadd.f32 %v3933, %v4045
    %v4047 = vpop.f32.mrb[0].mxu0
    %v4048 = vadd.f32 %v3935, %v4047
    %v4049 = vpop.f32.mrb[0].mxu0
    %v4050 = vadd.f32 %v3937, %v4049
    %v4051 = vpop.f32.mrb[0].mxu0
    %v4052 = vadd.f32 %v3939, %v4051
    %4053 = vmatprep.mubr.bf16.mxu0 0
    %4054 = vmatmul.mubr.bf16.gmra.mrb[0].mxu0 %v2741
    %v4055 = vpop.f32.mrb[0].mxu0
    %v4056 = vadd.f32 %v3943, %v4055
    %v4057 = vpop.f32.mrb[0].mxu0
    %v4058 = vadd.f32 %v3945, %v4057
    %v4059 = vpop.f32.mrb[0].mxu0
    %v4060 = vadd.f32 %v3947, %v4059
    %v4061 = vpop.f32.mrb[0].mxu0
    %v4062 = vadd.f32 %v3949, %v4061
    %4063 = vmatprep.mubr.bf16.mxu0 0
    %4064 = vmatmul.mubr.bf16.gmra.mrb[0].mxu0 %v2744
    %v4065 = vpop.f32.mrb[0].mxu0
    %v4066 = vadd.f32 %v3953, %v4065
    %v4067 = vpop.f32.mrb[0].mxu0
    %v4068 = vadd.f32 %v3955, %v4067
    %v4069 = vpop.f32.mrb[0].mxu0
    %v4070 = vadd.f32 %v3957, %v4069
    %v4071 = vpop.f32.mrb[0].mxu0
    %v4072 = vadd.f32 %v3959, %v4071
    %4073 = vmatprep.mubr.bf16.mxu0 0
    %4074 = vmatmul.mubr.bf16.gmra.mrb[0].mxu0 %v2747
    %v4075 = vpop.f32.mrb[0].mxu0
    %v4076 = vadd.f32 %v3963, %v4075
    %v4077 = vpop.f32.mrb[0].mxu0
    %v4078 = vadd.f32 %v3965, %v4077
    %v4079 = vpop.f32.mrb[0].mxu0
    %v4080 = vadd.f32 %v3967, %v4079
    %v4081 = vpop.f32.mrb[0].mxu0
    %v4082 = vadd.f32 %v3969, %v4081
    %4083 = vmatprep.mubr.bf16.mxu0 0
    %4084 = vmatmul.mubr.bf16.gmra.mrb[0].mxu0 %v2750
    %v4085 = vpop.f32.mrb[0].mxu0
    %v4086 = vadd.f32 %v3973, %v4085
    %v4087 = vpop.f32.mrb[0].mxu0
    %v4088 = vadd.f32 %v3975, %v4087
    %v4089 = vpop.f32.mrb[0].mxu0
    %v4090 = vadd.f32 %v3977, %v4089
    %v4091 = vpop.f32.mrb[0].mxu0
    %v4092 = vadd.f32 %v3979, %v4091
    %4093 = vmatprep.mubr.bf16.mxu0 0
    %4094 = vmatmul.mubr.bf16.gmra.mrb[0].mxu0 %v2753
    %v4095 = vpop.f32.mrb[0].mxu0
    %v4096 = vadd.f32 %v3983, %v4095
    %v4097 = vpop.f32.mrb[0].mxu0
    %v4098 = vadd.f32 %v3985, %v4097
    %v4099 = vpop.f32.mrb[0].mxu0
    %v4100 = vadd.f32 %v3987, %v4099
    %v4101 = vpop.f32.mrb[0].mxu0
    %v4102 = vadd.f32 %v3989, %v4101
    %4103 = vmatprep.mubr.bf16.mxu0 0
    %4104 = vmatmul.mubr.bf16.gmra.mrb[0].mxu0 %v2756
    %v4105 = vpop.f32.mrb[0].mxu0
    %v4106 = vadd.f32 %v3993, %v4105
    %v4107 = vpop.f32.mrb[0].mxu0
    %v4108 = vadd.f32 %v3995, %v4107
    %v4109 = vpop.f32.mrb[0].mxu0
    %v4110 = vadd.f32 %v3997, %v4109
    %v4111 = vpop.f32.mrb[0].mxu0
    %v4112 = vadd.f32 %v3999, %v4111
    %4113 = vdwg.mxu0
    %4114 = vmatprep.subr.bf16.mxu0 0
    %4115 = vmatpush1.bf16.msra.mxu0 %v2053
    %4116 = vmatprep.subr.bf16.mxu0 0
    %4117 = vmatpush1.bf16.msra.mxu0 %v2060
    %4118 = vmatprep.subr.bf16.mxu0 0
    %4119 = vmatpush1.bf16.msra.mxu0 %v2067
    %4120 = vmatprep.subr.bf16.mxu0 0
    %4121 = vmatpush1.bf16.msra.mxu0 %v2074
    %4122 = vmatprep.subr.bf16.mxu0 0
    %4123 = vmatpush1.bf16.msra.mxu0 %v2081
    %4124 = vmatprep.subr.bf16.mxu0 0
    %4125 = vmatpush1.bf16.msra.mxu0 %v2088
    %4126 = vmatprep.subr.bf16.mxu0 0
    %4127 = vmatpush1.bf16.msra.mxu0 %v2095
    %4128 = vmatprep.subr.bf16.mxu0 0
    %4129 = vmatpush1.bf16.msra.mxu0 %v2102
    %4130 = vmatprep.subr.bf16.mxu0 0
    %4131 = vmatpush1.bf16.msra.mxu0 %v2109
    %4132 = vmatprep.subr.bf16.mxu0 0
    %4133 = vmatpush1.bf16.msra.mxu0 %v2116
    %4134 = vmatprep.subr.bf16.mxu0 0
    %4135 = vmatpush1.bf16.msra.mxu0 %v2123
    %4136 = vmatprep.subr.bf16.mxu0 0
    %4137 = vmatpush1.bf16.msra.mxu0 %v2130
    %4138 = vmatprep.subr.bf16.mxu0 0
    %4139 = vmatpush1.bf16.msra.mxu0 %v2137
    %4140 = vmatprep.subr.bf16.mxu0 0
    %4141 = vmatpush1.bf16.msra.mxu0 %v2144
    %4142 = vmatprep.subr.bf16.mxu0 0
    %4143 = vmatpush1.bf16.msra.mxu0 %v2151
    %4144 = vmatprep.subr.bf16.mxu0 0
    %4145 = vmatpush1.bf16.msra.mxu0 %v2158
    %4146 = vmatprep.mubr.bf16.mxu0 %v866
    %4147 = vmatmul.mubr.bf16.gmra.mrb[0].mxu0 %v865
    %v4148 = vpop.f32.mrb[0].mxu0
    %v4149 = vadd.f32 %v681, %v4148
    %v4150 = vpop.f32.mrb[0].mxu0
    %v4151 = vpop.f32.mrb[0].mxu0
    %v4152 = vadd.f32 %v681, %v4151
    %v4153 = vpop.f32.mrb[0].mxu0
    %4154 = vmatprep.mubr.bf16.mxu0 %v873
    %4155 = vmatmul.mubr.bf16.gmra.mrb[0].mxu0 %v872
    %v4156 = vpop.f32.mrb[0].mxu0
    %v4157 = vadd.f32 %v681, %v4156
    %v4158 = vpop.f32.mrb[0].mxu0
    %v4159 = vpop.f32.mrb[0].mxu0
    %v4160 = vadd.f32 %v681, %v4159
    %v4161 = vpop.f32.mrb[0].mxu0
    %4162 = vmatprep.mubr.bf16.mxu0 %v880
    %4163 = vmatmul.mubr.bf16.gmra.mrb[0].mxu0 %v879
    %v4164 = vpop.f32.mrb[0].mxu0
    %v4165 = vadd.f32 %v681, %v4164
    %v4166 = vpop.f32.mrb[0].mxu0
    %v4167 = vpop.f32.mrb[0].mxu0
    %v4168 = vadd.f32 %v681, %v4167
    %v4169 = vpop.f32.mrb[0].mxu0
    %4170 = vmatprep.mubr.bf16.mxu0 %v887
    %4171 = vmatmul.mubr.bf16.gmra.mrb[0].mxu0 %v886
    %v4172 = vpop.f32.mrb[0].mxu0
    %v4173 = vadd.f32 %v681, %v4172
    %v4174 = vpop.f32.mrb[0].mxu0
    %v4175 = vpop.f32.mrb[0].mxu0
    %v4176 = vadd.f32 %v681, %v4175
    %v4177 = vpop.f32.mrb[0].mxu0
    %4178 = vmatprep.mubr.bf16.mxu0 %v894
    %4179 = vmatmul.mubr.bf16.gmra.mrb[0].mxu0 %v893
    %v4180 = vpop.f32.mrb[0].mxu0
    %v4181 = vadd.f32 %v681, %v4180
    %v4182 = vpop.f32.mrb[0].mxu0
    %v4183 = vpop.f32.mrb[0].mxu0
    %v4184 = vadd.f32 %v681, %v4183
    %v4185 = vpop.f32.mrb[0].mxu0
    %4186 = vmatprep.mubr.bf16.mxu0 %v901
    %4187 = vmatmul.mubr.bf16.gmra.mrb[0].mxu0 %v900
    %v4188 = vpop.f32.mrb[0].mxu0
    %v4189 = vadd.f32 %v681, %v4188
    %v4190 = vpop.f32.mrb[0].mxu0
    %v4191 = vpop.f32.mrb[0].mxu0
    %v4192 = vadd.f32 %v681, %v4191
    %v4193 = vpop.f32.mrb[0].mxu0
    %4194 = vmatprep.mubr.bf16.mxu0 %v908
    %4195 = vmatmul.mubr.bf16.gmra.mrb[0].mxu0 %v907
    %v4196 = vpop.f32.mrb[0].mxu0
    %v4197 = vadd.f32 %v681, %v4196
    %v4198 = vpop.f32.mrb[0].mxu0
    %v4199 = vpop.f32.mrb[0].mxu0
    %v4200 = vadd.f32 %v681, %v4199
    %v4201 = vpop.f32.mrb[0].mxu0
    %4202 = vmatprep.mubr.bf16.mxu0 %v915
    %4203 = vmatmul.mubr.bf16.gmra.mrb[0].mxu0 %v914
    %v4204 = vpop.f32.mrb[0].mxu0
    %v4205 = vadd.f32 %v681, %v4204
    %v4206 = vpop.f32.mrb[0].mxu0
    %v4207 = vpop.f32.mrb[0].mxu0
    %v4208 = vadd.f32 %v681, %v4207
    %v4209 = vpop.f32.mrb[0].mxu0
    %4210 = vdwg.mxu0
    %4211 = vmatprep.subr.bf16.mxu0 0
    %4212 = vmatpush1.bf16.msra.mxu0 %v2165
    %4213 = vmatprep.subr.bf16.mxu0 0
    %4214 = vmatpush1.bf16.msra.mxu0 %v2172
    %4215 = vmatprep.subr.bf16.mxu0 0
    %4216 = vmatpush1.bf16.msra.mxu0 %v2179
    %4217 = vmatprep.subr.bf16.mxu0 0
    %4218 = vmatpush1.bf16.msra.mxu0 %v2186
    %4219 = vmatprep.subr.bf16.mxu0 0
    %4220 = vmatpush1.bf16.msra.mxu0 %v2193
    %4221 = vmatprep.subr.bf16.mxu0 0
    %4222 = vmatpush1.bf16.msra.mxu0 %v2200
    %4223 = vmatprep.subr.bf16.mxu0 0
    %4224 = vmatpush1.bf16.msra.mxu0 %v2207
    %4225 = vmatprep.subr.bf16.mxu0 0
    %4226 = vmatpush1.bf16.msra.mxu0 %v2214
    %4227 = vmatprep.subr.bf16.mxu0 0
    %4228 = vmatpush1.bf16.msra.mxu0 %v2221
    %4229 = vmatprep.subr.bf16.mxu0 0
    %4230 = vmatpush1.bf16.msra.mxu0 %v2228
    %4231 = vmatprep.subr.bf16.mxu0 0
    %4232 = vmatpush1.bf16.msra.mxu0 %v2235
    %4233 = vmatprep.subr.bf16.mxu0 0
    %4234 = vmatpush1.bf16.msra.mxu0 %v2242
    %4235 = vmatprep.subr.bf16.mxu0 0
    %4236 = vmatpush1.bf16.msra.mxu0 %v2249
    %4237 = vmatprep.subr.bf16.mxu0 0
    %4238 = vmatpush1.bf16.msra.mxu0 %v2256
    %4239 = vmatprep.subr.bf16.mxu0 0
    %4240 = vmatpush1.bf16.msra.mxu0 %v2263
    %4241 = vmatprep.subr.bf16.mxu0 0
    %4242 = vmatpush1.bf16.msra.mxu0 %v2270
    %4243 = vmatprep.mubr.bf16.mxu0 %v868
    %4244 = vmatmul.mubr.bf16.gmra.mrb[0].mxu0 %v867
    %v4245 = vpop.f32.mrb[0].mxu0
    %v4246 = vadd.f32 %v4149, %v4245
    %v4247 = vpop.f32.mrb[0].mxu0
    %v4248 = vpop.f32.mrb[0].mxu0
    %v4249 = vadd.f32 %v4152, %v4248
    %v4250 = vpop.f32.mrb[0].mxu0
    %4251 = vmatprep.mubr.bf16.mxu0 %v875
    %4252 = vmatmul.mubr.bf16.gmra.mrb[0].mxu0 %v874
    %v4253 = vpop.f32.mrb[0].mxu0
    %v4254 = vadd.f32 %v4157, %v4253
    %v4255 = vpop.f32.mrb[0].mxu0
    %v4256 = vpop.f32.mrb[0].mxu0
    %v4257 = vadd.f32 %v4160, %v4256
    %v4258 = vpop.f32.mrb[0].mxu0
    %4259 = vmatprep.mubr.bf16.mxu0 %v882
    %4260 = vmatmul.mubr.bf16.gmra.mrb[0].mxu0 %v881
    %v4261 = vpop.f32.mrb[0].mxu0
    %v4262 = vadd.f32 %v4165, %v4261
    %v4263 = vpop.f32.mrb[0].mxu0
    %v4264 = vpop.f32.mrb[0].mxu0
    %v4265 = vadd.f32 %v4168, %v4264
    %v4266 = vpop.f32.mrb[0].mxu0
    %4267 = vmatprep.mubr.bf16.mxu0 %v889
    %4268 = vmatmul.mubr.bf16.gmra.mrb[0].mxu0 %v888
    %v4269 = vpop.f32.mrb[0].mxu0
    %v4270 = vadd.f32 %v4173, %v4269
    %v4271 = vpop.f32.mrb[0].mxu0
    %v4272 = vpop.f32.mrb[0].mxu0
    %v4273 = vadd.f32 %v4176, %v4272
    %v4274 = vpop.f32.mrb[0].mxu0
    %4275 = vmatprep.mubr.bf16.mxu0 %v896
    %4276 = vmatmul.mubr.bf16.gmra.mrb[0].mxu0 %v895
    %v4277 = vpop.f32.mrb[0].mxu0
    %v4278 = vadd.f32 %v4181, %v4277
    %v4279 = vpop.f32.mrb[0].mxu0
    %v4280 = vpop.f32.mrb[0].mxu0
    %v4281 = vadd.f32 %v4184, %v4280
    %v4282 = vpop.f32.mrb[0].mxu0
    %4283 = vmatprep.mubr.bf16.mxu0 %v903
    %4284 = vmatmul.mubr.bf16.gmra.mrb[0].mxu0 %v902
    %v4285 = vpop.f32.mrb[0].mxu0
    %v4286 = vadd.f32 %v4189, %v4285
    %v4287 = vpop.f32.mrb[0].mxu0
    %v4288 = vpop.f32.mrb[0].mxu0
    %v4289 = vadd.f32 %v4192, %v4288
    %v4290 = vpop.f32.mrb[0].mxu0
    %4291 = vmatprep.mubr.bf16.mxu0 %v910
    %4292 = vmatmul.mubr.bf16.gmra.mrb[0].mxu0 %v909
    %v4293 = vpop.f32.mrb[0].mxu0
    %v4294 = vadd.f32 %v4197, %v4293
    %v4295 = vpop.f32.mrb[0].mxu0
    %v4296 = vpop.f32.mrb[0].mxu0
    %v4297 = vadd.f32 %v4200, %v4296
    %v4298 = vpop.f32.mrb[0].mxu0
    %4299 = vmatprep.mubr.bf16.mxu0 %v917
    %4300 = vmatmul.mubr.bf16.gmra.mrb[0].mxu0 %v916
    %v4301 = vpop.f32.mrb[0].mxu0
    %v4302 = vadd.f32 %v4205, %v4301
    %v4303 = vpop.f32.mrb[0].mxu0
    %v4304 = vpop.f32.mrb[0].mxu0
    %v4305 = vadd.f32 %v4208, %v4304
    %v4306 = vpop.f32.mrb[0].mxu0
    %4307 = vdwg.mxu0
    %4308 = vmatprep.subr.bf16.mxu0 0
    %4309 = vmatpush1.bf16.msra.mxu0 %v2277
    %4310 = vmatprep.subr.bf16.mxu0 0
    %4311 = vmatpush1.bf16.msra.mxu0 %v2284
    %4312 = vmatprep.subr.bf16.mxu0 0
    %4313 = vmatpush1.bf16.msra.mxu0 %v2291
    %4314 = vmatprep.subr.bf16.mxu0 0
    %4315 = vmatpush1.bf16.msra.mxu0 %v2298
    %4316 = vmatprep.subr.bf16.mxu0 0
    %4317 = vmatpush1.bf16.msra.mxu0 %v2305
    %4318 = vmatprep.subr.bf16.mxu0 0
    %4319 = vmatpush1.bf16.msra.mxu0 %v2312
    %4320 = vmatprep.subr.bf16.mxu0 0
    %4321 = vmatpush1.bf16.msra.mxu0 %v2319
    %4322 = vmatprep.subr.bf16.mxu0 0
    %4323 = vmatpush1.bf16.msra.mxu0 %v2326
    %4324 = vmatprep.subr.bf16.mxu0 0
    %4325 = vmatpush1.bf16.msra.mxu0 %v2333
    %4326 = vmatprep.subr.bf16.mxu0 0
    %4327 = vmatpush1.bf16.msra.mxu0 %v2340
    %4328 = vmatprep.subr.bf16.mxu0 0
    %4329 = vmatpush1.bf16.msra.mxu0 %v2347
    %4330 = vmatprep.subr.bf16.mxu0 0
    %4331 = vmatpush1.bf16.msra.mxu0 %v2354
    %4332 = vmatprep.subr.bf16.mxu0 0
    %4333 = vmatpush1.bf16.msra.mxu0 %v2361
    %4334 = vmatprep.subr.bf16.mxu0 0
    %4335 = vmatpush1.bf16.msra.mxu0 %v2368
    %4336 = vmatprep.subr.bf16.mxu0 0
    %4337 = vmatpush1.bf16.msra.mxu0 %v2375
    %4338 = vmatprep.subr.bf16.mxu0 0
    %4339 = vmatpush1.bf16.msra.mxu0 %v2382
    %4340 = vmatprep.mubr.bf16.mxu0 %v870
    %4341 = vmatmul.mubr.bf16.gmra.mrb[0].mxu0 %v869
    %v4342 = vpop.f32.mrb[0].mxu0
    %v4343 = vadd.f32 %v4246, %v4342
    %v4344 = vpop.f32.mrb[0].mxu0
    %v4345 = vpop.f32.mrb[0].mxu0
    %v4346 = vadd.f32 %v4249, %v4345
    %v4347 = vpop.f32.mrb[0].mxu0
    %4348 = vmatprep.mubr.bf16.mxu0 %v877
    %4349 = vmatmul.mubr.bf16.gmra.mrb[0].mxu0 %v876
    %v4350 = vpop.f32.mrb[0].mxu0
    %v4351 = vadd.f32 %v4254, %v4350
    %v4352 = vpop.f32.mrb[0].mxu0
    %v4353 = vpop.f32.mrb[0].mxu0
    %v4354 = vadd.f32 %v4257, %v4353
    %v4355 = vpop.f32.mrb[0].mxu0
    %4356 = vmatprep.mubr.bf16.mxu0 %v884
    %4357 = vmatmul.mubr.bf16.gmra.mrb[0].mxu0 %v883
    %v4358 = vpop.f32.mrb[0].mxu0
    %v4359 = vadd.f32 %v4262, %v4358
    %v4360 = vpop.f32.mrb[0].mxu0
    %v4361 = vpop.f32.mrb[0].mxu0
    %v4362 = vadd.f32 %v4265, %v4361
    %v4363 = vpop.f32.mrb[0].mxu0
    %4364 = vmatprep.mubr.bf16.mxu0 %v891
    %4365 = vmatmul.mubr.bf16.gmra.mrb[0].mxu0 %v890
    %v4366 = vpop.f32.mrb[0].mxu0
    %v4367 = vadd.f32 %v4270, %v4366
    %v4368 = vpop.f32.mrb[0].mxu0
    %v4369 = vpop.f32.mrb[0].mxu0
    %v4370 = vadd.f32 %v4273, %v4369
    %v4371 = vpop.f32.mrb[0].mxu0
    %4372 = vmatprep.mubr.bf16.mxu0 %v898
    %4373 = vmatmul.mubr.bf16.gmra.mrb[0].mxu0 %v897
    %v4374 = vpop.f32.mrb[0].mxu0
    %v4375 = vadd.f32 %v4278, %v4374
    %v4376 = vpop.f32.mrb[0].mxu0
    %v4377 = vpop.f32.mrb[0].mxu0
    %v4378 = vadd.f32 %v4281, %v4377
    %v4379 = vpop.f32.mrb[0].mxu0
    %4380 = vmatprep.mubr.bf16.mxu0 %v905
    %4381 = vmatmul.mubr.bf16.gmra.mrb[0].mxu0 %v904
    %v4382 = vpop.f32.mrb[0].mxu0
    %v4383 = vadd.f32 %v4286, %v4382
    %v4384 = vpop.f32.mrb[0].mxu0
    %v4385 = vpop.f32.mrb[0].mxu0
    %v4386 = vadd.f32 %v4289, %v4385
    %v4387 = vpop.f32.mrb[0].mxu0
    %4388 = vmatprep.mubr.bf16.mxu0 %v912
    %4389 = vmatmul.mubr.bf16.gmra.mrb[0].mxu0 %v911
    %v4390 = vpop.f32.mrb[0].mxu0
    %v4391 = vadd.f32 %v4294, %v4390
    %v4392 = vpop.f32.mrb[0].mxu0
    %v4393 = vpop.f32.mrb[0].mxu0
    %v4394 = vadd.f32 %v4297, %v4393
    %v4395 = vpop.f32.mrb[0].mxu0
    %4396 = vmatprep.mubr.bf16.mxu0 %v919
    %4397 = vmatmul.mubr.bf16.gmra.mrb[0].mxu0 %v918
    %v4398 = vpop.f32.mrb[0].mxu0
    %v4399 = vadd.f32 %v4302, %v4398
    %v4400 = vpop.f32.mrb[0].mxu0
    %v4401 = vpop.f32.mrb[0].mxu0
    %v4402 = vadd.f32 %v4305, %v4401
    %v4403 = vpop.f32.mrb[0].mxu0
    %4404 = vdwg.mxu0
    %4405 = vmatprep.subr.bf16.mxu0 0
    %4406 = vmatpush1.bf16.msra.mxu0 %v2389
    %4407 = vmatprep.subr.bf16.mxu0 0
    %4408 = vmatpush1.bf16.msra.mxu0 0
    %4409 = vmatprep.subr.bf16.mxu0 0
    %4410 = vmatpush1.bf16.msra.mxu0 0
    %4411 = vmatprep.subr.bf16.mxu0 0
    %4412 = vmatpush1.bf16.msra.mxu0 0
    %4413 = vmatprep.subr.bf16.mxu0 0
    %4414 = vmatpush1.bf16.msra.mxu0 0
    %4415 = vmatprep.subr.bf16.mxu0 0
    %4416 = vmatpush1.bf16.msra.mxu0 0
    %4417 = vmatprep.subr.bf16.mxu0 0
    %4418 = vmatpush1.bf16.msra.mxu0 0
    %4419 = vmatprep.subr.bf16.mxu0 0
    %4420 = vmatpush1.bf16.msra.mxu0 0
    %4421 = vmatprep.subr.bf16.mxu0 0
    %4422 = vmatpush1.bf16.msra.mxu0 0
    %4423 = vmatprep.subr.bf16.mxu0 0
    %4424 = vmatpush1.bf16.msra.mxu0 0
    %4425 = vmatprep.subr.bf16.mxu0 0
    %4426 = vmatpush1.bf16.msra.mxu0 0
    %4427 = vmatprep.subr.bf16.mxu0 0
    %4428 = vmatpush1.bf16.msra.mxu0 0
    %4429 = vmatprep.subr.bf16.mxu0 0
    %4430 = vmatpush1.bf16.msra.mxu0 0
    %4431 = vmatprep.subr.bf16.mxu0 0
    %4432 = vmatpush1.bf16.msra.mxu0 0
    %4433 = vmatprep.subr.bf16.mxu0 0
    %4434 = vmatpush1.bf16.msra.mxu0 0
    %4435 = vmatprep.subr.bf16.mxu0 0
    %4436 = vmatpush1.bf16.msra.mxu0 0
    %4437 = vmatprep.mubr.bf16.mxu0 0
    %4438 = vmatmul.mubr.bf16.gmra.mrb[0].mxu0 %v2735
    %v4439 = vpop.f32.mrb[0].mxu0
    %v4440 = vadd.f32 %v4343, %v4439
    %v4441 = vpop.f32.mrb[0].mxu0
    %v4442 = vpop.f32.mrb[0].mxu0
    %v4443 = vadd.f32 %v4346, %v4442
    %v4444 = vpop.f32.mrb[0].mxu0
    %4445 = vmatprep.mubr.bf16.mxu0 0
    %4446 = vmatmul.mubr.bf16.gmra.mrb[0].mxu0 %v2738
    %v4447 = vpop.f32.mrb[0].mxu0
    %v4448 = vadd.f32 %v4351, %v4447
    %v4449 = vpop.f32.mrb[0].mxu0
    %v4450 = vpop.f32.mrb[0].mxu0
    %v4451 = vadd.f32 %v4354, %v4450
    %v4452 = vpop.f32.mrb[0].mxu0
    %4453 = vmatprep.mubr.bf16.mxu0 0
    %4454 = vmatmul.mubr.bf16.gmra.mrb[0].mxu0 %v2741
    %v4455 = vpop.f32.mrb[0].mxu0
    %v4456 = vadd.f32 %v4359, %v4455
    %v4457 = vpop.f32.mrb[0].mxu0
    %v4458 = vpop.f32.mrb[0].mxu0
    %v4459 = vadd.f32 %v4362, %v4458
    %v4460 = vpop.f32.mrb[0].mxu0
    %4461 = vmatprep.mubr.bf16.mxu0 0
    %4462 = vmatmul.mubr.bf16.gmra.mrb[0].mxu0 %v2744
    %v4463 = vpop.f32.mrb[0].mxu0
    %v4464 = vadd.f32 %v4367, %v4463
    %v4465 = vpop.f32.mrb[0].mxu0
    %v4466 = vpop.f32.mrb[0].mxu0
    %v4467 = vadd.f32 %v4370, %v4466
    %v4468 = vpop.f32.mrb[0].mxu0
    %4469 = vmatprep.mubr.bf16.mxu0 0
    %4470 = vmatmul.mubr.bf16.gmra.mrb[0].mxu0 %v2747
    %v4471 = vpop.f32.mrb[0].mxu0
    %v4472 = vadd.f32 %v4375, %v4471
    %v4473 = vpop.f32.mrb[0].mxu0
    %v4474 = vpop.f32.mrb[0].mxu0
    %v4475 = vadd.f32 %v4378, %v4474
    %v4476 = vpop.f32.mrb[0].mxu0
    %4477 = vmatprep.mubr.bf16.mxu0 0
    %4478 = vmatmul.mubr.bf16.gmra.mrb[0].mxu0 %v2750
    %v4479 = vpop.f32.mrb[0].mxu0
    %v4480 = vadd.f32 %v4383, %v4479
    %v4481 = vpop.f32.mrb[0].mxu0
    %v4482 = vpop.f32.mrb[0].mxu0
    %v4483 = vadd.f32 %v4386, %v4482
    %v4484 = vpop.f32.mrb[0].mxu0
    %4485 = vmatprep.mubr.bf16.mxu0 0
    %4486 = vmatmul.mubr.bf16.gmra.mrb[0].mxu0 %v2753
    %v4487 = vpop.f32.mrb[0].mxu0
    %v4488 = vadd.f32 %v4391, %v4487
    %v4489 = vpop.f32.mrb[0].mxu0
    %v4490 = vpop.f32.mrb[0].mxu0
    %v4491 = vadd.f32 %v4394, %v4490
    %v4492 = vpop.f32.mrb[0].mxu0
    %4493 = vmatprep.mubr.bf16.mxu0 0
    %4494 = vmatmul.mubr.bf16.gmra.mrb[0].mxu0 %v2756
    %v4495 = vpop.f32.mrb[0].mxu0
    %v4496 = vadd.f32 %v4399, %v4495
    %v4497 = vpop.f32.mrb[0].mxu0
    %v4498 = vpop.f32.mrb[0].mxu0
    %v4499 = vadd.f32 %v4402, %v4498
    %v4500 = vpop.f32.mrb[0].mxu0
    %4501 = vdwg.mxu0
    %v4502 = vmax.f32 %v3132, 0.0
    %v4503 = vmax.f32 %v3134, 0.0
    %v4504 = vmax.f32 %v3584, 0.0
    %v4505 = vmax.f32 %v3586, 0.0
    %v4506 = vmax.f32 %v4036, 0.0
    %v4507 = vmax.f32 %v4038, 0.0
    %v4508 = vmax.f32 %v4440, 0.0
    %v4509 = vmax.f32 %v3136, 0.0
    %v4510 = vmax.f32 %v3138, 0.0
    %v4511 = vmax.f32 %v3588, 0.0
    %v4512 = vmax.f32 %v3590, 0.0
    %v4513 = vmax.f32 %v4040, 0.0
    %v4514 = vmax.f32 %v4042, 0.0
    %v4515 = vmax.f32 %v4443, 0.0
    %v4516 = vmax.f32 %v3142, 0.0
    %v4517 = vmax.f32 %v3144, 0.0
    %v4518 = vmax.f32 %v3594, 0.0
    %v4519 = vmax.f32 %v3596, 0.0
    %v4520 = vmax.f32 %v4046, 0.0
    %v4521 = vmax.f32 %v4048, 0.0
    %v4522 = vmax.f32 %v4448, 0.0
    %v4523 = vmax.f32 %v3146, 0.0
    %v4524 = vmax.f32 %v3148, 0.0
    %v4525 = vmax.f32 %v3598, 0.0
    %v4526 = vmax.f32 %v3600, 0.0
    %v4527 = vmax.f32 %v4050, 0.0
    %v4528 = vmax.f32 %v4052, 0.0
    %v4529 = vmax.f32 %v4451, 0.0
    %v4530 = vmax.f32 %v3152, 0.0
    %v4531 = vmax.f32 %v3154, 0.0
    %v4532 = vmax.f32 %v3604, 0.0
    %v4533 = vmax.f32 %v3606, 0.0
    %v4534 = vmax.f32 %v4056, 0.0
    %v4535 = vmax.f32 %v4058, 0.0
    %v4536 = vmax.f32 %v4456, 0.0
    %v4537 = vmax.f32 %v3156, 0.0
    %v4538 = vmax.f32 %v3158, 0.0
    %v4539 = vmax.f32 %v3608, 0.0
    %v4540 = vmax.f32 %v3610, 0.0
    %v4541 = vmax.f32 %v4060, 0.0
    %v4542 = vmax.f32 %v4062, 0.0
    %v4543 = vmax.f32 %v4459, 0.0
    %v4544 = vmax.f32 %v3162, 0.0
    %v4545 = vmax.f32 %v3164, 0.0
    %v4546 = vmax.f32 %v3614, 0.0
    %v4547 = vmax.f32 %v3616, 0.0
    %v4548 = vmax.f32 %v4066, 0.0
    %v4549 = vmax.f32 %v4068, 0.0
    %v4550 = vmax.f32 %v4464, 0.0
    %v4551 = vmax.f32 %v3166, 0.0
    %v4552 = vmax.f32 %v3168, 0.0
    %v4553 = vmax.f32 %v3618, 0.0
    %v4554 = vmax.f32 %v3620, 0.0
    %v4555 = vmax.f32 %v4070, 0.0
    %v4556 = vmax.f32 %v4072, 0.0
    %v4557 = vmax.f32 %v4467, 0.0
    %v4558 = vmax.f32 %v3172, 0.0
    %v4559 = vmax.f32 %v3174, 0.0
    %v4560 = vmax.f32 %v3624, 0.0
    %v4561 = vmax.f32 %v3626, 0.0
    %v4562 = vmax.f32 %v4076, 0.0
    %v4563 = vmax.f32 %v4078, 0.0
    %v4564 = vmax.f32 %v4472, 0.0
    %v4565 = vmax.f32 %v3176, 0.0
    %v4566 = vmax.f32 %v3178, 0.0
    %v4567 = vmax.f32 %v3628, 0.0
    %v4568 = vmax.f32 %v3630, 0.0
    %v4569 = vmax.f32 %v4080, 0.0
    %v4570 = vmax.f32 %v4082, 0.0
    %v4571 = vmax.f32 %v4475, 0.0
    %v4572 = vmax.f32 %v3182, 0.0
    %v4573 = vmax.f32 %v3184, 0.0
    %v4574 = vmax.f32 %v3634, 0.0
    %v4575 = vmax.f32 %v3636, 0.0
    %v4576 = vmax.f32 %v4086, 0.0
    %v4577 = vmax.f32 %v4088, 0.0
    %v4578 = vmax.f32 %v4480, 0.0
    %v4579 = vmax.f32 %v3186, 0.0
    %v4580 = vmax.f32 %v3188, 0.0
    %v4581 = vmax.f32 %v3638, 0.0
    %v4582 = vmax.f32 %v3640, 0.0
    %v4583 = vmax.f32 %v4090, 0.0
    %v4584 = vmax.f32 %v4092, 0.0
    %v4585 = vmax.f32 %v4483, 0.0
    %v4586 = vmax.f32 %v3192, 0.0
    %v4587 = vmax.f32 %v3194, 0.0
    %v4588 = vmax.f32 %v3644, 0.0
    %v4589 = vmax.f32 %v3646, 0.0
    %v4590 = vmax.f32 %v4096, 0.0
    %v4591 = vmax.f32 %v4098, 0.0
    %v4592 = vmax.f32 %v4488, 0.0
    %v4593 = vmax.f32 %v3196, 0.0
    %v4594 = vmax.f32 %v3198, 0.0
    %v4595 = vmax.f32 %v3648, 0.0
    %v4596 = vmax.f32 %v3650, 0.0
    %v4597 = vmax.f32 %v4100, 0.0
    %v4598 = vmax.f32 %v4102, 0.0
    %v4599 = vmax.f32 %v4491, 0.0
    %v4600 = vmax.f32 %v3202, 0.0
    %v4601 = vmax.f32 %v3204, 0.0
    %v4602 = vmax.f32 %v3654, 0.0
    %v4603 = vmax.f32 %v3656, 0.0
    %v4604 = vmax.f32 %v4106, 0.0
    %v4605 = vmax.f32 %v4108, 0.0
    %v4606 = vmax.f32 %v4496, 0.0
    %v4607 = vmax.f32 %v3206, 0.0
    %v4608 = vmax.f32 %v3208, 0.0
    %v4609 = vmax.f32 %v3658, 0.0
    %v4610 = vmax.f32 %v3660, 0.0
    %v4611 = vmax.f32 %v4110, 0.0
    %v4612 = vmax.f32 %v4112, 0.0
    %v4613 = vmax.f32 %v4499, 0.0
    %v4614 = vpack.c.bf16 %v4509, %v4502
    %v4615 = vpack.c.bf16 %v4510, %v4503
    %v4616 = vpack.c.bf16 %v4511, %v4504
    %v4617 = vpack.c.bf16 %v4512, %v4505
    %v4618 = vpack.c.bf16 %v4513, %v4506
    %v4619 = vpack.c.bf16 %v4514, %v4507
    %v4620 = vpack.c.bf16 %v4515, %v4508
    %v4621 = vpack.c.bf16 %v4523, %v4516
    %v4622 = vpack.c.bf16 %v4524, %v4517
    %v4623 = vpack.c.bf16 %v4525, %v4518
    %v4624 = vpack.c.bf16 %v4526, %v4519
    %v4625 = vpack.c.bf16 %v4527, %v4520
    %v4626 = vpack.c.bf16 %v4528, %v4521
    %v4627 = vpack.c.bf16 %v4529, %v4522
    %v4628 = vpack.c.bf16 %v4537, %v4530
    %v4629 = vpack.c.bf16 %v4538, %v4531
    %v4630 = vpack.c.bf16 %v4539, %v4532
    %v4631 = vpack.c.bf16 %v4540, %v4533
    %v4632 = vpack.c.bf16 %v4541, %v4534
    %v4633 = vpack.c.bf16 %v4542, %v4535
    %v4634 = vpack.c.bf16 %v4543, %v4536
    %v4635 = vpack.c.bf16 %v4551, %v4544
    %v4636 = vpack.c.bf16 %v4552, %v4545
    %v4637 = vpack.c.bf16 %v4553, %v4546
    %v4638 = vpack.c.bf16 %v4554, %v4547
    %v4639 = vpack.c.bf16 %v4555, %v4548
    %v4640 = vpack.c.bf16 %v4556, %v4549
    %v4641 = vpack.c.bf16 %v4557, %v4550
    %v4642 = vpack.c.bf16 %v4565, %v4558
    %v4643 = vpack.c.bf16 %v4566, %v4559
    %v4644 = vpack.c.bf16 %v4567, %v4560
    %v4645 = vpack.c.bf16 %v4568, %v4561
    %v4646 = vpack.c.bf16 %v4569, %v4562
    %v4647 = vpack.c.bf16 %v4570, %v4563
    %v4648 = vpack.c.bf16 %v4571, %v4564
    %v4649 = vpack.c.bf16 %v4579, %v4572
    %v4650 = vpack.c.bf16 %v4580, %v4573
    %v4651 = vpack.c.bf16 %v4581, %v4574
    %v4652 = vpack.c.bf16 %v4582, %v4575
    %v4653 = vpack.c.bf16 %v4583, %v4576
    %v4654 = vpack.c.bf16 %v4584, %v4577
    %v4655 = vpack.c.bf16 %v4585, %v4578
    %v4656 = vpack.c.bf16 %v4593, %v4586
    %v4657 = vpack.c.bf16 %v4594, %v4587
    %v4658 = vpack.c.bf16 %v4595, %v4588
    %v4659 = vpack.c.bf16 %v4596, %v4589
    %v4660 = vpack.c.bf16 %v4597, %v4590
    %v4661 = vpack.c.bf16 %v4598, %v4591
    %v4662 = vpack.c.bf16 %v4599, %v4592
    %v4663 = vpack.c.bf16 %v4607, %v4600
    %v4664 = vpack.c.bf16 %v4608, %v4601
    %v4665 = vpack.c.bf16 %v4609, %v4602
    %v4666 = vpack.c.bf16 %v4610, %v4603
    %v4667 = vpack.c.bf16 %v4611, %v4604
    %v4668 = vpack.c.bf16 %v4612, %v4605
    %v4669 = vpack.c.bf16 %v4613, %v4606
    %v4670 = vld [vmem:[#allocation6] sm:$0xff]
    %v4671 = vld [vmem:[#allocation6 + $0x8] sm:$0xff]
    %v4672 = vld [vmem:[#allocation6 + $0x10] sm:$0xff]
    %v4673 = vld [vmem:[#allocation6 + $0x18] sm:$0xff]
    %v4674 = vld [vmem:[#allocation6 + $0x20] sm:$0xff]
    %v4675 = vld [vmem:[#allocation6 + $0x28] sm:$0xff]
    %v4676 = vld [vmem:[#allocation6 + $0x30] sm:$0xff]
    %v4677 = vld [vmem:[#allocation6 + $0x38] sm:$0xff]
    %v4678 = vld [vmem:[#allocation6 + $0x40] sm:$0xff]
    %v4679 = vld [vmem:[#allocation6 + $0x48] sm:$0xff]
    %v4680 = vld [vmem:[#allocation6 + $0x50] sm:$0xff]
    %v4681 = vld [vmem:[#allocation6 + $0x58] sm:$0xff]
    %v4682 = vld [vmem:[#allocation6 + $0x60] sm:$0xff]
    %v4683 = vld [vmem:[#allocation6 + $0x68] sm:$0xff]
    %v4684 = vld [vmem:[#allocation6 + $0x70] sm:$0xff]
    %v4685 = vld [vmem:[#allocation6 + $0x78] sm:$0xff]
    %v4686 = vld [vmem:[#allocation6 + $0x80] sm:$0xff]
    %v4687 = vld [vmem:[#allocation6 + $0x88] sm:$0xff]
    %v4688 = vld [vmem:[#allocation6 + $0x90] sm:$0xff]
    %v4689 = vld [vmem:[#allocation6 + $0x98] sm:$0xff]
    %v4690 = vld [vmem:[#allocation6 + $0xa0] sm:$0xff]
    %v4691 = vld [vmem:[#allocation6 + $0xa8] sm:$0xff]
    %v4692 = vld [vmem:[#allocation6 + $0xb0] sm:$0xff]
    %v4693 = vld [vmem:[#allocation6 + $0xb8] sm:$0xff]
    %v4694 = vld [vmem:[#allocation6 + $0xc0] sm:$0xff]
    %v4695 = vld [vmem:[#allocation6 + $0xc8] sm:$0xff]
    %v4696 = vld [vmem:[#allocation6 + $0xd0] sm:$0xff]
    %v4697 = vld [vmem:[#allocation6 + $0xd8] sm:$0xff]
    %v4698 = vld [vmem:[#allocation6 + $0xe0] sm:$0xff]
    %v4699 = vld [vmem:[#allocation6 + $0xe8] sm:$0xff]
    %v4700 = vld [vmem:[#allocation6 + $0xf0] sm:$0xff]
    %v4701 = vld [vmem:[#allocation6 + $0xf8] sm:$0xff]
    %v4702 = vld [vmem:[#allocation6 + $0x100] sm:$0xff]
    %v4703 = vld [vmem:[#allocation6 + $0x108] sm:$0xff]
    %v4704 = vld [vmem:[#allocation6 + $0x110] sm:$0xff]
    %v4705 = vld [vmem:[#allocation6 + $0x118] sm:$0xff]
    %v4706 = vld [vmem:[#allocation6 + $0x120] sm:$0xff]
    %v4707 = vld [vmem:[#allocation6 + $0x128] sm:$0xff]
    %v4708 = vld [vmem:[#allocation6 + $0x130] sm:$0xff]
    %v4709 = vld [vmem:[#allocation6 + $0x138] sm:$0xff]
    %v4710 = vld [vmem:[#allocation6 + $0x140] sm:$0xff]
    %v4711 = vld [vmem:[#allocation6 + $0x148] sm:$0xff]
    %v4712 = vld [vmem:[#allocation6 + $0x150] sm:$0xff]
    %v4713 = vld [vmem:[#allocation6 + $0x158] sm:$0xff]
    %v4714 = vld [vmem:[#allocation6 + $0x160] sm:$0xff]
    %v4715 = vld [vmem:[#allocation6 + $0x168] sm:$0xff]
    %v4716 = vld [vmem:[#allocation6 + $0x170] sm:$0xff]
    %v4717 = vld [vmem:[#allocation6 + $0x178] sm:$0xff]
    %v4718 = vld [vmem:[#allocation6 + $0x180] sm:$0xff]
    %v4719 = vld [vmem:[#allocation6 + $0x188] sm:$0xff]
    %v4720 = vld [vmem:[#allocation6 + $0x190] sm:$0xff]
    %v4721 = vld [vmem:[#allocation6 + $0x198] sm:$0xff]
    %v4722 = vld [vmem:[#allocation6 + $0x1a0] sm:$0xff]
    %v4723 = vld [vmem:[#allocation6 + $0x1a8] sm:$0xff]
    %v4724 = vld [vmem:[#allocation6 + $0x1b0] sm:$0xff]
    %v4725 = vld [vmem:[#allocation6 + $0x1b8] sm:$0xff]
    %v4726 = vld [vmem:[#allocation6 + $0x1c0] sm:$0xff]
    %v4727 = vld [vmem:[#allocation6 + $0x1c8] sm:$0xff]
    %v4728 = vld [vmem:[#allocation6 + $0x1d0] sm:$0xff]
    %v4729 = vld [vmem:[#allocation6 + $0x1d8] sm:$0xff]
    %v4730 = vld [vmem:[#allocation6 + $0x1e0] sm:$0xff]
    %v4731 = vld [vmem:[#allocation6 + $0x1e8] sm:$0xff]
    %v4732 = vld [vmem:[#allocation6 + $0x1f0] sm:$0xff]
    %v4733 = vld [vmem:[#allocation6 + $0x1f8] sm:$0xff]
    %v4734 = vld [vmem:[#allocation6 + $0x200] sm:$0xff]
    %v4735 = vld [vmem:[#allocation6 + $0x208] sm:$0xff]
    %v4736 = vld [vmem:[#allocation6 + $0x210] sm:$0xff]
    %v4737 = vld [vmem:[#allocation6 + $0x218] sm:$0xff]
    %v4738 = vld [vmem:[#allocation6 + $0x220] sm:$0xff]
    %v4739 = vld [vmem:[#allocation6 + $0x228] sm:$0xff]
    %v4740 = vld [vmem:[#allocation6 + $0x230] sm:$0xff]
    %v4741 = vld [vmem:[#allocation6 + $0x238] sm:$0xff]
    %v4742 = vld [vmem:[#allocation6 + $0x240] sm:$0xff]
    %v4743 = vld [vmem:[#allocation6 + $0x248] sm:$0xff]
    %v4744 = vld [vmem:[#allocation6 + $0x250] sm:$0xff]
    %v4745 = vld [vmem:[#allocation6 + $0x258] sm:$0xff]
    %v4746 = vld [vmem:[#allocation6 + $0x260] sm:$0xff]
    %v4747 = vld [vmem:[#allocation6 + $0x268] sm:$0xff]
    %v4748 = vld [vmem:[#allocation6 + $0x270] sm:$0xff]
    %v4749 = vld [vmem:[#allocation6 + $0x278] sm:$0xff]
    %v4750 = vld [vmem:[#allocation6 + $0x280] sm:$0xff]
    %v4751 = vld [vmem:[#allocation6 + $0x288] sm:$0xff]
    %v4752 = vld [vmem:[#allocation6 + $0x290] sm:$0xff]
    %v4753 = vld [vmem:[#allocation6 + $0x298] sm:$0xff]
    %v4754 = vld [vmem:[#allocation6 + $0x2a0] sm:$0xff]
    %v4755 = vld [vmem:[#allocation6 + $0x2a8] sm:$0xff]
    %v4756 = vld [vmem:[#allocation6 + $0x2b0] sm:$0xff]
    %v4757 = vld [vmem:[#allocation6 + $0x2b8] sm:$0xff]
    %v4758 = vld [vmem:[#allocation6 + $0x2c0] sm:$0xff]
    %v4759 = vld [vmem:[#allocation6 + $0x2c8] sm:$0xff]
    %v4760 = vld [vmem:[#allocation6 + $0x2d0] sm:$0xff]
    %v4761 = vld [vmem:[#allocation6 + $0x2d8] sm:$0xff]
    %v4762 = vld [vmem:[#allocation6 + $0x2e0] sm:$0xff]
    %v4763 = vld [vmem:[#allocation6 + $0x2e8] sm:$0xff]
    %v4764 = vld [vmem:[#allocation6 + $0x2f0] sm:$0xff]
    %v4765 = vld [vmem:[#allocation6 + $0x2f8] sm:$0xff]
    %v4766 = vld [vmem:[#allocation6 + $0x300] sm:$0xff]
    %v4767 = vld [vmem:[#allocation6 + $0x308] sm:$0xff]
    %v4768 = vld [vmem:[#allocation6 + $0x310] sm:$0xff]
    %v4769 = vld [vmem:[#allocation6 + $0x318] sm:$0xff]
    %v4770 = vld [vmem:[#allocation6 + $0x320] sm:$0xff]
    %v4771 = vld [vmem:[#allocation6 + $0x328] sm:$0xff]
    %v4772 = vld [vmem:[#allocation6 + $0x330] sm:$0xff]
    %v4773 = vld [vmem:[#allocation6 + $0x338] sm:$0xff]
    %v4774 = vld [vmem:[#allocation6 + $0x340] sm:$0xff]
    %v4775 = vld [vmem:[#allocation6 + $0x348] sm:$0xff]
    %v4776 = vld [vmem:[#allocation6 + $0x350] sm:$0xff]
    %v4777 = vld [vmem:[#allocation6 + $0x358] sm:$0xff]
    %v4778 = vld [vmem:[#allocation6 + $0x360] sm:$0xff]
    %v4779 = vld [vmem:[#allocation6 + $0x368] sm:$0xff]
    %v4780 = vld [vmem:[#allocation6 + $0x370] sm:$0xff]
    %v4781 = vld [vmem:[#allocation6 + $0x378] sm:$0xff]
    %v4782 = vld [vmem:[#allocation6 + $0x380] sm:$0xff]
    %v4783 = vld [vmem:[#allocation6 + $0x388] sm:$0xff]
    %v4784 = vld [vmem:[#allocation6 + $0x390] sm:$0xff]
    %v4785 = vld [vmem:[#allocation6 + $0x398] sm:$0xff]
    %v4786 = vld [vmem:[#allocation6 + $0x3a0] sm:$0xff]
    %v4787 = vld [vmem:[#allocation6 + $0x3a8] sm:$0xff]
    %v4788 = vld [vmem:[#allocation6 + $0x3b0] sm:$0xff]
    %v4789 = vld [vmem:[#allocation6 + $0x3b8] sm:$0xff]
    %v4790 = vld [vmem:[#allocation6 + $0x3c0] sm:$0xff]
    %v4791 = vld [vmem:[#allocation6 + $0x3c8] sm:$0xff]
    %v4792 = vld [vmem:[#allocation6 + $0x3d0] sm:$0xff]
    %v4793 = vld [vmem:[#allocation6 + $0x3d8] sm:$0xff]
    %v4794 = vld [vmem:[#allocation6 + $0x3e0] sm:$0xff]
    %v4795 = vld [vmem:[#allocation6 + $0x3e8] sm:$0xff]
    %v4796 = vld [vmem:[#allocation6 + $0x3f0] sm:$0xff]
    %v4797 = vld [vmem:[#allocation6 + $0x3f8] sm:$0xff]
    %v4798 = vld [vmem:[#allocation6 + $0x400] sm:$0xff]
    %v4799 = vld [vmem:[#allocation6 + $0x408] sm:$0xff]
    %v4800 = vld [vmem:[#allocation6 + $0x410] sm:$0xff]
    %v4801 = vld [vmem:[#allocation6 + $0x418] sm:$0xff]
    %v4802 = vld [vmem:[#allocation6 + $0x420] sm:$0xff]
    %v4803 = vld [vmem:[#allocation6 + $0x428] sm:$0xff]
    %v4804 = vld [vmem:[#allocation6 + $0x430] sm:$0xff]
    %v4805 = vld [vmem:[#allocation6 + $0x438] sm:$0xff]
    %v4806 = vld [vmem:[#allocation6 + $0x440] sm:$0xff]
    %v4807 = vld [vmem:[#allocation6 + $0x448] sm:$0xff]
    %v4808 = vld [vmem:[#allocation6 + $0x450] sm:$0xff]
    %v4809 = vld [vmem:[#allocation6 + $0x458] sm:$0xff]
    %v4810 = vld [vmem:[#allocation6 + $0x460] sm:$0xff]
    %v4811 = vld [vmem:[#allocation6 + $0x468] sm:$0xff]
    %v4812 = vld [vmem:[#allocation6 + $0x470] sm:$0xff]
    %v4813 = vld [vmem:[#allocation6 + $0x478] sm:$0xff]
    %v4814 = vld [vmem:[#allocation6 + $0x480] sm:$0xff]
    %v4815 = vld [vmem:[#allocation6 + $0x488] sm:$0xff]
    %v4816 = vld [vmem:[#allocation6 + $0x490] sm:$0xff]
    %v4817 = vld [vmem:[#allocation6 + $0x498] sm:$0xff]
    %v4818 = vld [vmem:[#allocation6 + $0x4a0] sm:$0xff]
    %v4819 = vld [vmem:[#allocation6 + $0x4a8] sm:$0xff]
    %v4820 = vld [vmem:[#allocation6 + $0x4b0] sm:$0xff]
    %v4821 = vld [vmem:[#allocation6 + $0x4b8] sm:$0xff]
    %v4822 = vld [vmem:[#allocation6 + $0x4c0] sm:$0xff]
    %v4823 = vld [vmem:[#allocation6 + $0x4c8] sm:$0xff]
    %v4824 = vld [vmem:[#allocation6 + $0x4d0] sm:$0xff]
    %v4825 = vld [vmem:[#allocation6 + $0x4d8] sm:$0xff]
    %v4826 = vld [vmem:[#allocation6 + $0x4e0] sm:$0xff]
    %v4827 = vld [vmem:[#allocation6 + $0x4e8] sm:$0xff]
    %v4828 = vld [vmem:[#allocation6 + $0x4f0] sm:$0xff]
    %v4829 = vld [vmem:[#allocation6 + $0x4f8] sm:$0xff]
    %v4830 = vld [vmem:[#allocation6 + $0x500] sm:$0xff]
    %v4831 = vld [vmem:[#allocation6 + $0x508] sm:$0xff]
    %v4832 = vld [vmem:[#allocation6 + $0x510] sm:$0xff]
    %v4833 = vld [vmem:[#allocation6 + $0x518] sm:$0xff]
    %v4834 = vld [vmem:[#allocation6 + $0x520] sm:$0xff]
    %v4835 = vld [vmem:[#allocation6 + $0x528] sm:$0xff]
    %v4836 = vld [vmem:[#allocation6 + $0x530] sm:$0xff]
    %v4837 = vld [vmem:[#allocation6 + $0x538] sm:$0xff]
    %v4838 = vld [vmem:[#allocation6 + $0x540] sm:$0xff]
    %v4839 = vld [vmem:[#allocation6 + $0x548] sm:$0xff]
    %v4840 = vld [vmem:[#allocation6 + $0x550] sm:$0xff]
    %v4841 = vld [vmem:[#allocation6 + $0x558] sm:$0xff]
    %v4842 = vld [vmem:[#allocation6 + $0x560] sm:$0xff]
    %v4843 = vld [vmem:[#allocation6 + $0x568] sm:$0xff]
    %v4844 = vld [vmem:[#allocation6 + $0x570] sm:$0xff]
    %v4845 = vld [vmem:[#allocation6 + $0x578] sm:$0xff]
    %v4846 = vld [vmem:[#allocation6 + $0x580] sm:$0xff]
    %v4847 = vld [vmem:[#allocation6 + $0x588] sm:$0xff]
    %v4848 = vld [vmem:[#allocation6 + $0x590] sm:$0xff]
    %v4849 = vld [vmem:[#allocation6 + $0x598] sm:$0xff]
    %v4850 = vld [vmem:[#allocation6 + $0x5a0] sm:$0xff]
    %v4851 = vld [vmem:[#allocation6 + $0x5a8] sm:$0xff]
    %v4852 = vld [vmem:[#allocation6 + $0x5b0] sm:$0xff]
    %v4853 = vld [vmem:[#allocation6 + $0x5b8] sm:$0xff]
    %v4854 = vld [vmem:[#allocation6 + $0x5c0] sm:$0xff]
    %v4855 = vld [vmem:[#allocation6 + $0x5c8] sm:$0xff]
    %v4856 = vld [vmem:[#allocation6 + $0x5d0] sm:$0xff]
    %v4857 = vld [vmem:[#allocation6 + $0x5d8] sm:$0xff]
    %v4858 = vld [vmem:[#allocation6 + $0x5e0] sm:$0xff]
    %v4859 = vld [vmem:[#allocation6 + $0x5e8] sm:$0xff]
    %v4860 = vld [vmem:[#allocation6 + $0x5f0] sm:$0xff]
    %v4861 = vld [vmem:[#allocation6 + $0x5f8] sm:$0xff]
    %v4862 = vld [vmem:[#allocation6 + $0x600] sm:$0xff]
    %v4863 = vld [vmem:[#allocation6 + $0x608] sm:$0xff]
    %v4864 = vld [vmem:[#allocation6 + $0x610] sm:$0xff]
    %v4865 = vld [vmem:[#allocation6 + $0x618] sm:$0xff]
    %v4866 = vld [vmem:[#allocation6 + $0x620] sm:$0xff]
    %v4867 = vld [vmem:[#allocation6 + $0x628] sm:$0xff]
    %v4868 = vld [vmem:[#allocation6 + $0x630] sm:$0xff]
    %v4869 = vld [vmem:[#allocation6 + $0x638] sm:$0xff]
    %v4870 = vld [vmem:[#allocation6 + $0x640] sm:$0xff]
    %v4871 = vld [vmem:[#allocation6 + $0x648] sm:$0xff]
    %v4872 = vld [vmem:[#allocation6 + $0x650] sm:$0xff]
    %v4873 = vld [vmem:[#allocation6 + $0x658] sm:$0xff]
    %v4874 = vld [vmem:[#allocation6 + $0x660] sm:$0xff]
    %v4875 = vld [vmem:[#allocation6 + $0x668] sm:$0xff]
    %v4876 = vld [vmem:[#allocation6 + $0x670] sm:$0xff]
    %v4877 = vld [vmem:[#allocation6 + $0x678] sm:$0xff]
    %v4878 = vld [vmem:[#allocation6 + $0x680] sm:$0xff]
    %v4879 = vld [vmem:[#allocation6 + $0x688] sm:$0xff]
    %v4880 = vld [vmem:[#allocation6 + $0x690] sm:$0xff]
    %v4881 = vld [vmem:[#allocation6 + $0x698] sm:$0xff]
    %v4882 = vld [vmem:[#allocation6 + $0x6a0] sm:$0xff]
    %v4883 = vld [vmem:[#allocation6 + $0x6a8] sm:$0xff]
    %v4884 = vld [vmem:[#allocation6 + $0x6b0] sm:$0xff]
    %v4885 = vld [vmem:[#allocation6 + $0x6b8] sm:$0xff]
    %v4886 = vld [vmem:[#allocation6 + $0x6c0] sm:$0xff]
    %v4887 = vld [vmem:[#allocation6 + $0x6c8] sm:$0xff]
    %v4888 = vld [vmem:[#allocation6 + $0x6d0] sm:$0xff]
    %v4889 = vld [vmem:[#allocation6 + $0x6d8] sm:$0xff]
    %v4890 = vld [vmem:[#allocation6 + $0x6e0] sm:$0xff]
    %v4891 = vld [vmem:[#allocation6 + $0x6e8] sm:$0xff]
    %v4892 = vld [vmem:[#allocation6 + $0x6f0] sm:$0xff]
    %v4893 = vld [vmem:[#allocation6 + $0x6f8] sm:$0xff]
    %v4894 = vld [vmem:[#allocation6 + $0x700] sm:$0xff]
    %v4895 = vld [vmem:[#allocation6 + $0x708] sm:$0xff]
    %v4896 = vld [vmem:[#allocation6 + $0x710] sm:$0xff]
    %v4897 = vld [vmem:[#allocation6 + $0x718] sm:$0xff]
    %v4898 = vld [vmem:[#allocation6 + $0x720] sm:$0xff]
    %v4899 = vld [vmem:[#allocation6 + $0x728] sm:$0xff]
    %v4900 = vld [vmem:[#allocation6 + $0x730] sm:$0xff]
    %v4901 = vld [vmem:[#allocation6 + $0x738] sm:$0xff]
    %v4902 = vld [vmem:[#allocation6 + $0x740] sm:$0xff]
    %v4903 = vld [vmem:[#allocation6 + $0x748] sm:$0xff]
    %v4904 = vld [vmem:[#allocation6 + $0x750] sm:$0xff]
    %v4905 = vld [vmem:[#allocation6 + $0x758] sm:$0xff]
    %v4906 = vld [vmem:[#allocation6 + $0x760] sm:$0xff]
    %v4907 = vld [vmem:[#allocation6 + $0x768] sm:$0xff]
    %v4908 = vld [vmem:[#allocation6 + $0x770] sm:$0xff]
    %v4909 = vld [vmem:[#allocation6 + $0x778] sm:$0xff]
    %v4910 = vld [vmem:[#allocation6 + $0x780] sm:$0xff]
    %v4911 = vld [vmem:[#allocation6 + $0x788] sm:$0xff]
    %v4912 = vld [vmem:[#allocation6 + $0x790] sm:$0xff]
    %v4913 = vld [vmem:[#allocation6 + $0x798] sm:$0xff]
    %v4914 = vld [vmem:[#allocation6 + $0x7a0] sm:$0xff]
    %v4915 = vld [vmem:[#allocation6 + $0x7a8] sm:$0xff]
    %v4916 = vld [vmem:[#allocation6 + $0x7b0] sm:$0xff]
    %v4917 = vld [vmem:[#allocation6 + $0x7b8] sm:$0xff]
    %v4918 = vld [vmem:[#allocation6 + $0x7c0] sm:$0xff]
    %v4919 = vld [vmem:[#allocation6 + $0x7c8] sm:$0xff]
    %v4920 = vld [vmem:[#allocation6 + $0x7d0] sm:$0xff]
    %v4921 = vld [vmem:[#allocation6 + $0x7d8] sm:$0xff]
    %v4922 = vld [vmem:[#allocation6 + $0x7e0] sm:$0xff]
    %v4923 = vld [vmem:[#allocation6 + $0x7e8] sm:$0xff]
    %v4924 = vld [vmem:[#allocation6 + $0x7f0] sm:$0xff]
    %v4925 = vld [vmem:[#allocation6 + $0x7f8] sm:$0xff]
    %v4926 = vld [vmem:[#allocation6 + $0x800] sm:$0xff]
    %v4927 = vld [vmem:[#allocation6 + $0x808] sm:$0xff]
    %v4928 = vld [vmem:[#allocation6 + $0x810] sm:$0xff]
    %v4929 = vld [vmem:[#allocation6 + $0x818] sm:$0xff]
    %v4930 = vld [vmem:[#allocation6 + $0x820] sm:$0xff]
    %v4931 = vld [vmem:[#allocation6 + $0x828] sm:$0xff]
    %v4932 = vld [vmem:[#allocation6 + $0x830] sm:$0xff]
    %v4933 = vld [vmem:[#allocation6 + $0x838] sm:$0xff]
    %v4934 = vld [vmem:[#allocation6 + $0x840] sm:$0xff]
    %v4935 = vld [vmem:[#allocation6 + $0x848] sm:$0xff]
    %v4936 = vld [vmem:[#allocation6 + $0x850] sm:$0xff]
    %v4937 = vld [vmem:[#allocation6 + $0x858] sm:$0xff]
    %v4938 = vld [vmem:[#allocation6 + $0x860] sm:$0xff]
    %v4939 = vld [vmem:[#allocation6 + $0x868] sm:$0xff]
    %v4940 = vld [vmem:[#allocation6 + $0x870] sm:$0xff]
    %v4941 = vld [vmem:[#allocation6 + $0x878] sm:$0xff]
    %v4942 = vld [vmem:[#allocation6 + $0x880] sm:$0xff]
    %v4943 = vld [vmem:[#allocation6 + $0x888] sm:$0xff]
    %v4944 = vld [vmem:[#allocation6 + $0x890] sm:$0xff]
    %v4945 = vld [vmem:[#allocation6 + $0x898] sm:$0xff]
    %v4946 = vld [vmem:[#allocation6 + $0x8a0] sm:$0xff]
    %v4947 = vld [vmem:[#allocation6 + $0x8a8] sm:$0xff]
    %v4948 = vld [vmem:[#allocation6 + $0x8b0] sm:$0xff]
    %v4949 = vld [vmem:[#allocation6 + $0x8b8] sm:$0xff]
    %v4950 = vld [vmem:[#allocation6 + $0x8c0] sm:$0xff]
    %v4951 = vld [vmem:[#allocation6 + $0x8c8] sm:$0xff]
    %v4952 = vld [vmem:[#allocation6 + $0x8d0] sm:$0xff]
    %v4953 = vld [vmem:[#allocation6 + $0x8d8] sm:$0xff]
    %v4954 = vld [vmem:[#allocation6 + $0x8e0] sm:$0xff]
    %v4955 = vld [vmem:[#allocation6 + $0x8e8] sm:$0xff]
    %v4956 = vld [vmem:[#allocation6 + $0x8f0] sm:$0xff]
    %v4957 = vld [vmem:[#allocation6 + $0x8f8] sm:$0xff]
    %v4958 = vld [vmem:[#allocation6 + $0x900] sm:$0xff]
    %v4959 = vld [vmem:[#allocation6 + $0x908] sm:$0xff]
    %v4960 = vld [vmem:[#allocation6 + $0x910] sm:$0xff]
    %v4961 = vld [vmem:[#allocation6 + $0x918] sm:$0xff]
    %v4962 = vld [vmem:[#allocation6 + $0x920] sm:$0xff]
    %v4963 = vld [vmem:[#allocation6 + $0x928] sm:$0xff]
    %v4964 = vld [vmem:[#allocation6 + $0x930] sm:$0xff]
    %v4965 = vld [vmem:[#allocation6 + $0x938] sm:$0xff]
    %v4966 = vld [vmem:[#allocation6 + $0x940] sm:$0xff]
    %v4967 = vld [vmem:[#allocation6 + $0x948] sm:$0xff]
    %v4968 = vld [vmem:[#allocation6 + $0x950] sm:$0xff]
    %v4969 = vld [vmem:[#allocation6 + $0x958] sm:$0xff]
    %v4970 = vld [vmem:[#allocation6 + $0x960] sm:$0xff]
    %v4971 = vld [vmem:[#allocation6 + $0x968] sm:$0xff]
    %v4972 = vld [vmem:[#allocation6 + $0x970] sm:$0xff]
    %v4973 = vld [vmem:[#allocation6 + $0x978] sm:$0xff]
    %v4974 = vld [vmem:[#allocation6 + $0x980] sm:$0xff]
    %v4975 = vld [vmem:[#allocation6 + $0x988] sm:$0xff]
    %v4976 = vld [vmem:[#allocation6 + $0x990] sm:$0xff]
    %v4977 = vld [vmem:[#allocation6 + $0x998] sm:$0xff]
    %v4978 = vld [vmem:[#allocation6 + $0x9a0] sm:$0xff]
    %v4979 = vld [vmem:[#allocation6 + $0x9a8] sm:$0xff]
    %v4980 = vld [vmem:[#allocation6 + $0x9b0] sm:$0xff]
    %v4981 = vld [vmem:[#allocation6 + $0x9b8] sm:$0xff]
    %v4982 = vld [vmem:[#allocation6 + $0x9c0] sm:$0xff]
    %v4983 = vld [vmem:[#allocation6 + $0x9c8] sm:$0xff]
    %v4984 = vld [vmem:[#allocation6 + $0x9d0] sm:$0xff]
    %v4985 = vld [vmem:[#allocation6 + $0x9d8] sm:$0xff]
    %v4986 = vld [vmem:[#allocation6 + $0x9e0] sm:$0xff]
    %v4987 = vld [vmem:[#allocation6 + $0x9e8] sm:$0xff]
    %v4988 = vld [vmem:[#allocation6 + $0x9f0] sm:$0xff]
    %v4989 = vld [vmem:[#allocation6 + $0x9f8] sm:$0xff]
    %v4990 = vld [vmem:[#allocation6 + $0xa00] sm:$0xff]
    %v4991 = vld [vmem:[#allocation6 + $0xa08] sm:$0xff]
    %v4992 = vld [vmem:[#allocation6 + $0xa10] sm:$0xff]
    %v4993 = vld [vmem:[#allocation6 + $0xa18] sm:$0xff]
    %v4994 = vld [vmem:[#allocation6 + $0xa20] sm:$0xff]
    %v4995 = vld [vmem:[#allocation6 + $0xa28] sm:$0xff]
    %v4996 = vld [vmem:[#allocation6 + $0xa30] sm:$0xff]
    %v4997 = vld [vmem:[#allocation6 + $0xa38] sm:$0xff]
    %v4998 = vld [vmem:[#allocation6 + $0xa40] sm:$0xff]
    %v4999 = vld [vmem:[#allocation6 + $0xa48] sm:$0xff]
    %v5000 = vld [vmem:[#allocation6 + $0xa50] sm:$0xff]
    %v5001 = vld [vmem:[#allocation6 + $0xa58] sm:$0xff]
    %v5002 = vld [vmem:[#allocation6 + $0xa60] sm:$0xff]
    %v5003 = vld [vmem:[#allocation6 + $0xa68] sm:$0xff]
    %v5004 = vld [vmem:[#allocation6 + $0xa70] sm:$0xff]
    %v5005 = vld [vmem:[#allocation6 + $0xa78] sm:$0xff]
    %v5006 = vld [vmem:[#allocation6 + $0xa80] sm:$0xff]
    %v5007 = vld [vmem:[#allocation6 + $0xa88] sm:$0xff]
    %v5008 = vld [vmem:[#allocation6 + $0xa90] sm:$0xff]
    %v5009 = vld [vmem:[#allocation6 + $0xa98] sm:$0xff]
    %v5010 = vld [vmem:[#allocation6 + $0xaa0] sm:$0xff]
    %v5011 = vld [vmem:[#allocation6 + $0xaa8] sm:$0xff]
    %v5012 = vld [vmem:[#allocation6 + $0xab0] sm:$0xff]
    %v5013 = vld [vmem:[#allocation6 + $0xab8] sm:$0xff]
    %v5014 = vld [vmem:[#allocation6 + $0xac0] sm:$0xff]
    %v5015 = vld [vmem:[#allocation6 + $0xac8] sm:$0xff]
    %v5016 = vld [vmem:[#allocation6 + $0xad0] sm:$0xff]
    %v5017 = vld [vmem:[#allocation6 + $0xad8] sm:$0xff]
    %v5018 = vld [vmem:[#allocation6 + $0xae0] sm:$0xff]
    %v5019 = vld [vmem:[#allocation6 + $0xae8] sm:$0xff]
    %v5020 = vld [vmem:[#allocation6 + $0xaf0] sm:$0xff]
    %v5021 = vld [vmem:[#allocation6 + $0xaf8] sm:$0xff]
    %v5022 = vld [vmem:[#allocation6 + $0xb00] sm:$0xff]
    %v5023 = vld [vmem:[#allocation6 + $0xb08] sm:$0xff]
    %v5024 = vld [vmem:[#allocation6 + $0xb10] sm:$0xff]
    %v5025 = vld [vmem:[#allocation6 + $0xb18] sm:$0xff]
    %v5026 = vld [vmem:[#allocation6 + $0xb20] sm:$0xff]
    %v5027 = vld [vmem:[#allocation6 + $0xb28] sm:$0xff]
    %v5028 = vld [vmem:[#allocation6 + $0xb30] sm:$0xff]
    %v5029 = vld [vmem:[#allocation6 + $0xb38] sm:$0xff]
    %v5030 = vld [vmem:[#allocation6 + $0xb40] sm:$0xff]
    %v5031 = vld [vmem:[#allocation6 + $0xb48] sm:$0xff]
    %v5032 = vld [vmem:[#allocation6 + $0xb50] sm:$0xff]
    %v5033 = vld [vmem:[#allocation6 + $0xb58] sm:$0xff]
    %v5034 = vld [vmem:[#allocation6 + $0xb60] sm:$0xff]
    %v5035 = vld [vmem:[#allocation6 + $0xb68] sm:$0xff]
    %v5036 = vld [vmem:[#allocation6 + $0xb70] sm:$0xff]
    %v5037 = vld [vmem:[#allocation6 + $0xb78] sm:$0xff]
    %v5038 = vld [vmem:[#allocation6 + $0xb80] sm:$0xff]
    %v5039 = vld [vmem:[#allocation6 + $0xb88] sm:$0xff]
    %v5040 = vld [vmem:[#allocation6 + $0xb90] sm:$0xff]
    %v5041 = vld [vmem:[#allocation6 + $0xb98] sm:$0xff]
    %v5042 = vld [vmem:[#allocation6 + $0xba0] sm:$0xff]
    %v5043 = vld [vmem:[#allocation6 + $0xba8] sm:$0xff]
    %v5044 = vld [vmem:[#allocation6 + $0xbb0] sm:$0xff]
    %v5045 = vld [vmem:[#allocation6 + $0xbb8] sm:$0xff]
    %v5046 = vld [vmem:[#allocation6 + $0xbc0] sm:$0xff]
    %v5047 = vld [vmem:[#allocation6 + $0xbc8] sm:$0xff]
    %v5048 = vld [vmem:[#allocation6 + $0xbd0] sm:$0xff]
    %v5049 = vld [vmem:[#allocation6 + $0xbd8] sm:$0xff]
    %v5050 = vld [vmem:[#allocation6 + $0xbe0] sm:$0xff]
    %v5051 = vld [vmem:[#allocation6 + $0xbe8] sm:$0xff]
    %v5052 = vld [vmem:[#allocation6 + $0xbf0] sm:$0xff]
    %v5053 = vld [vmem:[#allocation6 + $0xbf8] sm:$0xff]
    %v5054 = vld [vmem:[#allocation6 + $0xc00] sm:$0xff]
    %v5055 = vld [vmem:[#allocation6 + $0xc08] sm:$0xff]
    %v5056 = vld [vmem:[#allocation6 + $0xc10] sm:$0xff]
    %v5057 = vld [vmem:[#allocation6 + $0xc18] sm:$0xff]
    %v5058 = vld [vmem:[#allocation6 + $0xc20] sm:$0xff]
    %v5059 = vld [vmem:[#allocation6 + $0xc28] sm:$0xff]
    %v5060 = vld [vmem:[#allocation6 + $0xc30] sm:$0xff]
    %v5061 = vld [vmem:[#allocation6 + $0xc38] sm:$0xff]
    %v5062 = vld [vmem:[#allocation7] sm:$0xff]
    %v5064 = vlaneseq
    %v5065 = vshrl.u32 %v5064, 7
    %v5066 = vsub.s32 0, %v5065
    %v5067 = vrot.slane %v5062, %v5066
    %v5068 = vlaneseq
    %v5069 = vshrl.u32 %v5068, 7
    %v5070 = vsub.s32 1, %v5069
    %v5071 = vrot.slane %v5062, %v5070
    %v5072 = vlaneseq
    %v5073 = vshrl.u32 %v5072, 7
    %v5074 = vsub.s32 2, %v5073
    %v5075 = vrot.slane %v5062, %v5074
    %v5076 = vlaneseq
    %v5077 = vshrl.u32 %v5076, 7
    %v5078 = vsub.s32 3, %v5077
    %v5079 = vrot.slane %v5062, %v5078
    %v5080 = vlaneseq
    %v5081 = vshrl.u32 %v5080, 7
    %v5082 = vsub.s32 4, %v5081
    %v5083 = vrot.slane %v5062, %v5082
    %v5084 = vlaneseq
    %v5085 = vshrl.u32 %v5084, 7
    %v5086 = vsub.s32 5, %v5085
    %v5087 = vrot.slane %v5062, %v5086
    %v5088 = vlaneseq
    %v5089 = vshrl.u32 %v5088, 7
    %v5090 = vsub.s32 6, %v5089
    %v5091 = vrot.slane %v5062, %v5090
    %v5092 = vlaneseq
    %v5093 = vshrl.u32 %v5092, 7
    %v5094 = vsub.s32 7, %v5093
    %v5095 = vrot.slane %v5062, %v5094
    %v5496 = vunpack.c.l.b16 %v4670
    %v5497 = vunpack.c.h.b16 %v4670
    %v5498 = vunpack.c.l.b16 %v4671
    %v5499 = vunpack.c.h.b16 %v4671
    %v5500 = vunpack.c.l.b16 %v4672
    %v5501 = vunpack.c.h.b16 %v4672
    %v5502 = vunpack.c.l.b16 %v4673
    %v5503 = vunpack.c.h.b16 %v4673
    %v5504 = vunpack.c.l.b16 %v4674
    %v5505 = vunpack.c.h.b16 %v4674
    %v5506 = vunpack.c.l.b16 %v4675
    %v5507 = vunpack.c.h.b16 %v4675
    %v5508 = vunpack.c.l.b16 %v4676
    %v5509 = vunpack.c.h.b16 %v4676
    %v5510 = vunpack.c.l.b16 %v4677
    %v5511 = vunpack.c.h.b16 %v4677
    %v5512 = vunpack.c.l.b16 %v4678
    %v5513 = vunpack.c.h.b16 %v4678
    %v5514 = vunpack.c.l.b16 %v4679
    %v5515 = vunpack.c.h.b16 %v4679
    %v5516 = vunpack.c.l.b16 %v4680
    %v5517 = vunpack.c.h.b16 %v4680
    %v5518 = vunpack.c.l.b16 %v4681
    %v5519 = vunpack.c.h.b16 %v4681
    %v5520 = vunpack.c.l.b16 %v4682
    %v5521 = vunpack.c.h.b16 %v4682
    %v5522 = vunpack.c.l.b16 %v4683
    %v5523 = vunpack.c.h.b16 %v4683
    %v5524 = vunpack.c.l.b16 %v4684
    %v5525 = vunpack.c.h.b16 %v4684
    %v5526 = vunpack.c.l.b16 %v4685
    %v5527 = vunpack.c.h.b16 %v4685
    %v5528 = vunpack.c.l.b16 %v4686
    %v5529 = vunpack.c.h.b16 %v4686
    %v5530 = vunpack.c.l.b16 %v4687
    %v5531 = vunpack.c.h.b16 %v4687
    %v5532 = vunpack.c.l.b16 %v4688
    %v5533 = vunpack.c.h.b16 %v4688
    %v5534 = vunpack.c.l.b16 %v4689
    %v5535 = vunpack.c.h.b16 %v4689
    %v5536 = vunpack.c.l.b16 %v4690
    %v5537 = vunpack.c.h.b16 %v4690
    %v5538 = vunpack.c.l.b16 %v4691
    %v5539 = vunpack.c.h.b16 %v4691
    %v5540 = vunpack.c.l.b16 %v4692
    %v5541 = vunpack.c.h.b16 %v4692
    %v5542 = vunpack.c.l.b16 %v4693
    %v5543 = vunpack.c.h.b16 %v4693
    %v5544 = vunpack.c.l.b16 %v4694
    %v5545 = vunpack.c.h.b16 %v4694
    %v5546 = vunpack.c.l.b16 %v4695
    %v5547 = vunpack.c.h.b16 %v4695
    %v5548 = vunpack.c.l.b16 %v4696
    %v5549 = vunpack.c.h.b16 %v4696
    %v5550 = vunpack.c.l.b16 %v4697
    %v5551 = vunpack.c.h.b16 %v4697
    %v5552 = vunpack.c.l.b16 %v4698
    %v5553 = vunpack.c.h.b16 %v4698
    %v5554 = vunpack.c.l.b16 %v4699
    %v5555 = vunpack.c.h.b16 %v4699
    %v5556 = vunpack.c.l.b16 %v4700
    %v5557 = vunpack.c.h.b16 %v4700
    %v5558 = vunpack.c.l.b16 %v4701
    %v5559 = vunpack.c.h.b16 %v4701
    %v5560 = vunpack.c.l.b16 %v4702
    %v5561 = vunpack.c.h.b16 %v4702
    %v5562 = vunpack.c.l.b16 %v4703
    %v5563 = vunpack.c.h.b16 %v4703
    %v5564 = vunpack.c.l.b16 %v4704
    %v5565 = vunpack.c.h.b16 %v4704
    %v5566 = vunpack.c.l.b16 %v4705
    %v5567 = vunpack.c.h.b16 %v4705
    %v5568 = vunpack.c.l.b16 %v4706
    %v5569 = vunpack.c.h.b16 %v4706
    %v5570 = vunpack.c.l.b16 %v4707
    %v5571 = vunpack.c.h.b16 %v4707
    %v5572 = vunpack.c.l.b16 %v4708
    %v5573 = vunpack.c.h.b16 %v4708
    %v5574 = vunpack.c.l.b16 %v4709
    %v5575 = vunpack.c.h.b16 %v4709
    %v5576 = vunpack.c.l.b16 %v4710
    %v5577 = vunpack.c.h.b16 %v4710
    %v5578 = vunpack.c.l.b16 %v4711
    %v5579 = vunpack.c.h.b16 %v4711
    %v5580 = vunpack.c.l.b16 %v4712
    %v5581 = vunpack.c.h.b16 %v4712
    %v5582 = vunpack.c.l.b16 %v4713
    %v5583 = vunpack.c.h.b16 %v4713
    %v5584 = vunpack.c.l.b16 %v4714
    %v5585 = vunpack.c.h.b16 %v4714
    %v5586 = vunpack.c.l.b16 %v4715
    %v5587 = vunpack.c.h.b16 %v4715
    %v5588 = vunpack.c.l.b16 %v4716
    %v5589 = vunpack.c.h.b16 %v4716
    %v5590 = vunpack.c.l.b16 %v4717
    %v5591 = vunpack.c.h.b16 %v4717
    %v5592 = vunpack.c.l.b16 %v4718
    %v5593 = vunpack.c.h.b16 %v4718
    %v5594 = vunpack.c.l.b16 %v4719
    %v5595 = vunpack.c.h.b16 %v4719
    %v5596 = vunpack.c.l.b16 %v4720
    %v5597 = vunpack.c.h.b16 %v4720
    %v5598 = vunpack.c.l.b16 %v4721
    %v5599 = vunpack.c.h.b16 %v4721
    %v5600 = vunpack.c.l.b16 %v4722
    %v5601 = vunpack.c.h.b16 %v4722
    %v5602 = vunpack.c.l.b16 %v4723
    %v5603 = vunpack.c.h.b16 %v4723
    %v5604 = vunpack.c.l.b16 %v4724
    %v5605 = vunpack.c.h.b16 %v4724
    %v5606 = vunpack.c.l.b16 %v4725
    %v5607 = vunpack.c.h.b16 %v4725
    %v5608 = vunpack.c.l.b16 %v4726
    %v5609 = vunpack.c.h.b16 %v4726
    %v5610 = vunpack.c.l.b16 %v4727
    %v5611 = vunpack.c.h.b16 %v4727
    %v5612 = vunpack.c.l.b16 %v4728
    %v5613 = vunpack.c.h.b16 %v4728
    %v5614 = vunpack.c.l.b16 %v4729
    %v5615 = vunpack.c.h.b16 %v4729
    %v5616 = vunpack.c.l.b16 %v4730
    %v5617 = vunpack.c.h.b16 %v4730
    %v5618 = vunpack.c.l.b16 %v4731
    %v5619 = vunpack.c.h.b16 %v4731
    %v5620 = vunpack.c.l.b16 %v4732
    %v5621 = vunpack.c.h.b16 %v4732
    %v5622 = vunpack.c.l.b16 %v4733
    %v5623 = vunpack.c.h.b16 %v4733
    %v5624 = vunpack.c.l.b16 %v4734
    %v5625 = vunpack.c.h.b16 %v4734
    %v5626 = vunpack.c.l.b16 %v4735
    %v5627 = vunpack.c.h.b16 %v4735
    %v5628 = vunpack.c.l.b16 %v4736
    %v5629 = vunpack.c.h.b16 %v4736
    %v5630 = vunpack.c.l.b16 %v4737
    %v5631 = vunpack.c.h.b16 %v4737
    %v5632 = vunpack.c.l.b16 %v4738
    %v5633 = vunpack.c.h.b16 %v4738
    %v5634 = vunpack.c.l.b16 %v4739
    %v5635 = vunpack.c.h.b16 %v4739
    %v5636 = vunpack.c.l.b16 %v4740
    %v5637 = vunpack.c.h.b16 %v4740
    %v5638 = vunpack.c.l.b16 %v4741
    %v5639 = vunpack.c.h.b16 %v4741
    %v5640 = vunpack.c.l.b16 %v4742
    %v5641 = vunpack.c.h.b16 %v4742
    %v5642 = vunpack.c.l.b16 %v4743
    %v5643 = vunpack.c.h.b16 %v4743
    %v5644 = vunpack.c.l.b16 %v4744
    %v5645 = vunpack.c.h.b16 %v4744
    %v5646 = vunpack.c.l.b16 %v4745
    %v5647 = vunpack.c.h.b16 %v4745
    %v5648 = vunpack.c.l.b16 %v4746
    %v5649 = vunpack.c.h.b16 %v4746
    %v5650 = vunpack.c.l.b16 %v4747
    %v5651 = vunpack.c.h.b16 %v4747
    %v5652 = vunpack.c.l.b16 %v4748
    %v5653 = vunpack.c.h.b16 %v4748
    %v5654 = vunpack.c.l.b16 %v4749
    %v5655 = vunpack.c.h.b16 %v4749
    %v5656 = vunpack.c.l.b16 %v4750
    %v5657 = vunpack.c.h.b16 %v4750
    %v5658 = vunpack.c.l.b16 %v4751
    %v5659 = vunpack.c.h.b16 %v4751
    %v5660 = vunpack.c.l.b16 %v4752
    %v5661 = vunpack.c.h.b16 %v4752
    %v5662 = vunpack.c.l.b16 %v4753
    %v5663 = vunpack.c.h.b16 %v4753
    %v5664 = vunpack.c.l.b16 %v4754
    %v5665 = vunpack.c.h.b16 %v4754
    %v5666 = vunpack.c.l.b16 %v4755
    %v5667 = vunpack.c.h.b16 %v4755
    %v5668 = vunpack.c.l.b16 %v4756
    %v5669 = vunpack.c.h.b16 %v4756
    %v5670 = vunpack.c.l.b16 %v4757
    %v5671 = vunpack.c.h.b16 %v4757
    %v5672 = vunpack.c.l.b16 %v4758
    %v5673 = vunpack.c.h.b16 %v4758
    %v5674 = vunpack.c.l.b16 %v4759
    %v5675 = vunpack.c.h.b16 %v4759
    %v5676 = vunpack.c.l.b16 %v4760
    %v5677 = vunpack.c.h.b16 %v4760
    %v5678 = vunpack.c.l.b16 %v4761
    %v5679 = vunpack.c.h.b16 %v4761
    %v5680 = vunpack.c.l.b16 %v4762
    %v5681 = vunpack.c.h.b16 %v4762
    %v5682 = vunpack.c.l.b16 %v4763
    %v5683 = vunpack.c.h.b16 %v4763
    %v5684 = vunpack.c.l.b16 %v4764
    %v5685 = vunpack.c.h.b16 %v4764
    %v5686 = vunpack.c.l.b16 %v4765
    %v5687 = vunpack.c.h.b16 %v4765
    %v5688 = vunpack.c.l.b16 %v4766
    %v5689 = vunpack.c.h.b16 %v4766
    %v5690 = vunpack.c.l.b16 %v4767
    %v5691 = vunpack.c.h.b16 %v4767
    %v5692 = vunpack.c.l.b16 %v4768
    %v5693 = vunpack.c.h.b16 %v4768
    %v5694 = vunpack.c.l.b16 %v4769
    %v5695 = vunpack.c.h.b16 %v4769
    %v5696 = vunpack.c.l.b16 %v4770
    %v5697 = vunpack.c.h.b16 %v4770
    %v5698 = vunpack.c.l.b16 %v4771
    %v5699 = vunpack.c.h.b16 %v4771
    %v5700 = vunpack.c.l.b16 %v4772
    %v5701 = vunpack.c.h.b16 %v4772
    %v5702 = vunpack.c.l.b16 %v4773
    %v5703 = vunpack.c.h.b16 %v4773
    %v5704 = vunpack.c.l.b16 %v4774
    %v5705 = vunpack.c.h.b16 %v4774
    %v5706 = vunpack.c.l.b16 %v4775
    %v5707 = vunpack.c.h.b16 %v4775
    %v5708 = vunpack.c.l.b16 %v4776
    %v5709 = vunpack.c.h.b16 %v4776
    %v5710 = vunpack.c.l.b16 %v4777
    %v5711 = vunpack.c.h.b16 %v4777
    %v5712 = vunpack.c.l.b16 %v4778
    %v5713 = vunpack.c.h.b16 %v4778
    %v5714 = vunpack.c.l.b16 %v4779
    %v5715 = vunpack.c.h.b16 %v4779
    %v5716 = vunpack.c.l.b16 %v4780
    %v5717 = vunpack.c.h.b16 %v4780
    %v5718 = vunpack.c.l.b16 %v4781
    %v5719 = vunpack.c.h.b16 %v4781
    %v5720 = vunpack.c.l.b16 %v4782
    %v5721 = vunpack.c.h.b16 %v4782
    %v5722 = vunpack.c.l.b16 %v4783
    %v5723 = vunpack.c.h.b16 %v4783
    %v5724 = vunpack.c.l.b16 %v4784
    %v5725 = vunpack.c.h.b16 %v4784
    %v5726 = vunpack.c.l.b16 %v4785
    %v5727 = vunpack.c.h.b16 %v4785
    %v5728 = vunpack.c.l.b16 %v4786
    %v5729 = vunpack.c.h.b16 %v4786
    %v5730 = vunpack.c.l.b16 %v4787
    %v5731 = vunpack.c.h.b16 %v4787
    %v5732 = vunpack.c.l.b16 %v4788
    %v5733 = vunpack.c.h.b16 %v4788
    %v5734 = vunpack.c.l.b16 %v4789
    %v5735 = vunpack.c.h.b16 %v4789
    %v5736 = vunpack.c.l.b16 %v4790
    %v5737 = vunpack.c.h.b16 %v4790
    %v5738 = vunpack.c.l.b16 %v4791
    %v5739 = vunpack.c.h.b16 %v4791
    %v5740 = vunpack.c.l.b16 %v4792
    %v5741 = vunpack.c.h.b16 %v4792
    %v5742 = vunpack.c.l.b16 %v4793
    %v5743 = vunpack.c.h.b16 %v4793
    %v5744 = vunpack.c.l.b16 %v4794
    %v5745 = vunpack.c.h.b16 %v4794
    %v5746 = vunpack.c.l.b16 %v4795
    %v5747 = vunpack.c.h.b16 %v4795
    %v5748 = vunpack.c.l.b16 %v4796
    %v5749 = vunpack.c.h.b16 %v4796
    %v5750 = vunpack.c.l.b16 %v4797
    %v5751 = vunpack.c.h.b16 %v4797
    %v5752 = vunpack.c.l.b16 %v4798
    %v5753 = vunpack.c.h.b16 %v4798
    %v5754 = vunpack.c.l.b16 %v4799
    %v5755 = vunpack.c.h.b16 %v4799
    %v5756 = vunpack.c.l.b16 %v4800
    %v5757 = vunpack.c.h.b16 %v4800
    %v5758 = vunpack.c.l.b16 %v4801
    %v5759 = vunpack.c.h.b16 %v4801
    %v5760 = vunpack.c.l.b16 %v4802
    %v5761 = vunpack.c.h.b16 %v4802
    %v5762 = vunpack.c.l.b16 %v4803
    %v5763 = vunpack.c.h.b16 %v4803
    %v5764 = vunpack.c.l.b16 %v4804
    %v5765 = vunpack.c.h.b16 %v4804
    %v5766 = vunpack.c.l.b16 %v4805
    %v5767 = vunpack.c.h.b16 %v4805
    %v5768 = vunpack.c.l.b16 %v4806
    %v5769 = vunpack.c.h.b16 %v4806
    %v5770 = vunpack.c.l.b16 %v4807
    %v5771 = vunpack.c.h.b16 %v4807
    %v5772 = vunpack.c.l.b16 %v4808
    %v5773 = vunpack.c.h.b16 %v4808
    %v5774 = vunpack.c.l.b16 %v4809
    %v5775 = vunpack.c.h.b16 %v4809
    %v5776 = vunpack.c.l.b16 %v4810
    %v5777 = vunpack.c.h.b16 %v4810
    %v5778 = vunpack.c.l.b16 %v4811
    %v5779 = vunpack.c.h.b16 %v4811
    %v5780 = vunpack.c.l.b16 %v4812
    %v5781 = vunpack.c.h.b16 %v4812
    %v5782 = vunpack.c.l.b16 %v4813
    %v5783 = vunpack.c.h.b16 %v4813
    %v5784 = vunpack.c.l.b16 %v4814
    %v5785 = vunpack.c.h.b16 %v4814
    %v5786 = vunpack.c.l.b16 %v4815
    %v5787 = vunpack.c.h.b16 %v4815
    %v5788 = vunpack.c.l.b16 %v4816
    %v5789 = vunpack.c.h.b16 %v4816
    %v5790 = vunpack.c.l.b16 %v4817
    %v5791 = vunpack.c.h.b16 %v4817
    %v5792 = vunpack.c.l.b16 %v4818
    %v5793 = vunpack.c.h.b16 %v4818
    %v5794 = vunpack.c.l.b16 %v4819
    %v5795 = vunpack.c.h.b16 %v4819
    %v5796 = vunpack.c.l.b16 %v4820
    %v5797 = vunpack.c.h.b16 %v4820
    %v5798 = vunpack.c.l.b16 %v4821
    %v5799 = vunpack.c.h.b16 %v4821
    %v5800 = vunpack.c.l.b16 %v4822
    %v5801 = vunpack.c.h.b16 %v4822
    %v5802 = vunpack.c.l.b16 %v4823
    %v5803 = vunpack.c.h.b16 %v4823
    %v5804 = vunpack.c.l.b16 %v4824
    %v5805 = vunpack.c.h.b16 %v4824
    %v5806 = vunpack.c.l.b16 %v4825
    %v5807 = vunpack.c.h.b16 %v4825
    %v5808 = vunpack.c.l.b16 %v4826
    %v5809 = vunpack.c.h.b16 %v4826
    %v5810 = vunpack.c.l.b16 %v4827
    %v5811 = vunpack.c.h.b16 %v4827
    %v5812 = vunpack.c.l.b16 %v4828
    %v5813 = vunpack.c.h.b16 %v4828
    %v5814 = vunpack.c.l.b16 %v4829
    %v5815 = vunpack.c.h.b16 %v4829
    %v5816 = vunpack.c.l.b16 %v4830
    %v5817 = vunpack.c.h.b16 %v4830
    %v5818 = vunpack.c.l.b16 %v4831
    %v5819 = vunpack.c.h.b16 %v4831
    %v5820 = vunpack.c.l.b16 %v4832
    %v5821 = vunpack.c.h.b16 %v4832
    %v5822 = vunpack.c.l.b16 %v4833
    %v5823 = vunpack.c.h.b16 %v4833
    %v5824 = vunpack.c.l.b16 %v4834
    %v5825 = vunpack.c.h.b16 %v4834
    %v5826 = vunpack.c.l.b16 %v4835
    %v5827 = vunpack.c.h.b16 %v4835
    %v5828 = vunpack.c.l.b16 %v4836
    %v5829 = vunpack.c.h.b16 %v4836
    %v5830 = vunpack.c.l.b16 %v4837
    %v5831 = vunpack.c.h.b16 %v4837
    %v5832 = vunpack.c.l.b16 %v4838
    %v5833 = vunpack.c.h.b16 %v4838
    %v5834 = vunpack.c.l.b16 %v4839
    %v5835 = vunpack.c.h.b16 %v4839
    %v5836 = vunpack.c.l.b16 %v4840
    %v5837 = vunpack.c.h.b16 %v4840
    %v5838 = vunpack.c.l.b16 %v4841
    %v5839 = vunpack.c.h.b16 %v4841
    %v5840 = vunpack.c.l.b16 %v4842
    %v5841 = vunpack.c.h.b16 %v4842
    %v5842 = vunpack.c.l.b16 %v4843
    %v5843 = vunpack.c.h.b16 %v4843
    %v5844 = vunpack.c.l.b16 %v4844
    %v5845 = vunpack.c.h.b16 %v4844
    %v5846 = vunpack.c.l.b16 %v4845
    %v5847 = vunpack.c.h.b16 %v4845
    %v5848 = vunpack.c.l.b16 %v4846
    %v5849 = vunpack.c.h.b16 %v4846
    %v5850 = vunpack.c.l.b16 %v4847
    %v5851 = vunpack.c.h.b16 %v4847
    %v5852 = vunpack.c.l.b16 %v4848
    %v5853 = vunpack.c.h.b16 %v4848
    %v5854 = vunpack.c.l.b16 %v4849
    %v5855 = vunpack.c.h.b16 %v4849
    %v5856 = vunpack.c.l.b16 %v4850
    %v5857 = vunpack.c.h.b16 %v4850
    %v5858 = vunpack.c.l.b16 %v4851
    %v5859 = vunpack.c.h.b16 %v4851
    %v5860 = vunpack.c.l.b16 %v4852
    %v5861 = vunpack.c.h.b16 %v4852
    %v5862 = vunpack.c.l.b16 %v4853
    %v5863 = vunpack.c.h.b16 %v4853
    %v5864 = vunpack.c.l.b16 %v4854
    %v5865 = vunpack.c.h.b16 %v4854
    %v5866 = vunpack.c.l.b16 %v4855
    %v5867 = vunpack.c.h.b16 %v4855
    %v5868 = vunpack.c.l.b16 %v4856
    %v5869 = vunpack.c.h.b16 %v4856
    %v5870 = vunpack.c.l.b16 %v4857
    %v5871 = vunpack.c.h.b16 %v4857
    %v5872 = vunpack.c.l.b16 %v4858
    %v5873 = vunpack.c.h.b16 %v4858
    %v5874 = vunpack.c.l.b16 %v4859
    %v5875 = vunpack.c.h.b16 %v4859
    %v5876 = vunpack.c.l.b16 %v4860
    %v5877 = vunpack.c.h.b16 %v4860
    %v5878 = vunpack.c.l.b16 %v4861
    %v5879 = vunpack.c.h.b16 %v4861
    %v5880 = vunpack.c.l.b16 %v4862
    %v5881 = vunpack.c.h.b16 %v4862
    %v5882 = vunpack.c.l.b16 %v4863
    %v5883 = vunpack.c.h.b16 %v4863
    %v5884 = vunpack.c.l.b16 %v4864
    %v5885 = vunpack.c.h.b16 %v4864
    %v5886 = vunpack.c.l.b16 %v4865
    %v5887 = vunpack.c.h.b16 %v4865
    %v5888 = vunpack.c.l.b16 %v4866
    %v5889 = vunpack.c.h.b16 %v4866
    %v5890 = vunpack.c.l.b16 %v4867
    %v5891 = vunpack.c.h.b16 %v4867
    %v5892 = vunpack.c.l.b16 %v4868
    %v5893 = vunpack.c.h.b16 %v4868
    %v5894 = vunpack.c.l.b16 %v4869
    %v5895 = vunpack.c.h.b16 %v4869
    %v5896 = vunpack.c.l.b16 %v4870
    %v5897 = vunpack.c.h.b16 %v4870
    %v5898 = vunpack.c.l.b16 %v4871
    %v5899 = vunpack.c.h.b16 %v4871
    %v5900 = vunpack.c.l.b16 %v4872
    %v5901 = vunpack.c.h.b16 %v4872
    %v5902 = vunpack.c.l.b16 %v4873
    %v5903 = vunpack.c.h.b16 %v4873
    %v5904 = vunpack.c.l.b16 %v4874
    %v5905 = vunpack.c.h.b16 %v4874
    %v5906 = vunpack.c.l.b16 %v4875
    %v5907 = vunpack.c.h.b16 %v4875
    %v5908 = vunpack.c.l.b16 %v4876
    %v5909 = vunpack.c.h.b16 %v4876
    %v5910 = vunpack.c.l.b16 %v4877
    %v5911 = vunpack.c.h.b16 %v4877
    %v5912 = vunpack.c.l.b16 %v4878
    %v5913 = vunpack.c.h.b16 %v4878
    %v5914 = vunpack.c.l.b16 %v4879
    %v5915 = vunpack.c.h.b16 %v4879
    %v5916 = vunpack.c.l.b16 %v4880
    %v5917 = vunpack.c.h.b16 %v4880
    %v5918 = vunpack.c.l.b16 %v4881
    %v5919 = vunpack.c.h.b16 %v4881
    %v5920 = vunpack.c.l.b16 %v4882
    %v5921 = vunpack.c.h.b16 %v4882
    %v5922 = vunpack.c.l.b16 %v4883
    %v5923 = vunpack.c.h.b16 %v4883
    %v5924 = vunpack.c.l.b16 %v4884
    %v5925 = vunpack.c.h.b16 %v4884
    %v5926 = vunpack.c.l.b16 %v4885
    %v5927 = vunpack.c.h.b16 %v4885
    %v5928 = vunpack.c.l.b16 %v4886
    %v5929 = vunpack.c.h.b16 %v4886
    %v5930 = vunpack.c.l.b16 %v4887
    %v5931 = vunpack.c.h.b16 %v4887
    %v5932 = vunpack.c.l.b16 %v4888
    %v5933 = vunpack.c.h.b16 %v4888
    %v5934 = vunpack.c.l.b16 %v4889
    %v5935 = vunpack.c.h.b16 %v4889
    %v5936 = vunpack.c.l.b16 %v4890
    %v5937 = vunpack.c.h.b16 %v4890
    %v5938 = vunpack.c.l.b16 %v4891
    %v5939 = vunpack.c.h.b16 %v4891
    %v5940 = vunpack.c.l.b16 %v4892
    %v5941 = vunpack.c.h.b16 %v4892
    %v5942 = vunpack.c.l.b16 %v4893
    %v5943 = vunpack.c.h.b16 %v4893
    %v5944 = vunpack.c.l.b16 %v4894
    %v5945 = vunpack.c.h.b16 %v4894
    %v5946 = vunpack.c.l.b16 %v4895
    %v5947 = vunpack.c.h.b16 %v4895
    %v5948 = vunpack.c.l.b16 %v4896
    %v5949 = vunpack.c.h.b16 %v4896
    %v5950 = vunpack.c.l.b16 %v4897
    %v5951 = vunpack.c.h.b16 %v4897
    %v5952 = vunpack.c.l.b16 %v4898
    %v5953 = vunpack.c.h.b16 %v4898
    %v5954 = vunpack.c.l.b16 %v4899
    %v5955 = vunpack.c.h.b16 %v4899
    %v5956 = vunpack.c.l.b16 %v4900
    %v5957 = vunpack.c.h.b16 %v4900
    %v5958 = vunpack.c.l.b16 %v4901
    %v5959 = vunpack.c.h.b16 %v4901
    %v5960 = vunpack.c.l.b16 %v4902
    %v5961 = vunpack.c.h.b16 %v4902
    %v5962 = vunpack.c.l.b16 %v4903
    %v5963 = vunpack.c.h.b16 %v4903
    %v5964 = vunpack.c.l.b16 %v4904
    %v5965 = vunpack.c.h.b16 %v4904
    %v5966 = vunpack.c.l.b16 %v4905
    %v5967 = vunpack.c.h.b16 %v4905
    %v5968 = vunpack.c.l.b16 %v4906
    %v5969 = vunpack.c.h.b16 %v4906
    %v5970 = vunpack.c.l.b16 %v4907
    %v5971 = vunpack.c.h.b16 %v4907
    %v5972 = vunpack.c.l.b16 %v4908
    %v5973 = vunpack.c.h.b16 %v4908
    %v5974 = vunpack.c.l.b16 %v4909
    %v5975 = vunpack.c.h.b16 %v4909
    %v5976 = vunpack.c.l.b16 %v4910
    %v5977 = vunpack.c.h.b16 %v4910
    %v5978 = vunpack.c.l.b16 %v4911
    %v5979 = vunpack.c.h.b16 %v4911
    %v5980 = vunpack.c.l.b16 %v4912
    %v5981 = vunpack.c.h.b16 %v4912
    %v5982 = vunpack.c.l.b16 %v4913
    %v5983 = vunpack.c.h.b16 %v4913
    %v5984 = vunpack.c.l.b16 %v4914
    %v5985 = vunpack.c.h.b16 %v4914
    %v5986 = vunpack.c.l.b16 %v4915
    %v5987 = vunpack.c.h.b16 %v4915
    %v5988 = vunpack.c.l.b16 %v4916
    %v5989 = vunpack.c.h.b16 %v4916
    %v5990 = vunpack.c.l.b16 %v4917
    %v5991 = vunpack.c.h.b16 %v4917
    %v5992 = vunpack.c.l.b16 %v4918
    %v5993 = vunpack.c.h.b16 %v4918
    %v5994 = vunpack.c.l.b16 %v4919
    %v5995 = vunpack.c.h.b16 %v4919
    %v5996 = vunpack.c.l.b16 %v4920
    %v5997 = vunpack.c.h.b16 %v4920
    %v5998 = vunpack.c.l.b16 %v4921
    %v5999 = vunpack.c.h.b16 %v4921
    %v6000 = vunpack.c.l.b16 %v4922
    %v6001 = vunpack.c.h.b16 %v4922
    %v6002 = vunpack.c.l.b16 %v4923
    %v6003 = vunpack.c.h.b16 %v4923
    %v6004 = vunpack.c.l.b16 %v4924
    %v6005 = vunpack.c.h.b16 %v4924
    %v6006 = vunpack.c.l.b16 %v4925
    %v6007 = vunpack.c.h.b16 %v4925
    %v6008 = vunpack.c.l.b16 %v4926
    %v6009 = vunpack.c.h.b16 %v4926
    %v6010 = vunpack.c.l.b16 %v4927
    %v6011 = vunpack.c.h.b16 %v4927
    %v6012 = vunpack.c.l.b16 %v4928
    %v6013 = vunpack.c.h.b16 %v4928
    %v6014 = vunpack.c.l.b16 %v4929
    %v6015 = vunpack.c.h.b16 %v4929
    %v6016 = vunpack.c.l.b16 %v4930
    %v6017 = vunpack.c.h.b16 %v4930
    %v6018 = vunpack.c.l.b16 %v4931
    %v6019 = vunpack.c.h.b16 %v4931
    %v6020 = vunpack.c.l.b16 %v4932
    %v6021 = vunpack.c.h.b16 %v4932
    %v6022 = vunpack.c.l.b16 %v4933
    %v6023 = vunpack.c.h.b16 %v4933
    %v6024 = vunpack.c.l.b16 %v4934
    %v6025 = vunpack.c.h.b16 %v4934
    %v6026 = vunpack.c.l.b16 %v4935
    %v6027 = vunpack.c.h.b16 %v4935
    %v6028 = vunpack.c.l.b16 %v4936
    %v6029 = vunpack.c.h.b16 %v4936
    %v6030 = vunpack.c.l.b16 %v4937
    %v6031 = vunpack.c.h.b16 %v4937
    %v6032 = vunpack.c.l.b16 %v4938
    %v6033 = vunpack.c.h.b16 %v4938
    %v6034 = vunpack.c.l.b16 %v4939
    %v6035 = vunpack.c.h.b16 %v4939
    %v6036 = vunpack.c.l.b16 %v4940
    %v6037 = vunpack.c.h.b16 %v4940
    %v6038 = vunpack.c.l.b16 %v4941
    %v6039 = vunpack.c.h.b16 %v4941
    %v6040 = vunpack.c.l.b16 %v4942
    %v6041 = vunpack.c.h.b16 %v4942
    %v6042 = vunpack.c.l.b16 %v4943
    %v6043 = vunpack.c.h.b16 %v4943
    %v6044 = vunpack.c.l.b16 %v4944
    %v6045 = vunpack.c.h.b16 %v4944
    %v6046 = vunpack.c.l.b16 %v4945
    %v6047 = vunpack.c.h.b16 %v4945
    %v6048 = vunpack.c.l.b16 %v4946
    %v6049 = vunpack.c.h.b16 %v4946
    %v6050 = vunpack.c.l.b16 %v4947
    %v6051 = vunpack.c.h.b16 %v4947
    %v6052 = vunpack.c.l.b16 %v4948
    %v6053 = vunpack.c.h.b16 %v4948
    %v6054 = vunpack.c.l.b16 %v4949
    %v6055 = vunpack.c.h.b16 %v4949
    %v6056 = vunpack.c.l.b16 %v4950
    %v6057 = vunpack.c.h.b16 %v4950
    %v6058 = vunpack.c.l.b16 %v4951
    %v6059 = vunpack.c.h.b16 %v4951
    %v6060 = vunpack.c.l.b16 %v4952
    %v6061 = vunpack.c.h.b16 %v4952
    %v6062 = vunpack.c.l.b16 %v4953
    %v6063 = vunpack.c.h.b16 %v4953
    %v6064 = vunpack.c.l.b16 %v4954
    %v6065 = vunpack.c.h.b16 %v4954
    %v6066 = vunpack.c.l.b16 %v4955
    %v6067 = vunpack.c.h.b16 %v4955
    %v6068 = vunpack.c.l.b16 %v4956
    %v6069 = vunpack.c.h.b16 %v4956
    %v6070 = vunpack.c.l.b16 %v4957
    %v6071 = vunpack.c.h.b16 %v4957
    %v6072 = vunpack.c.l.b16 %v4958
    %v6073 = vunpack.c.h.b16 %v4958
    %v6074 = vunpack.c.l.b16 %v4959
    %v6075 = vunpack.c.h.b16 %v4959
    %v6076 = vunpack.c.l.b16 %v4960
    %v6077 = vunpack.c.h.b16 %v4960
    %v6078 = vunpack.c.l.b16 %v4961
    %v6079 = vunpack.c.h.b16 %v4961
    %v6080 = vunpack.c.l.b16 %v4962
    %v6081 = vunpack.c.h.b16 %v4962
    %v6082 = vunpack.c.l.b16 %v4963
    %v6083 = vunpack.c.h.b16 %v4963
    %v6084 = vunpack.c.l.b16 %v4964
    %v6085 = vunpack.c.h.b16 %v4964
    %v6086 = vunpack.c.l.b16 %v4965
    %v6087 = vunpack.c.h.b16 %v4965
    %v6088 = vunpack.c.l.b16 %v4966
    %v6089 = vunpack.c.h.b16 %v4966
    %v6090 = vunpack.c.l.b16 %v4967
    %v6091 = vunpack.c.h.b16 %v4967
    %v6092 = vunpack.c.l.b16 %v4968
    %v6093 = vunpack.c.h.b16 %v4968
    %v6094 = vunpack.c.l.b16 %v4969
    %v6095 = vunpack.c.h.b16 %v4969
    %v6096 = vunpack.c.l.b16 %v4970
    %v6097 = vunpack.c.h.b16 %v4970
    %v6098 = vunpack.c.l.b16 %v4971
    %v6099 = vunpack.c.h.b16 %v4971
    %v6100 = vunpack.c.l.b16 %v4972
    %v6101 = vunpack.c.h.b16 %v4972
    %v6102 = vunpack.c.l.b16 %v4973
    %v6103 = vunpack.c.h.b16 %v4973
    %v6104 = vunpack.c.l.b16 %v4974
    %v6105 = vunpack.c.h.b16 %v4974
    %v6106 = vunpack.c.l.b16 %v4975
    %v6107 = vunpack.c.h.b16 %v4975
    %v6108 = vunpack.c.l.b16 %v4976
    %v6109 = vunpack.c.h.b16 %v4976
    %v6110 = vunpack.c.l.b16 %v4977
    %v6111 = vunpack.c.h.b16 %v4977
    %v6112 = vunpack.c.l.b16 %v4978
    %v6113 = vunpack.c.h.b16 %v4978
    %v6114 = vunpack.c.l.b16 %v4979
    %v6115 = vunpack.c.h.b16 %v4979
    %v6116 = vunpack.c.l.b16 %v4980
    %v6117 = vunpack.c.h.b16 %v4980
    %v6118 = vunpack.c.l.b16 %v4981
    %v6119 = vunpack.c.h.b16 %v4981
    %v6120 = vunpack.c.l.b16 %v4982
    %v6121 = vunpack.c.h.b16 %v4982
    %v6122 = vunpack.c.l.b16 %v4983
    %v6123 = vunpack.c.h.b16 %v4983
    %v6124 = vunpack.c.l.b16 %v4984
    %v6125 = vunpack.c.h.b16 %v4984
    %v6126 = vunpack.c.l.b16 %v4985
    %v6127 = vunpack.c.h.b16 %v4985
    %v6128 = vunpack.c.l.b16 %v4986
    %v6129 = vunpack.c.h.b16 %v4986
    %v6130 = vunpack.c.l.b16 %v4987
    %v6131 = vunpack.c.h.b16 %v4987
    %v6132 = vunpack.c.l.b16 %v4988
    %v6133 = vunpack.c.h.b16 %v4988
    %v6134 = vunpack.c.l.b16 %v4989
    %v6135 = vunpack.c.h.b16 %v4989
    %v6136 = vunpack.c.l.b16 %v4990
    %v6137 = vunpack.c.h.b16 %v4990
    %v6138 = vunpack.c.l.b16 %v4991
    %v6139 = vunpack.c.h.b16 %v4991
    %v6140 = vunpack.c.l.b16 %v4992
    %v6141 = vunpack.c.h.b16 %v4992
    %v6142 = vunpack.c.l.b16 %v4993
    %v6143 = vunpack.c.h.b16 %v4993
    %v6144 = vunpack.c.l.b16 %v4994
    %v6145 = vunpack.c.h.b16 %v4994
    %v6146 = vunpack.c.l.b16 %v4995
    %v6147 = vunpack.c.h.b16 %v4995
    %v6148 = vunpack.c.l.b16 %v4996
    %v6149 = vunpack.c.h.b16 %v4996
    %v6150 = vunpack.c.l.b16 %v4997
    %v6151 = vunpack.c.h.b16 %v4997
    %v6152 = vunpack.c.l.b16 %v4998
    %v6153 = vunpack.c.h.b16 %v4998
    %v6154 = vunpack.c.l.b16 %v4999
    %v6155 = vunpack.c.h.b16 %v4999
    %v6156 = vunpack.c.l.b16 %v5000
    %v6157 = vunpack.c.h.b16 %v5000
    %v6158 = vunpack.c.l.b16 %v5001
    %v6159 = vunpack.c.h.b16 %v5001
    %v6160 = vunpack.c.l.b16 %v5002
    %v6161 = vunpack.c.h.b16 %v5002
    %v6162 = vunpack.c.l.b16 %v5003
    %v6163 = vunpack.c.h.b16 %v5003
    %v6164 = vunpack.c.l.b16 %v5004
    %v6165 = vunpack.c.h.b16 %v5004
    %v6166 = vunpack.c.l.b16 %v5005
    %v6167 = vunpack.c.h.b16 %v5005
    %v6168 = vunpack.c.l.b16 %v5006
    %v6169 = vunpack.c.h.b16 %v5006
    %v6170 = vunpack.c.l.b16 %v5007
    %v6171 = vunpack.c.h.b16 %v5007
    %v6172 = vunpack.c.l.b16 %v5008
    %v6173 = vunpack.c.h.b16 %v5008
    %v6174 = vunpack.c.l.b16 %v5009
    %v6175 = vunpack.c.h.b16 %v5009
    %v6176 = vunpack.c.l.b16 %v5010
    %v6177 = vunpack.c.h.b16 %v5010
    %v6178 = vunpack.c.l.b16 %v5011
    %v6179 = vunpack.c.h.b16 %v5011
    %v6180 = vunpack.c.l.b16 %v5012
    %v6181 = vunpack.c.h.b16 %v5012
    %v6182 = vunpack.c.l.b16 %v5013
    %v6183 = vunpack.c.h.b16 %v5013
    %v6184 = vunpack.c.l.b16 %v5014
    %v6185 = vunpack.c.h.b16 %v5014
    %v6186 = vunpack.c.l.b16 %v5015
    %v6187 = vunpack.c.h.b16 %v5015
    %v6188 = vunpack.c.l.b16 %v5016
    %v6189 = vunpack.c.h.b16 %v5016
    %v6190 = vunpack.c.l.b16 %v5017
    %v6191 = vunpack.c.h.b16 %v5017
    %v6192 = vunpack.c.l.b16 %v5018
    %v6193 = vunpack.c.h.b16 %v5018
    %v6194 = vunpack.c.l.b16 %v5019
    %v6195 = vunpack.c.h.b16 %v5019
    %v6196 = vunpack.c.l.b16 %v5020
    %v6197 = vunpack.c.h.b16 %v5020
    %v6198 = vunpack.c.l.b16 %v5021
    %v6199 = vunpack.c.h.b16 %v5021
    %v6200 = vunpack.c.l.b16 %v5022
    %v6201 = vunpack.c.h.b16 %v5022
    %v6202 = vunpack.c.l.b16 %v5023
    %v6203 = vunpack.c.h.b16 %v5023
    %v6204 = vunpack.c.l.b16 %v5024
    %v6205 = vunpack.c.h.b16 %v5024
    %v6206 = vunpack.c.l.b16 %v5025
    %v6207 = vunpack.c.h.b16 %v5025
    %v6208 = vunpack.c.l.b16 %v5026
    %v6209 = vunpack.c.h.b16 %v5026
    %v6210 = vunpack.c.l.b16 %v5027
    %v6211 = vunpack.c.h.b16 %v5027
    %v6212 = vunpack.c.l.b16 %v5028
    %v6213 = vunpack.c.h.b16 %v5028
    %v6214 = vunpack.c.l.b16 %v5029
    %v6215 = vunpack.c.h.b16 %v5029
    %v6216 = vunpack.c.l.b16 %v5030
    %v6217 = vunpack.c.h.b16 %v5030
    %v6218 = vunpack.c.l.b16 %v5031
    %v6219 = vunpack.c.h.b16 %v5031
    %v6220 = vunpack.c.l.b16 %v5032
    %v6221 = vunpack.c.h.b16 %v5032
    %v6222 = vunpack.c.l.b16 %v5033
    %v6223 = vunpack.c.h.b16 %v5033
    %v6224 = vunpack.c.l.b16 %v5034
    %v6225 = vunpack.c.h.b16 %v5034
    %v6226 = vunpack.c.l.b16 %v5035
    %v6227 = vunpack.c.h.b16 %v5035
    %v6228 = vunpack.c.l.b16 %v5036
    %v6229 = vunpack.c.h.b16 %v5036
    %v6230 = vunpack.c.l.b16 %v5037
    %v6231 = vunpack.c.h.b16 %v5037
    %v6232 = vunpack.c.l.b16 %v5038
    %v6233 = vunpack.c.h.b16 %v5038
    %v6234 = vunpack.c.l.b16 %v5039
    %v6235 = vunpack.c.h.b16 %v5039
    %v6236 = vunpack.c.l.b16 %v5040
    %v6237 = vunpack.c.h.b16 %v5040
    %v6238 = vunpack.c.l.b16 %v5041
    %v6239 = vunpack.c.h.b16 %v5041
    %v6240 = vunpack.c.l.b16 %v5042
    %v6241 = vunpack.c.h.b16 %v5042
    %v6242 = vunpack.c.l.b16 %v5043
    %v6243 = vunpack.c.h.b16 %v5043
    %v6244 = vunpack.c.l.b16 %v5044
    %v6245 = vunpack.c.h.b16 %v5044
    %v6246 = vunpack.c.l.b16 %v5045
    %v6247 = vunpack.c.h.b16 %v5045
    %v6248 = vunpack.c.l.b16 %v5046
    %v6249 = vunpack.c.h.b16 %v5046
    %v6250 = vunpack.c.l.b16 %v5047
    %v6251 = vunpack.c.h.b16 %v5047
    %v6252 = vunpack.c.l.b16 %v5048
    %v6253 = vunpack.c.h.b16 %v5048
    %v6254 = vunpack.c.l.b16 %v5049
    %v6255 = vunpack.c.h.b16 %v5049
    %v6256 = vunpack.c.l.b16 %v5050
    %v6257 = vunpack.c.h.b16 %v5050
    %v6258 = vunpack.c.l.b16 %v5051
    %v6259 = vunpack.c.h.b16 %v5051
    %v6260 = vunpack.c.l.b16 %v5052
    %v6261 = vunpack.c.h.b16 %v5052
    %v6262 = vunpack.c.l.b16 %v5053
    %v6263 = vunpack.c.h.b16 %v5053
    %v6264 = vunpack.c.l.b16 %v5054
    %v6265 = vunpack.c.h.b16 %v5054
    %v6266 = vunpack.c.l.b16 %v5055
    %v6267 = vunpack.c.h.b16 %v5055
    %v6268 = vunpack.c.l.b16 %v5056
    %v6269 = vunpack.c.h.b16 %v5056
    %v6270 = vunpack.c.l.b16 %v5057
    %v6271 = vunpack.c.h.b16 %v5057
    %v6272 = vunpack.c.l.b16 %v5058
    %v6273 = vunpack.c.h.b16 %v5058
    %v6274 = vunpack.c.l.b16 %v5059
    %v6275 = vunpack.c.h.b16 %v5059
    %v6276 = vunpack.c.l.b16 %v5060
    %v6277 = vunpack.c.h.b16 %v5060
    %v6278 = vunpack.c.l.b16 %v5061
    %v6279 = vunpack.c.h.b16 %v5061
    %v6280 = vpack.c.b16 %v5504, %v5496
    %v6281 = vpack.c.b16 %v5505, %v5497
    %v6282 = vpack.c.b16 %v5506, %v5498
    %v6283 = vpack.c.b16 %v5507, %v5499
    %v6284 = vpack.c.b16 %v5508, %v5500
    %v6285 = vpack.c.b16 %v5509, %v5501
    %v6286 = vpack.c.b16 %v5510, %v5502
    %v6287 = vpack.c.b16 %v5511, %v5503
    %v6288 = vpack.c.b16 %v5520, %v5512
    %v6289 = vpack.c.b16 %v5521, %v5513
    %v6290 = vpack.c.b16 %v5522, %v5514
    %v6291 = vpack.c.b16 %v5523, %v5515
    %v6292 = vpack.c.b16 %v5524, %v5516
    %v6293 = vpack.c.b16 %v5525, %v5517
    %v6294 = vpack.c.b16 %v5526, %v5518
    %v6295 = vpack.c.b16 %v5527, %v5519
    %v6296 = vpack.c.b16 %v5536, %v5528
    %v6297 = vpack.c.b16 %v5537, %v5529
    %v6298 = vpack.c.b16 %v5538, %v5530
    %v6299 = vpack.c.b16 %v5539, %v5531
    %v6300 = vpack.c.b16 %v5540, %v5532
    %v6301 = vpack.c.b16 %v5541, %v5533
    %v6302 = vpack.c.b16 %v5542, %v5534
    %v6303 = vpack.c.b16 %v5543, %v5535
    %v6304 = vpack.c.b16 %v5552, %v5544
    %v6305 = vpack.c.b16 %v5553, %v5545
    %v6306 = vpack.c.b16 %v5554, %v5546
    %v6307 = vpack.c.b16 %v5555, %v5547
    %v6308 = vpack.c.b16 %v5556, %v5548
    %v6309 = vpack.c.b16 %v5557, %v5549
    %v6310 = vpack.c.b16 %v5558, %v5550
    %v6311 = vpack.c.b16 %v5559, %v5551
    %v6312 = vpack.c.b16 %v5568, %v5560
    %v6313 = vpack.c.b16 %v5569, %v5561
    %v6314 = vpack.c.b16 %v5570, %v5562
    %v6315 = vpack.c.b16 %v5571, %v5563
    %v6316 = vpack.c.b16 %v5572, %v5564
    %v6317 = vpack.c.b16 %v5573, %v5565
    %v6318 = vpack.c.b16 %v5574, %v5566
    %v6319 = vpack.c.b16 %v5575, %v5567
    %v6320 = vpack.c.b16 %v5584, %v5576
    %v6321 = vpack.c.b16 %v5585, %v5577
    %v6322 = vpack.c.b16 %v5586, %v5578
    %v6323 = vpack.c.b16 %v5587, %v5579
    %v6324 = vpack.c.b16 %v5588, %v5580
    %v6325 = vpack.c.b16 %v5589, %v5581
    %v6326 = vpack.c.b16 %v5590, %v5582
    %v6327 = vpack.c.b16 %v5591, %v5583
    %v6328 = vpack.c.b16 %v5600, %v5592
    %v6329 = vpack.c.b16 %v5601, %v5593
    %v6330 = vpack.c.b16 %v5602, %v5594
    %v6331 = vpack.c.b16 %v5603, %v5595
    %v6332 = vpack.c.b16 %v5604, %v5596
    %v6333 = vpack.c.b16 %v5605, %v5597
    %v6334 = vpack.c.b16 %v5606, %v5598
    %v6335 = vpack.c.b16 %v5607, %v5599
    %v6336 = vpack.c.b16 %v5616, %v5608
    %v6337 = vpack.c.b16 %v5617, %v5609
    %v6338 = vpack.c.b16 %v5618, %v5610
    %v6339 = vpack.c.b16 %v5619, %v5611
    %v6340 = vpack.c.b16 %v5620, %v5612
    %v6341 = vpack.c.b16 %v5621, %v5613
    %v6342 = vpack.c.b16 %v5622, %v5614
    %v6343 = vpack.c.b16 %v5623, %v5615
    %v6344 = vpack.c.b16 %v5632, %v5624
    %v6345 = vpack.c.b16 %v5633, %v5625
    %v6346 = vpack.c.b16 %v5634, %v5626
    %v6347 = vpack.c.b16 %v5635, %v5627
    %v6348 = vpack.c.b16 %v5636, %v5628
    %v6349 = vpack.c.b16 %v5637, %v5629
    %v6350 = vpack.c.b16 %v5638, %v5630
    %v6351 = vpack.c.b16 %v5639, %v5631
    %v6352 = vpack.c.b16 %v5648, %v5640
    %v6353 = vpack.c.b16 %v5649, %v5641
    %v6354 = vpack.c.b16 %v5650, %v5642
    %v6355 = vpack.c.b16 %v5651, %v5643
    %v6356 = vpack.c.b16 %v5652, %v5644
    %v6357 = vpack.c.b16 %v5653, %v5645
    %v6358 = vpack.c.b16 %v5654, %v5646
    %v6359 = vpack.c.b16 %v5655, %v5647
    %v6360 = vpack.c.b16 %v5664, %v5656
    %v6361 = vpack.c.b16 %v5665, %v5657
    %v6362 = vpack.c.b16 %v5666, %v5658
    %v6363 = vpack.c.b16 %v5667, %v5659
    %v6364 = vpack.c.b16 %v5668, %v5660
    %v6365 = vpack.c.b16 %v5669, %v5661
    %v6366 = vpack.c.b16 %v5670, %v5662
    %v6367 = vpack.c.b16 %v5671, %v5663
    %v6368 = vpack.c.b16 %v5680, %v5672
    %v6369 = vpack.c.b16 %v5681, %v5673
    %v6370 = vpack.c.b16 %v5682, %v5674
    %v6371 = vpack.c.b16 %v5683, %v5675
    %v6372 = vpack.c.b16 %v5684, %v5676
    %v6373 = vpack.c.b16 %v5685, %v5677
    %v6374 = vpack.c.b16 %v5686, %v5678
    %v6375 = vpack.c.b16 %v5687, %v5679
    %v6376 = vpack.c.b16 %v5696, %v5688
    %v6377 = vpack.c.b16 %v5697, %v5689
    %v6378 = vpack.c.b16 %v5698, %v5690
    %v6379 = vpack.c.b16 %v5699, %v5691
    %v6380 = vpack.c.b16 %v5700, %v5692
    %v6381 = vpack.c.b16 %v5701, %v5693
    %v6382 = vpack.c.b16 %v5702, %v5694
    %v6383 = vpack.c.b16 %v5703, %v5695
    %v6384 = vpack.c.b16 %v5712, %v5704
    %v6385 = vpack.c.b16 %v5713, %v5705
    %v6386 = vpack.c.b16 %v5714, %v5706
    %v6387 = vpack.c.b16 %v5715, %v5707
    %v6388 = vpack.c.b16 %v5716, %v5708
    %v6389 = vpack.c.b16 %v5717, %v5709
    %v6390 = vpack.c.b16 %v5718, %v5710
    %v6391 = vpack.c.b16 %v5719, %v5711
    %v6392 = vpack.c.b16 %v5728, %v5720
    %v6393 = vpack.c.b16 %v5729, %v5721
    %v6394 = vpack.c.b16 %v5730, %v5722
    %v6395 = vpack.c.b16 %v5731, %v5723
    %v6396 = vpack.c.b16 %v5732, %v5724
    %v6397 = vpack.c.b16 %v5733, %v5725
    %v6398 = vpack.c.b16 %v5734, %v5726
    %v6399 = vpack.c.b16 %v5735, %v5727
    %v6400 = vpack.c.b16 %v5744, %v5736
    %v6401 = vpack.c.b16 %v5745, %v5737
    %v6402 = vpack.c.b16 %v5746, %v5738
    %v6403 = vpack.c.b16 %v5747, %v5739
    %v6404 = vpack.c.b16 %v5748, %v5740
    %v6405 = vpack.c.b16 %v5749, %v5741
    %v6406 = vpack.c.b16 %v5750, %v5742
    %v6407 = vpack.c.b16 %v5751, %v5743
    %v6408 = vpack.c.b16 %v5760, %v5752
    %v6409 = vpack.c.b16 %v5761, %v5753
    %v6410 = vpack.c.b16 %v5762, %v5754
    %v6411 = vpack.c.b16 %v5763, %v5755
    %v6412 = vpack.c.b16 %v5764, %v5756
    %v6413 = vpack.c.b16 %v5765, %v5757
    %v6414 = vpack.c.b16 %v5766, %v5758
    %v6415 = vpack.c.b16 %v5767, %v5759
    %v6416 = vpack.c.b16 %v5776, %v5768
    %v6417 = vpack.c.b16 %v5777, %v5769
    %v6418 = vpack.c.b16 %v5778, %v5770
    %v6419 = vpack.c.b16 %v5779, %v5771
    %v6420 = vpack.c.b16 %v5780, %v5772
    %v6421 = vpack.c.b16 %v5781, %v5773
    %v6422 = vpack.c.b16 %v5782, %v5774
    %v6423 = vpack.c.b16 %v5783, %v5775
    %v6424 = vpack.c.b16 %v5792, %v5784
    %v6425 = vpack.c.b16 %v5793, %v5785
    %v6426 = vpack.c.b16 %v5794, %v5786
    %v6427 = vpack.c.b16 %v5795, %v5787
    %v6428 = vpack.c.b16 %v5796, %v5788
    %v6429 = vpack.c.b16 %v5797, %v5789
    %v6430 = vpack.c.b16 %v5798, %v5790
    %v6431 = vpack.c.b16 %v5799, %v5791
    %v6432 = vpack.c.b16 %v5808, %v5800
    %v6433 = vpack.c.b16 %v5809, %v5801
    %v6434 = vpack.c.b16 %v5810, %v5802
    %v6435 = vpack.c.b16 %v5811, %v5803
    %v6436 = vpack.c.b16 %v5812, %v5804
    %v6437 = vpack.c.b16 %v5813, %v5805
    %v6438 = vpack.c.b16 %v5814, %v5806
    %v6439 = vpack.c.b16 %v5815, %v5807
    %v6440 = vpack.c.b16 %v5824, %v5816
    %v6441 = vpack.c.b16 %v5825, %v5817
    %v6442 = vpack.c.b16 %v5826, %v5818
    %v6443 = vpack.c.b16 %v5827, %v5819
    %v6444 = vpack.c.b16 %v5828, %v5820
    %v6445 = vpack.c.b16 %v5829, %v5821
    %v6446 = vpack.c.b16 %v5830, %v5822
    %v6447 = vpack.c.b16 %v5831, %v5823
    %v6448 = vpack.c.b16 %v5840, %v5832
    %v6449 = vpack.c.b16 %v5841, %v5833
    %v6450 = vpack.c.b16 %v5842, %v5834
    %v6451 = vpack.c.b16 %v5843, %v5835
    %v6452 = vpack.c.b16 %v5844, %v5836
    %v6453 = vpack.c.b16 %v5845, %v5837
    %v6454 = vpack.c.b16 %v5846, %v5838
    %v6455 = vpack.c.b16 %v5847, %v5839
    %v6456 = vpack.c.b16 %v5856, %v5848
    %v6457 = vpack.c.b16 %v5857, %v5849
    %v6458 = vpack.c.b16 %v5858, %v5850
    %v6459 = vpack.c.b16 %v5859, %v5851
    %v6460 = vpack.c.b16 %v5860, %v5852
    %v6461 = vpack.c.b16 %v5861, %v5853
    %v6462 = vpack.c.b16 %v5862, %v5854
    %v6463 = vpack.c.b16 %v5863, %v5855
    %v6464 = vpack.c.b16 %v5872, %v5864
    %v6465 = vpack.c.b16 %v5873, %v5865
    %v6466 = vpack.c.b16 %v5874, %v5866
    %v6467 = vpack.c.b16 %v5875, %v5867
    %v6468 = vpack.c.b16 %v5876, %v5868
    %v6469 = vpack.c.b16 %v5877, %v5869
    %v6470 = vpack.c.b16 %v5878, %v5870
    %v6471 = vpack.c.b16 %v5879, %v5871
    %v6472 = vpack.c.b16 %v5888, %v5880
    %v6473 = vpack.c.b16 %v5889, %v5881
    %v6474 = vpack.c.b16 %v5890, %v5882
    %v6475 = vpack.c.b16 %v5891, %v5883
    %v6476 = vpack.c.b16 %v5892, %v5884
    %v6477 = vpack.c.b16 %v5893, %v5885
    %v6478 = vpack.c.b16 %v5894, %v5886
    %v6479 = vpack.c.b16 %v5895, %v5887
    %v6480 = vpack.c.b16 %v5904, %v5896
    %v6481 = vpack.c.b16 %v5905, %v5897
    %v6482 = vpack.c.b16 %v5906, %v5898
    %v6483 = vpack.c.b16 %v5907, %v5899
    %v6484 = vpack.c.b16 %v5908, %v5900
    %v6485 = vpack.c.b16 %v5909, %v5901
    %v6486 = vpack.c.b16 %v5910, %v5902
    %v6487 = vpack.c.b16 %v5911, %v5903
    %v6488 = vpack.c.b16 %v5920, %v5912
    %v6489 = vpack.c.b16 %v5921, %v5913
    %v6490 = vpack.c.b16 %v5922, %v5914
    %v6491 = vpack.c.b16 %v5923, %v5915
    %v6492 = vpack.c.b16 %v5924, %v5916
    %v6493 = vpack.c.b16 %v5925, %v5917
    %v6494 = vpack.c.b16 %v5926, %v5918
    %v6495 = vpack.c.b16 %v5927, %v5919
    %v6496 = vpack.c.b16 %v5936, %v5928
    %v6497 = vpack.c.b16 %v5937, %v5929
    %v6498 = vpack.c.b16 %v5938, %v5930
    %v6499 = vpack.c.b16 %v5939, %v5931
    %v6500 = vpack.c.b16 %v5940, %v5932
    %v6501 = vpack.c.b16 %v5941, %v5933
    %v6502 = vpack.c.b16 %v5942, %v5934
    %v6503 = vpack.c.b16 %v5943, %v5935
    %v6504 = vpack.c.b16 %v5952, %v5944
    %v6505 = vpack.c.b16 %v5953, %v5945
    %v6506 = vpack.c.b16 %v5954, %v5946
    %v6507 = vpack.c.b16 %v5955, %v5947
    %v6508 = vpack.c.b16 %v5956, %v5948
    %v6509 = vpack.c.b16 %v5957, %v5949
    %v6510 = vpack.c.b16 %v5958, %v5950
    %v6511 = vpack.c.b16 %v5959, %v5951
    %v6512 = vpack.c.b16 %v5968, %v5960
    %v6513 = vpack.c.b16 %v5969, %v5961
    %v6514 = vpack.c.b16 %v5970, %v5962
    %v6515 = vpack.c.b16 %v5971, %v5963
    %v6516 = vpack.c.b16 %v5972, %v5964
    %v6517 = vpack.c.b16 %v5973, %v5965
    %v6518 = vpack.c.b16 %v5974, %v5966
    %v6519 = vpack.c.b16 %v5975, %v5967
    %v6520 = vpack.c.b16 %v5984, %v5976
    %v6521 = vpack.c.b16 %v5985, %v5977
    %v6522 = vpack.c.b16 %v5986, %v5978
    %v6523 = vpack.c.b16 %v5987, %v5979
    %v6524 = vpack.c.b16 %v5988, %v5980
    %v6525 = vpack.c.b16 %v5989, %v5981
    %v6526 = vpack.c.b16 %v5990, %v5982
    %v6527 = vpack.c.b16 %v5991, %v5983
    %v6528 = vpack.c.b16 %v6000, %v5992
    %v6529 = vpack.c.b16 %v6001, %v5993
    %v6530 = vpack.c.b16 %v6002, %v5994
    %v6531 = vpack.c.b16 %v6003, %v5995
    %v6532 = vpack.c.b16 %v6004, %v5996
    %v6533 = vpack.c.b16 %v6005, %v5997
    %v6534 = vpack.c.b16 %v6006, %v5998
    %v6535 = vpack.c.b16 %v6007, %v5999
    %v6536 = vpack.c.b16 %v6016, %v6008
    %v6537 = vpack.c.b16 %v6017, %v6009
    %v6538 = vpack.c.b16 %v6018, %v6010
    %v6539 = vpack.c.b16 %v6019, %v6011
    %v6540 = vpack.c.b16 %v6020, %v6012
    %v6541 = vpack.c.b16 %v6021, %v6013
    %v6542 = vpack.c.b16 %v6022, %v6014
    %v6543 = vpack.c.b16 %v6023, %v6015
    %v6544 = vpack.c.b16 %v6032, %v6024
    %v6545 = vpack.c.b16 %v6033, %v6025
    %v6546 = vpack.c.b16 %v6034, %v6026
    %v6547 = vpack.c.b16 %v6035, %v6027
    %v6548 = vpack.c.b16 %v6036, %v6028
    %v6549 = vpack.c.b16 %v6037, %v6029
    %v6550 = vpack.c.b16 %v6038, %v6030
    %v6551 = vpack.c.b16 %v6039, %v6031
    %v6552 = vpack.c.b16 %v6048, %v6040
    %v6553 = vpack.c.b16 %v6049, %v6041
    %v6554 = vpack.c.b16 %v6050, %v6042
    %v6555 = vpack.c.b16 %v6051, %v6043
    %v6556 = vpack.c.b16 %v6052, %v6044
    %v6557 = vpack.c.b16 %v6053, %v6045
    %v6558 = vpack.c.b16 %v6054, %v6046
    %v6559 = vpack.c.b16 %v6055, %v6047
    %v6560 = vpack.c.b16 %v6064, %v6056
    %v6561 = vpack.c.b16 %v6065, %v6057
    %v6562 = vpack.c.b16 %v6066, %v6058
    %v6563 = vpack.c.b16 %v6067, %v6059
    %v6564 = vpack.c.b16 %v6068, %v6060
    %v6565 = vpack.c.b16 %v6069, %v6061
    %v6566 = vpack.c.b16 %v6070, %v6062
    %v6567 = vpack.c.b16 %v6071, %v6063
    %v6568 = vpack.c.b16 %v6080, %v6072
    %v6569 = vpack.c.b16 %v6081, %v6073
    %v6570 = vpack.c.b16 %v6082, %v6074
    %v6571 = vpack.c.b16 %v6083, %v6075
    %v6572 = vpack.c.b16 %v6084, %v6076
    %v6573 = vpack.c.b16 %v6085, %v6077
    %v6574 = vpack.c.b16 %v6086, %v6078
    %v6575 = vpack.c.b16 %v6087, %v6079
    %v6576 = vpack.c.b16 %v6096, %v6088
    %v6577 = vpack.c.b16 %v6097, %v6089
    %v6578 = vpack.c.b16 %v6098, %v6090
    %v6579 = vpack.c.b16 %v6099, %v6091
    %v6580 = vpack.c.b16 %v6100, %v6092
    %v6581 = vpack.c.b16 %v6101, %v6093
    %v6582 = vpack.c.b16 %v6102, %v6094
    %v6583 = vpack.c.b16 %v6103, %v6095
    %v6584 = vpack.c.b16 %v6112, %v6104
    %v6585 = vpack.c.b16 %v6113, %v6105
    %v6586 = vpack.c.b16 %v6114, %v6106
    %v6587 = vpack.c.b16 %v6115, %v6107
    %v6588 = vpack.c.b16 %v6116, %v6108
    %v6589 = vpack.c.b16 %v6117, %v6109
    %v6590 = vpack.c.b16 %v6118, %v6110
    %v6591 = vpack.c.b16 %v6119, %v6111
    %v6592 = vpack.c.b16 %v6128, %v6120
    %v6593 = vpack.c.b16 %v6129, %v6121
    %v6594 = vpack.c.b16 %v6130, %v6122
    %v6595 = vpack.c.b16 %v6131, %v6123
    %v6596 = vpack.c.b16 %v6132, %v6124
    %v6597 = vpack.c.b16 %v6133, %v6125
    %v6598 = vpack.c.b16 %v6134, %v6126
    %v6599 = vpack.c.b16 %v6135, %v6127
    %v6600 = vpack.c.b16 %v6144, %v6136
    %v6601 = vpack.c.b16 %v6145, %v6137
    %v6602 = vpack.c.b16 %v6146, %v6138
    %v6603 = vpack.c.b16 %v6147, %v6139
    %v6604 = vpack.c.b16 %v6148, %v6140
    %v6605 = vpack.c.b16 %v6149, %v6141
    %v6606 = vpack.c.b16 %v6150, %v6142
    %v6607 = vpack.c.b16 %v6151, %v6143
    %v6608 = vpack.c.b16 %v6160, %v6152
    %v6609 = vpack.c.b16 %v6161, %v6153
    %v6610 = vpack.c.b16 %v6162, %v6154
    %v6611 = vpack.c.b16 %v6163, %v6155
    %v6612 = vpack.c.b16 %v6164, %v6156
    %v6613 = vpack.c.b16 %v6165, %v6157
    %v6614 = vpack.c.b16 %v6166, %v6158
    %v6615 = vpack.c.b16 %v6167, %v6159
    %v6616 = vpack.c.b16 %v6176, %v6168
    %v6617 = vpack.c.b16 %v6177, %v6169
    %v6618 = vpack.c.b16 %v6178, %v6170
    %v6619 = vpack.c.b16 %v6179, %v6171
    %v6620 = vpack.c.b16 %v6180, %v6172
    %v6621 = vpack.c.b16 %v6181, %v6173
    %v6622 = vpack.c.b16 %v6182, %v6174
    %v6623 = vpack.c.b16 %v6183, %v6175
    %v6624 = vpack.c.b16 %v6192, %v6184
    %v6625 = vpack.c.b16 %v6193, %v6185
    %v6626 = vpack.c.b16 %v6194, %v6186
    %v6627 = vpack.c.b16 %v6195, %v6187
    %v6628 = vpack.c.b16 %v6196, %v6188
    %v6629 = vpack.c.b16 %v6197, %v6189
    %v6630 = vpack.c.b16 %v6198, %v6190
    %v6631 = vpack.c.b16 %v6199, %v6191
    %v6632 = vpack.c.b16 %v6208, %v6200
    %v6633 = vpack.c.b16 %v6209, %v6201
    %v6634 = vpack.c.b16 %v6210, %v6202
    %v6635 = vpack.c.b16 %v6211, %v6203
    %v6636 = vpack.c.b16 %v6212, %v6204
    %v6637 = vpack.c.b16 %v6213, %v6205
    %v6638 = vpack.c.b16 %v6214, %v6206
    %v6639 = vpack.c.b16 %v6215, %v6207
    %v6640 = vpack.c.b16 %v6224, %v6216
    %v6641 = vpack.c.b16 %v6225, %v6217
    %v6642 = vpack.c.b16 %v6226, %v6218
    %v6643 = vpack.c.b16 %v6227, %v6219
    %v6644 = vpack.c.b16 %v6228, %v6220
    %v6645 = vpack.c.b16 %v6229, %v6221
    %v6646 = vpack.c.b16 %v6230, %v6222
    %v6647 = vpack.c.b16 %v6231, %v6223
    %v6648 = vpack.c.b16 %v6240, %v6232
    %v6649 = vpack.c.b16 %v6241, %v6233
    %v6650 = vpack.c.b16 %v6242, %v6234
    %v6651 = vpack.c.b16 %v6243, %v6235
    %v6652 = vpack.c.b16 %v6244, %v6236
    %v6653 = vpack.c.b16 %v6245, %v6237
    %v6654 = vpack.c.b16 %v6246, %v6238
    %v6655 = vpack.c.b16 %v6247, %v6239
    %v6656 = vpack.c.b16 %v6256, %v6248
    %v6657 = vpack.c.b16 %v6257, %v6249
    %v6658 = vpack.c.b16 %v6258, %v6250
    %v6659 = vpack.c.b16 %v6259, %v6251
    %v6660 = vpack.c.b16 %v6260, %v6252
    %v6661 = vpack.c.b16 %v6261, %v6253
    %v6662 = vpack.c.b16 %v6262, %v6254
    %v6663 = vpack.c.b16 %v6263, %v6255
    %v6664 = vpack.c.b16 %v6272, %v6264
    %v6665 = vpack.c.b16 %v6273, %v6265
    %v6666 = vpack.c.b16 %v6274, %v6266
    %v6667 = vpack.c.b16 %v6275, %v6267
    %v6668 = vpack.c.b16 %v6276, %v6268
    %v6669 = vpack.c.b16 %v6277, %v6269
    %v6670 = vpack.c.b16 %v6278, %v6270
    %v6671 = vpack.c.b16 %v6279, %v6271
    %v7065 = vsel %vm2733, %v4620, 0
    %v7068 = vsel %vm2733, %v4627, 0
    %v7071 = vsel %vm2733, %v4634, 0
    %v7074 = vsel %vm2733, %v4641, 0
    %v7077 = vsel %vm2733, %v4648, 0
    %v7080 = vsel %vm2733, %v4655, 0
    %v7083 = vsel %vm2733, %v4662, 0
    %v7086 = vsel %vm2733, %v4669, 0
    %7088 = vmatprep.subr.bf16.mxu0 %v6281
    %7089 = vmatpush1.bf16.msra.mxu0 %v6280
    %7090 = vmatprep.subr.bf16.mxu0 %v6289
    %7091 = vmatpush1.bf16.msra.mxu0 %v6288
    %7092 = vmatprep.subr.bf16.mxu0 %v6297
    %7093 = vmatpush1.bf16.msra.mxu0 %v6296
    %7094 = vmatprep.subr.bf16.mxu0 %v6305
    %7095 = vmatpush1.bf16.msra.mxu0 %v6304
    %7096 = vmatprep.subr.bf16.mxu0 %v6313
    %7097 = vmatpush1.bf16.msra.mxu0 %v6312
    %7098 = vmatprep.subr.bf16.mxu0 %v6321
    %7099 = vmatpush1.bf16.msra.mxu0 %v6320
    %7100 = vmatprep.subr.bf16.mxu0 %v6329
    %7101 = vmatpush1.bf16.msra.mxu0 %v6328
    %7102 = vmatprep.subr.bf16.mxu0 %v6337
    %7103 = vmatpush1.bf16.msra.mxu0 %v6336
    %7104 = vmatprep.subr.bf16.mxu0 %v6345
    %7105 = vmatpush1.bf16.msra.mxu0 %v6344
    %7106 = vmatprep.subr.bf16.mxu0 %v6353
    %7107 = vmatpush1.bf16.msra.mxu0 %v6352
    %7108 = vmatprep.subr.bf16.mxu0 %v6361
    %7109 = vmatpush1.bf16.msra.mxu0 %v6360
    %7110 = vmatprep.subr.bf16.mxu0 %v6369
    %7111 = vmatpush1.bf16.msra.mxu0 %v6368
    %7112 = vmatprep.subr.bf16.mxu0 %v6377
    %7113 = vmatpush1.bf16.msra.mxu0 %v6376
    %7114 = vmatprep.subr.bf16.mxu0 %v6385
    %7115 = vmatpush1.bf16.msra.mxu0 %v6384
    %7116 = vmatprep.subr.bf16.mxu0 %v6393
    %7117 = vmatpush1.bf16.msra.mxu0 %v6392
    %7118 = vmatprep.subr.bf16.mxu0 %v6401
    %7119 = vmatpush1.bf16.msra.mxu0 %v6400
    %7120 = vmatprep.mubr.bf16.mxu0 %v4615
    %7121 = vmatmul.mubr.bf16.gmra.mrb[0].mxu0 %v4614
    %v7122 = vpop.f32.mrb[0].mxu0
    %v7123 = vadd.f32 %v5067, %v7122
    %v7124 = vpop.f32.mrb[0].mxu0
    %v7125 = vadd.f32 %v5071, %v7124
    %v7126 = vpop.f32.mrb[0].mxu0
    %v7127 = vadd.f32 %v5067, %v7126
    %v7128 = vpop.f32.mrb[0].mxu0
    %v7129 = vadd.f32 %v5071, %v7128
    %7130 = vmatprep.mubr.bf16.mxu0 %v4622
    %7131 = vmatmul.mubr.bf16.gmra.mrb[0].mxu0 %v4621
    %v7132 = vpop.f32.mrb[0].mxu0
    %v7133 = vadd.f32 %v5067, %v7132
    %v7134 = vpop.f32.mrb[0].mxu0
    %v7135 = vadd.f32 %v5071, %v7134
    %v7136 = vpop.f32.mrb[0].mxu0
    %v7137 = vadd.f32 %v5067, %v7136
    %v7138 = vpop.f32.mrb[0].mxu0
    %v7139 = vadd.f32 %v5071, %v7138
    %7140 = vmatprep.mubr.bf16.mxu0 %v4629
    %7141 = vmatmul.mubr.bf16.gmra.mrb[0].mxu0 %v4628
    %v7142 = vpop.f32.mrb[0].mxu0
    %v7143 = vadd.f32 %v5067, %v7142
    %v7144 = vpop.f32.mrb[0].mxu0
    %v7145 = vadd.f32 %v5071, %v7144
    %v7146 = vpop.f32.mrb[0].mxu0
    %v7147 = vadd.f32 %v5067, %v7146
    %v7148 = vpop.f32.mrb[0].mxu0
    %v7149 = vadd.f32 %v5071, %v7148
    %7150 = vmatprep.mubr.bf16.mxu0 %v4636
    %7151 = vmatmul.mubr.bf16.gmra.mrb[0].mxu0 %v4635
    %v7152 = vpop.f32.mrb[0].mxu0
    %v7153 = vadd.f32 %v5067, %v7152
    %v7154 = vpop.f32.mrb[0].mxu0
    %v7155 = vadd.f32 %v5071, %v7154
    %v7156 = vpop.f32.mrb[0].mxu0
    %v7157 = vadd.f32 %v5067, %v7156
    %v7158 = vpop.f32.mrb[0].mxu0
    %v7159 = vadd.f32 %v5071, %v7158
    %7160 = vmatprep.mubr.bf16.mxu0 %v4643
    %7161 = vmatmul.mubr.bf16.gmra.mrb[0].mxu0 %v4642
    %v7162 = vpop.f32.mrb[0].mxu0
    %v7163 = vadd.f32 %v5067, %v7162
    %v7164 = vpop.f32.mrb[0].mxu0
    %v7165 = vadd.f32 %v5071, %v7164
    %v7166 = vpop.f32.mrb[0].mxu0
    %v7167 = vadd.f32 %v5067, %v7166
    %v7168 = vpop.f32.mrb[0].mxu0
    %v7169 = vadd.f32 %v5071, %v7168
    %7170 = vmatprep.mubr.bf16.mxu0 %v4650
    %7171 = vmatmul.mubr.bf16.gmra.mrb[0].mxu0 %v4649
    %v7172 = vpop.f32.mrb[0].mxu0
    %v7173 = vadd.f32 %v5067, %v7172
    %v7174 = vpop.f32.mrb[0].mxu0
    %v7175 = vadd.f32 %v5071, %v7174
    %v7176 = vpop.f32.mrb[0].mxu0
    %v7177 = vadd.f32 %v5067, %v7176
    %v7178 = vpop.f32.mrb[0].mxu0
    %v7179 = vadd.f32 %v5071, %v7178
    %7180 = vmatprep.mubr.bf16.mxu0 %v4657
    %7181 = vmatmul.mubr.bf16.gmra.mrb[0].mxu0 %v4656
    %v7182 = vpop.f32.mrb[0].mxu0
    %v7183 = vadd.f32 %v5067, %v7182
    %v7184 = vpop.f32.mrb[0].mxu0
    %v7185 = vadd.f32 %v5071, %v7184
    %v7186 = vpop.f32.mrb[0].mxu0
    %v7187 = vadd.f32 %v5067, %v7186
    %v7188 = vpop.f32.mrb[0].mxu0
    %v7189 = vadd.f32 %v5071, %v7188
    %7190 = vmatprep.mubr.bf16.mxu0 %v4664
    %7191 = vmatmul.mubr.bf16.gmra.mrb[0].mxu0 %v4663
    %v7192 = vpop.f32.mrb[0].mxu0
    %v7193 = vadd.f32 %v5067, %v7192
    %v7194 = vpop.f32.mrb[0].mxu0
    %v7195 = vadd.f32 %v5071, %v7194
    %v7196 = vpop.f32.mrb[0].mxu0
    %v7197 = vadd.f32 %v5067, %v7196
    %v7198 = vpop.f32.mrb[0].mxu0
    %v7199 = vadd.f32 %v5071, %v7198
    %7200 = vdwg.mxu0
    %7201 = vmatprep.subr.bf16.mxu0 %v6409
    %7202 = vmatpush1.bf16.msra.mxu0 %v6408
    %7203 = vmatprep.subr.bf16.mxu0 %v6417
    %7204 = vmatpush1.bf16.msra.mxu0 %v6416
    %7205 = vmatprep.subr.bf16.mxu0 %v6425
    %7206 = vmatpush1.bf16.msra.mxu0 %v6424
    %7207 = vmatprep.subr.bf16.mxu0 %v6433
    %7208 = vmatpush1.bf16.msra.mxu0 %v6432
    %7209 = vmatprep.subr.bf16.mxu0 %v6441
    %7210 = vmatpush1.bf16.msra.mxu0 %v6440
    %7211 = vmatprep.subr.bf16.mxu0 %v6449
    %7212 = vmatpush1.bf16.msra.mxu0 %v6448
    %7213 = vmatprep.subr.bf16.mxu0 %v6457
    %7214 = vmatpush1.bf16.msra.mxu0 %v6456
    %7215 = vmatprep.subr.bf16.mxu0 %v6465
    %7216 = vmatpush1.bf16.msra.mxu0 %v6464
    %7217 = vmatprep.subr.bf16.mxu0 %v6473
    %7218 = vmatpush1.bf16.msra.mxu0 %v6472
    %7219 = vmatprep.subr.bf16.mxu0 %v6481
    %7220 = vmatpush1.bf16.msra.mxu0 %v6480
    %7221 = vmatprep.subr.bf16.mxu0 %v6489
    %7222 = vmatpush1.bf16.msra.mxu0 %v6488
    %7223 = vmatprep.subr.bf16.mxu0 %v6497
    %7224 = vmatpush1.bf16.msra.mxu0 %v6496
    %7225 = vmatprep.subr.bf16.mxu0 %v6505
    %7226 = vmatpush1.bf16.msra.mxu0 %v6504
    %7227 = vmatprep.subr.bf16.mxu0 %v6513
    %7228 = vmatpush1.bf16.msra.mxu0 %v6512
    %7229 = vmatprep.subr.bf16.mxu0 %v6521
    %7230 = vmatpush1.bf16.msra.mxu0 %v6520
    %7231 = vmatprep.subr.bf16.mxu0 %v6529
    %7232 = vmatpush1.bf16.msra.mxu0 %v6528
    %7233 = vmatprep.mubr.bf16.mxu0 %v4617
    %7234 = vmatmul.mubr.bf16.gmra.mrb[0].mxu0 %v4616
    %v7235 = vpop.f32.mrb[0].mxu0
    %v7236 = vadd.f32 %v7123, %v7235
    %v7237 = vpop.f32.mrb[0].mxu0
    %v7238 = vadd.f32 %v7125, %v7237
    %v7239 = vpop.f32.mrb[0].mxu0
    %v7240 = vadd.f32 %v7127, %v7239
    %v7241 = vpop.f32.mrb[0].mxu0
    %v7242 = vadd.f32 %v7129, %v7241
    %7243 = vmatprep.mubr.bf16.mxu0 %v4624
    %7244 = vmatmul.mubr.bf16.gmra.mrb[0].mxu0 %v4623
    %v7245 = vpop.f32.mrb[0].mxu0
    %v7246 = vadd.f32 %v7133, %v7245
    %v7247 = vpop.f32.mrb[0].mxu0
    %v7248 = vadd.f32 %v7135, %v7247
    %v7249 = vpop.f32.mrb[0].mxu0
    %v7250 = vadd.f32 %v7137, %v7249
    %v7251 = vpop.f32.mrb[0].mxu0
    %v7252 = vadd.f32 %v7139, %v7251
    %7253 = vmatprep.mubr.bf16.mxu0 %v4631
    %7254 = vmatmul.mubr.bf16.gmra.mrb[0].mxu0 %v4630
    %v7255 = vpop.f32.mrb[0].mxu0
    %v7256 = vadd.f32 %v7143, %v7255
    %v7257 = vpop.f32.mrb[0].mxu0
    %v7258 = vadd.f32 %v7145, %v7257
    %v7259 = vpop.f32.mrb[0].mxu0
    %v7260 = vadd.f32 %v7147, %v7259
    %v7261 = vpop.f32.mrb[0].mxu0
    %v7262 = vadd.f32 %v7149, %v7261
    %7263 = vmatprep.mubr.bf16.mxu0 %v4638
    %7264 = vmatmul.mubr.bf16.gmra.mrb[0].mxu0 %v4637
    %v7265 = vpop.f32.mrb[0].mxu0
    %v7266 = vadd.f32 %v7153, %v7265
    %v7267 = vpop.f32.mrb[0].mxu0
    %v7268 = vadd.f32 %v7155, %v7267
    %v7269 = vpop.f32.mrb[0].mxu0
    %v7270 = vadd.f32 %v7157, %v7269
    %v7271 = vpop.f32.mrb[0].mxu0
    %v7272 = vadd.f32 %v7159, %v7271
    %7273 = vmatprep.mubr.bf16.mxu0 %v4645
    %7274 = vmatmul.mubr.bf16.gmra.mrb[0].mxu0 %v4644
    %v7275 = vpop.f32.mrb[0].mxu0
    %v7276 = vadd.f32 %v7163, %v7275
    %v7277 = vpop.f32.mrb[0].mxu0
    %v7278 = vadd.f32 %v7165, %v7277
    %v7279 = vpop.f32.mrb[0].mxu0
    %v7280 = vadd.f32 %v7167, %v7279
    %v7281 = vpop.f32.mrb[0].mxu0
    %v7282 = vadd.f32 %v7169, %v7281
    %7283 = vmatprep.mubr.bf16.mxu0 %v4652
    %7284 = vmatmul.mubr.bf16.gmra.mrb[0].mxu0 %v4651
    %v7285 = vpop.f32.mrb[0].mxu0
    %v7286 = vadd.f32 %v7173, %v7285
    %v7287 = vpop.f32.mrb[0].mxu0
    %v7288 = vadd.f32 %v7175, %v7287
    %v7289 = vpop.f32.mrb[0].mxu0
    %v7290 = vadd.f32 %v7177, %v7289
    %v7291 = vpop.f32.mrb[0].mxu0
    %v7292 = vadd.f32 %v7179, %v7291
    %7293 = vmatprep.mubr.bf16.mxu0 %v4659
    %7294 = vmatmul.mubr.bf16.gmra.mrb[0].mxu0 %v4658
    %v7295 = vpop.f32.mrb[0].mxu0
    %v7296 = vadd.f32 %v7183, %v7295
    %v7297 = vpop.f32.mrb[0].mxu0
    %v7298 = vadd.f32 %v7185, %v7297
    %v7299 = vpop.f32.mrb[0].mxu0
    %v7300 = vadd.f32 %v7187, %v7299
    %v7301 = vpop.f32.mrb[0].mxu0
    %v7302 = vadd.f32 %v7189, %v7301
    %7303 = vmatprep.mubr.bf16.mxu0 %v4666
    %7304 = vmatmul.mubr.bf16.gmra.mrb[0].mxu0 %v4665
    %v7305 = vpop.f32.mrb[0].mxu0
    %v7306 = vadd.f32 %v7193, %v7305
    %v7307 = vpop.f32.mrb[0].mxu0
    %v7308 = vadd.f32 %v7195, %v7307
    %v7309 = vpop.f32.mrb[0].mxu0
    %v7310 = vadd.f32 %v7197, %v7309
    %v7311 = vpop.f32.mrb[0].mxu0
    %v7312 = vadd.f32 %v7199, %v7311
    %7313 = vdwg.mxu0
    %7314 = vmatprep.subr.bf16.mxu0 %v6537
    %7315 = vmatpush1.bf16.msra.mxu0 %v6536
    %7316 = vmatprep.subr.bf16.mxu0 %v6545
    %7317 = vmatpush1.bf16.msra.mxu0 %v6544
    %7318 = vmatprep.subr.bf16.mxu0 %v6553
    %7319 = vmatpush1.bf16.msra.mxu0 %v6552
    %7320 = vmatprep.subr.bf16.mxu0 %v6561
    %7321 = vmatpush1.bf16.msra.mxu0 %v6560
    %7322 = vmatprep.subr.bf16.mxu0 %v6569
    %7323 = vmatpush1.bf16.msra.mxu0 %v6568
    %7324 = vmatprep.subr.bf16.mxu0 %v6577
    %7325 = vmatpush1.bf16.msra.mxu0 %v6576
    %7326 = vmatprep.subr.bf16.mxu0 %v6585
    %7327 = vmatpush1.bf16.msra.mxu0 %v6584
    %7328 = vmatprep.subr.bf16.mxu0 %v6593
    %7329 = vmatpush1.bf16.msra.mxu0 %v6592
    %7330 = vmatprep.subr.bf16.mxu0 %v6601
    %7331 = vmatpush1.bf16.msra.mxu0 %v6600
    %7332 = vmatprep.subr.bf16.mxu0 %v6609
    %7333 = vmatpush1.bf16.msra.mxu0 %v6608
    %7334 = vmatprep.subr.bf16.mxu0 %v6617
    %7335 = vmatpush1.bf16.msra.mxu0 %v6616
    %7336 = vmatprep.subr.bf16.mxu0 %v6625
    %7337 = vmatpush1.bf16.msra.mxu0 %v6624
    %7338 = vmatprep.subr.bf16.mxu0 %v6633
    %7339 = vmatpush1.bf16.msra.mxu0 %v6632
    %7340 = vmatprep.subr.bf16.mxu0 %v6641
    %7341 = vmatpush1.bf16.msra.mxu0 %v6640
    %7342 = vmatprep.subr.bf16.mxu0 %v6649
    %7343 = vmatpush1.bf16.msra.mxu0 %v6648
    %7344 = vmatprep.subr.bf16.mxu0 %v6657
    %7345 = vmatpush1.bf16.msra.mxu0 %v6656
    %7346 = vmatprep.mubr.bf16.mxu0 %v4619
    %7347 = vmatmul.mubr.bf16.gmra.mrb[0].mxu0 %v4618
    %v7348 = vpop.f32.mrb[0].mxu0
    %v7349 = vadd.f32 %v7236, %v7348
    %v7350 = vpop.f32.mrb[0].mxu0
    %v7351 = vadd.f32 %v7238, %v7350
    %v7352 = vpop.f32.mrb[0].mxu0
    %v7353 = vadd.f32 %v7240, %v7352
    %v7354 = vpop.f32.mrb[0].mxu0
    %v7355 = vadd.f32 %v7242, %v7354
    %7356 = vmatprep.mubr.bf16.mxu0 %v4626
    %7357 = vmatmul.mubr.bf16.gmra.mrb[0].mxu0 %v4625
    %v7358 = vpop.f32.mrb[0].mxu0
    %v7359 = vadd.f32 %v7246, %v7358
    %v7360 = vpop.f32.mrb[0].mxu0
    %v7361 = vadd.f32 %v7248, %v7360
    %v7362 = vpop.f32.mrb[0].mxu0
    %v7363 = vadd.f32 %v7250, %v7362
    %v7364 = vpop.f32.mrb[0].mxu0
    %v7365 = vadd.f32 %v7252, %v7364
    %7366 = vmatprep.mubr.bf16.mxu0 %v4633
    %7367 = vmatmul.mubr.bf16.gmra.mrb[0].mxu0 %v4632
    %v7368 = vpop.f32.mrb[0].mxu0
    %v7369 = vadd.f32 %v7256, %v7368
    %v7370 = vpop.f32.mrb[0].mxu0
    %v7371 = vadd.f32 %v7258, %v7370
    %v7372 = vpop.f32.mrb[0].mxu0
    %v7373 = vadd.f32 %v7260, %v7372
    %v7374 = vpop.f32.mrb[0].mxu0
    %v7375 = vadd.f32 %v7262, %v7374
    %7376 = vmatprep.mubr.bf16.mxu0 %v4640
    %7377 = vmatmul.mubr.bf16.gmra.mrb[0].mxu0 %v4639
    %v7378 = vpop.f32.mrb[0].mxu0
    %v7379 = vadd.f32 %v7266, %v7378
    %v7380 = vpop.f32.mrb[0].mxu0
    %v7381 = vadd.f32 %v7268, %v7380
    %v7382 = vpop.f32.mrb[0].mxu0
    %v7383 = vadd.f32 %v7270, %v7382
    %v7384 = vpop.f32.mrb[0].mxu0
    %v7385 = vadd.f32 %v7272, %v7384
    %7386 = vmatprep.mubr.bf16.mxu0 %v4647
    %7387 = vmatmul.mubr.bf16.gmra.mrb[0].mxu0 %v4646
    %v7388 = vpop.f32.mrb[0].mxu0
    %v7389 = vadd.f32 %v7276, %v7388
    %v7390 = vpop.f32.mrb[0].mxu0
    %v7391 = vadd.f32 %v7278, %v7390
    %v7392 = vpop.f32.mrb[0].mxu0
    %v7393 = vadd.f32 %v7280, %v7392
    %v7394 = vpop.f32.mrb[0].mxu0
    %v7395 = vadd.f32 %v7282, %v7394
    %7396 = vmatprep.mubr.bf16.mxu0 %v4654
    %7397 = vmatmul.mubr.bf16.gmra.mrb[0].mxu0 %v4653
    %v7398 = vpop.f32.mrb[0].mxu0
    %v7399 = vadd.f32 %v7286, %v7398
    %v7400 = vpop.f32.mrb[0].mxu0
    %v7401 = vadd.f32 %v7288, %v7400
    %v7402 = vpop.f32.mrb[0].mxu0
    %v7403 = vadd.f32 %v7290, %v7402
    %v7404 = vpop.f32.mrb[0].mxu0
    %v7405 = vadd.f32 %v7292, %v7404
    %7406 = vmatprep.mubr.bf16.mxu0 %v4661
    %7407 = vmatmul.mubr.bf16.gmra.mrb[0].mxu0 %v4660
    %v7408 = vpop.f32.mrb[0].mxu0
    %v7409 = vadd.f32 %v7296, %v7408
    %v7410 = vpop.f32.mrb[0].mxu0
    %v7411 = vadd.f32 %v7298, %v7410
    %v7412 = vpop.f32.mrb[0].mxu0
    %v7413 = vadd.f32 %v7300, %v7412
    %v7414 = vpop.f32.mrb[0].mxu0
    %v7415 = vadd.f32 %v7302, %v7414
    %7416 = vmatprep.mubr.bf16.mxu0 %v4668
    %7417 = vmatmul.mubr.bf16.gmra.mrb[0].mxu0 %v4667
    %v7418 = vpop.f32.mrb[0].mxu0
    %v7419 = vadd.f32 %v7306, %v7418
    %v7420 = vpop.f32.mrb[0].mxu0
    %v7421 = vadd.f32 %v7308, %v7420
    %v7422 = vpop.f32.mrb[0].mxu0
    %v7423 = vadd.f32 %v7310, %v7422
    %v7424 = vpop.f32.mrb[0].mxu0
    %v7425 = vadd.f32 %v7312, %v7424
    %7426 = vdwg.mxu0
    %7427 = vmatprep.subr.bf16.mxu0 %v6665
    %7428 = vmatpush1.bf16.msra.mxu0 %v6664
    %7429 = vmatprep.subr.bf16.mxu0 0
    %7430 = vmatpush1.bf16.msra.mxu0 0
    %7431 = vmatprep.subr.bf16.mxu0 0
    %7432 = vmatpush1.bf16.msra.mxu0 0
    %7433 = vmatprep.subr.bf16.mxu0 0
    %7434 = vmatpush1.bf16.msra.mxu0 0
    %7435 = vmatprep.subr.bf16.mxu0 0
    %7436 = vmatpush1.bf16.msra.mxu0 0
    %7437 = vmatprep.subr.bf16.mxu0 0
    %7438 = vmatpush1.bf16.msra.mxu0 0
    %7439 = vmatprep.subr.bf16.mxu0 0
    %7440 = vmatpush1.bf16.msra.mxu0 0
    %7441 = vmatprep.subr.bf16.mxu0 0
    %7442 = vmatpush1.bf16.msra.mxu0 0
    %7443 = vmatprep.subr.bf16.mxu0 0
    %7444 = vmatpush1.bf16.msra.mxu0 0
    %7445 = vmatprep.subr.bf16.mxu0 0
    %7446 = vmatpush1.bf16.msra.mxu0 0
    %7447 = vmatprep.subr.bf16.mxu0 0
    %7448 = vmatpush1.bf16.msra.mxu0 0
    %7449 = vmatprep.subr.bf16.mxu0 0
    %7450 = vmatpush1.bf16.msra.mxu0 0
    %7451 = vmatprep.subr.bf16.mxu0 0
    %7452 = vmatpush1.bf16.msra.mxu0 0
    %7453 = vmatprep.subr.bf16.mxu0 0
    %7454 = vmatpush1.bf16.msra.mxu0 0
    %7455 = vmatprep.subr.bf16.mxu0 0
    %7456 = vmatpush1.bf16.msra.mxu0 0
    %7457 = vmatprep.subr.bf16.mxu0 0
    %7458 = vmatpush1.bf16.msra.mxu0 0
    %7459 = vmatprep.mubr.bf16.mxu0 0
    %7460 = vmatmul.mubr.bf16.gmra.mrb[0].mxu0 %v7065
    %v7461 = vpop.f32.mrb[0].mxu0
    %v7462 = vadd.f32 %v7349, %v7461
    %v7463 = vpop.f32.mrb[0].mxu0
    %v7464 = vadd.f32 %v7351, %v7463
    %v7465 = vpop.f32.mrb[0].mxu0
    %v7466 = vadd.f32 %v7353, %v7465
    %v7467 = vpop.f32.mrb[0].mxu0
    %v7468 = vadd.f32 %v7355, %v7467
    %7469 = vmatprep.mubr.bf16.mxu0 0
    %7470 = vmatmul.mubr.bf16.gmra.mrb[0].mxu0 %v7068
    %v7471 = vpop.f32.mrb[0].mxu0
    %v7472 = vadd.f32 %v7359, %v7471
    %v7473 = vpop.f32.mrb[0].mxu0
    %v7474 = vadd.f32 %v7361, %v7473
    %v7475 = vpop.f32.mrb[0].mxu0
    %v7476 = vadd.f32 %v7363, %v7475
    %v7477 = vpop.f32.mrb[0].mxu0
    %v7478 = vadd.f32 %v7365, %v7477
    %7479 = vmatprep.mubr.bf16.mxu0 0
    %7480 = vmatmul.mubr.bf16.gmra.mrb[0].mxu0 %v7071
    %v7481 = vpop.f32.mrb[0].mxu0
    %v7482 = vadd.f32 %v7369, %v7481
    %v7483 = vpop.f32.mrb[0].mxu0
    %v7484 = vadd.f32 %v7371, %v7483
    %v7485 = vpop.f32.mrb[0].mxu0
    %v7486 = vadd.f32 %v7373, %v7485
    %v7487 = vpop.f32.mrb[0].mxu0
    %v7488 = vadd.f32 %v7375, %v7487
    %7489 = vmatprep.mubr.bf16.mxu0 0
    %7490 = vmatmul.mubr.bf16.gmra.mrb[0].mxu0 %v7074
    %v7491 = vpop.f32.mrb[0].mxu0
    %v7492 = vadd.f32 %v7379, %v7491
    %v7493 = vpop.f32.mrb[0].mxu0
    %v7494 = vadd.f32 %v7381, %v7493
    %v7495 = vpop.f32.mrb[0].mxu0
    %v7496 = vadd.f32 %v7383, %v7495
    %v7497 = vpop.f32.mrb[0].mxu0
    %v7498 = vadd.f32 %v7385, %v7497
    %7499 = vmatprep.mubr.bf16.mxu0 0
    %7500 = vmatmul.mubr.bf16.gmra.mrb[0].mxu0 %v7077
    %v7501 = vpop.f32.mrb[0].mxu0
    %v7502 = vadd.f32 %v7389, %v7501
    %v7503 = vpop.f32.mrb[0].mxu0
    %v7504 = vadd.f32 %v7391, %v7503
    %v7505 = vpop.f32.mrb[0].mxu0
    %v7506 = vadd.f32 %v7393, %v7505
    %v7507 = vpop.f32.mrb[0].mxu0
    %v7508 = vadd.f32 %v7395, %v7507
    %7509 = vmatprep.mubr.bf16.mxu0 0
    %7510 = vmatmul.mubr.bf16.gmra.mrb[0].mxu0 %v7080
    %v7511 = vpop.f32.mrb[0].mxu0
    %v7512 = vadd.f32 %v7399, %v7511
    %v7513 = vpop.f32.mrb[0].mxu0
    %v7514 = vadd.f32 %v7401, %v7513
    %v7515 = vpop.f32.mrb[0].mxu0
    %v7516 = vadd.f32 %v7403, %v7515
    %v7517 = vpop.f32.mrb[0].mxu0
    %v7518 = vadd.f32 %v7405, %v7517
    %7519 = vmatprep.mubr.bf16.mxu0 0
    %7520 = vmatmul.mubr.bf16.gmra.mrb[0].mxu0 %v7083
    %v7521 = vpop.f32.mrb[0].mxu0
    %v7522 = vadd.f32 %v7409, %v7521
    %v7523 = vpop.f32.mrb[0].mxu0
    %v7524 = vadd.f32 %v7411, %v7523
    %v7525 = vpop.f32.mrb[0].mxu0
    %v7526 = vadd.f32 %v7413, %v7525
    %v7527 = vpop.f32.mrb[0].mxu0
    %v7528 = vadd.f32 %v7415, %v7527
    %7529 = vmatprep.mubr.bf16.mxu0 0
    %7530 = vmatmul.mubr.bf16.gmra.mrb[0].mxu0 %v7086
    %v7531 = vpop.f32.mrb[0].mxu0
    %v7532 = vadd.f32 %v7419, %v7531
    %v7533 = vpop.f32.mrb[0].mxu0
    %v7534 = vadd.f32 %v7421, %v7533
    %v7535 = vpop.f32.mrb[0].mxu0
    %v7536 = vadd.f32 %v7423, %v7535
    %v7537 = vpop.f32.mrb[0].mxu0
    %v7538 = vadd.f32 %v7425, %v7537
    %7539 = vdwg.mxu0
    %7540 = vmatprep.subr.bf16.mxu0 %v6283
    %7541 = vmatpush1.bf16.msra.mxu0 %v6282
    %7542 = vmatprep.subr.bf16.mxu0 %v6291
    %7543 = vmatpush1.bf16.msra.mxu0 %v6290
    %7544 = vmatprep.subr.bf16.mxu0 %v6299
    %7545 = vmatpush1.bf16.msra.mxu0 %v6298
    %7546 = vmatprep.subr.bf16.mxu0 %v6307
    %7547 = vmatpush1.bf16.msra.mxu0 %v6306
    %7548 = vmatprep.subr.bf16.mxu0 %v6315
    %7549 = vmatpush1.bf16.msra.mxu0 %v6314
    %7550 = vmatprep.subr.bf16.mxu0 %v6323
    %7551 = vmatpush1.bf16.msra.mxu0 %v6322
    %7552 = vmatprep.subr.bf16.mxu0 %v6331
    %7553 = vmatpush1.bf16.msra.mxu0 %v6330
    %7554 = vmatprep.subr.bf16.mxu0 %v6339
    %7555 = vmatpush1.bf16.msra.mxu0 %v6338
    %7556 = vmatprep.subr.bf16.mxu0 %v6347
    %7557 = vmatpush1.bf16.msra.mxu0 %v6346
    %7558 = vmatprep.subr.bf16.mxu0 %v6355
    %7559 = vmatpush1.bf16.msra.mxu0 %v6354
    %7560 = vmatprep.subr.bf16.mxu0 %v6363
    %7561 = vmatpush1.bf16.msra.mxu0 %v6362
    %7562 = vmatprep.subr.bf16.mxu0 %v6371
    %7563 = vmatpush1.bf16.msra.mxu0 %v6370
    %7564 = vmatprep.subr.bf16.mxu0 %v6379
    %7565 = vmatpush1.bf16.msra.mxu0 %v6378
    %7566 = vmatprep.subr.bf16.mxu0 %v6387
    %7567 = vmatpush1.bf16.msra.mxu0 %v6386
    %7568 = vmatprep.subr.bf16.mxu0 %v6395
    %7569 = vmatpush1.bf16.msra.mxu0 %v6394
    %7570 = vmatprep.subr.bf16.mxu0 %v6403
    %7571 = vmatpush1.bf16.msra.mxu0 %v6402
    %7572 = vmatprep.mubr.bf16.mxu0 %v4615
    %7573 = vmatmul.mubr.bf16.gmra.mrb[0].mxu0 %v4614
    %v7574 = vpop.f32.mrb[0].mxu0
    %v7575 = vadd.f32 %v5075, %v7574
    %v7576 = vpop.f32.mrb[0].mxu0
    %v7577 = vadd.f32 %v5079, %v7576
    %v7578 = vpop.f32.mrb[0].mxu0
    %v7579 = vadd.f32 %v5075, %v7578
    %v7580 = vpop.f32.mrb[0].mxu0
    %v7581 = vadd.f32 %v5079, %v7580
    %7582 = vmatprep.mubr.bf16.mxu0 %v4622
    %7583 = vmatmul.mubr.bf16.gmra.mrb[0].mxu0 %v4621
    %v7584 = vpop.f32.mrb[0].mxu0
    %v7585 = vadd.f32 %v5075, %v7584
    %v7586 = vpop.f32.mrb[0].mxu0
    %v7587 = vadd.f32 %v5079, %v7586
    %v7588 = vpop.f32.mrb[0].mxu0
    %v7589 = vadd.f32 %v5075, %v7588
    %v7590 = vpop.f32.mrb[0].mxu0
    %v7591 = vadd.f32 %v5079, %v7590
    %7592 = vmatprep.mubr.bf16.mxu0 %v4629
    %7593 = vmatmul.mubr.bf16.gmra.mrb[0].mxu0 %v4628
    %v7594 = vpop.f32.mrb[0].mxu0
    %v7595 = vadd.f32 %v5075, %v7594
    %v7596 = vpop.f32.mrb[0].mxu0
    %v7597 = vadd.f32 %v5079, %v7596
    %v7598 = vpop.f32.mrb[0].mxu0
    %v7599 = vadd.f32 %v5075, %v7598
    %v7600 = vpop.f32.mrb[0].mxu0
    %v7601 = vadd.f32 %v5079, %v7600
    %7602 = vmatprep.mubr.bf16.mxu0 %v4636
    %7603 = vmatmul.mubr.bf16.gmra.mrb[0].mxu0 %v4635
    %v7604 = vpop.f32.mrb[0].mxu0
    %v7605 = vadd.f32 %v5075, %v7604
    %v7606 = vpop.f32.mrb[0].mxu0
    %v7607 = vadd.f32 %v5079, %v7606
    %v7608 = vpop.f32.mrb[0].mxu0
    %v7609 = vadd.f32 %v5075, %v7608
    %v7610 = vpop.f32.mrb[0].mxu0
    %v7611 = vadd.f32 %v5079, %v7610
    %7612 = vmatprep.mubr.bf16.mxu0 %v4643
    %7613 = vmatmul.mubr.bf16.gmra.mrb[0].mxu0 %v4642
    %v7614 = vpop.f32.mrb[0].mxu0
    %v7615 = vadd.f32 %v5075, %v7614
    %v7616 = vpop.f32.mrb[0].mxu0
    %v7617 = vadd.f32 %v5079, %v7616
    %v7618 = vpop.f32.mrb[0].mxu0
    %v7619 = vadd.f32 %v5075, %v7618
    %v7620 = vpop.f32.mrb[0].mxu0
    %v7621 = vadd.f32 %v5079, %v7620
    %7622 = vmatprep.mubr.bf16.mxu0 %v4650
    %7623 = vmatmul.mubr.bf16.gmra.mrb[0].mxu0 %v4649
    %v7624 = vpop.f32.mrb[0].mxu0
    %v7625 = vadd.f32 %v5075, %v7624
    %v7626 = vpop.f32.mrb[0].mxu0
    %v7627 = vadd.f32 %v5079, %v7626
    %v7628 = vpop.f32.mrb[0].mxu0
    %v7629 = vadd.f32 %v5075, %v7628
    %v7630 = vpop.f32.mrb[0].mxu0
    %v7631 = vadd.f32 %v5079, %v7630
    %7632 = vmatprep.mubr.bf16.mxu0 %v4657
    %7633 = vmatmul.mubr.bf16.gmra.mrb[0].mxu0 %v4656
    %v7634 = vpop.f32.mrb[0].mxu0
    %v7635 = vadd.f32 %v5075, %v7634
    %v7636 = vpop.f32.mrb[0].mxu0
    %v7637 = vadd.f32 %v5079, %v7636
    %v7638 = vpop.f32.mrb[0].mxu0
    %v7639 = vadd.f32 %v5075, %v7638
    %v7640 = vpop.f32.mrb[0].mxu0
    %v7641 = vadd.f32 %v5079, %v7640
    %7642 = vmatprep.mubr.bf16.mxu0 %v4664
    %7643 = vmatmul.mubr.bf16.gmra.mrb[0].mxu0 %v4663
    %v7644 = vpop.f32.mrb[0].mxu0
    %v7645 = vadd.f32 %v5075, %v7644
    %v7646 = vpop.f32.mrb[0].mxu0
    %v7647 = vadd.f32 %v5079, %v7646
    %v7648 = vpop.f32.mrb[0].mxu0
    %v7649 = vadd.f32 %v5075, %v7648
    %v7650 = vpop.f32.mrb[0].mxu0
    %v7651 = vadd.f32 %v5079, %v7650
    %7652 = vdwg.mxu0
    %7653 = vmatprep.subr.bf16.mxu0 %v6411
    %7654 = vmatpush1.bf16.msra.mxu0 %v6410
    %7655 = vmatprep.subr.bf16.mxu0 %v6419
    %7656 = vmatpush1.bf16.msra.mxu0 %v6418
    %7657 = vmatprep.subr.bf16.mxu0 %v6427
    %7658 = vmatpush1.bf16.msra.mxu0 %v6426
    %7659 = vmatprep.subr.bf16.mxu0 %v6435
    %7660 = vmatpush1.bf16.msra.mxu0 %v6434
    %7661 = vmatprep.subr.bf16.mxu0 %v6443
    %7662 = vmatpush1.bf16.msra.mxu0 %v6442
    %7663 = vmatprep.subr.bf16.mxu0 %v6451
    %7664 = vmatpush1.bf16.msra.mxu0 %v6450
    %7665 = vmatprep.subr.bf16.mxu0 %v6459
    %7666 = vmatpush1.bf16.msra.mxu0 %v6458
    %7667 = vmatprep.subr.bf16.mxu0 %v6467
    %7668 = vmatpush1.bf16.msra.mxu0 %v6466
    %7669 = vmatprep.subr.bf16.mxu0 %v6475
    %7670 = vmatpush1.bf16.msra.mxu0 %v6474
    %7671 = vmatprep.subr.bf16.mxu0 %v6483
    %7672 = vmatpush1.bf16.msra.mxu0 %v6482
    %7673 = vmatprep.subr.bf16.mxu0 %v6491
    %7674 = vmatpush1.bf16.msra.mxu0 %v6490
    %7675 = vmatprep.subr.bf16.mxu0 %v6499
    %7676 = vmatpush1.bf16.msra.mxu0 %v6498
    %7677 = vmatprep.subr.bf16.mxu0 %v6507
    %7678 = vmatpush1.bf16.msra.mxu0 %v6506
    %7679 = vmatprep.subr.bf16.mxu0 %v6515
    %7680 = vmatpush1.bf16.msra.mxu0 %v6514
    %7681 = vmatprep.subr.bf16.mxu0 %v6523
    %7682 = vmatpush1.bf16.msra.mxu0 %v6522
    %7683 = vmatprep.subr.bf16.mxu0 %v6531
    %7684 = vmatpush1.bf16.msra.mxu0 %v6530
    %7685 = vmatprep.mubr.bf16.mxu0 %v4617
    %7686 = vmatmul.mubr.bf16.gmra.mrb[0].mxu0 %v4616
    %v7687 = vpop.f32.mrb[0].mxu0
    %v7688 = vadd.f32 %v7575, %v7687
    %v7689 = vpop.f32.mrb[0].mxu0
    %v7690 = vadd.f32 %v7577, %v7689
    %v7691 = vpop.f32.mrb[0].mxu0
    %v7692 = vadd.f32 %v7579, %v7691
    %v7693 = vpop.f32.mrb[0].mxu0
    %v7694 = vadd.f32 %v7581, %v7693
    %7695 = vmatprep.mubr.bf16.mxu0 %v4624
    %7696 = vmatmul.mubr.bf16.gmra.mrb[0].mxu0 %v4623
    %v7697 = vpop.f32.mrb[0].mxu0
    %v7698 = vadd.f32 %v7585, %v7697
    %v7699 = vpop.f32.mrb[0].mxu0
    %v7700 = vadd.f32 %v7587, %v7699
    %v7701 = vpop.f32.mrb[0].mxu0
    %v7702 = vadd.f32 %v7589, %v7701
    %v7703 = vpop.f32.mrb[0].mxu0
    %v7704 = vadd.f32 %v7591, %v7703
    %7705 = vmatprep.mubr.bf16.mxu0 %v4631
    %7706 = vmatmul.mubr.bf16.gmra.mrb[0].mxu0 %v4630
    %v7707 = vpop.f32.mrb[0].mxu0
    %v7708 = vadd.f32 %v7595, %v7707
    %v7709 = vpop.f32.mrb[0].mxu0
    %v7710 = vadd.f32 %v7597, %v7709
    %v7711 = vpop.f32.mrb[0].mxu0
    %v7712 = vadd.f32 %v7599, %v7711
    %v7713 = vpop.f32.mrb[0].mxu0
    %v7714 = vadd.f32 %v7601, %v7713
    %7715 = vmatprep.mubr.bf16.mxu0 %v4638
    %7716 = vmatmul.mubr.bf16.gmra.mrb[0].mxu0 %v4637
    %v7717 = vpop.f32.mrb[0].mxu0
    %v7718 = vadd.f32 %v7605, %v7717
    %v7719 = vpop.f32.mrb[0].mxu0
    %v7720 = vadd.f32 %v7607, %v7719
    %v7721 = vpop.f32.mrb[0].mxu0
    %v7722 = vadd.f32 %v7609, %v7721
    %v7723 = vpop.f32.mrb[0].mxu0
    %v7724 = vadd.f32 %v7611, %v7723
    %7725 = vmatprep.mubr.bf16.mxu0 %v4645
    %7726 = vmatmul.mubr.bf16.gmra.mrb[0].mxu0 %v4644
    %v7727 = vpop.f32.mrb[0].mxu0
    %v7728 = vadd.f32 %v7615, %v7727
    %v7729 = vpop.f32.mrb[0].mxu0
    %v7730 = vadd.f32 %v7617, %v7729
    %v7731 = vpop.f32.mrb[0].mxu0
    %v7732 = vadd.f32 %v7619, %v7731
    %v7733 = vpop.f32.mrb[0].mxu0
    %v7734 = vadd.f32 %v7621, %v7733
    %7735 = vmatprep.mubr.bf16.mxu0 %v4652
    %7736 = vmatmul.mubr.bf16.gmra.mrb[0].mxu0 %v4651
    %v7737 = vpop.f32.mrb[0].mxu0
    %v7738 = vadd.f32 %v7625, %v7737
    %v7739 = vpop.f32.mrb[0].mxu0
    %v7740 = vadd.f32 %v7627, %v7739
    %v7741 = vpop.f32.mrb[0].mxu0
    %v7742 = vadd.f32 %v7629, %v7741
    %v7743 = vpop.f32.mrb[0].mxu0
    %v7744 = vadd.f32 %v7631, %v7743
    %7745 = vmatprep.mubr.bf16.mxu0 %v4659
    %7746 = vmatmul.mubr.bf16.gmra.mrb[0].mxu0 %v4658
    %v7747 = vpop.f32.mrb[0].mxu0
    %v7748 = vadd.f32 %v7635, %v7747
    %v7749 = vpop.f32.mrb[0].mxu0
    %v7750 = vadd.f32 %v7637, %v7749
    %v7751 = vpop.f32.mrb[0].mxu0
    %v7752 = vadd.f32 %v7639, %v7751
    %v7753 = vpop.f32.mrb[0].mxu0
    %v7754 = vadd.f32 %v7641, %v7753
    %7755 = vmatprep.mubr.bf16.mxu0 %v4666
    %7756 = vmatmul.mubr.bf16.gmra.mrb[0].mxu0 %v4665
    %v7757 = vpop.f32.mrb[0].mxu0
    %v7758 = vadd.f32 %v7645, %v7757
    %v7759 = vpop.f32.mrb[0].mxu0
    %v7760 = vadd.f32 %v7647, %v7759
    %v7761 = vpop.f32.mrb[0].mxu0
    %v7762 = vadd.f32 %v7649, %v7761
    %v7763 = vpop.f32.mrb[0].mxu0
    %v7764 = vadd.f32 %v7651, %v7763
    %7765 = vdwg.mxu0
    %7766 = vmatprep.subr.bf16.mxu0 %v6539
    %7767 = vmatpush1.bf16.msra.mxu0 %v6538
    %7768 = vmatprep.subr.bf16.mxu0 %v6547
    %7769 = vmatpush1.bf16.msra.mxu0 %v6546
    %7770 = vmatprep.subr.bf16.mxu0 %v6555
    %7771 = vmatpush1.bf16.msra.mxu0 %v6554
    %7772 = vmatprep.subr.bf16.mxu0 %v6563
    %7773 = vmatpush1.bf16.msra.mxu0 %v6562
    %7774 = vmatprep.subr.bf16.mxu0 %v6571
    %7775 = vmatpush1.bf16.msra.mxu0 %v6570
    %7776 = vmatprep.subr.bf16.mxu0 %v6579
    %7777 = vmatpush1.bf16.msra.mxu0 %v6578
    %7778 = vmatprep.subr.bf16.mxu0 %v6587
    %7779 = vmatpush1.bf16.msra.mxu0 %v6586
    %7780 = vmatprep.subr.bf16.mxu0 %v6595
    %7781 = vmatpush1.bf16.msra.mxu0 %v6594
    %7782 = vmatprep.subr.bf16.mxu0 %v6603
    %7783 = vmatpush1.bf16.msra.mxu0 %v6602
    %7784 = vmatprep.subr.bf16.mxu0 %v6611
    %7785 = vmatpush1.bf16.msra.mxu0 %v6610
    %7786 = vmatprep.subr.bf16.mxu0 %v6619
    %7787 = vmatpush1.bf16.msra.mxu0 %v6618
    %7788 = vmatprep.subr.bf16.mxu0 %v6627
    %7789 = vmatpush1.bf16.msra.mxu0 %v6626
    %7790 = vmatprep.subr.bf16.mxu0 %v6635
    %7791 = vmatpush1.bf16.msra.mxu0 %v6634
    %7792 = vmatprep.subr.bf16.mxu0 %v6643
    %7793 = vmatpush1.bf16.msra.mxu0 %v6642
    %7794 = vmatprep.subr.bf16.mxu0 %v6651
    %7795 = vmatpush1.bf16.msra.mxu0 %v6650
    %7796 = vmatprep.subr.bf16.mxu0 %v6659
    %7797 = vmatpush1.bf16.msra.mxu0 %v6658
    %7798 = vmatprep.mubr.bf16.mxu0 %v4619
    %7799 = vmatmul.mubr.bf16.gmra.mrb[0].mxu0 %v4618
    %v7800 = vpop.f32.mrb[0].mxu0
    %v7801 = vadd.f32 %v7688, %v7800
    %v7802 = vpop.f32.mrb[0].mxu0
    %v7803 = vadd.f32 %v7690, %v7802
    %v7804 = vpop.f32.mrb[0].mxu0
    %v7805 = vadd.f32 %v7692, %v7804
    %v7806 = vpop.f32.mrb[0].mxu0
    %v7807 = vadd.f32 %v7694, %v7806
    %7808 = vmatprep.mubr.bf16.mxu0 %v4626
    %7809 = vmatmul.mubr.bf16.gmra.mrb[0].mxu0 %v4625
    %v7810 = vpop.f32.mrb[0].mxu0
    %v7811 = vadd.f32 %v7698, %v7810
    %v7812 = vpop.f32.mrb[0].mxu0
    %v7813 = vadd.f32 %v7700, %v7812
    %v7814 = vpop.f32.mrb[0].mxu0
    %v7815 = vadd.f32 %v7702, %v7814
    %v7816 = vpop.f32.mrb[0].mxu0
    %v7817 = vadd.f32 %v7704, %v7816
    %7818 = vmatprep.mubr.bf16.mxu0 %v4633
    %7819 = vmatmul.mubr.bf16.gmra.mrb[0].mxu0 %v4632
    %v7820 = vpop.f32.mrb[0].mxu0
    %v7821 = vadd.f32 %v7708, %v7820
    %v7822 = vpop.f32.mrb[0].mxu0
    %v7823 = vadd.f32 %v7710, %v7822
    %v7824 = vpop.f32.mrb[0].mxu0
    %v7825 = vadd.f32 %v7712, %v7824
    %v7826 = vpop.f32.mrb[0].mxu0
    %v7827 = vadd.f32 %v7714, %v7826
    %7828 = vmatprep.mubr.bf16.mxu0 %v4640
    %7829 = vmatmul.mubr.bf16.gmra.mrb[0].mxu0 %v4639
    %v7830 = vpop.f32.mrb[0].mxu0
    %v7831 = vadd.f32 %v7718, %v7830
    %v7832 = vpop.f32.mrb[0].mxu0
    %v7833 = vadd.f32 %v7720, %v7832
    %v7834 = vpop.f32.mrb[0].mxu0
    %v7835 = vadd.f32 %v7722, %v7834
    %v7836 = vpop.f32.mrb[0].mxu0
    %v7837 = vadd.f32 %v7724, %v7836
    %7838 = vmatprep.mubr.bf16.mxu0 %v4647
    %7839 = vmatmul.mubr.bf16.gmra.mrb[0].mxu0 %v4646
    %v7840 = vpop.f32.mrb[0].mxu0
    %v7841 = vadd.f32 %v7728, %v7840
    %v7842 = vpop.f32.mrb[0].mxu0
    %v7843 = vadd.f32 %v7730, %v7842
    %v7844 = vpop.f32.mrb[0].mxu0
    %v7845 = vadd.f32 %v7732, %v7844
    %v7846 = vpop.f32.mrb[0].mxu0
    %v7847 = vadd.f32 %v7734, %v7846
    %7848 = vmatprep.mubr.bf16.mxu0 %v4654
    %7849 = vmatmul.mubr.bf16.gmra.mrb[0].mxu0 %v4653
    %v7850 = vpop.f32.mrb[0].mxu0
    %v7851 = vadd.f32 %v7738, %v7850
    %v7852 = vpop.f32.mrb[0].mxu0
    %v7853 = vadd.f32 %v7740, %v7852
    %v7854 = vpop.f32.mrb[0].mxu0
    %v7855 = vadd.f32 %v7742, %v7854
    %v7856 = vpop.f32.mrb[0].mxu0
    %v7857 = vadd.f32 %v7744, %v7856
    %7858 = vmatprep.mubr.bf16.mxu0 %v4661
    %7859 = vmatmul.mubr.bf16.gmra.mrb[0].mxu0 %v4660
    %v7860 = vpop.f32.mrb[0].mxu0
    %v7861 = vadd.f32 %v7748, %v7860
    %v7862 = vpop.f32.mrb[0].mxu0
    %v7863 = vadd.f32 %v7750, %v7862
    %v7864 = vpop.f32.mrb[0].mxu0
    %v7865 = vadd.f32 %v7752, %v7864
    %v7866 = vpop.f32.mrb[0].mxu0
    %v7867 = vadd.f32 %v7754, %v7866
    %7868 = vmatprep.mubr.bf16.mxu0 %v4668
    %7869 = vmatmul.mubr.bf16.gmra.mrb[0].mxu0 %v4667
    %v7870 = vpop.f32.mrb[0].mxu0
    %v7871 = vadd.f32 %v7758, %v7870
    %v7872 = vpop.f32.mrb[0].mxu0
    %v7873 = vadd.f32 %v7760, %v7872
    %v7874 = vpop.f32.mrb[0].mxu0
    %v7875 = vadd.f32 %v7762, %v7874
    %v7876 = vpop.f32.mrb[0].mxu0
    %v7877 = vadd.f32 %v7764, %v7876
    %7878 = vdwg.mxu0
    %7879 = vmatprep.subr.bf16.mxu0 %v6667
    %7880 = vmatpush1.bf16.msra.mxu0 %v6666
    %7881 = vmatprep.subr.bf16.mxu0 0
    %7882 = vmatpush1.bf16.msra.mxu0 0
    %7883 = vmatprep.subr.bf16.mxu0 0
    %7884 = vmatpush1.bf16.msra.mxu0 0
    %7885 = vmatprep.subr.bf16.mxu0 0
    %7886 = vmatpush1.bf16.msra.mxu0 0
    %7887 = vmatprep.subr.bf16.mxu0 0
    %7888 = vmatpush1.bf16.msra.mxu0 0
    %7889 = vmatprep.subr.bf16.mxu0 0
    %7890 = vmatpush1.bf16.msra.mxu0 0
    %7891 = vmatprep.subr.bf16.mxu0 0
    %7892 = vmatpush1.bf16.msra.mxu0 0
    %7893 = vmatprep.subr.bf16.mxu0 0
    %7894 = vmatpush1.bf16.msra.mxu0 0
    %7895 = vmatprep.subr.bf16.mxu0 0
    %7896 = vmatpush1.bf16.msra.mxu0 0
    %7897 = vmatprep.subr.bf16.mxu0 0
    %7898 = vmatpush1.bf16.msra.mxu0 0
    %7899 = vmatprep.subr.bf16.mxu0 0
    %7900 = vmatpush1.bf16.msra.mxu0 0
    %7901 = vmatprep.subr.bf16.mxu0 0
    %7902 = vmatpush1.bf16.msra.mxu0 0
    %7903 = vmatprep.subr.bf16.mxu0 0
    %7904 = vmatpush1.bf16.msra.mxu0 0
    %7905 = vmatprep.subr.bf16.mxu0 0
    %7906 = vmatpush1.bf16.msra.mxu0 0
    %7907 = vmatprep.subr.bf16.mxu0 0
    %7908 = vmatpush1.bf16.msra.mxu0 0
    %7909 = vmatprep.subr.bf16.mxu0 0
    %7910 = vmatpush1.bf16.msra.mxu0 0
    %7911 = vmatprep.mubr.bf16.mxu0 0
    %7912 = vmatmul.mubr.bf16.gmra.mrb[0].mxu0 %v7065
    %v7913 = vpop.f32.mrb[0].mxu0
    %v7914 = vadd.f32 %v7801, %v7913
    %v7915 = vpop.f32.mrb[0].mxu0
    %v7916 = vadd.f32 %v7803, %v7915
    %v7917 = vpop.f32.mrb[0].mxu0
    %v7918 = vadd.f32 %v7805, %v7917
    %v7919 = vpop.f32.mrb[0].mxu0
    %v7920 = vadd.f32 %v7807, %v7919
    %7921 = vmatprep.mubr.bf16.mxu0 0
    %7922 = vmatmul.mubr.bf16.gmra.mrb[0].mxu0 %v7068
    %v7923 = vpop.f32.mrb[0].mxu0
    %v7924 = vadd.f32 %v7811, %v7923
    %v7925 = vpop.f32.mrb[0].mxu0
    %v7926 = vadd.f32 %v7813, %v7925
    %v7927 = vpop.f32.mrb[0].mxu0
    %v7928 = vadd.f32 %v7815, %v7927
    %v7929 = vpop.f32.mrb[0].mxu0
    %v7930 = vadd.f32 %v7817, %v7929
    %7931 = vmatprep.mubr.bf16.mxu0 0
    %7932 = vmatmul.mubr.bf16.gmra.mrb[0].mxu0 %v7071
    %v7933 = vpop.f32.mrb[0].mxu0
    %v7934 = vadd.f32 %v7821, %v7933
    %v7935 = vpop.f32.mrb[0].mxu0
    %v7936 = vadd.f32 %v7823, %v7935
    %v7937 = vpop.f32.mrb[0].mxu0
    %v7938 = vadd.f32 %v7825, %v7937
    %v7939 = vpop.f32.mrb[0].mxu0
    %v7940 = vadd.f32 %v7827, %v7939
    %7941 = vmatprep.mubr.bf16.mxu0 0
    %7942 = vmatmul.mubr.bf16.gmra.mrb[0].mxu0 %v7074
    %v7943 = vpop.f32.mrb[0].mxu0
    %v7944 = vadd.f32 %v7831, %v7943
    %v7945 = vpop.f32.mrb[0].mxu0
    %v7946 = vadd.f32 %v7833, %v7945
    %v7947 = vpop.f32.mrb[0].mxu0
    %v7948 = vadd.f32 %v7835, %v7947
    %v7949 = vpop.f32.mrb[0].mxu0
    %v7950 = vadd.f32 %v7837, %v7949
    %7951 = vmatprep.mubr.bf16.mxu0 0
    %7952 = vmatmul.mubr.bf16.gmra.mrb[0].mxu0 %v7077
    %v7953 = vpop.f32.mrb[0].mxu0
    %v7954 = vadd.f32 %v7841, %v7953
    %v7955 = vpop.f32.mrb[0].mxu0
    %v7956 = vadd.f32 %v7843, %v7955
    %v7957 = vpop.f32.mrb[0].mxu0
    %v7958 = vadd.f32 %v7845, %v7957
    %v7959 = vpop.f32.mrb[0].mxu0
    %v7960 = vadd.f32 %v7847, %v7959
    %7961 = vmatprep.mubr.bf16.mxu0 0
    %7962 = vmatmul.mubr.bf16.gmra.mrb[0].mxu0 %v7080
    %v7963 = vpop.f32.mrb[0].mxu0
    %v7964 = vadd.f32 %v7851, %v7963
    %v7965 = vpop.f32.mrb[0].mxu0
    %v7966 = vadd.f32 %v7853, %v7965
    %v7967 = vpop.f32.mrb[0].mxu0
    %v7968 = vadd.f32 %v7855, %v7967
    %v7969 = vpop.f32.mrb[0].mxu0
    %v7970 = vadd.f32 %v7857, %v7969
    %7971 = vmatprep.mubr.bf16.mxu0 0
    %7972 = vmatmul.mubr.bf16.gmra.mrb[0].mxu0 %v7083
    %v7973 = vpop.f32.mrb[0].mxu0
    %v7974 = vadd.f32 %v7861, %v7973
    %v7975 = vpop.f32.mrb[0].mxu0
    %v7976 = vadd.f32 %v7863, %v7975
    %v7977 = vpop.f32.mrb[0].mxu0
    %v7978 = vadd.f32 %v7865, %v7977
    %v7979 = vpop.f32.mrb[0].mxu0
    %v7980 = vadd.f32 %v7867, %v7979
    %7981 = vmatprep.mubr.bf16.mxu0 0
    %7982 = vmatmul.mubr.bf16.gmra.mrb[0].mxu0 %v7086
    %v7983 = vpop.f32.mrb[0].mxu0
    %v7984 = vadd.f32 %v7871, %v7983
    %v7985 = vpop.f32.mrb[0].mxu0
    %v7986 = vadd.f32 %v7873, %v7985
    %v7987 = vpop.f32.mrb[0].mxu0
    %v7988 = vadd.f32 %v7875, %v7987
    %v7989 = vpop.f32.mrb[0].mxu0
    %v7990 = vadd.f32 %v7877, %v7989
    %7991 = vdwg.mxu0
    %7992 = vmatprep.subr.bf16.mxu0 %v6285
    %7993 = vmatpush1.bf16.msra.mxu0 %v6284
    %7994 = vmatprep.subr.bf16.mxu0 %v6293
    %7995 = vmatpush1.bf16.msra.mxu0 %v6292
    %7996 = vmatprep.subr.bf16.mxu0 %v6301
    %7997 = vmatpush1.bf16.msra.mxu0 %v6300
    %7998 = vmatprep.subr.bf16.mxu0 %v6309
    %7999 = vmatpush1.bf16.msra.mxu0 %v6308
    %8000 = vmatprep.subr.bf16.mxu0 %v6317
    %8001 = vmatpush1.bf16.msra.mxu0 %v6316
    %8002 = vmatprep.subr.bf16.mxu0 %v6325
    %8003 = vmatpush1.bf16.msra.mxu0 %v6324
    %8004 = vmatprep.subr.bf16.mxu0 %v6333
    %8005 = vmatpush1.bf16.msra.mxu0 %v6332
    %8006 = vmatprep.subr.bf16.mxu0 %v6341
    %8007 = vmatpush1.bf16.msra.mxu0 %v6340
    %8008 = vmatprep.subr.bf16.mxu0 %v6349
    %8009 = vmatpush1.bf16.msra.mxu0 %v6348
    %8010 = vmatprep.subr.bf16.mxu0 %v6357
    %8011 = vmatpush1.bf16.msra.mxu0 %v6356
    %8012 = vmatprep.subr.bf16.mxu0 %v6365
    %8013 = vmatpush1.bf16.msra.mxu0 %v6364
    %8014 = vmatprep.subr.bf16.mxu0 %v6373
    %8015 = vmatpush1.bf16.msra.mxu0 %v6372
    %8016 = vmatprep.subr.bf16.mxu0 %v6381
    %8017 = vmatpush1.bf16.msra.mxu0 %v6380
    %8018 = vmatprep.subr.bf16.mxu0 %v6389
    %8019 = vmatpush1.bf16.msra.mxu0 %v6388
    %8020 = vmatprep.subr.bf16.mxu0 %v6397
    %8021 = vmatpush1.bf16.msra.mxu0 %v6396
    %8022 = vmatprep.subr.bf16.mxu0 %v6405
    %8023 = vmatpush1.bf16.msra.mxu0 %v6404
    %8024 = vmatprep.mubr.bf16.mxu0 %v4615
    %8025 = vmatmul.mubr.bf16.gmra.mrb[0].mxu0 %v4614
    %v8026 = vpop.f32.mrb[0].mxu0
    %v8027 = vadd.f32 %v5083, %v8026
    %v8028 = vpop.f32.mrb[0].mxu0
    %v8029 = vadd.f32 %v5087, %v8028
    %v8030 = vpop.f32.mrb[0].mxu0
    %v8031 = vadd.f32 %v5083, %v8030
    %v8032 = vpop.f32.mrb[0].mxu0
    %v8033 = vadd.f32 %v5087, %v8032
    %8034 = vmatprep.mubr.bf16.mxu0 %v4622
    %8035 = vmatmul.mubr.bf16.gmra.mrb[0].mxu0 %v4621
    %v8036 = vpop.f32.mrb[0].mxu0
    %v8037 = vadd.f32 %v5083, %v8036
    %v8038 = vpop.f32.mrb[0].mxu0
    %v8039 = vadd.f32 %v5087, %v8038
    %v8040 = vpop.f32.mrb[0].mxu0
    %v8041 = vadd.f32 %v5083, %v8040
    %v8042 = vpop.f32.mrb[0].mxu0
    %v8043 = vadd.f32 %v5087, %v8042
    %8044 = vmatprep.mubr.bf16.mxu0 %v4629
    %8045 = vmatmul.mubr.bf16.gmra.mrb[0].mxu0 %v4628
    %v8046 = vpop.f32.mrb[0].mxu0
    %v8047 = vadd.f32 %v5083, %v8046
    %v8048 = vpop.f32.mrb[0].mxu0
    %v8049 = vadd.f32 %v5087, %v8048
    %v8050 = vpop.f32.mrb[0].mxu0
    %v8051 = vadd.f32 %v5083, %v8050
    %v8052 = vpop.f32.mrb[0].mxu0
    %v8053 = vadd.f32 %v5087, %v8052
    %8054 = vmatprep.mubr.bf16.mxu0 %v4636
    %8055 = vmatmul.mubr.bf16.gmra.mrb[0].mxu0 %v4635
    %v8056 = vpop.f32.mrb[0].mxu0
    %v8057 = vadd.f32 %v5083, %v8056
    %v8058 = vpop.f32.mrb[0].mxu0
    %v8059 = vadd.f32 %v5087, %v8058
    %v8060 = vpop.f32.mrb[0].mxu0
    %v8061 = vadd.f32 %v5083, %v8060
    %v8062 = vpop.f32.mrb[0].mxu0
    %v8063 = vadd.f32 %v5087, %v8062
    %8064 = vmatprep.mubr.bf16.mxu0 %v4643
    %8065 = vmatmul.mubr.bf16.gmra.mrb[0].mxu0 %v4642
    %v8066 = vpop.f32.mrb[0].mxu0
    %v8067 = vadd.f32 %v5083, %v8066
    %v8068 = vpop.f32.mrb[0].mxu0
    %v8069 = vadd.f32 %v5087, %v8068
    %v8070 = vpop.f32.mrb[0].mxu0
    %v8071 = vadd.f32 %v5083, %v8070
    %v8072 = vpop.f32.mrb[0].mxu0
    %v8073 = vadd.f32 %v5087, %v8072
    %8074 = vmatprep.mubr.bf16.mxu0 %v4650
    %8075 = vmatmul.mubr.bf16.gmra.mrb[0].mxu0 %v4649
    %v8076 = vpop.f32.mrb[0].mxu0
    %v8077 = vadd.f32 %v5083, %v8076
    %v8078 = vpop.f32.mrb[0].mxu0
    %v8079 = vadd.f32 %v5087, %v8078
    %v8080 = vpop.f32.mrb[0].mxu0
    %v8081 = vadd.f32 %v5083, %v8080
    %v8082 = vpop.f32.mrb[0].mxu0
    %v8083 = vadd.f32 %v5087, %v8082
    %8084 = vmatprep.mubr.bf16.mxu0 %v4657
    %8085 = vmatmul.mubr.bf16.gmra.mrb[0].mxu0 %v4656
    %v8086 = vpop.f32.mrb[0].mxu0
    %v8087 = vadd.f32 %v5083, %v8086
    %v8088 = vpop.f32.mrb[0].mxu0
    %v8089 = vadd.f32 %v5087, %v8088
    %v8090 = vpop.f32.mrb[0].mxu0
    %v8091 = vadd.f32 %v5083, %v8090
    %v8092 = vpop.f32.mrb[0].mxu0
    %v8093 = vadd.f32 %v5087, %v8092
    %8094 = vmatprep.mubr.bf16.mxu0 %v4664
    %8095 = vmatmul.mubr.bf16.gmra.mrb[0].mxu0 %v4663
    %v8096 = vpop.f32.mrb[0].mxu0
    %v8097 = vadd.f32 %v5083, %v8096
    %v8098 = vpop.f32.mrb[0].mxu0
    %v8099 = vadd.f32 %v5087, %v8098
    %v8100 = vpop.f32.mrb[0].mxu0
    %v8101 = vadd.f32 %v5083, %v8100
    %v8102 = vpop.f32.mrb[0].mxu0
    %v8103 = vadd.f32 %v5087, %v8102
    %8104 = vdwg.mxu0
    %8105 = vmatprep.subr.bf16.mxu0 %v6413
    %8106 = vmatpush1.bf16.msra.mxu0 %v6412
    %8107 = vmatprep.subr.bf16.mxu0 %v6421
    %8108 = vmatpush1.bf16.msra.mxu0 %v6420
    %8109 = vmatprep.subr.bf16.mxu0 %v6429
    %8110 = vmatpush1.bf16.msra.mxu0 %v6428
    %8111 = vmatprep.subr.bf16.mxu0 %v6437
    %8112 = vmatpush1.bf16.msra.mxu0 %v6436
    %8113 = vmatprep.subr.bf16.mxu0 %v6445
    %8114 = vmatpush1.bf16.msra.mxu0 %v6444
    %8115 = vmatprep.subr.bf16.mxu0 %v6453
    %8116 = vmatpush1.bf16.msra.mxu0 %v6452
    %8117 = vmatprep.subr.bf16.mxu0 %v6461
    %8118 = vmatpush1.bf16.msra.mxu0 %v6460
    %8119 = vmatprep.subr.bf16.mxu0 %v6469
    %8120 = vmatpush1.bf16.msra.mxu0 %v6468
    %8121 = vmatprep.subr.bf16.mxu0 %v6477
    %8122 = vmatpush1.bf16.msra.mxu0 %v6476
    %8123 = vmatprep.subr.bf16.mxu0 %v6485
    %8124 = vmatpush1.bf16.msra.mxu0 %v6484
    %8125 = vmatprep.subr.bf16.mxu0 %v6493
    %8126 = vmatpush1.bf16.msra.mxu0 %v6492
    %8127 = vmatprep.subr.bf16.mxu0 %v6501
    %8128 = vmatpush1.bf16.msra.mxu0 %v6500
    %8129 = vmatprep.subr.bf16.mxu0 %v6509
    %8130 = vmatpush1.bf16.msra.mxu0 %v6508
    %8131 = vmatprep.subr.bf16.mxu0 %v6517
    %8132 = vmatpush1.bf16.msra.mxu0 %v6516
    %8133 = vmatprep.subr.bf16.mxu0 %v6525
    %8134 = vmatpush1.bf16.msra.mxu0 %v6524
    %8135 = vmatprep.subr.bf16.mxu0 %v6533
    %8136 = vmatpush1.bf16.msra.mxu0 %v6532
    %8137 = vmatprep.mubr.bf16.mxu0 %v4617
    %8138 = vmatmul.mubr.bf16.gmra.mrb[0].mxu0 %v4616
    %v8139 = vpop.f32.mrb[0].mxu0
    %v8140 = vadd.f32 %v8027, %v8139
    %v8141 = vpop.f32.mrb[0].mxu0
    %v8142 = vadd.f32 %v8029, %v8141
    %v8143 = vpop.f32.mrb[0].mxu0
    %v8144 = vadd.f32 %v8031, %v8143
    %v8145 = vpop.f32.mrb[0].mxu0
    %v8146 = vadd.f32 %v8033, %v8145
    %8147 = vmatprep.mubr.bf16.mxu0 %v4624
    %8148 = vmatmul.mubr.bf16.gmra.mrb[0].mxu0 %v4623
    %v8149 = vpop.f32.mrb[0].mxu0
    %v8150 = vadd.f32 %v8037, %v8149
    %v8151 = vpop.f32.mrb[0].mxu0
    %v8152 = vadd.f32 %v8039, %v8151
    %v8153 = vpop.f32.mrb[0].mxu0
    %v8154 = vadd.f32 %v8041, %v8153
    %v8155 = vpop.f32.mrb[0].mxu0
    %v8156 = vadd.f32 %v8043, %v8155
    %8157 = vmatprep.mubr.bf16.mxu0 %v4631
    %8158 = vmatmul.mubr.bf16.gmra.mrb[0].mxu0 %v4630
    %v8159 = vpop.f32.mrb[0].mxu0
    %v8160 = vadd.f32 %v8047, %v8159
    %v8161 = vpop.f32.mrb[0].mxu0
    %v8162 = vadd.f32 %v8049, %v8161
    %v8163 = vpop.f32.mrb[0].mxu0
    %v8164 = vadd.f32 %v8051, %v8163
    %v8165 = vpop.f32.mrb[0].mxu0
    %v8166 = vadd.f32 %v8053, %v8165
    %8167 = vmatprep.mubr.bf16.mxu0 %v4638
    %8168 = vmatmul.mubr.bf16.gmra.mrb[0].mxu0 %v4637
    %v8169 = vpop.f32.mrb[0].mxu0
    %v8170 = vadd.f32 %v8057, %v8169
    %v8171 = vpop.f32.mrb[0].mxu0
    %v8172 = vadd.f32 %v8059, %v8171
    %v8173 = vpop.f32.mrb[0].mxu0
    %v8174 = vadd.f32 %v8061, %v8173
    %v8175 = vpop.f32.mrb[0].mxu0
    %v8176 = vadd.f32 %v8063, %v8175
    %8177 = vmatprep.mubr.bf16.mxu0 %v4645
    %8178 = vmatmul.mubr.bf16.gmra.mrb[0].mxu0 %v4644
    %v8179 = vpop.f32.mrb[0].mxu0
    %v8180 = vadd.f32 %v8067, %v8179
    %v8181 = vpop.f32.mrb[0].mxu0
    %v8182 = vadd.f32 %v8069, %v8181
    %v8183 = vpop.f32.mrb[0].mxu0
    %v8184 = vadd.f32 %v8071, %v8183
    %v8185 = vpop.f32.mrb[0].mxu0
    %v8186 = vadd.f32 %v8073, %v8185
    %8187 = vmatprep.mubr.bf16.mxu0 %v4652
    %8188 = vmatmul.mubr.bf16.gmra.mrb[0].mxu0 %v4651
    %v8189 = vpop.f32.mrb[0].mxu0
    %v8190 = vadd.f32 %v8077, %v8189
    %v8191 = vpop.f32.mrb[0].mxu0
    %v8192 = vadd.f32 %v8079, %v8191
    %v8193 = vpop.f32.mrb[0].mxu0
    %v8194 = vadd.f32 %v8081, %v8193
    %v8195 = vpop.f32.mrb[0].mxu0
    %v8196 = vadd.f32 %v8083, %v8195
    %8197 = vmatprep.mubr.bf16.mxu0 %v4659
    %8198 = vmatmul.mubr.bf16.gmra.mrb[0].mxu0 %v4658
    %v8199 = vpop.f32.mrb[0].mxu0
    %v8200 = vadd.f32 %v8087, %v8199
    %v8201 = vpop.f32.mrb[0].mxu0
    %v8202 = vadd.f32 %v8089, %v8201
    %v8203 = vpop.f32.mrb[0].mxu0
    %v8204 = vadd.f32 %v8091, %v8203
    %v8205 = vpop.f32.mrb[0].mxu0
    %v8206 = vadd.f32 %v8093, %v8205
    %8207 = vmatprep.mubr.bf16.mxu0 %v4666
    %8208 = vmatmul.mubr.bf16.gmra.mrb[0].mxu0 %v4665
    %v8209 = vpop.f32.mrb[0].mxu0
    %v8210 = vadd.f32 %v8097, %v8209
    %v8211 = vpop.f32.mrb[0].mxu0
    %v8212 = vadd.f32 %v8099, %v8211
    %v8213 = vpop.f32.mrb[0].mxu0
    %v8214 = vadd.f32 %v8101, %v8213
    %v8215 = vpop.f32.mrb[0].mxu0
    %v8216 = vadd.f32 %v8103, %v8215
    %8217 = vdwg.mxu0
    %8218 = vmatprep.subr.bf16.mxu0 %v6541
    %8219 = vmatpush1.bf16.msra.mxu0 %v6540
    %8220 = vmatprep.subr.bf16.mxu0 %v6549
    %8221 = vmatpush1.bf16.msra.mxu0 %v6548
    %8222 = vmatprep.subr.bf16.mxu0 %v6557
    %8223 = vmatpush1.bf16.msra.mxu0 %v6556
    %8224 = vmatprep.subr.bf16.mxu0 %v6565
    %8225 = vmatpush1.bf16.msra.mxu0 %v6564
    %8226 = vmatprep.subr.bf16.mxu0 %v6573
    %8227 = vmatpush1.bf16.msra.mxu0 %v6572
    %8228 = vmatprep.subr.bf16.mxu0 %v6581
    %8229 = vmatpush1.bf16.msra.mxu0 %v6580
    %8230 = vmatprep.subr.bf16.mxu0 %v6589
    %8231 = vmatpush1.bf16.msra.mxu0 %v6588
    %8232 = vmatprep.subr.bf16.mxu0 %v6597
    %8233 = vmatpush1.bf16.msra.mxu0 %v6596
    %8234 = vmatprep.subr.bf16.mxu0 %v6605
    %8235 = vmatpush1.bf16.msra.mxu0 %v6604
    %8236 = vmatprep.subr.bf16.mxu0 %v6613
    %8237 = vmatpush1.bf16.msra.mxu0 %v6612
    %8238 = vmatprep.subr.bf16.mxu0 %v6621
    %8239 = vmatpush1.bf16.msra.mxu0 %v6620
    %8240 = vmatprep.subr.bf16.mxu0 %v6629
    %8241 = vmatpush1.bf16.msra.mxu0 %v6628
    %8242 = vmatprep.subr.bf16.mxu0 %v6637
    %8243 = vmatpush1.bf16.msra.mxu0 %v6636
    %8244 = vmatprep.subr.bf16.mxu0 %v6645
    %8245 = vmatpush1.bf16.msra.mxu0 %v6644
    %8246 = vmatprep.subr.bf16.mxu0 %v6653
    %8247 = vmatpush1.bf16.msra.mxu0 %v6652
    %8248 = vmatprep.subr.bf16.mxu0 %v6661
    %8249 = vmatpush1.bf16.msra.mxu0 %v6660
    %8250 = vmatprep.mubr.bf16.mxu0 %v4619
    %8251 = vmatmul.mubr.bf16.gmra.mrb[0].mxu0 %v4618
    %v8252 = vpop.f32.mrb[0].mxu0
    %v8253 = vadd.f32 %v8140, %v8252
    %v8254 = vpop.f32.mrb[0].mxu0
    %v8255 = vadd.f32 %v8142, %v8254
    %v8256 = vpop.f32.mrb[0].mxu0
    %v8257 = vadd.f32 %v8144, %v8256
    %v8258 = vpop.f32.mrb[0].mxu0
    %v8259 = vadd.f32 %v8146, %v8258
    %8260 = vmatprep.mubr.bf16.mxu0 %v4626
    %8261 = vmatmul.mubr.bf16.gmra.mrb[0].mxu0 %v4625
    %v8262 = vpop.f32.mrb[0].mxu0
    %v8263 = vadd.f32 %v8150, %v8262
    %v8264 = vpop.f32.mrb[0].mxu0
    %v8265 = vadd.f32 %v8152, %v8264
    %v8266 = vpop.f32.mrb[0].mxu0
    %v8267 = vadd.f32 %v8154, %v8266
    %v8268 = vpop.f32.mrb[0].mxu0
    %v8269 = vadd.f32 %v8156, %v8268
    %8270 = vmatprep.mubr.bf16.mxu0 %v4633
    %8271 = vmatmul.mubr.bf16.gmra.mrb[0].mxu0 %v4632
    %v8272 = vpop.f32.mrb[0].mxu0
    %v8273 = vadd.f32 %v8160, %v8272
    %v8274 = vpop.f32.mrb[0].mxu0
    %v8275 = vadd.f32 %v8162, %v8274
    %v8276 = vpop.f32.mrb[0].mxu0
    %v8277 = vadd.f32 %v8164, %v8276
    %v8278 = vpop.f32.mrb[0].mxu0
    %v8279 = vadd.f32 %v8166, %v8278
    %8280 = vmatprep.mubr.bf16.mxu0 %v4640
    %8281 = vmatmul.mubr.bf16.gmra.mrb[0].mxu0 %v4639
    %v8282 = vpop.f32.mrb[0].mxu0
    %v8283 = vadd.f32 %v8170, %v8282
    %v8284 = vpop.f32.mrb[0].mxu0
    %v8285 = vadd.f32 %v8172, %v8284
    %v8286 = vpop.f32.mrb[0].mxu0
    %v8287 = vadd.f32 %v8174, %v8286
    %v8288 = vpop.f32.mrb[0].mxu0
    %v8289 = vadd.f32 %v8176, %v8288
    %8290 = vmatprep.mubr.bf16.mxu0 %v4647
    %8291 = vmatmul.mubr.bf16.gmra.mrb[0].mxu0 %v4646
    %v8292 = vpop.f32.mrb[0].mxu0
    %v8293 = vadd.f32 %v8180, %v8292
    %v8294 = vpop.f32.mrb[0].mxu0
    %v8295 = vadd.f32 %v8182, %v8294
    %v8296 = vpop.f32.mrb[0].mxu0
    %v8297 = vadd.f32 %v8184, %v8296
    %v8298 = vpop.f32.mrb[0].mxu0
    %v8299 = vadd.f32 %v8186, %v8298
    %8300 = vmatprep.mubr.bf16.mxu0 %v4654
    %8301 = vmatmul.mubr.bf16.gmra.mrb[0].mxu0 %v4653
    %v8302 = vpop.f32.mrb[0].mxu0
    %v8303 = vadd.f32 %v8190, %v8302
    %v8304 = vpop.f32.mrb[0].mxu0
    %v8305 = vadd.f32 %v8192, %v8304
    %v8306 = vpop.f32.mrb[0].mxu0
    %v8307 = vadd.f32 %v8194, %v8306
    %v8308 = vpop.f32.mrb[0].mxu0
    %v8309 = vadd.f32 %v8196, %v8308
    %8310 = vmatprep.mubr.bf16.mxu0 %v4661
    %8311 = vmatmul.mubr.bf16.gmra.mrb[0].mxu0 %v4660
    %v8312 = vpop.f32.mrb[0].mxu0
    %v8313 = vadd.f32 %v8200, %v8312
    %v8314 = vpop.f32.mrb[0].mxu0
    %v8315 = vadd.f32 %v8202, %v8314
    %v8316 = vpop.f32.mrb[0].mxu0
    %v8317 = vadd.f32 %v8204, %v8316
    %v8318 = vpop.f32.mrb[0].mxu0
    %v8319 = vadd.f32 %v8206, %v8318
    %8320 = vmatprep.mubr.bf16.mxu0 %v4668
    %8321 = vmatmul.mubr.bf16.gmra.mrb[0].mxu0 %v4667
    %v8322 = vpop.f32.mrb[0].mxu0
    %v8323 = vadd.f32 %v8210, %v8322
    %v8324 = vpop.f32.mrb[0].mxu0
    %v8325 = vadd.f32 %v8212, %v8324
    %v8326 = vpop.f32.mrb[0].mxu0
    %v8327 = vadd.f32 %v8214, %v8326
    %v8328 = vpop.f32.mrb[0].mxu0
    %v8329 = vadd.f32 %v8216, %v8328
    %8330 = vdwg.mxu0
    %8331 = vmatprep.subr.bf16.mxu0 %v6669
    %8332 = vmatpush1.bf16.msra.mxu0 %v6668
    %8333 = vmatprep.subr.bf16.mxu0 0
    %8334 = vmatpush1.bf16.msra.mxu0 0
    %8335 = vmatprep.subr.bf16.mxu0 0
    %8336 = vmatpush1.bf16.msra.mxu0 0
    %8337 = vmatprep.subr.bf16.mxu0 0
    %8338 = vmatpush1.bf16.msra.mxu0 0
    %8339 = vmatprep.subr.bf16.mxu0 0
    %8340 = vmatpush1.bf16.msra.mxu0 0
    %8341 = vmatprep.subr.bf16.mxu0 0
    %8342 = vmatpush1.bf16.msra.mxu0 0
    %8343 = vmatprep.subr.bf16.mxu0 0
    %8344 = vmatpush1.bf16.msra.mxu0 0
    %8345 = vmatprep.subr.bf16.mxu0 0
    %8346 = vmatpush1.bf16.msra.mxu0 0
    %8347 = vmatprep.subr.bf16.mxu0 0
    %8348 = vmatpush1.bf16.msra.mxu0 0
    %8349 = vmatprep.subr.bf16.mxu0 0
    %8350 = vmatpush1.bf16.msra.mxu0 0
    %8351 = vmatprep.subr.bf16.mxu0 0
    %8352 = vmatpush1.bf16.msra.mxu0 0
    %8353 = vmatprep.subr.bf16.mxu0 0
    %8354 = vmatpush1.bf16.msra.mxu0 0
    %8355 = vmatprep.subr.bf16.mxu0 0
    %8356 = vmatpush1.bf16.msra.mxu0 0
    %8357 = vmatprep.subr.bf16.mxu0 0
    %8358 = vmatpush1.bf16.msra.mxu0 0
    %8359 = vmatprep.subr.bf16.mxu0 0
    %8360 = vmatpush1.bf16.msra.mxu0 0
    %8361 = vmatprep.subr.bf16.mxu0 0
    %8362 = vmatpush1.bf16.msra.mxu0 0
    %8363 = vmatprep.mubr.bf16.mxu0 0
    %8364 = vmatmul.mubr.bf16.gmra.mrb[0].mxu0 %v7065
    %v8365 = vpop.f32.mrb[0].mxu0
    %v8366 = vadd.f32 %v8253, %v8365
    %v8367 = vpop.f32.mrb[0].mxu0
    %v8368 = vadd.f32 %v8255, %v8367
    %v8369 = vpop.f32.mrb[0].mxu0
    %v8370 = vadd.f32 %v8257, %v8369
    %v8371 = vpop.f32.mrb[0].mxu0
    %v8372 = vadd.f32 %v8259, %v8371
    %8373 = vmatprep.mubr.bf16.mxu0 0
    %8374 = vmatmul.mubr.bf16.gmra.mrb[0].mxu0 %v7068
    %v8375 = vpop.f32.mrb[0].mxu0
    %v8376 = vadd.f32 %v8263, %v8375
    %v8377 = vpop.f32.mrb[0].mxu0
    %v8378 = vadd.f32 %v8265, %v8377
    %v8379 = vpop.f32.mrb[0].mxu0
    %v8380 = vadd.f32 %v8267, %v8379
    %v8381 = vpop.f32.mrb[0].mxu0
    %v8382 = vadd.f32 %v8269, %v8381
    %8383 = vmatprep.mubr.bf16.mxu0 0
    %8384 = vmatmul.mubr.bf16.gmra.mrb[0].mxu0 %v7071
    %v8385 = vpop.f32.mrb[0].mxu0
    %v8386 = vadd.f32 %v8273, %v8385
    %v8387 = vpop.f32.mrb[0].mxu0
    %v8388 = vadd.f32 %v8275, %v8387
    %v8389 = vpop.f32.mrb[0].mxu0
    %v8390 = vadd.f32 %v8277, %v8389
    %v8391 = vpop.f32.mrb[0].mxu0
    %v8392 = vadd.f32 %v8279, %v8391
    %8393 = vmatprep.mubr.bf16.mxu0 0
    %8394 = vmatmul.mubr.bf16.gmra.mrb[0].mxu0 %v7074
    %v8395 = vpop.f32.mrb[0].mxu0
    %v8396 = vadd.f32 %v8283, %v8395
    %v8397 = vpop.f32.mrb[0].mxu0
    %v8398 = vadd.f32 %v8285, %v8397
    %v8399 = vpop.f32.mrb[0].mxu0
    %v8400 = vadd.f32 %v8287, %v8399
    %v8401 = vpop.f32.mrb[0].mxu0
    %v8402 = vadd.f32 %v8289, %v8401
    %8403 = vmatprep.mubr.bf16.mxu0 0
    %8404 = vmatmul.mubr.bf16.gmra.mrb[0].mxu0 %v7077
    %v8405 = vpop.f32.mrb[0].mxu0
    %v8406 = vadd.f32 %v8293, %v8405
    %v8407 = vpop.f32.mrb[0].mxu0
    %v8408 = vadd.f32 %v8295, %v8407
    %v8409 = vpop.f32.mrb[0].mxu0
    %v8410 = vadd.f32 %v8297, %v8409
    %v8411 = vpop.f32.mrb[0].mxu0
    %v8412 = vadd.f32 %v8299, %v8411
    %8413 = vmatprep.mubr.bf16.mxu0 0
    %8414 = vmatmul.mubr.bf16.gmra.mrb[0].mxu0 %v7080
    %v8415 = vpop.f32.mrb[0].mxu0
    %v8416 = vadd.f32 %v8303, %v8415
    %v8417 = vpop.f32.mrb[0].mxu0
    %v8418 = vadd.f32 %v8305, %v8417
    %v8419 = vpop.f32.mrb[0].mxu0
    %v8420 = vadd.f32 %v8307, %v8419
    %v8421 = vpop.f32.mrb[0].mxu0
    %v8422 = vadd.f32 %v8309, %v8421
    %8423 = vmatprep.mubr.bf16.mxu0 0
    %8424 = vmatmul.mubr.bf16.gmra.mrb[0].mxu0 %v7083
    %v8425 = vpop.f32.mrb[0].mxu0
    %v8426 = vadd.f32 %v8313, %v8425
    %v8427 = vpop.f32.mrb[0].mxu0
    %v8428 = vadd.f32 %v8315, %v8427
    %v8429 = vpop.f32.mrb[0].mxu0
    %v8430 = vadd.f32 %v8317, %v8429
    %v8431 = vpop.f32.mrb[0].mxu0
    %v8432 = vadd.f32 %v8319, %v8431
    %8433 = vmatprep.mubr.bf16.mxu0 0
    %8434 = vmatmul.mubr.bf16.gmra.mrb[0].mxu0 %v7086
    %v8435 = vpop.f32.mrb[0].mxu0
    %v8436 = vadd.f32 %v8323, %v8435
    %v8437 = vpop.f32.mrb[0].mxu0
    %v8438 = vadd.f32 %v8325, %v8437
    %v8439 = vpop.f32.mrb[0].mxu0
    %v8440 = vadd.f32 %v8327, %v8439
    %v8441 = vpop.f32.mrb[0].mxu0
    %v8442 = vadd.f32 %v8329, %v8441
    %8443 = vdwg.mxu0
    %8444 = vmatprep.subr.bf16.mxu0 %v6287
    %8445 = vmatpush1.bf16.msra.mxu0 %v6286
    %8446 = vmatprep.subr.bf16.mxu0 %v6295
    %8447 = vmatpush1.bf16.msra.mxu0 %v6294
    %8448 = vmatprep.subr.bf16.mxu0 %v6303
    %8449 = vmatpush1.bf16.msra.mxu0 %v6302
    %8450 = vmatprep.subr.bf16.mxu0 %v6311
    %8451 = vmatpush1.bf16.msra.mxu0 %v6310
    %8452 = vmatprep.subr.bf16.mxu0 %v6319
    %8453 = vmatpush1.bf16.msra.mxu0 %v6318
    %8454 = vmatprep.subr.bf16.mxu0 %v6327
    %8455 = vmatpush1.bf16.msra.mxu0 %v6326
    %8456 = vmatprep.subr.bf16.mxu0 %v6335
    %8457 = vmatpush1.bf16.msra.mxu0 %v6334
    %8458 = vmatprep.subr.bf16.mxu0 %v6343
    %8459 = vmatpush1.bf16.msra.mxu0 %v6342
    %8460 = vmatprep.subr.bf16.mxu0 %v6351
    %8461 = vmatpush1.bf16.msra.mxu0 %v6350
    %8462 = vmatprep.subr.bf16.mxu0 %v6359
    %8463 = vmatpush1.bf16.msra.mxu0 %v6358
    %8464 = vmatprep.subr.bf16.mxu0 %v6367
    %8465 = vmatpush1.bf16.msra.mxu0 %v6366
    %8466 = vmatprep.subr.bf16.mxu0 %v6375
    %8467 = vmatpush1.bf16.msra.mxu0 %v6374
    %8468 = vmatprep.subr.bf16.mxu0 %v6383
    %8469 = vmatpush1.bf16.msra.mxu0 %v6382
    %8470 = vmatprep.subr.bf16.mxu0 %v6391
    %8471 = vmatpush1.bf16.msra.mxu0 %v6390
    %8472 = vmatprep.subr.bf16.mxu0 %v6399
    %8473 = vmatpush1.bf16.msra.mxu0 %v6398
    %8474 = vmatprep.subr.bf16.mxu0 %v6407
    %8475 = vmatpush1.bf16.msra.mxu0 %v6406
    %8476 = vmatprep.mubr.bf16.mxu0 %v4615
    %8477 = vmatmul.mubr.bf16.gmra.mrb[0].mxu0 %v4614
    %v8478 = vpop.f32.mrb[0].mxu0
    %v8479 = vadd.f32 %v5091, %v8478
    %v8480 = vpop.f32.mrb[0].mxu0
    %v8481 = vadd.f32 %v5095, %v8480
    %v8482 = vpop.f32.mrb[0].mxu0
    %v8483 = vadd.f32 %v5091, %v8482
    %v8484 = vpop.f32.mrb[0].mxu0
    %v8485 = vadd.f32 %v5095, %v8484
    %8486 = vmatprep.mubr.bf16.mxu0 %v4622
    %8487 = vmatmul.mubr.bf16.gmra.mrb[0].mxu0 %v4621
    %v8488 = vpop.f32.mrb[0].mxu0
    %v8489 = vadd.f32 %v5091, %v8488
    %v8490 = vpop.f32.mrb[0].mxu0
    %v8491 = vadd.f32 %v5095, %v8490
    %v8492 = vpop.f32.mrb[0].mxu0
    %v8493 = vadd.f32 %v5091, %v8492
    %v8494 = vpop.f32.mrb[0].mxu0
    %v8495 = vadd.f32 %v5095, %v8494
    %8496 = vmatprep.mubr.bf16.mxu0 %v4629
    %8497 = vmatmul.mubr.bf16.gmra.mrb[0].mxu0 %v4628
    %v8498 = vpop.f32.mrb[0].mxu0
    %v8499 = vadd.f32 %v5091, %v8498
    %v8500 = vpop.f32.mrb[0].mxu0
    %v8501 = vadd.f32 %v5095, %v8500
    %v8502 = vpop.f32.mrb[0].mxu0
    %v8503 = vadd.f32 %v5091, %v8502
    %v8504 = vpop.f32.mrb[0].mxu0
    %v8505 = vadd.f32 %v5095, %v8504
    %8506 = vmatprep.mubr.bf16.mxu0 %v4636
    %8507 = vmatmul.mubr.bf16.gmra.mrb[0].mxu0 %v4635
    %v8508 = vpop.f32.mrb[0].mxu0
    %v8509 = vadd.f32 %v5091, %v8508
    %v8510 = vpop.f32.mrb[0].mxu0
    %v8511 = vadd.f32 %v5095, %v8510
    %v8512 = vpop.f32.mrb[0].mxu0
    %v8513 = vadd.f32 %v5091, %v8512
    %v8514 = vpop.f32.mrb[0].mxu0
    %v8515 = vadd.f32 %v5095, %v8514
    %8516 = vmatprep.mubr.bf16.mxu0 %v4643
    %8517 = vmatmul.mubr.bf16.gmra.mrb[0].mxu0 %v4642
    %v8518 = vpop.f32.mrb[0].mxu0
    %v8519 = vadd.f32 %v5091, %v8518
    %v8520 = vpop.f32.mrb[0].mxu0
    %v8521 = vadd.f32 %v5095, %v8520
    %v8522 = vpop.f32.mrb[0].mxu0
    %v8523 = vadd.f32 %v5091, %v8522
    %v8524 = vpop.f32.mrb[0].mxu0
    %v8525 = vadd.f32 %v5095, %v8524
    %8526 = vmatprep.mubr.bf16.mxu0 %v4650
    %8527 = vmatmul.mubr.bf16.gmra.mrb[0].mxu0 %v4649
    %v8528 = vpop.f32.mrb[0].mxu0
    %v8529 = vadd.f32 %v5091, %v8528
    %v8530 = vpop.f32.mrb[0].mxu0
    %v8531 = vadd.f32 %v5095, %v8530
    %v8532 = vpop.f32.mrb[0].mxu0
    %v8533 = vadd.f32 %v5091, %v8532
    %v8534 = vpop.f32.mrb[0].mxu0
    %v8535 = vadd.f32 %v5095, %v8534
    %8536 = vmatprep.mubr.bf16.mxu0 %v4657
    %8537 = vmatmul.mubr.bf16.gmra.mrb[0].mxu0 %v4656
    %v8538 = vpop.f32.mrb[0].mxu0
    %v8539 = vadd.f32 %v5091, %v8538
    %v8540 = vpop.f32.mrb[0].mxu0
    %v8541 = vadd.f32 %v5095, %v8540
    %v8542 = vpop.f32.mrb[0].mxu0
    %v8543 = vadd.f32 %v5091, %v8542
    %v8544 = vpop.f32.mrb[0].mxu0
    %v8545 = vadd.f32 %v5095, %v8544
    %8546 = vmatprep.mubr.bf16.mxu0 %v4664
    %8547 = vmatmul.mubr.bf16.gmra.mrb[0].mxu0 %v4663
    %v8548 = vpop.f32.mrb[0].mxu0
    %v8549 = vadd.f32 %v5091, %v8548
    %v8550 = vpop.f32.mrb[0].mxu0
    %v8551 = vadd.f32 %v5095, %v8550
    %v8552 = vpop.f32.mrb[0].mxu0
    %v8553 = vadd.f32 %v5091, %v8552
    %v8554 = vpop.f32.mrb[0].mxu0
    %v8555 = vadd.f32 %v5095, %v8554
    %8556 = vdwg.mxu0
    %8557 = vmatprep.subr.bf16.mxu0 %v6415
    %8558 = vmatpush1.bf16.msra.mxu0 %v6414
    %8559 = vmatprep.subr.bf16.mxu0 %v6423
    %8560 = vmatpush1.bf16.msra.mxu0 %v6422
    %8561 = vmatprep.subr.bf16.mxu0 %v6431
    %8562 = vmatpush1.bf16.msra.mxu0 %v6430
    %8563 = vmatprep.subr.bf16.mxu0 %v6439
    %8564 = vmatpush1.bf16.msra.mxu0 %v6438
    %8565 = vmatprep.subr.bf16.mxu0 %v6447
    %8566 = vmatpush1.bf16.msra.mxu0 %v6446
    %8567 = vmatprep.subr.bf16.mxu0 %v6455
    %8568 = vmatpush1.bf16.msra.mxu0 %v6454
    %8569 = vmatprep.subr.bf16.mxu0 %v6463
    %8570 = vmatpush1.bf16.msra.mxu0 %v6462
    %8571 = vmatprep.subr.bf16.mxu0 %v6471
    %8572 = vmatpush1.bf16.msra.mxu0 %v6470
    %8573 = vmatprep.subr.bf16.mxu0 %v6479
    %8574 = vmatpush1.bf16.msra.mxu0 %v6478
    %8575 = vmatprep.subr.bf16.mxu0 %v6487
    %8576 = vmatpush1.bf16.msra.mxu0 %v6486
    %8577 = vmatprep.subr.bf16.mxu0 %v6495
    %8578 = vmatpush1.bf16.msra.mxu0 %v6494
    %8579 = vmatprep.subr.bf16.mxu0 %v6503
    %8580 = vmatpush1.bf16.msra.mxu0 %v6502
    %8581 = vmatprep.subr.bf16.mxu0 %v6511
    %8582 = vmatpush1.bf16.msra.mxu0 %v6510
    %8583 = vmatprep.subr.bf16.mxu0 %v6519
    %8584 = vmatpush1.bf16.msra.mxu0 %v6518
    %8585 = vmatprep.subr.bf16.mxu0 %v6527
    %8586 = vmatpush1.bf16.msra.mxu0 %v6526
    %8587 = vmatprep.subr.bf16.mxu0 %v6535
    %8588 = vmatpush1.bf16.msra.mxu0 %v6534
    %8589 = vmatprep.mubr.bf16.mxu0 %v4617
    %8590 = vmatmul.mubr.bf16.gmra.mrb[0].mxu0 %v4616
    %v8591 = vpop.f32.mrb[0].mxu0
    %v8592 = vadd.f32 %v8479, %v8591
    %v8593 = vpop.f32.mrb[0].mxu0
    %v8594 = vadd.f32 %v8481, %v8593
    %v8595 = vpop.f32.mrb[0].mxu0
    %v8596 = vadd.f32 %v8483, %v8595
    %v8597 = vpop.f32.mrb[0].mxu0
    %v8598 = vadd.f32 %v8485, %v8597
    %8599 = vmatprep.mubr.bf16.mxu0 %v4624
    %8600 = vmatmul.mubr.bf16.gmra.mrb[0].mxu0 %v4623
    %v8601 = vpop.f32.mrb[0].mxu0
    %v8602 = vadd.f32 %v8489, %v8601
    %v8603 = vpop.f32.mrb[0].mxu0
    %v8604 = vadd.f32 %v8491, %v8603
    %v8605 = vpop.f32.mrb[0].mxu0
    %v8606 = vadd.f32 %v8493, %v8605
    %v8607 = vpop.f32.mrb[0].mxu0
    %v8608 = vadd.f32 %v8495, %v8607
    %8609 = vmatprep.mubr.bf16.mxu0 %v4631
    %8610 = vmatmul.mubr.bf16.gmra.mrb[0].mxu0 %v4630
    %v8611 = vpop.f32.mrb[0].mxu0
    %v8612 = vadd.f32 %v8499, %v8611
    %v8613 = vpop.f32.mrb[0].mxu0
    %v8614 = vadd.f32 %v8501, %v8613
    %v8615 = vpop.f32.mrb[0].mxu0
    %v8616 = vadd.f32 %v8503, %v8615
    %v8617 = vpop.f32.mrb[0].mxu0
    %v8618 = vadd.f32 %v8505, %v8617
    %8619 = vmatprep.mubr.bf16.mxu0 %v4638
    %8620 = vmatmul.mubr.bf16.gmra.mrb[0].mxu0 %v4637
    %v8621 = vpop.f32.mrb[0].mxu0
    %v8622 = vadd.f32 %v8509, %v8621
    %v8623 = vpop.f32.mrb[0].mxu0
    %v8624 = vadd.f32 %v8511, %v8623
    %v8625 = vpop.f32.mrb[0].mxu0
    %v8626 = vadd.f32 %v8513, %v8625
    %v8627 = vpop.f32.mrb[0].mxu0
    %v8628 = vadd.f32 %v8515, %v8627
    %8629 = vmatprep.mubr.bf16.mxu0 %v4645
    %8630 = vmatmul.mubr.bf16.gmra.mrb[0].mxu0 %v4644
    %v8631 = vpop.f32.mrb[0].mxu0
    %v8632 = vadd.f32 %v8519, %v8631
    %v8633 = vpop.f32.mrb[0].mxu0
    %v8634 = vadd.f32 %v8521, %v8633
    %v8635 = vpop.f32.mrb[0].mxu0
    %v8636 = vadd.f32 %v8523, %v8635
    %v8637 = vpop.f32.mrb[0].mxu0
    %v8638 = vadd.f32 %v8525, %v8637
    %8639 = vmatprep.mubr.bf16.mxu0 %v4652
    %8640 = vmatmul.mubr.bf16.gmra.mrb[0].mxu0 %v4651
    %v8641 = vpop.f32.mrb[0].mxu0
    %v8642 = vadd.f32 %v8529, %v8641
    %v8643 = vpop.f32.mrb[0].mxu0
    %v8644 = vadd.f32 %v8531, %v8643
    %v8645 = vpop.f32.mrb[0].mxu0
    %v8646 = vadd.f32 %v8533, %v8645
    %v8647 = vpop.f32.mrb[0].mxu0
    %v8648 = vadd.f32 %v8535, %v8647
    %8649 = vmatprep.mubr.bf16.mxu0 %v4659
    %8650 = vmatmul.mubr.bf16.gmra.mrb[0].mxu0 %v4658
    %v8651 = vpop.f32.mrb[0].mxu0
    %v8652 = vadd.f32 %v8539, %v8651
    %v8653 = vpop.f32.mrb[0].mxu0
    %v8654 = vadd.f32 %v8541, %v8653
    %v8655 = vpop.f32.mrb[0].mxu0
    %v8656 = vadd.f32 %v8543, %v8655
    %v8657 = vpop.f32.mrb[0].mxu0
    %v8658 = vadd.f32 %v8545, %v8657
    %8659 = vmatprep.mubr.bf16.mxu0 %v4666
    %8660 = vmatmul.mubr.bf16.gmra.mrb[0].mxu0 %v4665
    %v8661 = vpop.f32.mrb[0].mxu0
    %v8662 = vadd.f32 %v8549, %v8661
    %v8663 = vpop.f32.mrb[0].mxu0
    %v8664 = vadd.f32 %v8551, %v8663
    %v8665 = vpop.f32.mrb[0].mxu0
    %v8666 = vadd.f32 %v8553, %v8665
    %v8667 = vpop.f32.mrb[0].mxu0
    %v8668 = vadd.f32 %v8555, %v8667
    %8669 = vdwg.mxu0
    %8670 = vmatprep.subr.bf16.mxu0 %v6543
    %8671 = vmatpush1.bf16.msra.mxu0 %v6542
    %8672 = vmatprep.subr.bf16.mxu0 %v6551
    %8673 = vmatpush1.bf16.msra.mxu0 %v6550
    %8674 = vmatprep.subr.bf16.mxu0 %v6559
    %8675 = vmatpush1.bf16.msra.mxu0 %v6558
    %8676 = vmatprep.subr.bf16.mxu0 %v6567
    %8677 = vmatpush1.bf16.msra.mxu0 %v6566
    %8678 = vmatprep.subr.bf16.mxu0 %v6575
    %8679 = vmatpush1.bf16.msra.mxu0 %v6574
    %8680 = vmatprep.subr.bf16.mxu0 %v6583
    %8681 = vmatpush1.bf16.msra.mxu0 %v6582
    %8682 = vmatprep.subr.bf16.mxu0 %v6591
    %8683 = vmatpush1.bf16.msra.mxu0 %v6590
    %8684 = vmatprep.subr.bf16.mxu0 %v6599
    %8685 = vmatpush1.bf16.msra.mxu0 %v6598
    %8686 = vmatprep.subr.bf16.mxu0 %v6607
    %8687 = vmatpush1.bf16.msra.mxu0 %v6606
    %8688 = vmatprep.subr.bf16.mxu0 %v6615
    %8689 = vmatpush1.bf16.msra.mxu0 %v6614
    %8690 = vmatprep.subr.bf16.mxu0 %v6623
    %8691 = vmatpush1.bf16.msra.mxu0 %v6622
    %8692 = vmatprep.subr.bf16.mxu0 %v6631
    %8693 = vmatpush1.bf16.msra.mxu0 %v6630
    %8694 = vmatprep.subr.bf16.mxu0 %v6639
    %8695 = vmatpush1.bf16.msra.mxu0 %v6638
    %8696 = vmatprep.subr.bf16.mxu0 %v6647
    %8697 = vmatpush1.bf16.msra.mxu0 %v6646
    %8698 = vmatprep.subr.bf16.mxu0 %v6655
    %8699 = vmatpush1.bf16.msra.mxu0 %v6654
    %8700 = vmatprep.subr.bf16.mxu0 %v6663
    %8701 = vmatpush1.bf16.msra.mxu0 %v6662
    %8702 = vmatprep.mubr.bf16.mxu0 %v4619
    %8703 = vmatmul.mubr.bf16.gmra.mrb[0].mxu0 %v4618
    %v8704 = vpop.f32.mrb[0].mxu0
    %v8705 = vadd.f32 %v8592, %v8704
    %v8706 = vpop.f32.mrb[0].mxu0
    %v8707 = vadd.f32 %v8594, %v8706
    %v8708 = vpop.f32.mrb[0].mxu0
    %v8709 = vadd.f32 %v8596, %v8708
    %v8710 = vpop.f32.mrb[0].mxu0
    %v8711 = vadd.f32 %v8598, %v8710
    %8712 = vmatprep.mubr.bf16.mxu0 %v4626
    %8713 = vmatmul.mubr.bf16.gmra.mrb[0].mxu0 %v4625
    %v8714 = vpop.f32.mrb[0].mxu0
    %v8715 = vadd.f32 %v8602, %v8714
    %v8716 = vpop.f32.mrb[0].mxu0
    %v8717 = vadd.f32 %v8604, %v8716
    %v8718 = vpop.f32.mrb[0].mxu0
    %v8719 = vadd.f32 %v8606, %v8718
    %v8720 = vpop.f32.mrb[0].mxu0
    %v8721 = vadd.f32 %v8608, %v8720
    %8722 = vmatprep.mubr.bf16.mxu0 %v4633
    %8723 = vmatmul.mubr.bf16.gmra.mrb[0].mxu0 %v4632
    %v8724 = vpop.f32.mrb[0].mxu0
    %v8725 = vadd.f32 %v8612, %v8724
    %v8726 = vpop.f32.mrb[0].mxu0
    %v8727 = vadd.f32 %v8614, %v8726
    %v8728 = vpop.f32.mrb[0].mxu0
    %v8729 = vadd.f32 %v8616, %v8728
    %v8730 = vpop.f32.mrb[0].mxu0
    %v8731 = vadd.f32 %v8618, %v8730
    %8732 = vmatprep.mubr.bf16.mxu0 %v4640
    %8733 = vmatmul.mubr.bf16.gmra.mrb[0].mxu0 %v4639
    %v8734 = vpop.f32.mrb[0].mxu0
    %v8735 = vadd.f32 %v8622, %v8734
    %v8736 = vpop.f32.mrb[0].mxu0
    %v8737 = vadd.f32 %v8624, %v8736
    %v8738 = vpop.f32.mrb[0].mxu0
    %v8739 = vadd.f32 %v8626, %v8738
    %v8740 = vpop.f32.mrb[0].mxu0
    %v8741 = vadd.f32 %v8628, %v8740
    %8742 = vmatprep.mubr.bf16.mxu0 %v4647
    %8743 = vmatmul.mubr.bf16.gmra.mrb[0].mxu0 %v4646
    %v8744 = vpop.f32.mrb[0].mxu0
    %v8745 = vadd.f32 %v8632, %v8744
    %v8746 = vpop.f32.mrb[0].mxu0
    %v8747 = vadd.f32 %v8634, %v8746
    %v8748 = vpop.f32.mrb[0].mxu0
    %v8749 = vadd.f32 %v8636, %v8748
    %v8750 = vpop.f32.mrb[0].mxu0
    %v8751 = vadd.f32 %v8638, %v8750
    %8752 = vmatprep.mubr.bf16.mxu0 %v4654
    %8753 = vmatmul.mubr.bf16.gmra.mrb[0].mxu0 %v4653
    %v8754 = vpop.f32.mrb[0].mxu0
    %v8755 = vadd.f32 %v8642, %v8754
    %v8756 = vpop.f32.mrb[0].mxu0
    %v8757 = vadd.f32 %v8644, %v8756
    %v8758 = vpop.f32.mrb[0].mxu0
    %v8759 = vadd.f32 %v8646, %v8758
    %v8760 = vpop.f32.mrb[0].mxu0
    %v8761 = vadd.f32 %v8648, %v8760
    %8762 = vmatprep.mubr.bf16.mxu0 %v4661
    %8763 = vmatmul.mubr.bf16.gmra.mrb[0].mxu0 %v4660
    %v8764 = vpop.f32.mrb[0].mxu0
    %v8765 = vadd.f32 %v8652, %v8764
    %v8766 = vpop.f32.mrb[0].mxu0
    %v8767 = vadd.f32 %v8654, %v8766
    %v8768 = vpop.f32.mrb[0].mxu0
    %v8769 = vadd.f32 %v8656, %v8768
    %v8770 = vpop.f32.mrb[0].mxu0
    %v8771 = vadd.f32 %v8658, %v8770
    %8772 = vmatprep.mubr.bf16.mxu0 %v4668
    %8773 = vmatmul.mubr.bf16.gmra.mrb[0].mxu0 %v4667
    %v8774 = vpop.f32.mrb[0].mxu0
    %v8775 = vadd.f32 %v8662, %v8774
    %v8776 = vpop.f32.mrb[0].mxu0
    %v8777 = vadd.f32 %v8664, %v8776
    %v8778 = vpop.f32.mrb[0].mxu0
    %v8779 = vadd.f32 %v8666, %v8778
    %v8780 = vpop.f32.mrb[0].mxu0
    %v8781 = vadd.f32 %v8668, %v8780
    %8782 = vdwg.mxu0
    %8783 = vmatprep.subr.bf16.mxu0 %v6671
    %8784 = vmatpush1.bf16.msra.mxu0 %v6670
    %8785 = vmatprep.subr.bf16.mxu0 0
    %8786 = vmatpush1.bf16.msra.mxu0 0
    %8787 = vmatprep.subr.bf16.mxu0 0
    %8788 = vmatpush1.bf16.msra.mxu0 0
    %8789 = vmatprep.subr.bf16.mxu0 0
    %8790 = vmatpush1.bf16.msra.mxu0 0
    %8791 = vmatprep.subr.bf16.mxu0 0
    %8792 = vmatpush1.bf16.msra.mxu0 0
    %8793 = vmatprep.subr.bf16.mxu0 0
    %8794 = vmatpush1.bf16.msra.mxu0 0
    %8795 = vmatprep.subr.bf16.mxu0 0
    %8796 = vmatpush1.bf16.msra.mxu0 0
    %8797 = vmatprep.subr.bf16.mxu0 0
    %8798 = vmatpush1.bf16.msra.mxu0 0
    %8799 = vmatprep.subr.bf16.mxu0 0
    %8800 = vmatpush1.bf16.msra.mxu0 0
    %8801 = vmatprep.subr.bf16.mxu0 0
    %8802 = vmatpush1.bf16.msra.mxu0 0
    %8803 = vmatprep.subr.bf16.mxu0 0
    %8804 = vmatpush1.bf16.msra.mxu0 0
    %8805 = vmatprep.subr.bf16.mxu0 0
    %8806 = vmatpush1.bf16.msra.mxu0 0
    %8807 = vmatprep.subr.bf16.mxu0 0
    %8808 = vmatpush1.bf16.msra.mxu0 0
    %8809 = vmatprep.subr.bf16.mxu0 0
    %8810 = vmatpush1.bf16.msra.mxu0 0
    %8811 = vmatprep.subr.bf16.mxu0 0
    %8812 = vmatpush1.bf16.msra.mxu0 0
    %8813 = vmatprep.subr.bf16.mxu0 0
    %8814 = vmatpush1.bf16.msra.mxu0 0
    %8815 = vmatprep.mubr.bf16.mxu0 0
    %8816 = vmatmul.mubr.bf16.gmra.mrb[0].mxu0 %v7065
    %v8817 = vpop.f32.mrb[0].mxu0
    %v8818 = vadd.f32 %v8705, %v8817
    %v8819 = vpop.f32.mrb[0].mxu0
    %v8820 = vadd.f32 %v8707, %v8819
    %v8821 = vpop.f32.mrb[0].mxu0
    %v8822 = vadd.f32 %v8709, %v8821
    %v8823 = vpop.f32.mrb[0].mxu0
    %v8824 = vadd.f32 %v8711, %v8823
    %8825 = vmatprep.mubr.bf16.mxu0 0
    %8826 = vmatmul.mubr.bf16.gmra.mrb[0].mxu0 %v7068
    %v8827 = vpop.f32.mrb[0].mxu0
    %v8828 = vadd.f32 %v8715, %v8827
    %v8829 = vpop.f32.mrb[0].mxu0
    %v8830 = vadd.f32 %v8717, %v8829
    %v8831 = vpop.f32.mrb[0].mxu0
    %v8832 = vadd.f32 %v8719, %v8831
    %v8833 = vpop.f32.mrb[0].mxu0
    %v8834 = vadd.f32 %v8721, %v8833
    %8835 = vmatprep.mubr.bf16.mxu0 0
    %8836 = vmatmul.mubr.bf16.gmra.mrb[0].mxu0 %v7071
    %v8837 = vpop.f32.mrb[0].mxu0
    %v8838 = vadd.f32 %v8725, %v8837
    %v8839 = vpop.f32.mrb[0].mxu0
    %v8840 = vadd.f32 %v8727, %v8839
    %v8841 = vpop.f32.mrb[0].mxu0
    %v8842 = vadd.f32 %v8729, %v8841
    %v8843 = vpop.f32.mrb[0].mxu0
    %v8844 = vadd.f32 %v8731, %v8843
    %8845 = vmatprep.mubr.bf16.mxu0 0
    %8846 = vmatmul.mubr.bf16.gmra.mrb[0].mxu0 %v7074
    %v8847 = vpop.f32.mrb[0].mxu0
    %v8848 = vadd.f32 %v8735, %v8847
    %v8849 = vpop.f32.mrb[0].mxu0
    %v8850 = vadd.f32 %v8737, %v8849
    %v8851 = vpop.f32.mrb[0].mxu0
    %v8852 = vadd.f32 %v8739, %v8851
    %v8853 = vpop.f32.mrb[0].mxu0
    %v8854 = vadd.f32 %v8741, %v8853
    %8855 = vmatprep.mubr.bf16.mxu0 0
    %8856 = vmatmul.mubr.bf16.gmra.mrb[0].mxu0 %v7077
    %v8857 = vpop.f32.mrb[0].mxu0
    %v8858 = vadd.f32 %v8745, %v8857
    %v8859 = vpop.f32.mrb[0].mxu0
    %v8860 = vadd.f32 %v8747, %v8859
    %v8861 = vpop.f32.mrb[0].mxu0
    %v8862 = vadd.f32 %v8749, %v8861
    %v8863 = vpop.f32.mrb[0].mxu0
    %v8864 = vadd.f32 %v8751, %v8863
    %8865 = vmatprep.mubr.bf16.mxu0 0
    %8866 = vmatmul.mubr.bf16.gmra.mrb[0].mxu0 %v7080
    %v8867 = vpop.f32.mrb[0].mxu0
    %v8868 = vadd.f32 %v8755, %v8867
    %v8869 = vpop.f32.mrb[0].mxu0
    %v8870 = vadd.f32 %v8757, %v8869
    %v8871 = vpop.f32.mrb[0].mxu0
    %v8872 = vadd.f32 %v8759, %v8871
    %v8873 = vpop.f32.mrb[0].mxu0
    %v8874 = vadd.f32 %v8761, %v8873
    %8875 = vmatprep.mubr.bf16.mxu0 0
    %8876 = vmatmul.mubr.bf16.gmra.mrb[0].mxu0 %v7083
    %v8877 = vpop.f32.mrb[0].mxu0
    %v8878 = vadd.f32 %v8765, %v8877
    %v8879 = vpop.f32.mrb[0].mxu0
    %v8880 = vadd.f32 %v8767, %v8879
    %v8881 = vpop.f32.mrb[0].mxu0
    %v8882 = vadd.f32 %v8769, %v8881
    %v8883 = vpop.f32.mrb[0].mxu0
    %v8884 = vadd.f32 %v8771, %v8883
    %8885 = vmatprep.mubr.bf16.mxu0 0
    %8886 = vmatmul.mubr.bf16.gmra.mrb[0].mxu0 %v7086
    %v8887 = vpop.f32.mrb[0].mxu0
    %v8888 = vadd.f32 %v8775, %v8887
    %v8889 = vpop.f32.mrb[0].mxu0
    %v8890 = vadd.f32 %v8777, %v8889
    %v8891 = vpop.f32.mrb[0].mxu0
    %v8892 = vadd.f32 %v8779, %v8891
    %v8893 = vpop.f32.mrb[0].mxu0
    %v8894 = vadd.f32 %v8781, %v8893
    %8895 = vdwg.mxu0
    %v8896 = vmax.f32 %v7462, 0.0
    %v8897 = vmax.f32 %v7464, 0.0
    %v8898 = vmax.f32 %v7914, 0.0
    %v8899 = vmax.f32 %v7916, 0.0
    %v8900 = vmax.f32 %v8366, 0.0
    %v8901 = vmax.f32 %v8368, 0.0
    %v8902 = vmax.f32 %v8818, 0.0
    %v8903 = vmax.f32 %v8820, 0.0
    %v8904 = vmax.f32 %v7466, 0.0
    %v8905 = vmax.f32 %v7468, 0.0
    %v8906 = vmax.f32 %v7918, 0.0
    %v8907 = vmax.f32 %v7920, 0.0
    %v8908 = vmax.f32 %v8370, 0.0
    %v8909 = vmax.f32 %v8372, 0.0
    %v8910 = vmax.f32 %v8822, 0.0
    %v8911 = vmax.f32 %v8824, 0.0
    %v8912 = vmax.f32 %v7472, 0.0
    %v8913 = vmax.f32 %v7474, 0.0
    %v8914 = vmax.f32 %v7924, 0.0
    %v8915 = vmax.f32 %v7926, 0.0
    %v8916 = vmax.f32 %v8376, 0.0
    %v8917 = vmax.f32 %v8378, 0.0
    %v8918 = vmax.f32 %v8828, 0.0
    %v8919 = vmax.f32 %v8830, 0.0
    %v8920 = vmax.f32 %v7476, 0.0
    %v8921 = vmax.f32 %v7478, 0.0
    %v8922 = vmax.f32 %v7928, 0.0
    %v8923 = vmax.f32 %v7930, 0.0
    %v8924 = vmax.f32 %v8380, 0.0
    %v8925 = vmax.f32 %v8382, 0.0
    %v8926 = vmax.f32 %v8832, 0.0
    %v8927 = vmax.f32 %v8834, 0.0
    %v8928 = vmax.f32 %v7482, 0.0
    %v8929 = vmax.f32 %v7484, 0.0
    %v8930 = vmax.f32 %v7934, 0.0
    %v8931 = vmax.f32 %v7936, 0.0
    %v8932 = vmax.f32 %v8386, 0.0
    %v8933 = vmax.f32 %v8388, 0.0
    %v8934 = vmax.f32 %v8838, 0.0
    %v8935 = vmax.f32 %v8840, 0.0
    %v8936 = vmax.f32 %v7486, 0.0
    %v8937 = vmax.f32 %v7488, 0.0
    %v8938 = vmax.f32 %v7938, 0.0
    %v8939 = vmax.f32 %v7940, 0.0
    %v8940 = vmax.f32 %v8390, 0.0
    %v8941 = vmax.f32 %v8392, 0.0
    %v8942 = vmax.f32 %v8842, 0.0
    %v8943 = vmax.f32 %v8844, 0.0
    %v8944 = vmax.f32 %v7492, 0.0
    %v8945 = vmax.f32 %v7494, 0.0
    %v8946 = vmax.f32 %v7944, 0.0
    %v8947 = vmax.f32 %v7946, 0.0
    %v8948 = vmax.f32 %v8396, 0.0
    %v8949 = vmax.f32 %v8398, 0.0
    %v8950 = vmax.f32 %v8848, 0.0
    %v8951 = vmax.f32 %v8850, 0.0
    %v8952 = vmax.f32 %v7496, 0.0
    %v8953 = vmax.f32 %v7498, 0.0
    %v8954 = vmax.f32 %v7948, 0.0
    %v8955 = vmax.f32 %v7950, 0.0
    %v8956 = vmax.f32 %v8400, 0.0
    %v8957 = vmax.f32 %v8402, 0.0
    %v8958 = vmax.f32 %v8852, 0.0
    %v8959 = vmax.f32 %v8854, 0.0
    %v8960 = vmax.f32 %v7502, 0.0
    %v8961 = vmax.f32 %v7504, 0.0
    %v8962 = vmax.f32 %v7954, 0.0
    %v8963 = vmax.f32 %v7956, 0.0
    %v8964 = vmax.f32 %v8406, 0.0
    %v8965 = vmax.f32 %v8408, 0.0
    %v8966 = vmax.f32 %v8858, 0.0
    %v8967 = vmax.f32 %v8860, 0.0
    %v8968 = vmax.f32 %v7506, 0.0
    %v8969 = vmax.f32 %v7508, 0.0
    %v8970 = vmax.f32 %v7958, 0.0
    %v8971 = vmax.f32 %v7960, 0.0
    %v8972 = vmax.f32 %v8410, 0.0
    %v8973 = vmax.f32 %v8412, 0.0
    %v8974 = vmax.f32 %v8862, 0.0
    %v8975 = vmax.f32 %v8864, 0.0
    %v8976 = vmax.f32 %v7512, 0.0
    %v8977 = vmax.f32 %v7514, 0.0
    %v8978 = vmax.f32 %v7964, 0.0
    %v8979 = vmax.f32 %v7966, 0.0
    %v8980 = vmax.f32 %v8416, 0.0
    %v8981 = vmax.f32 %v8418, 0.0
    %v8982 = vmax.f32 %v8868, 0.0
    %v8983 = vmax.f32 %v8870, 0.0
    %v8984 = vmax.f32 %v7516, 0.0
    %v8985 = vmax.f32 %v7518, 0.0
    %v8986 = vmax.f32 %v7968, 0.0
    %v8987 = vmax.f32 %v7970, 0.0
    %v8988 = vmax.f32 %v8420, 0.0
    %v8989 = vmax.f32 %v8422, 0.0
    %v8990 = vmax.f32 %v8872, 0.0
    %v8991 = vmax.f32 %v8874, 0.0
    %v8992 = vmax.f32 %v7522, 0.0
    %v8993 = vmax.f32 %v7524, 0.0
    %v8994 = vmax.f32 %v7974, 0.0
    %v8995 = vmax.f32 %v7976, 0.0
    %v8996 = vmax.f32 %v8426, 0.0
    %v8997 = vmax.f32 %v8428, 0.0
    %v8998 = vmax.f32 %v8878, 0.0
    %v8999 = vmax.f32 %v8880, 0.0
    %v9000 = vmax.f32 %v7526, 0.0
    %v9001 = vmax.f32 %v7528, 0.0
    %v9002 = vmax.f32 %v7978, 0.0
    %v9003 = vmax.f32 %v7980, 0.0
    %v9004 = vmax.f32 %v8430, 0.0
    %v9005 = vmax.f32 %v8432, 0.0
    %v9006 = vmax.f32 %v8882, 0.0
    %v9007 = vmax.f32 %v8884, 0.0
    %v9008 = vmax.f32 %v7532, 0.0
    %v9009 = vmax.f32 %v7534, 0.0
    %v9010 = vmax.f32 %v7984, 0.0
    %v9011 = vmax.f32 %v7986, 0.0
    %v9012 = vmax.f32 %v8436, 0.0
    %v9013 = vmax.f32 %v8438, 0.0
    %v9014 = vmax.f32 %v8888, 0.0
    %v9015 = vmax.f32 %v8890, 0.0
    %v9016 = vmax.f32 %v7536, 0.0
    %v9017 = vmax.f32 %v7538, 0.0
    %v9018 = vmax.f32 %v7988, 0.0
    %v9019 = vmax.f32 %v7990, 0.0
    %v9020 = vmax.f32 %v8440, 0.0
    %v9021 = vmax.f32 %v8442, 0.0
    %v9022 = vmax.f32 %v8892, 0.0
    %v9023 = vmax.f32 %v8894, 0.0
    %v9024 = vpack.c.bf16 %v8904, %v8896
    %v9025 = vpack.c.bf16 %v8905, %v8897
    %v9026 = vpack.c.bf16 %v8906, %v8898
    %v9027 = vpack.c.bf16 %v8907, %v8899
    %v9028 = vpack.c.bf16 %v8908, %v8900
    %v9029 = vpack.c.bf16 %v8909, %v8901
    %v9030 = vpack.c.bf16 %v8910, %v8902
    %v9031 = vpack.c.bf16 %v8911, %v8903
    %v9032 = vpack.c.bf16 %v8920, %v8912
    %v9033 = vpack.c.bf16 %v8921, %v8913
    %v9034 = vpack.c.bf16 %v8922, %v8914
    %v9035 = vpack.c.bf16 %v8923, %v8915
    %v9036 = vpack.c.bf16 %v8924, %v8916
    %v9037 = vpack.c.bf16 %v8925, %v8917
    %v9038 = vpack.c.bf16 %v8926, %v8918
    %v9039 = vpack.c.bf16 %v8927, %v8919
    %v9040 = vpack.c.bf16 %v8936, %v8928
    %v9041 = vpack.c.bf16 %v8937, %v8929
    %v9042 = vpack.c.bf16 %v8938, %v8930
    %v9043 = vpack.c.bf16 %v8939, %v8931
    %v9044 = vpack.c.bf16 %v8940, %v8932
    %v9045 = vpack.c.bf16 %v8941, %v8933
    %v9046 = vpack.c.bf16 %v8942, %v8934
    %v9047 = vpack.c.bf16 %v8943, %v8935
    %v9048 = vpack.c.bf16 %v8952, %v8944
    %v9049 = vpack.c.bf16 %v8953, %v8945
    %v9050 = vpack.c.bf16 %v8954, %v8946
    %v9051 = vpack.c.bf16 %v8955, %v8947
    %v9052 = vpack.c.bf16 %v8956, %v8948
    %v9053 = vpack.c.bf16 %v8957, %v8949
    %v9054 = vpack.c.bf16 %v8958, %v8950
    %v9055 = vpack.c.bf16 %v8959, %v8951
    %v9056 = vpack.c.bf16 %v8968, %v8960
    %v9057 = vpack.c.bf16 %v8969, %v8961
    %v9058 = vpack.c.bf16 %v8970, %v8962
    %v9059 = vpack.c.bf16 %v8971, %v8963
    %v9060 = vpack.c.bf16 %v8972, %v8964
    %v9061 = vpack.c.bf16 %v8973, %v8965
    %v9062 = vpack.c.bf16 %v8974, %v8966
    %v9063 = vpack.c.bf16 %v8975, %v8967
    %v9064 = vpack.c.bf16 %v8984, %v8976
    %v9065 = vpack.c.bf16 %v8985, %v8977
    %v9066 = vpack.c.bf16 %v8986, %v8978
    %v9067 = vpack.c.bf16 %v8987, %v8979
    %v9068 = vpack.c.bf16 %v8988, %v8980
    %v9069 = vpack.c.bf16 %v8989, %v8981
    %v9070 = vpack.c.bf16 %v8990, %v8982
    %v9071 = vpack.c.bf16 %v8991, %v8983
    %v9072 = vpack.c.bf16 %v9000, %v8992
    %v9073 = vpack.c.bf16 %v9001, %v8993
    %v9074 = vpack.c.bf16 %v9002, %v8994
    %v9075 = vpack.c.bf16 %v9003, %v8995
    %v9076 = vpack.c.bf16 %v9004, %v8996
    %v9077 = vpack.c.bf16 %v9005, %v8997
    %v9078 = vpack.c.bf16 %v9006, %v8998
    %v9079 = vpack.c.bf16 %v9007, %v8999
    %v9080 = vpack.c.bf16 %v9016, %v9008
    %v9081 = vpack.c.bf16 %v9017, %v9009
    %v9082 = vpack.c.bf16 %v9018, %v9010
    %v9083 = vpack.c.bf16 %v9019, %v9011
    %v9084 = vpack.c.bf16 %v9020, %v9012
    %v9085 = vpack.c.bf16 %v9021, %v9013
    %v9086 = vpack.c.bf16 %v9022, %v9014
    %v9087 = vpack.c.bf16 %v9023, %v9015
    %v9088 = vld [vmem:[#allocation9] sm:$0xf]
    %v9089 = vld [vmem:[#allocation9 + $0x4] sm:$0xf]
    %v9090 = vld [vmem:[#allocation9 + $0x8] sm:$0xf]
    %v9091 = vld [vmem:[#allocation9 + $0xc] sm:$0xf]
    %v9092 = vld [vmem:[#allocation9 + $0x10] sm:$0xf]
    %v9093 = vld [vmem:[#allocation9 + $0x14] sm:$0xf]
    %v9094 = vld [vmem:[#allocation9 + $0x18] sm:$0xf]
    %v9095 = vld [vmem:[#allocation9 + $0x1c] sm:$0xf]
    %v9096 = vld [vmem:[#allocation9 + $0x20] sm:$0xf]
    %v9097 = vld [vmem:[#allocation9 + $0x24] sm:$0xf]
    %v9098 = vld [vmem:[#allocation9 + $0x28] sm:$0xf]
    %v9099 = vld [vmem:[#allocation9 + $0x2c] sm:$0xf]
    %v9100 = vld [vmem:[#allocation9 + $0x30] sm:$0xf]
    %v9101 = vld [vmem:[#allocation9 + $0x34] sm:$0xf]
    %v9102 = vld [vmem:[#allocation9 + $0x38] sm:$0xf]
    %v9103 = vld [vmem:[#allocation9 + $0x3c] sm:$0xf]
    %v9104 = vld [vmem:[#allocation9 + $0x40] sm:$0xf]
    %v9105 = vld [vmem:[#allocation9 + $0x44] sm:$0xf]
    %v9106 = vld [vmem:[#allocation9 + $0x48] sm:$0xf]
    %v9107 = vld [vmem:[#allocation9 + $0x4c] sm:$0xf]
    %v9108 = vld [vmem:[#allocation9 + $0x50] sm:$0xf]
    %v9109 = vld [vmem:[#allocation9 + $0x54] sm:$0xf]
    %v9110 = vld [vmem:[#allocation9 + $0x58] sm:$0xf]
    %v9111 = vld [vmem:[#allocation9 + $0x5c] sm:$0xf]
    %v9112 = vld [vmem:[#allocation9 + $0x60] sm:$0xf]
    %v9113 = vld [vmem:[#allocation9 + $0x64] sm:$0xf]
    %v9114 = vld [vmem:[#allocation9 + $0x68] sm:$0xf]
    %v9115 = vld [vmem:[#allocation9 + $0x6c] sm:$0xf]
    %v9116 = vld [vmem:[#allocation9 + $0x70] sm:$0xf]
    %v9117 = vld [vmem:[#allocation9 + $0x74] sm:$0xf]
    %v9118 = vld [vmem:[#allocation9 + $0x78] sm:$0xf]
    %v9119 = vld [vmem:[#allocation9 + $0x7c] sm:$0xf]
    %v9120 = vld [vmem:[#allocation9 + $0x80] sm:$0xf]
    %v9121 = vld [vmem:[#allocation9 + $0x84] sm:$0xf]
    %v9122 = vld [vmem:[#allocation9 + $0x88] sm:$0xf]
    %v9123 = vld [vmem:[#allocation9 + $0x8c] sm:$0xf]
    %v9124 = vld [vmem:[#allocation9 + $0x90] sm:$0xf]
    %v9125 = vld [vmem:[#allocation9 + $0x94] sm:$0xf]
    %v9126 = vld [vmem:[#allocation9 + $0x98] sm:$0xf]
    %v9127 = vld [vmem:[#allocation9 + $0x9c] sm:$0xf]
    %v9128 = vld [vmem:[#allocation9 + $0xa0] sm:$0xf]
    %v9129 = vld [vmem:[#allocation9 + $0xa4] sm:$0xf]
    %v9130 = vld [vmem:[#allocation9 + $0xa8] sm:$0xf]
    %v9131 = vld [vmem:[#allocation9 + $0xac] sm:$0xf]
    %v9132 = vld [vmem:[#allocation9 + $0xb0] sm:$0xf]
    %v9133 = vld [vmem:[#allocation9 + $0xb4] sm:$0xf]
    %v9134 = vld [vmem:[#allocation9 + $0xb8] sm:$0xf]
    %v9135 = vld [vmem:[#allocation9 + $0xbc] sm:$0xf]
    %v9136 = vld [vmem:[#allocation9 + $0xc0] sm:$0xf]
    %v9137 = vld [vmem:[#allocation9 + $0xc4] sm:$0xf]
    %v9138 = vld [vmem:[#allocation9 + $0xc8] sm:$0xf]
    %v9139 = vld [vmem:[#allocation9 + $0xcc] sm:$0xf]
    %v9140 = vld [vmem:[#allocation9 + $0xd0] sm:$0xf]
    %v9141 = vld [vmem:[#allocation9 + $0xd4] sm:$0xf]
    %v9142 = vld [vmem:[#allocation9 + $0xd8] sm:$0xf]
    %v9143 = vld [vmem:[#allocation9 + $0xdc] sm:$0xf]
    %v9144 = vld [vmem:[#allocation9 + $0xe0] sm:$0xf]
    %v9145 = vld [vmem:[#allocation9 + $0xe4] sm:$0xf]
    %v9146 = vld [vmem:[#allocation9 + $0xe8] sm:$0xf]
    %v9147 = vld [vmem:[#allocation9 + $0xec] sm:$0xf]
    %v9148 = vld [vmem:[#allocation9 + $0xf0] sm:$0xf]
    %v9149 = vld [vmem:[#allocation9 + $0xf4] sm:$0xf]
    %v9150 = vld [vmem:[#allocation9 + $0xf8] sm:$0xf]
    %v9151 = vld [vmem:[#allocation9 + $0xfc] sm:$0xf]
    %v9152 = vld [vmem:[#allocation9 + $0x100] sm:$0xf]
    %v9153 = vld [vmem:[#allocation9 + $0x104] sm:$0xf]
    %v9154 = vld [vmem:[#allocation9 + $0x108] sm:$0xf]
    %v9155 = vld [vmem:[#allocation9 + $0x10c] sm:$0xf]
    %v9156 = vld [vmem:[#allocation9 + $0x110] sm:$0xf]
    %v9157 = vld [vmem:[#allocation9 + $0x114] sm:$0xf]
    %v9158 = vld [vmem:[#allocation9 + $0x118] sm:$0xf]
    %v9159 = vld [vmem:[#allocation9 + $0x11c] sm:$0xf]
    %v9160 = vld [vmem:[#allocation9 + $0x120] sm:$0xf]
    %v9161 = vld [vmem:[#allocation9 + $0x124] sm:$0xf]
    %v9162 = vld [vmem:[#allocation9 + $0x128] sm:$0xf]
    %v9163 = vld [vmem:[#allocation9 + $0x12c] sm:$0xf]
    %v9164 = vld [vmem:[#allocation9 + $0x130] sm:$0xf]
    %v9165 = vld [vmem:[#allocation9 + $0x134] sm:$0xf]
    %v9166 = vld [vmem:[#allocation9 + $0x138] sm:$0xf]
    %v9167 = vld [vmem:[#allocation9 + $0x13c] sm:$0xf]
    %v9168 = vld [vmem:[#allocation9 + $0x140] sm:$0xf]
    %v9169 = vld [vmem:[#allocation9 + $0x144] sm:$0xf]
    %v9170 = vld [vmem:[#allocation9 + $0x148] sm:$0xf]
    %v9171 = vld [vmem:[#allocation9 + $0x14c] sm:$0xf]
    %v9172 = vld [vmem:[#allocation9 + $0x150] sm:$0xf]
    %v9173 = vld [vmem:[#allocation9 + $0x154] sm:$0xf]
    %v9174 = vld [vmem:[#allocation9 + $0x158] sm:$0xf]
    %v9175 = vld [vmem:[#allocation9 + $0x15c] sm:$0xf]
    %v9176 = vld [vmem:[#allocation9 + $0x160] sm:$0xf]
    %v9177 = vld [vmem:[#allocation9 + $0x164] sm:$0xf]
    %v9178 = vld [vmem:[#allocation9 + $0x168] sm:$0xf]
    %v9179 = vld [vmem:[#allocation9 + $0x16c] sm:$0xf]
    %v9180 = vld [vmem:[#allocation9 + $0x170] sm:$0xf]
    %v9181 = vld [vmem:[#allocation9 + $0x174] sm:$0xf]
    %v9182 = vld [vmem:[#allocation9 + $0x178] sm:$0xf]
    %v9183 = vld [vmem:[#allocation9 + $0x17c] sm:$0xf]
    %v9184 = vld [vmem:[#allocation9 + $0x180] sm:$0xf]
    %v9185 = vld [vmem:[#allocation9 + $0x184] sm:$0xf]
    %v9186 = vld [vmem:[#allocation9 + $0x188] sm:$0xf]
    %v9187 = vld [vmem:[#allocation9 + $0x18c] sm:$0xf]
    %v9188 = vld [vmem:[#allocation9 + $0x190] sm:$0xf]
    %v9189 = vld [vmem:[#allocation9 + $0x194] sm:$0xf]
    %v9190 = vld [vmem:[#allocation9 + $0x198] sm:$0xf]
    %v9191 = vld [vmem:[#allocation9 + $0x19c] sm:$0xf]
    %v9192 = vld [vmem:[#allocation9 + $0x1a0] sm:$0xf]
    %v9193 = vld [vmem:[#allocation9 + $0x1a4] sm:$0xf]
    %v9194 = vld [vmem:[#allocation9 + $0x1a8] sm:$0xf]
    %v9195 = vld [vmem:[#allocation9 + $0x1ac] sm:$0xf]
    %v9196 = vld [vmem:[#allocation9 + $0x1b0] sm:$0xf]
    %v9197 = vld [vmem:[#allocation9 + $0x1b4] sm:$0xf]
    %v9198 = vld [vmem:[#allocation9 + $0x1b8] sm:$0xf]
    %v9199 = vld [vmem:[#allocation9 + $0x1bc] sm:$0xf]
    %v9200 = vld [vmem:[#allocation9 + $0x1c0] sm:$0xf]
    %v9201 = vld [vmem:[#allocation9 + $0x1c4] sm:$0xf]
    %v9202 = vld [vmem:[#allocation9 + $0x1c8] sm:$0xf]
    %v9203 = vld [vmem:[#allocation9 + $0x1cc] sm:$0xf]
    %v9204 = vld [vmem:[#allocation9 + $0x1d0] sm:$0xf]
    %v9205 = vld [vmem:[#allocation9 + $0x1d4] sm:$0xf]
    %v9206 = vld [vmem:[#allocation9 + $0x1d8] sm:$0xf]
    %v9207 = vld [vmem:[#allocation9 + $0x1dc] sm:$0xf]
    %v9208 = vld [vmem:[#allocation9 + $0x1e0] sm:$0xf]
    %v9209 = vld [vmem:[#allocation9 + $0x1e4] sm:$0xf]
    %v9210 = vld [vmem:[#allocation9 + $0x1e8] sm:$0xf]
    %v9211 = vld [vmem:[#allocation9 + $0x1ec] sm:$0xf]
    %v9212 = vld [vmem:[#allocation9 + $0x1f0] sm:$0xf]
    %v9213 = vld [vmem:[#allocation9 + $0x1f4] sm:$0xf]
    %v9214 = vld [vmem:[#allocation9 + $0x1f8] sm:$0xf]
    %v9215 = vld [vmem:[#allocation9 + $0x1fc] sm:$0xf]
    %v9216 = vld [vmem:[#allocation10] sm:$0x1]
    %v9218 = vlaneseq
    %v9219 = vshrl.u32 %v9218, 7
    %v9220 = vsub.s32 0, %v9219
    %v9221 = vrot.slane %v9216, %v9220
    %v9351 = vunpack.c.l.b16 %v9088
    %v9352 = vunpack.c.l.b16 %v9089
    %v9353 = vunpack.c.l.b16 %v9090
    %v9354 = vunpack.c.l.b16 %v9091
    %v9355 = vunpack.c.l.b16 %v9092
    %v9356 = vunpack.c.l.b16 %v9093
    %v9357 = vunpack.c.l.b16 %v9094
    %v9358 = vunpack.c.l.b16 %v9095
    %v9359 = vunpack.c.l.b16 %v9096
    %v9360 = vunpack.c.l.b16 %v9097
    %v9361 = vunpack.c.l.b16 %v9098
    %v9362 = vunpack.c.l.b16 %v9099
    %v9363 = vunpack.c.l.b16 %v9100
    %v9364 = vunpack.c.l.b16 %v9101
    %v9365 = vunpack.c.l.b16 %v9102
    %v9366 = vunpack.c.l.b16 %v9103
    %v9367 = vunpack.c.l.b16 %v9104
    %v9368 = vunpack.c.l.b16 %v9105
    %v9369 = vunpack.c.l.b16 %v9106
    %v9370 = vunpack.c.l.b16 %v9107
    %v9371 = vunpack.c.l.b16 %v9108
    %v9372 = vunpack.c.l.b16 %v9109
    %v9373 = vunpack.c.l.b16 %v9110
    %v9374 = vunpack.c.l.b16 %v9111
    %v9375 = vunpack.c.l.b16 %v9112
    %v9376 = vunpack.c.l.b16 %v9113
    %v9377 = vunpack.c.l.b16 %v9114
    %v9378 = vunpack.c.l.b16 %v9115
    %v9379 = vunpack.c.l.b16 %v9116
    %v9380 = vunpack.c.l.b16 %v9117
    %v9381 = vunpack.c.l.b16 %v9118
    %v9382 = vunpack.c.l.b16 %v9119
    %v9383 = vunpack.c.l.b16 %v9120
    %v9384 = vunpack.c.l.b16 %v9121
    %v9385 = vunpack.c.l.b16 %v9122
    %v9386 = vunpack.c.l.b16 %v9123
    %v9387 = vunpack.c.l.b16 %v9124
    %v9388 = vunpack.c.l.b16 %v9125
    %v9389 = vunpack.c.l.b16 %v9126
    %v9390 = vunpack.c.l.b16 %v9127
    %v9391 = vunpack.c.l.b16 %v9128
    %v9392 = vunpack.c.l.b16 %v9129
    %v9393 = vunpack.c.l.b16 %v9130
    %v9394 = vunpack.c.l.b16 %v9131
    %v9395 = vunpack.c.l.b16 %v9132
    %v9396 = vunpack.c.l.b16 %v9133
    %v9397 = vunpack.c.l.b16 %v9134
    %v9398 = vunpack.c.l.b16 %v9135
    %v9399 = vunpack.c.l.b16 %v9136
    %v9400 = vunpack.c.l.b16 %v9137
    %v9401 = vunpack.c.l.b16 %v9138
    %v9402 = vunpack.c.l.b16 %v9139
    %v9403 = vunpack.c.l.b16 %v9140
    %v9404 = vunpack.c.l.b16 %v9141
    %v9405 = vunpack.c.l.b16 %v9142
    %v9406 = vunpack.c.l.b16 %v9143
    %v9407 = vunpack.c.l.b16 %v9144
    %v9408 = vunpack.c.l.b16 %v9145
    %v9409 = vunpack.c.l.b16 %v9146
    %v9410 = vunpack.c.l.b16 %v9147
    %v9411 = vunpack.c.l.b16 %v9148
    %v9412 = vunpack.c.l.b16 %v9149
    %v9413 = vunpack.c.l.b16 %v9150
    %v9414 = vunpack.c.l.b16 %v9151
    %v9415 = vunpack.c.l.b16 %v9152
    %v9416 = vunpack.c.l.b16 %v9153
    %v9417 = vunpack.c.l.b16 %v9154
    %v9418 = vunpack.c.l.b16 %v9155
    %v9419 = vunpack.c.l.b16 %v9156
    %v9420 = vunpack.c.l.b16 %v9157
    %v9421 = vunpack.c.l.b16 %v9158
    %v9422 = vunpack.c.l.b16 %v9159
    %v9423 = vunpack.c.l.b16 %v9160
    %v9424 = vunpack.c.l.b16 %v9161
    %v9425 = vunpack.c.l.b16 %v9162
    %v9426 = vunpack.c.l.b16 %v9163
    %v9427 = vunpack.c.l.b16 %v9164
    %v9428 = vunpack.c.l.b16 %v9165
    %v9429 = vunpack.c.l.b16 %v9166
    %v9430 = vunpack.c.l.b16 %v9167
    %v9431 = vunpack.c.l.b16 %v9168
    %v9432 = vunpack.c.l.b16 %v9169
    %v9433 = vunpack.c.l.b16 %v9170
    %v9434 = vunpack.c.l.b16 %v9171
    %v9435 = vunpack.c.l.b16 %v9172
    %v9436 = vunpack.c.l.b16 %v9173
    %v9437 = vunpack.c.l.b16 %v9174
    %v9438 = vunpack.c.l.b16 %v9175
    %v9439 = vunpack.c.l.b16 %v9176
    %v9440 = vunpack.c.l.b16 %v9177
    %v9441 = vunpack.c.l.b16 %v9178
    %v9442 = vunpack.c.l.b16 %v9179
    %v9443 = vunpack.c.l.b16 %v9180
    %v9444 = vunpack.c.l.b16 %v9181
    %v9445 = vunpack.c.l.b16 %v9182
    %v9446 = vunpack.c.l.b16 %v9183
    %v9447 = vunpack.c.l.b16 %v9184
    %v9448 = vunpack.c.l.b16 %v9185
    %v9449 = vunpack.c.l.b16 %v9186
    %v9450 = vunpack.c.l.b16 %v9187
    %v9451 = vunpack.c.l.b16 %v9188
    %v9452 = vunpack.c.l.b16 %v9189
    %v9453 = vunpack.c.l.b16 %v9190
    %v9454 = vunpack.c.l.b16 %v9191
    %v9455 = vunpack.c.l.b16 %v9192
    %v9456 = vunpack.c.l.b16 %v9193
    %v9457 = vunpack.c.l.b16 %v9194
    %v9458 = vunpack.c.l.b16 %v9195
    %v9459 = vunpack.c.l.b16 %v9196
    %v9460 = vunpack.c.l.b16 %v9197
    %v9461 = vunpack.c.l.b16 %v9198
    %v9462 = vunpack.c.l.b16 %v9199
    %v9463 = vunpack.c.l.b16 %v9200
    %v9464 = vunpack.c.l.b16 %v9201
    %v9465 = vunpack.c.l.b16 %v9202
    %v9466 = vunpack.c.l.b16 %v9203
    %v9467 = vunpack.c.l.b16 %v9204
    %v9468 = vunpack.c.l.b16 %v9205
    %v9469 = vunpack.c.l.b16 %v9206
    %v9470 = vunpack.c.l.b16 %v9207
    %v9471 = vunpack.c.l.b16 %v9208
    %v9472 = vunpack.c.l.b16 %v9209
    %v9473 = vunpack.c.l.b16 %v9210
    %v9474 = vunpack.c.l.b16 %v9211
    %v9475 = vunpack.c.l.b16 %v9212
    %v9476 = vunpack.c.l.b16 %v9213
    %v9477 = vunpack.c.l.b16 %v9214
    %v9478 = vunpack.c.l.b16 %v9215
    %v9479 = vpack.c.b16 %v9352, %v9351
    %v9480 = vpack.c.b16 %v9354, %v9353
    %v9481 = vpack.c.b16 %v9356, %v9355
    %v9482 = vpack.c.b16 %v9358, %v9357
    %v9483 = vpack.c.b16 %v9360, %v9359
    %v9484 = vpack.c.b16 %v9362, %v9361
    %v9485 = vpack.c.b16 %v9364, %v9363
    %v9486 = vpack.c.b16 %v9366, %v9365
    %v9487 = vpack.c.b16 %v9368, %v9367
    %v9488 = vpack.c.b16 %v9370, %v9369
    %v9489 = vpack.c.b16 %v9372, %v9371
    %v9490 = vpack.c.b16 %v9374, %v9373
    %v9491 = vpack.c.b16 %v9376, %v9375
    %v9492 = vpack.c.b16 %v9378, %v9377
    %v9493 = vpack.c.b16 %v9380, %v9379
    %v9494 = vpack.c.b16 %v9382, %v9381
    %v9495 = vpack.c.b16 %v9384, %v9383
    %v9496 = vpack.c.b16 %v9386, %v9385
    %v9497 = vpack.c.b16 %v9388, %v9387
    %v9498 = vpack.c.b16 %v9390, %v9389
    %v9499 = vpack.c.b16 %v9392, %v9391
    %v9500 = vpack.c.b16 %v9394, %v9393
    %v9501 = vpack.c.b16 %v9396, %v9395
    %v9502 = vpack.c.b16 %v9398, %v9397
    %v9503 = vpack.c.b16 %v9400, %v9399
    %v9504 = vpack.c.b16 %v9402, %v9401
    %v9505 = vpack.c.b16 %v9404, %v9403
    %v9506 = vpack.c.b16 %v9406, %v9405
    %v9507 = vpack.c.b16 %v9408, %v9407
    %v9508 = vpack.c.b16 %v9410, %v9409
    %v9509 = vpack.c.b16 %v9412, %v9411
    %v9510 = vpack.c.b16 %v9414, %v9413
    %v9511 = vpack.c.b16 %v9416, %v9415
    %v9512 = vpack.c.b16 %v9418, %v9417
    %v9513 = vpack.c.b16 %v9420, %v9419
    %v9514 = vpack.c.b16 %v9422, %v9421
    %v9515 = vpack.c.b16 %v9424, %v9423
    %v9516 = vpack.c.b16 %v9426, %v9425
    %v9517 = vpack.c.b16 %v9428, %v9427
    %v9518 = vpack.c.b16 %v9430, %v9429
    %v9519 = vpack.c.b16 %v9432, %v9431
    %v9520 = vpack.c.b16 %v9434, %v9433
    %v9521 = vpack.c.b16 %v9436, %v9435
    %v9522 = vpack.c.b16 %v9438, %v9437
    %v9523 = vpack.c.b16 %v9440, %v9439
    %v9524 = vpack.c.b16 %v9442, %v9441
    %v9525 = vpack.c.b16 %v9444, %v9443
    %v9526 = vpack.c.b16 %v9446, %v9445
    %v9527 = vpack.c.b16 %v9448, %v9447
    %v9528 = vpack.c.b16 %v9450, %v9449
    %v9529 = vpack.c.b16 %v9452, %v9451
    %v9530 = vpack.c.b16 %v9454, %v9453
    %v9531 = vpack.c.b16 %v9456, %v9455
    %v9532 = vpack.c.b16 %v9458, %v9457
    %v9533 = vpack.c.b16 %v9460, %v9459
    %v9534 = vpack.c.b16 %v9462, %v9461
    %v9535 = vpack.c.b16 %v9464, %v9463
    %v9536 = vpack.c.b16 %v9466, %v9465
    %v9537 = vpack.c.b16 %v9468, %v9467
    %v9538 = vpack.c.b16 %v9470, %v9469
    %v9539 = vpack.c.b16 %v9472, %v9471
    %v9540 = vpack.c.b16 %v9474, %v9473
    %v9541 = vpack.c.b16 %v9476, %v9475
    %v9542 = vpack.c.b16 %v9478, %v9477
    %9607 = vmatprep.subr.bf16.mxu0 0
    %9608 = vmatpush1.bf16.msra.mxu0 %v9479
    %9609 = vmatprep.subr.bf16.mxu0 0
    %9610 = vmatpush1.bf16.msra.mxu0 %v9480
    %9611 = vmatprep.subr.bf16.mxu0 0
    %9612 = vmatpush1.bf16.msra.mxu0 %v9481
    %9613 = vmatprep.subr.bf16.mxu0 0
    %9614 = vmatpush1.bf16.msra.mxu0 %v9482
    %9615 = vmatprep.subr.bf16.mxu0 0
    %9616 = vmatpush1.bf16.msra.mxu0 %v9483
    %9617 = vmatprep.subr.bf16.mxu0 0
    %9618 = vmatpush1.bf16.msra.mxu0 %v9484
    %9619 = vmatprep.subr.bf16.mxu0 0
    %9620 = vmatpush1.bf16.msra.mxu0 %v9485
    %9621 = vmatprep.subr.bf16.mxu0 0
    %9622 = vmatpush1.bf16.msra.mxu0 %v9486
    %9623 = vmatprep.subr.bf16.mxu0 0
    %9624 = vmatpush1.bf16.msra.mxu0 %v9487
    %9625 = vmatprep.subr.bf16.mxu0 0
    %9626 = vmatpush1.bf16.msra.mxu0 %v9488
    %9627 = vmatprep.subr.bf16.mxu0 0
    %9628 = vmatpush1.bf16.msra.mxu0 %v9489
    %9629 = vmatprep.subr.bf16.mxu0 0
    %9630 = vmatpush1.bf16.msra.mxu0 %v9490
    %9631 = vmatprep.subr.bf16.mxu0 0
    %9632 = vmatpush1.bf16.msra.mxu0 %v9491
    %9633 = vmatprep.subr.bf16.mxu0 0
    %9634 = vmatpush1.bf16.msra.mxu0 %v9492
    %9635 = vmatprep.subr.bf16.mxu0 0
    %9636 = vmatpush1.bf16.msra.mxu0 %v9493
    %9637 = vmatprep.subr.bf16.mxu0 0
    %9638 = vmatpush1.bf16.msra.mxu0 %v9494
    %9639 = vmatprep.mubr.bf16.mxu0 %v9025
    %9640 = vmatmul.mubr.bf16.gmra.mrb[0].mxu0 %v9024
    %v9641 = vpop.f32.mrb[0].mxu0
    %v9642 = vadd.f32 %v9221, %v9641
    %v9643 = vpop.f32.mrb[0].mxu0
    %v9644 = vpop.f32.mrb[0].mxu0
    %v9645 = vadd.f32 %v9221, %v9644
    %v9646 = vpop.f32.mrb[0].mxu0
    %9647 = vmatprep.mubr.bf16.mxu0 %v9033
    %9648 = vmatmul.mubr.bf16.gmra.mrb[0].mxu0 %v9032
    %v9649 = vpop.f32.mrb[0].mxu0
    %v9650 = vadd.f32 %v9221, %v9649
    %v9651 = vpop.f32.mrb[0].mxu0
    %v9652 = vpop.f32.mrb[0].mxu0
    %v9653 = vadd.f32 %v9221, %v9652
    %v9654 = vpop.f32.mrb[0].mxu0
    %9655 = vmatprep.mubr.bf16.mxu0 %v9041
    %9656 = vmatmul.mubr.bf16.gmra.mrb[0].mxu0 %v9040
    %v9657 = vpop.f32.mrb[0].mxu0
    %v9658 = vadd.f32 %v9221, %v9657
    %v9659 = vpop.f32.mrb[0].mxu0
    %v9660 = vpop.f32.mrb[0].mxu0
    %v9661 = vadd.f32 %v9221, %v9660
    %v9662 = vpop.f32.mrb[0].mxu0
    %9663 = vmatprep.mubr.bf16.mxu0 %v9049
    %9664 = vmatmul.mubr.bf16.gmra.mrb[0].mxu0 %v9048
    %v9665 = vpop.f32.mrb[0].mxu0
    %v9666 = vadd.f32 %v9221, %v9665
    %v9667 = vpop.f32.mrb[0].mxu0
    %v9668 = vpop.f32.mrb[0].mxu0
    %v9669 = vadd.f32 %v9221, %v9668
    %v9670 = vpop.f32.mrb[0].mxu0
    %9671 = vmatprep.mubr.bf16.mxu0 %v9057
    %9672 = vmatmul.mubr.bf16.gmra.mrb[0].mxu0 %v9056
    %v9673 = vpop.f32.mrb[0].mxu0
    %v9674 = vadd.f32 %v9221, %v9673
    %v9675 = vpop.f32.mrb[0].mxu0
    %v9676 = vpop.f32.mrb[0].mxu0
    %v9677 = vadd.f32 %v9221, %v9676
    %v9678 = vpop.f32.mrb[0].mxu0
    %9679 = vmatprep.mubr.bf16.mxu0 %v9065
    %9680 = vmatmul.mubr.bf16.gmra.mrb[0].mxu0 %v9064
    %v9681 = vpop.f32.mrb[0].mxu0
    %v9682 = vadd.f32 %v9221, %v9681
    %v9683 = vpop.f32.mrb[0].mxu0
    %v9684 = vpop.f32.mrb[0].mxu0
    %v9685 = vadd.f32 %v9221, %v9684
    %v9686 = vpop.f32.mrb[0].mxu0
    %9687 = vmatprep.mubr.bf16.mxu0 %v9073
    %9688 = vmatmul.mubr.bf16.gmra.mrb[0].mxu0 %v9072
    %v9689 = vpop.f32.mrb[0].mxu0
    %v9690 = vadd.f32 %v9221, %v9689
    %v9691 = vpop.f32.mrb[0].mxu0
    %v9692 = vpop.f32.mrb[0].mxu0
    %v9693 = vadd.f32 %v9221, %v9692
    %v9694 = vpop.f32.mrb[0].mxu0
    %9695 = vmatprep.mubr.bf16.mxu0 %v9081
    %9696 = vmatmul.mubr.bf16.gmra.mrb[0].mxu0 %v9080
    %v9697 = vpop.f32.mrb[0].mxu0
    %v9698 = vadd.f32 %v9221, %v9697
    %v9699 = vpop.f32.mrb[0].mxu0
    %v9700 = vpop.f32.mrb[0].mxu0
    %v9701 = vadd.f32 %v9221, %v9700
    %v9702 = vpop.f32.mrb[0].mxu0
    %9703 = vdwg.mxu0
    %9704 = vmatprep.subr.bf16.mxu0 0
    %9705 = vmatpush1.bf16.msra.mxu0 %v9495
    %9706 = vmatprep.subr.bf16.mxu0 0
    %9707 = vmatpush1.bf16.msra.mxu0 %v9496
    %9708 = vmatprep.subr.bf16.mxu0 0
    %9709 = vmatpush1.bf16.msra.mxu0 %v9497
    %9710 = vmatprep.subr.bf16.mxu0 0
    %9711 = vmatpush1.bf16.msra.mxu0 %v9498
    %9712 = vmatprep.subr.bf16.mxu0 0
    %9713 = vmatpush1.bf16.msra.mxu0 %v9499
    %9714 = vmatprep.subr.bf16.mxu0 0
    %9715 = vmatpush1.bf16.msra.mxu0 %v9500
    %9716 = vmatprep.subr.bf16.mxu0 0
    %9717 = vmatpush1.bf16.msra.mxu0 %v9501
    %9718 = vmatprep.subr.bf16.mxu0 0
    %9719 = vmatpush1.bf16.msra.mxu0 %v9502
    %9720 = vmatprep.subr.bf16.mxu0 0
    %9721 = vmatpush1.bf16.msra.mxu0 %v9503
    %9722 = vmatprep.subr.bf16.mxu0 0
    %9723 = vmatpush1.bf16.msra.mxu0 %v9504
    %9724 = vmatprep.subr.bf16.mxu0 0
    %9725 = vmatpush1.bf16.msra.mxu0 %v9505
    %9726 = vmatprep.subr.bf16.mxu0 0
    %9727 = vmatpush1.bf16.msra.mxu0 %v9506
    %9728 = vmatprep.subr.bf16.mxu0 0
    %9729 = vmatpush1.bf16.msra.mxu0 %v9507
    %9730 = vmatprep.subr.bf16.mxu0 0
    %9731 = vmatpush1.bf16.msra.mxu0 %v9508
    %9732 = vmatprep.subr.bf16.mxu0 0
    %9733 = vmatpush1.bf16.msra.mxu0 %v9509
    %9734 = vmatprep.subr.bf16.mxu0 0
    %9735 = vmatpush1.bf16.msra.mxu0 %v9510
    %9736 = vmatprep.mubr.bf16.mxu0 %v9027
    %9737 = vmatmul.mubr.bf16.gmra.mrb[0].mxu0 %v9026
    %v9738 = vpop.f32.mrb[0].mxu0
    %v9739 = vadd.f32 %v9642, %v9738
    %v9740 = vpop.f32.mrb[0].mxu0
    %v9741 = vpop.f32.mrb[0].mxu0
    %v9742 = vadd.f32 %v9645, %v9741
    %v9743 = vpop.f32.mrb[0].mxu0
    %9744 = vmatprep.mubr.bf16.mxu0 %v9035
    %9745 = vmatmul.mubr.bf16.gmra.mrb[0].mxu0 %v9034
    %v9746 = vpop.f32.mrb[0].mxu0
    %v9747 = vadd.f32 %v9650, %v9746
    %v9748 = vpop.f32.mrb[0].mxu0
    %v9749 = vpop.f32.mrb[0].mxu0
    %v9750 = vadd.f32 %v9653, %v9749
    %v9751 = vpop.f32.mrb[0].mxu0
    %9752 = vmatprep.mubr.bf16.mxu0 %v9043
    %9753 = vmatmul.mubr.bf16.gmra.mrb[0].mxu0 %v9042
    %v9754 = vpop.f32.mrb[0].mxu0
    %v9755 = vadd.f32 %v9658, %v9754
    %v9756 = vpop.f32.mrb[0].mxu0
    %v9757 = vpop.f32.mrb[0].mxu0
    %v9758 = vadd.f32 %v9661, %v9757
    %v9759 = vpop.f32.mrb[0].mxu0
    %9760 = vmatprep.mubr.bf16.mxu0 %v9051
    %9761 = vmatmul.mubr.bf16.gmra.mrb[0].mxu0 %v9050
    %v9762 = vpop.f32.mrb[0].mxu0
    %v9763 = vadd.f32 %v9666, %v9762
    %v9764 = vpop.f32.mrb[0].mxu0
    %v9765 = vpop.f32.mrb[0].mxu0
    %v9766 = vadd.f32 %v9669, %v9765
    %v9767 = vpop.f32.mrb[0].mxu0
    %9768 = vmatprep.mubr.bf16.mxu0 %v9059
    %9769 = vmatmul.mubr.bf16.gmra.mrb[0].mxu0 %v9058
    %v9770 = vpop.f32.mrb[0].mxu0
    %v9771 = vadd.f32 %v9674, %v9770
    %v9772 = vpop.f32.mrb[0].mxu0
    %v9773 = vpop.f32.mrb[0].mxu0
    %v9774 = vadd.f32 %v9677, %v9773
    %v9775 = vpop.f32.mrb[0].mxu0
    %9776 = vmatprep.mubr.bf16.mxu0 %v9067
    %9777 = vmatmul.mubr.bf16.gmra.mrb[0].mxu0 %v9066
    %v9778 = vpop.f32.mrb[0].mxu0
    %v9779 = vadd.f32 %v9682, %v9778
    %v9780 = vpop.f32.mrb[0].mxu0
    %v9781 = vpop.f32.mrb[0].mxu0
    %v9782 = vadd.f32 %v9685, %v9781
    %v9783 = vpop.f32.mrb[0].mxu0
    %9784 = vmatprep.mubr.bf16.mxu0 %v9075
    %9785 = vmatmul.mubr.bf16.gmra.mrb[0].mxu0 %v9074
    %v9786 = vpop.f32.mrb[0].mxu0
    %v9787 = vadd.f32 %v9690, %v9786
    %v9788 = vpop.f32.mrb[0].mxu0
    %v9789 = vpop.f32.mrb[0].mxu0
    %v9790 = vadd.f32 %v9693, %v9789
    %v9791 = vpop.f32.mrb[0].mxu0
    %9792 = vmatprep.mubr.bf16.mxu0 %v9083
    %9793 = vmatmul.mubr.bf16.gmra.mrb[0].mxu0 %v9082
    %v9794 = vpop.f32.mrb[0].mxu0
    %v9795 = vadd.f32 %v9698, %v9794
    %v9796 = vpop.f32.mrb[0].mxu0
    %v9797 = vpop.f32.mrb[0].mxu0
    %v9798 = vadd.f32 %v9701, %v9797
    %v9799 = vpop.f32.mrb[0].mxu0
    %9800 = vdwg.mxu0
    %9801 = vmatprep.subr.bf16.mxu0 0
    %9802 = vmatpush1.bf16.msra.mxu0 %v9511
    %9803 = vmatprep.subr.bf16.mxu0 0
    %9804 = vmatpush1.bf16.msra.mxu0 %v9512
    %9805 = vmatprep.subr.bf16.mxu0 0
    %9806 = vmatpush1.bf16.msra.mxu0 %v9513
    %9807 = vmatprep.subr.bf16.mxu0 0
    %9808 = vmatpush1.bf16.msra.mxu0 %v9514
    %9809 = vmatprep.subr.bf16.mxu0 0
    %9810 = vmatpush1.bf16.msra.mxu0 %v9515
    %9811 = vmatprep.subr.bf16.mxu0 0
    %9812 = vmatpush1.bf16.msra.mxu0 %v9516
    %9813 = vmatprep.subr.bf16.mxu0 0
    %9814 = vmatpush1.bf16.msra.mxu0 %v9517
    %9815 = vmatprep.subr.bf16.mxu0 0
    %9816 = vmatpush1.bf16.msra.mxu0 %v9518
    %9817 = vmatprep.subr.bf16.mxu0 0
    %9818 = vmatpush1.bf16.msra.mxu0 %v9519
    %9819 = vmatprep.subr.bf16.mxu0 0
    %9820 = vmatpush1.bf16.msra.mxu0 %v9520
    %9821 = vmatprep.subr.bf16.mxu0 0
    %9822 = vmatpush1.bf16.msra.mxu0 %v9521
    %9823 = vmatprep.subr.bf16.mxu0 0
    %9824 = vmatpush1.bf16.msra.mxu0 %v9522
    %9825 = vmatprep.subr.bf16.mxu0 0
    %9826 = vmatpush1.bf16.msra.mxu0 %v9523
    %9827 = vmatprep.subr.bf16.mxu0 0
    %9828 = vmatpush1.bf16.msra.mxu0 %v9524
    %9829 = vmatprep.subr.bf16.mxu0 0
    %9830 = vmatpush1.bf16.msra.mxu0 %v9525
    %9831 = vmatprep.subr.bf16.mxu0 0
    %9832 = vmatpush1.bf16.msra.mxu0 %v9526
    %9833 = vmatprep.mubr.bf16.mxu0 %v9029
    %9834 = vmatmul.mubr.bf16.gmra.mrb[0].mxu0 %v9028
    %v9835 = vpop.f32.mrb[0].mxu0
    %v9836 = vadd.f32 %v9739, %v9835
    %v9837 = vpop.f32.mrb[0].mxu0
    %v9838 = vpop.f32.mrb[0].mxu0
    %v9839 = vadd.f32 %v9742, %v9838
    %v9840 = vpop.f32.mrb[0].mxu0
    %9841 = vmatprep.mubr.bf16.mxu0 %v9037
    %9842 = vmatmul.mubr.bf16.gmra.mrb[0].mxu0 %v9036
    %v9843 = vpop.f32.mrb[0].mxu0
    %v9844 = vadd.f32 %v9747, %v9843
    %v9845 = vpop.f32.mrb[0].mxu0
    %v9846 = vpop.f32.mrb[0].mxu0
    %v9847 = vadd.f32 %v9750, %v9846
    %v9848 = vpop.f32.mrb[0].mxu0
    %9849 = vmatprep.mubr.bf16.mxu0 %v9045
    %9850 = vmatmul.mubr.bf16.gmra.mrb[0].mxu0 %v9044
    %v9851 = vpop.f32.mrb[0].mxu0
    %v9852 = vadd.f32 %v9755, %v9851
    %v9853 = vpop.f32.mrb[0].mxu0
    %v9854 = vpop.f32.mrb[0].mxu0
    %v9855 = vadd.f32 %v9758, %v9854
    %v9856 = vpop.f32.mrb[0].mxu0
    %9857 = vmatprep.mubr.bf16.mxu0 %v9053
    %9858 = vmatmul.mubr.bf16.gmra.mrb[0].mxu0 %v9052
    %v9859 = vpop.f32.mrb[0].mxu0
    %v9860 = vadd.f32 %v9763, %v9859
    %v9861 = vpop.f32.mrb[0].mxu0
    %v9862 = vpop.f32.mrb[0].mxu0
    %v9863 = vadd.f32 %v9766, %v9862
    %v9864 = vpop.f32.mrb[0].mxu0
    %9865 = vmatprep.mubr.bf16.mxu0 %v9061
    %9866 = vmatmul.mubr.bf16.gmra.mrb[0].mxu0 %v9060
    %v9867 = vpop.f32.mrb[0].mxu0
    %v9868 = vadd.f32 %v9771, %v9867
    %v9869 = vpop.f32.mrb[0].mxu0
    %v9870 = vpop.f32.mrb[0].mxu0
    %v9871 = vadd.f32 %v9774, %v9870
    %v9872 = vpop.f32.mrb[0].mxu0
    %9873 = vmatprep.mubr.bf16.mxu0 %v9069
    %9874 = vmatmul.mubr.bf16.gmra.mrb[0].mxu0 %v9068
    %v9875 = vpop.f32.mrb[0].mxu0
    %v9876 = vadd.f32 %v9779, %v9875
    %v9877 = vpop.f32.mrb[0].mxu0
    %v9878 = vpop.f32.mrb[0].mxu0
    %v9879 = vadd.f32 %v9782, %v9878
    %v9880 = vpop.f32.mrb[0].mxu0
    %9881 = vmatprep.mubr.bf16.mxu0 %v9077
    %9882 = vmatmul.mubr.bf16.gmra.mrb[0].mxu0 %v9076
    %v9883 = vpop.f32.mrb[0].mxu0
    %v9884 = vadd.f32 %v9787, %v9883
    %v9885 = vpop.f32.mrb[0].mxu0
    %v9886 = vpop.f32.mrb[0].mxu0
    %v9887 = vadd.f32 %v9790, %v9886
    %v9888 = vpop.f32.mrb[0].mxu0
    %9889 = vmatprep.mubr.bf16.mxu0 %v9085
    %9890 = vmatmul.mubr.bf16.gmra.mrb[0].mxu0 %v9084
    %v9891 = vpop.f32.mrb[0].mxu0
    %v9892 = vadd.f32 %v9795, %v9891
    %v9893 = vpop.f32.mrb[0].mxu0
    %v9894 = vpop.f32.mrb[0].mxu0
    %v9895 = vadd.f32 %v9798, %v9894
    %v9896 = vpop.f32.mrb[0].mxu0
    %9897 = vdwg.mxu0
    %9898 = vmatprep.subr.bf16.mxu0 0
    %9899 = vmatpush1.bf16.msra.mxu0 %v9527
    %9900 = vmatprep.subr.bf16.mxu0 0
    %9901 = vmatpush1.bf16.msra.mxu0 %v9528
    %9902 = vmatprep.subr.bf16.mxu0 0
    %9903 = vmatpush1.bf16.msra.mxu0 %v9529
    %9904 = vmatprep.subr.bf16.mxu0 0
    %9905 = vmatpush1.bf16.msra.mxu0 %v9530
    %9906 = vmatprep.subr.bf16.mxu0 0
    %9907 = vmatpush1.bf16.msra.mxu0 %v9531
    %9908 = vmatprep.subr.bf16.mxu0 0
    %9909 = vmatpush1.bf16.msra.mxu0 %v9532
    %9910 = vmatprep.subr.bf16.mxu0 0
    %9911 = vmatpush1.bf16.msra.mxu0 %v9533
    %9912 = vmatprep.subr.bf16.mxu0 0
    %9913 = vmatpush1.bf16.msra.mxu0 %v9534
    %9914 = vmatprep.subr.bf16.mxu0 0
    %9915 = vmatpush1.bf16.msra.mxu0 %v9535
    %9916 = vmatprep.subr.bf16.mxu0 0
    %9917 = vmatpush1.bf16.msra.mxu0 %v9536
    %9918 = vmatprep.subr.bf16.mxu0 0
    %9919 = vmatpush1.bf16.msra.mxu0 %v9537
    %9920 = vmatprep.subr.bf16.mxu0 0
    %9921 = vmatpush1.bf16.msra.mxu0 %v9538
    %9922 = vmatprep.subr.bf16.mxu0 0
    %9923 = vmatpush1.bf16.msra.mxu0 %v9539
    %9924 = vmatprep.subr.bf16.mxu0 0
    %9925 = vmatpush1.bf16.msra.mxu0 %v9540
    %9926 = vmatprep.subr.bf16.mxu0 0
    %9927 = vmatpush1.bf16.msra.mxu0 %v9541
    %9928 = vmatprep.subr.bf16.mxu0 0
    %9929 = vmatpush1.bf16.msra.mxu0 %v9542
    %9930 = vmatprep.mubr.bf16.mxu0 %v9031
    %9931 = vmatmul.mubr.bf16.gmra.mrb[0].mxu0 %v9030
    %v9932 = vpop.f32.mrb[0].mxu0
    %v9933 = vadd.f32 %v9836, %v9932
    %v9934 = vpop.f32.mrb[0].mxu0
    %v9935 = vpop.f32.mrb[0].mxu0
    %v9936 = vadd.f32 %v9839, %v9935
    %v9937 = vpop.f32.mrb[0].mxu0
    %9938 = vmatprep.mubr.bf16.mxu0 %v9039
    %9939 = vmatmul.mubr.bf16.gmra.mrb[0].mxu0 %v9038
    %v9940 = vpop.f32.mrb[0].mxu0
    %v9941 = vadd.f32 %v9844, %v9940
    %v9942 = vpop.f32.mrb[0].mxu0
    %v9943 = vpop.f32.mrb[0].mxu0
    %v9944 = vadd.f32 %v9847, %v9943
    %v9945 = vpop.f32.mrb[0].mxu0
    %9946 = vmatprep.mubr.bf16.mxu0 %v9047
    %9947 = vmatmul.mubr.bf16.gmra.mrb[0].mxu0 %v9046
    %v9948 = vpop.f32.mrb[0].mxu0
    %v9949 = vadd.f32 %v9852, %v9948
    %v9950 = vpop.f32.mrb[0].mxu0
    %v9951 = vpop.f32.mrb[0].mxu0
    %v9952 = vadd.f32 %v9855, %v9951
    %v9953 = vpop.f32.mrb[0].mxu0
    %9954 = vmatprep.mubr.bf16.mxu0 %v9055
    %9955 = vmatmul.mubr.bf16.gmra.mrb[0].mxu0 %v9054
    %v9956 = vpop.f32.mrb[0].mxu0
    %v9957 = vadd.f32 %v9860, %v9956
    %v9958 = vpop.f32.mrb[0].mxu0
    %v9959 = vpop.f32.mrb[0].mxu0
    %v9960 = vadd.f32 %v9863, %v9959
    %v9961 = vpop.f32.mrb[0].mxu0
    %9962 = vmatprep.mubr.bf16.mxu0 %v9063
    %9963 = vmatmul.mubr.bf16.gmra.mrb[0].mxu0 %v9062
    %v9964 = vpop.f32.mrb[0].mxu0
    %v9965 = vadd.f32 %v9868, %v9964
    %v9966 = vpop.f32.mrb[0].mxu0
    %v9967 = vpop.f32.mrb[0].mxu0
    %v9968 = vadd.f32 %v9871, %v9967
    %v9969 = vpop.f32.mrb[0].mxu0
    %9970 = vmatprep.mubr.bf16.mxu0 %v9071
    %9971 = vmatmul.mubr.bf16.gmra.mrb[0].mxu0 %v9070
    %v9972 = vpop.f32.mrb[0].mxu0
    %v9973 = vadd.f32 %v9876, %v9972
    %v9974 = vpop.f32.mrb[0].mxu0
    %v9975 = vpop.f32.mrb[0].mxu0
    %v9976 = vadd.f32 %v9879, %v9975
    %v9977 = vpop.f32.mrb[0].mxu0
    %9978 = vmatprep.mubr.bf16.mxu0 %v9079
    %9979 = vmatmul.mubr.bf16.gmra.mrb[0].mxu0 %v9078
    %v9980 = vpop.f32.mrb[0].mxu0
    %v9981 = vadd.f32 %v9884, %v9980
    %v9982 = vpop.f32.mrb[0].mxu0
    %v9983 = vpop.f32.mrb[0].mxu0
    %v9984 = vadd.f32 %v9887, %v9983
    %v9985 = vpop.f32.mrb[0].mxu0
    %9986 = vmatprep.mubr.bf16.mxu0 %v9087
    %9987 = vmatmul.mubr.bf16.gmra.mrb[0].mxu0 %v9086
    %v9988 = vpop.f32.mrb[0].mxu0
    %v9989 = vadd.f32 %v9892, %v9988
    %v9990 = vpop.f32.mrb[0].mxu0
    %v9991 = vpop.f32.mrb[0].mxu0
    %v9992 = vadd.f32 %v9895, %v9991
    %v9993 = vpop.f32.mrb[0].mxu0
    %9994 = vdwg.mxu0
    %v9995 = vmax.f32 %v9933, 0.0
    %v9996 = vmax.f32 %v9936, 0.0
    %v9997 = vmax.f32 %v9941, 0.0
    %v9998 = vmax.f32 %v9944, 0.0
    %v9999 = vmax.f32 %v9949, 0.0
    %v10000 = vmax.f32 %v9952, 0.0
    %v10001 = vmax.f32 %v9957, 0.0
    %v10002 = vmax.f32 %v9960, 0.0
    %v10003 = vmax.f32 %v9965, 0.0
    %v10004 = vmax.f32 %v9968, 0.0
    %v10005 = vmax.f32 %v9973, 0.0
    %v10006 = vmax.f32 %v9976, 0.0
    %v10007 = vmax.f32 %v9981, 0.0
    %v10008 = vmax.f32 %v9984, 0.0
    %v10009 = vmax.f32 %v9989, 0.0
    %v10010 = vmax.f32 %v9992, 0.0
    %v10011 = vpack.c.bf16 %v9996, %v9995
    %v10012 = vpack.c.bf16 %v9998, %v9997
    %v10013 = vpack.c.bf16 %v10000, %v9999
    %v10014 = vpack.c.bf16 %v10002, %v10001
    %v10015 = vpack.c.bf16 %v10004, %v10003
    %v10016 = vpack.c.bf16 %v10006, %v10005
    %v10017 = vpack.c.bf16 %v10008, %v10007
    %v10018 = vpack.c.bf16 %v10010, %v10009
    %v10019 = vld [vmem:[#allocation12] sm:$0xf]
    %v10020 = vld [vmem:[#allocation12 + $0x4] sm:$0xf]
    %v10021 = vld [vmem:[#allocation12 + $0x8] sm:$0xf]
    %v10022 = vld [vmem:[#allocation12 + $0xc] sm:$0xf]
    %v10023 = vld [vmem:[#allocation12 + $0x10] sm:$0xf]
    %v10024 = vld [vmem:[#allocation12 + $0x14] sm:$0xf]
    %v10025 = vld [vmem:[#allocation12 + $0x18] sm:$0xf]
    %v10026 = vld [vmem:[#allocation12 + $0x1c] sm:$0xf]
    %v10027 = vld [vmem:[#allocation12 + $0x20] sm:$0xf]
    %v10028 = vld [vmem:[#allocation12 + $0x24] sm:$0xf]
    %v10029 = vld [vmem:[#allocation12 + $0x28] sm:$0xf]
    %v10030 = vld [vmem:[#allocation12 + $0x2c] sm:$0xf]
    %v10031 = vld [vmem:[#allocation12 + $0x30] sm:$0xf]
    %v10032 = vld [vmem:[#allocation12 + $0x34] sm:$0xf]
    %v10033 = vld [vmem:[#allocation12 + $0x38] sm:$0xf]
    %v10034 = vld [vmem:[#allocation12 + $0x3c] sm:$0xf]
    %v10035 = vld [vmem:[#allocation13] sm:$0x1]
    %v10037 = vlaneseq
    %v10038 = vshrl.u32 %v10037, 7
    %v10039 = vsub.s32 0, %v10038
    %v10040 = vrot.slane %v10035, %v10039
    %v10058 = vunpack.c.l.b16 %v10019
    %v10059 = vunpack.c.l.b16 %v10020
    %v10060 = vunpack.c.l.b16 %v10021
    %v10061 = vunpack.c.l.b16 %v10022
    %v10062 = vunpack.c.l.b16 %v10023
    %v10063 = vunpack.c.l.b16 %v10024
    %v10064 = vunpack.c.l.b16 %v10025
    %v10065 = vunpack.c.l.b16 %v10026
    %v10066 = vunpack.c.l.b16 %v10027
    %v10067 = vunpack.c.l.b16 %v10028
    %v10068 = vunpack.c.l.b16 %v10029
    %v10069 = vunpack.c.l.b16 %v10030
    %v10070 = vunpack.c.l.b16 %v10031
    %v10071 = vunpack.c.l.b16 %v10032
    %v10072 = vunpack.c.l.b16 %v10033
    %v10073 = vunpack.c.l.b16 %v10034
    %v10074 = vpack.c.b16 %v10059, %v10058
    %v10075 = vpack.c.b16 %v10061, %v10060
    %v10076 = vpack.c.b16 %v10063, %v10062
    %v10077 = vpack.c.b16 %v10065, %v10064
    %v10078 = vpack.c.b16 %v10067, %v10066
    %v10079 = vpack.c.b16 %v10069, %v10068
    %v10080 = vpack.c.b16 %v10071, %v10070
    %v10081 = vpack.c.b16 %v10073, %v10072
    %10090 = vmatprep.subr.bf16.mxu0 0
    %10091 = vmatpush1.bf16.msra.mxu0 %v10074
    %10092 = vmatprep.subr.bf16.mxu0 0
    %10093 = vmatpush1.bf16.msra.mxu0 %v10075
    %10094 = vmatprep.subr.bf16.mxu0 0
    %10095 = vmatpush1.bf16.msra.mxu0 %v10076
    %10096 = vmatprep.subr.bf16.mxu0 0
    %10097 = vmatpush1.bf16.msra.mxu0 %v10077
    %10098 = vmatprep.subr.bf16.mxu0 0
    %10099 = vmatpush1.bf16.msra.mxu0 %v10078
    %10100 = vmatprep.subr.bf16.mxu0 0
    %10101 = vmatpush1.bf16.msra.mxu0 %v10079
    %10102 = vmatprep.subr.bf16.mxu0 0
    %10103 = vmatpush1.bf16.msra.mxu0 %v10080
    %10104 = vmatprep.subr.bf16.mxu0 0
    %10105 = vmatpush1.bf16.msra.mxu0 %v10081
    %10106 = vmatprep.subr.bf16.mxu0 0
    %10107 = vmatpush1.bf16.msra.mxu0 0
    %10108 = vmatprep.subr.bf16.mxu0 0
    %10109 = vmatpush1.bf16.msra.mxu0 0
    %10110 = vmatprep.subr.bf16.mxu0 0
    %10111 = vmatpush1.bf16.msra.mxu0 0
    %10112 = vmatprep.subr.bf16.mxu0 0
    %10113 = vmatpush1.bf16.msra.mxu0 0
    %10114 = vmatprep.subr.bf16.mxu0 0
    %10115 = vmatpush1.bf16.msra.mxu0 0
    %10116 = vmatprep.subr.bf16.mxu0 0
    %10117 = vmatpush1.bf16.msra.mxu0 0
    %10118 = vmatprep.subr.bf16.mxu0 0
    %10119 = vmatpush1.bf16.msra.mxu0 0
    %10120 = vmatprep.subr.bf16.mxu0 0
    %10121 = vmatpush1.bf16.msra.mxu0 0
    %10122 = vmatprep.mubr.bf16.mxu0 0
    %10123 = vmatmul.mubr.bf16.gmra.mrb[0].mxu0 %v10011
    %v10124 = vpop.f32.mrb[0].mxu0
    %v10125 = vadd.f32 %v10040, %v10124
    %v10126 = vpop.f32.mrb[0].mxu0
    %v10127 = vpop.f32.mrb[0].mxu0
    %v10128 = vadd.f32 %v10040, %v10127
    %v10129 = vpop.f32.mrb[0].mxu0
    %10130 = vmatprep.mubr.bf16.mxu0 0
    %10131 = vmatmul.mubr.bf16.gmra.mrb[0].mxu0 %v10012
    %v10132 = vpop.f32.mrb[0].mxu0
    %v10133 = vadd.f32 %v10040, %v10132
    %v10134 = vpop.f32.mrb[0].mxu0
    %v10135 = vpop.f32.mrb[0].mxu0
    %v10136 = vadd.f32 %v10040, %v10135
    %v10137 = vpop.f32.mrb[0].mxu0
    %10138 = vmatprep.mubr.bf16.mxu0 0
    %10139 = vmatmul.mubr.bf16.gmra.mrb[0].mxu0 %v10013
    %v10140 = vpop.f32.mrb[0].mxu0
    %v10141 = vadd.f32 %v10040, %v10140
    %v10142 = vpop.f32.mrb[0].mxu0
    %v10143 = vpop.f32.mrb[0].mxu0
    %v10144 = vadd.f32 %v10040, %v10143
    %v10145 = vpop.f32.mrb[0].mxu0
    %10146 = vmatprep.mubr.bf16.mxu0 0
    %10147 = vmatmul.mubr.bf16.gmra.mrb[0].mxu0 %v10014
    %v10148 = vpop.f32.mrb[0].mxu0
    %v10149 = vadd.f32 %v10040, %v10148
    %v10150 = vpop.f32.mrb[0].mxu0
    %v10151 = vpop.f32.mrb[0].mxu0
    %v10152 = vadd.f32 %v10040, %v10151
    %v10153 = vpop.f32.mrb[0].mxu0
    %10154 = vmatprep.mubr.bf16.mxu0 0
    %10155 = vmatmul.mubr.bf16.gmra.mrb[0].mxu0 %v10015
    %v10156 = vpop.f32.mrb[0].mxu0
    %v10157 = vadd.f32 %v10040, %v10156
    %v10158 = vpop.f32.mrb[0].mxu0
    %v10159 = vpop.f32.mrb[0].mxu0
    %v10160 = vadd.f32 %v10040, %v10159
    %v10161 = vpop.f32.mrb[0].mxu0
    %10162 = vmatprep.mubr.bf16.mxu0 0
    %10163 = vmatmul.mubr.bf16.gmra.mrb[0].mxu0 %v10016
    %v10164 = vpop.f32.mrb[0].mxu0
    %v10165 = vadd.f32 %v10040, %v10164
    %v10166 = vpop.f32.mrb[0].mxu0
    %v10167 = vpop.f32.mrb[0].mxu0
    %v10168 = vadd.f32 %v10040, %v10167
    %v10169 = vpop.f32.mrb[0].mxu0
    %10170 = vmatprep.mubr.bf16.mxu0 0
    %10171 = vmatmul.mubr.bf16.gmra.mrb[0].mxu0 %v10017
    %v10172 = vpop.f32.mrb[0].mxu0
    %v10173 = vadd.f32 %v10040, %v10172
    %v10174 = vpop.f32.mrb[0].mxu0
    %v10175 = vpop.f32.mrb[0].mxu0
    %v10176 = vadd.f32 %v10040, %v10175
    %v10177 = vpop.f32.mrb[0].mxu0
    %10178 = vmatprep.mubr.bf16.mxu0 0
    %10179 = vmatmul.mubr.bf16.gmra.mrb[0].mxu0 %v10018
    %v10180 = vpop.f32.mrb[0].mxu0
    %v10181 = vadd.f32 %v10040, %v10180
    %v10182 = vpop.f32.mrb[0].mxu0
    %v10183 = vpop.f32.mrb[0].mxu0
    %v10184 = vadd.f32 %v10040, %v10183
    %v10185 = vpop.f32.mrb[0].mxu0
    %10186 = vdwg.mxu0
    %v10187 = vmax.f32 %v10125, 0.0
    %v10188 = vmax.f32 %v10128, 0.0
    %v10189 = vmax.f32 %v10133, 0.0
    %v10190 = vmax.f32 %v10136, 0.0
    %v10191 = vmax.f32 %v10141, 0.0
    %v10192 = vmax.f32 %v10144, 0.0
    %v10193 = vmax.f32 %v10149, 0.0
    %v10194 = vmax.f32 %v10152, 0.0
    %v10195 = vmax.f32 %v10157, 0.0
    %v10196 = vmax.f32 %v10160, 0.0
    %v10197 = vmax.f32 %v10165, 0.0
    %v10198 = vmax.f32 %v10168, 0.0
    %v10199 = vmax.f32 %v10173, 0.0
    %v10200 = vmax.f32 %v10176, 0.0
    %v10201 = vmax.f32 %v10181, 0.0
    %v10202 = vmax.f32 %v10184, 0.0
    %v10203 = vpack.c.bf16 %v10188, %v10187
    %v10204 = vpack.c.bf16 %v10190, %v10189
    %v10205 = vpack.c.bf16 %v10192, %v10191
    %v10206 = vpack.c.bf16 %v10194, %v10193
    %v10207 = vpack.c.bf16 %v10196, %v10195
    %v10208 = vpack.c.bf16 %v10198, %v10197
    %v10209 = vpack.c.bf16 %v10200, %v10199
    %v10210 = vpack.c.bf16 %v10202, %v10201
    %v10211 = vld [vmem:[#allocation15] sm:$0xf]
    %v10212 = vld [vmem:[#allocation15 + $0x4] sm:$0xf]
    %v10213 = vld [vmem:[#allocation15 + $0x8] sm:$0xf]
    %v10214 = vld [vmem:[#allocation15 + $0xc] sm:$0xf]
    %v10215 = vld [vmem:[#allocation15 + $0x10] sm:$0xf]
    %v10216 = vld [vmem:[#allocation15 + $0x14] sm:$0xf]
    %v10217 = vld [vmem:[#allocation15 + $0x18] sm:$0xf]
    %v10218 = vld [vmem:[#allocation15 + $0x1c] sm:$0xf]
    %v10219 = vld [vmem:[#allocation15 + $0x20] sm:$0xf]
    %v10220 = vld [vmem:[#allocation15 + $0x24] sm:$0xf]
    %v10221 = vld [vmem:[#allocation15 + $0x28] sm:$0xf]
    %v10222 = vld [vmem:[#allocation15 + $0x2c] sm:$0xf]
    %v10223 = vld [vmem:[#allocation15 + $0x30] sm:$0xf]
    %v10224 = vld [vmem:[#allocation15 + $0x34] sm:$0xf]
    %v10225 = vld [vmem:[#allocation15 + $0x38] sm:$0xf]
    %v10226 = vld [vmem:[#allocation15 + $0x3c] sm:$0xf]
    %v10227 = vld [vmem:[#allocation16] sm:$0x1]
    %v10229 = vlaneseq
    %v10230 = vshrl.u32 %v10229, 7
    %v10231 = vsub.s32 0, %v10230
    %v10232 = vrot.slane %v10227, %v10231
    %v10250 = vunpack.c.l.b16 %v10211
    %v10251 = vunpack.c.l.b16 %v10212
    %v10252 = vunpack.c.l.b16 %v10213
    %v10253 = vunpack.c.l.b16 %v10214
    %v10254 = vunpack.c.l.b16 %v10215
    %v10255 = vunpack.c.l.b16 %v10216
    %v10256 = vunpack.c.l.b16 %v10217
    %v10257 = vunpack.c.l.b16 %v10218
    %v10258 = vunpack.c.l.b16 %v10219
    %v10259 = vunpack.c.l.b16 %v10220
    %v10260 = vunpack.c.l.b16 %v10221
    %v10261 = vunpack.c.l.b16 %v10222
    %v10262 = vunpack.c.l.b16 %v10223
    %v10263 = vunpack.c.l.b16 %v10224
    %v10264 = vunpack.c.l.b16 %v10225
    %v10265 = vunpack.c.l.b16 %v10226
    %v10266 = vpack.c.b16 %v10251, %v10250
    %v10267 = vpack.c.b16 %v10253, %v10252
    %v10268 = vpack.c.b16 %v10255, %v10254
    %v10269 = vpack.c.b16 %v10257, %v10256
    %v10270 = vpack.c.b16 %v10259, %v10258
    %v10271 = vpack.c.b16 %v10261, %v10260
    %v10272 = vpack.c.b16 %v10263, %v10262
    %v10273 = vpack.c.b16 %v10265, %v10264
    %10282 = vmatprep.subr.bf16.mxu0 0
    %10283 = vmatpush1.bf16.msra.mxu0 %v10266
    %10284 = vmatprep.subr.bf16.mxu0 0
    %10285 = vmatpush1.bf16.msra.mxu0 %v10267
    %10286 = vmatprep.subr.bf16.mxu0 0
    %10287 = vmatpush1.bf16.msra.mxu0 %v10268
    %10288 = vmatprep.subr.bf16.mxu0 0
    %10289 = vmatpush1.bf16.msra.mxu0 %v10269
    %10290 = vmatprep.subr.bf16.mxu0 0
    %10291 = vmatpush1.bf16.msra.mxu0 %v10270
    %10292 = vmatprep.subr.bf16.mxu0 0
    %10293 = vmatpush1.bf16.msra.mxu0 %v10271
    %10294 = vmatprep.subr.bf16.mxu0 0
    %10295 = vmatpush1.bf16.msra.mxu0 %v10272
    %10296 = vmatprep.subr.bf16.mxu0 0
    %10297 = vmatpush1.bf16.msra.mxu0 %v10273
    %10298 = vmatprep.subr.bf16.mxu0 0
    %10299 = vmatpush1.bf16.msra.mxu0 0
    %10300 = vmatprep.subr.bf16.mxu0 0
    %10301 = vmatpush1.bf16.msra.mxu0 0
    %10302 = vmatprep.subr.bf16.mxu0 0
    %10303 = vmatpush1.bf16.msra.mxu0 0
    %10304 = vmatprep.subr.bf16.mxu0 0
    %10305 = vmatpush1.bf16.msra.mxu0 0
    %10306 = vmatprep.subr.bf16.mxu0 0
    %10307 = vmatpush1.bf16.msra.mxu0 0
    %10308 = vmatprep.subr.bf16.mxu0 0
    %10309 = vmatpush1.bf16.msra.mxu0 0
    %10310 = vmatprep.subr.bf16.mxu0 0
    %10311 = vmatpush1.bf16.msra.mxu0 0
    %10312 = vmatprep.subr.bf16.mxu0 0
    %10313 = vmatpush1.bf16.msra.mxu0 0
    %10314 = vmatprep.mubr.bf16.mxu0 0
    %10315 = vmatmul.mubr.bf16.gmra.mrb[0].mxu0 %v10203
    %v10316 = vpop.f32.mrb[0].mxu0
    %v10317 = vadd.f32 %v10232, %v10316
    %v10318 = vpop.f32.mrb[0].mxu0
    %v10319 = vpop.f32.mrb[0].mxu0
    %v10320 = vadd.f32 %v10232, %v10319
    %v10321 = vpop.f32.mrb[0].mxu0
    %10322 = vmatprep.mubr.bf16.mxu0 0
    %10323 = vmatmul.mubr.bf16.gmra.mrb[0].mxu0 %v10204
    %v10324 = vpop.f32.mrb[0].mxu0
    %v10325 = vadd.f32 %v10232, %v10324
    %v10326 = vpop.f32.mrb[0].mxu0
    %v10327 = vpop.f32.mrb[0].mxu0
    %v10328 = vadd.f32 %v10232, %v10327
    %v10329 = vpop.f32.mrb[0].mxu0
    %10330 = vmatprep.mubr.bf16.mxu0 0
    %10331 = vmatmul.mubr.bf16.gmra.mrb[0].mxu0 %v10205
    %v10332 = vpop.f32.mrb[0].mxu0
    %v10333 = vadd.f32 %v10232, %v10332
    %v10334 = vpop.f32.mrb[0].mxu0
    %v10335 = vpop.f32.mrb[0].mxu0
    %v10336 = vadd.f32 %v10232, %v10335
    %v10337 = vpop.f32.mrb[0].mxu0
    %10338 = vmatprep.mubr.bf16.mxu0 0
    %10339 = vmatmul.mubr.bf16.gmra.mrb[0].mxu0 %v10206
    %v10340 = vpop.f32.mrb[0].mxu0
    %v10341 = vadd.f32 %v10232, %v10340
    %v10342 = vpop.f32.mrb[0].mxu0
    %v10343 = vpop.f32.mrb[0].mxu0
    %v10344 = vadd.f32 %v10232, %v10343
    %v10345 = vpop.f32.mrb[0].mxu0
    %10346 = vmatprep.mubr.bf16.mxu0 0
    %10347 = vmatmul.mubr.bf16.gmra.mrb[0].mxu0 %v10207
    %v10348 = vpop.f32.mrb[0].mxu0
    %v10349 = vadd.f32 %v10232, %v10348
    %v10350 = vpop.f32.mrb[0].mxu0
    %v10351 = vpop.f32.mrb[0].mxu0
    %v10352 = vadd.f32 %v10232, %v10351
    %v10353 = vpop.f32.mrb[0].mxu0
    %10354 = vmatprep.mubr.bf16.mxu0 0
    %10355 = vmatmul.mubr.bf16.gmra.mrb[0].mxu0 %v10208
    %v10356 = vpop.f32.mrb[0].mxu0
    %v10357 = vadd.f32 %v10232, %v10356
    %v10358 = vpop.f32.mrb[0].mxu0
    %v10359 = vpop.f32.mrb[0].mxu0
    %v10360 = vadd.f32 %v10232, %v10359
    %v10361 = vpop.f32.mrb[0].mxu0
    %10362 = vmatprep.mubr.bf16.mxu0 0
    %10363 = vmatmul.mubr.bf16.gmra.mrb[0].mxu0 %v10209
    %v10364 = vpop.f32.mrb[0].mxu0
    %v10365 = vadd.f32 %v10232, %v10364
    %v10366 = vpop.f32.mrb[0].mxu0
    %v10367 = vpop.f32.mrb[0].mxu0
    %v10368 = vadd.f32 %v10232, %v10367
    %v10369 = vpop.f32.mrb[0].mxu0
    %10370 = vmatprep.mubr.bf16.mxu0 0
    %10371 = vmatmul.mubr.bf16.gmra.mrb[0].mxu0 %v10210
    %v10372 = vpop.f32.mrb[0].mxu0
    %v10373 = vadd.f32 %v10232, %v10372
    %v10374 = vpop.f32.mrb[0].mxu0
    %v10375 = vpop.f32.mrb[0].mxu0
    %v10376 = vadd.f32 %v10232, %v10375
    %v10377 = vpop.f32.mrb[0].mxu0
    %10378 = vdwg.mxu0
    %v10379 = vmax.f32 %v10317, 0.0
    %v10380 = vmax.f32 %v10320, 0.0
    %v10381 = vmax.f32 %v10325, 0.0
    %v10382 = vmax.f32 %v10328, 0.0
    %v10383 = vmax.f32 %v10333, 0.0
    %v10384 = vmax.f32 %v10336, 0.0
    %v10385 = vmax.f32 %v10341, 0.0
    %v10386 = vmax.f32 %v10344, 0.0
    %v10387 = vmax.f32 %v10349, 0.0
    %v10388 = vmax.f32 %v10352, 0.0
    %v10389 = vmax.f32 %v10357, 0.0
    %v10390 = vmax.f32 %v10360, 0.0
    %v10391 = vmax.f32 %v10365, 0.0
    %v10392 = vmax.f32 %v10368, 0.0
    %v10393 = vmax.f32 %v10373, 0.0
    %v10394 = vmax.f32 %v10376, 0.0
    %v10395 = vpack.c.bf16 %v10380, %v10379
    %v10396 = vpack.c.bf16 %v10382, %v10381
    %v10397 = vpack.c.bf16 %v10384, %v10383
    %v10398 = vpack.c.bf16 %v10386, %v10385
    %v10399 = vpack.c.bf16 %v10388, %v10387
    %v10400 = vpack.c.bf16 %v10390, %v10389
    %v10401 = vpack.c.bf16 %v10392, %v10391
    %v10402 = vpack.c.bf16 %v10394, %v10393
    %v10403 = vld [vmem:[#allocation18] sm:$0xf]
    %v10404 = vld [vmem:[#allocation18 + $0x4] sm:$0xf]
    %v10405 = vld [vmem:[#allocation18 + $0x8] sm:$0xf]
    %v10406 = vld [vmem:[#allocation18 + $0xc] sm:$0xf]
    %v10407 = vld [vmem:[#allocation18 + $0x10] sm:$0xf]
    %v10408 = vld [vmem:[#allocation18 + $0x14] sm:$0xf]
    %v10409 = vld [vmem:[#allocation18 + $0x18] sm:$0xf]
    %v10410 = vld [vmem:[#allocation18 + $0x1c] sm:$0xf]
    %v10411 = vld [vmem:[#allocation18 + $0x20] sm:$0xf]
    %v10412 = vld [vmem:[#allocation18 + $0x24] sm:$0xf]
    %v10413 = vld [vmem:[#allocation18 + $0x28] sm:$0xf]
    %v10414 = vld [vmem:[#allocation18 + $0x2c] sm:$0xf]
    %v10415 = vld [vmem:[#allocation18 + $0x30] sm:$0xf]
    %v10416 = vld [vmem:[#allocation18 + $0x34] sm:$0xf]
    %v10417 = vld [vmem:[#allocation18 + $0x38] sm:$0xf]
    %v10418 = vld [vmem:[#allocation18 + $0x3c] sm:$0xf]
    %v10419 = vld [vmem:[#allocation19] sm:$0x1]
    %v10421 = vlaneseq
    %v10422 = vshrl.u32 %v10421, 7
    %v10423 = vsub.s32 0, %v10422
    %v10424 = vrot.slane %v10419, %v10423
    %v10442 = vunpack.c.l.b16 %v10403
    %v10443 = vunpack.c.l.b16 %v10404
    %v10444 = vunpack.c.l.b16 %v10405
    %v10445 = vunpack.c.l.b16 %v10406
    %v10446 = vunpack.c.l.b16 %v10407
    %v10447 = vunpack.c.l.b16 %v10408
    %v10448 = vunpack.c.l.b16 %v10409
    %v10449 = vunpack.c.l.b16 %v10410
    %v10450 = vunpack.c.l.b16 %v10411
    %v10451 = vunpack.c.l.b16 %v10412
    %v10452 = vunpack.c.l.b16 %v10413
    %v10453 = vunpack.c.l.b16 %v10414
    %v10454 = vunpack.c.l.b16 %v10415
    %v10455 = vunpack.c.l.b16 %v10416
    %v10456 = vunpack.c.l.b16 %v10417
    %v10457 = vunpack.c.l.b16 %v10418
    %v10458 = vpack.c.b16 %v10443, %v10442
    %v10459 = vpack.c.b16 %v10445, %v10444
    %v10460 = vpack.c.b16 %v10447, %v10446
    %v10461 = vpack.c.b16 %v10449, %v10448
    %v10462 = vpack.c.b16 %v10451, %v10450
    %v10463 = vpack.c.b16 %v10453, %v10452
    %v10464 = vpack.c.b16 %v10455, %v10454
    %v10465 = vpack.c.b16 %v10457, %v10456
    %10474 = vmatprep.subr.bf16.mxu0 0
    %10475 = vmatpush1.bf16.msra.mxu0 %v10458
    %10476 = vmatprep.subr.bf16.mxu0 0
    %10477 = vmatpush1.bf16.msra.mxu0 %v10459
    %10478 = vmatprep.subr.bf16.mxu0 0
    %10479 = vmatpush1.bf16.msra.mxu0 %v10460
    %10480 = vmatprep.subr.bf16.mxu0 0
    %10481 = vmatpush1.bf16.msra.mxu0 %v10461
    %10482 = vmatprep.subr.bf16.mxu0 0
    %10483 = vmatpush1.bf16.msra.mxu0 %v10462
    %10484 = vmatprep.subr.bf16.mxu0 0
    %10485 = vmatpush1.bf16.msra.mxu0 %v10463
    %10486 = vmatprep.subr.bf16.mxu0 0
    %10487 = vmatpush1.bf16.msra.mxu0 %v10464
    %10488 = vmatprep.subr.bf16.mxu0 0
    %10489 = vmatpush1.bf16.msra.mxu0 %v10465
    %10490 = vmatprep.subr.bf16.mxu0 0
    %10491 = vmatpush1.bf16.msra.mxu0 0
    %10492 = vmatprep.subr.bf16.mxu0 0
    %10493 = vmatpush1.bf16.msra.mxu0 0
    %10494 = vmatprep.subr.bf16.mxu0 0
    %10495 = vmatpush1.bf16.msra.mxu0 0
    %10496 = vmatprep.subr.bf16.mxu0 0
    %10497 = vmatpush1.bf16.msra.mxu0 0
    %10498 = vmatprep.subr.bf16.mxu0 0
    %10499 = vmatpush1.bf16.msra.mxu0 0
    %10500 = vmatprep.subr.bf16.mxu0 0
    %10501 = vmatpush1.bf16.msra.mxu0 0
    %10502 = vmatprep.subr.bf16.mxu0 0
    %10503 = vmatpush1.bf16.msra.mxu0 0
    %10504 = vmatprep.subr.bf16.mxu0 0
    %10505 = vmatpush1.bf16.msra.mxu0 0
    %10506 = vmatprep.mubr.bf16.mxu0 0
    %10507 = vmatmul.mubr.bf16.gmra.mrb[0].mxu0 %v10395
    %v10508 = vpop.f32.mrb[0].mxu0
    %v10509 = vadd.f32 %v10424, %v10508
    %v10510 = vpop.f32.mrb[0].mxu0
    %v10511 = vpop.f32.mrb[0].mxu0
    %v10512 = vadd.f32 %v10424, %v10511
    %v10513 = vpop.f32.mrb[0].mxu0
    %10514 = vmatprep.mubr.bf16.mxu0 0
    %10515 = vmatmul.mubr.bf16.gmra.mrb[0].mxu0 %v10396
    %v10516 = vpop.f32.mrb[0].mxu0
    %v10517 = vadd.f32 %v10424, %v10516
    %v10518 = vpop.f32.mrb[0].mxu0
    %v10519 = vpop.f32.mrb[0].mxu0
    %v10520 = vadd.f32 %v10424, %v10519
    %v10521 = vpop.f32.mrb[0].mxu0
    %10522 = vmatprep.mubr.bf16.mxu0 0
    %10523 = vmatmul.mubr.bf16.gmra.mrb[0].mxu0 %v10397
    %v10524 = vpop.f32.mrb[0].mxu0
    %v10525 = vadd.f32 %v10424, %v10524
    %v10526 = vpop.f32.mrb[0].mxu0
    %v10527 = vpop.f32.mrb[0].mxu0
    %v10528 = vadd.f32 %v10424, %v10527
    %v10529 = vpop.f32.mrb[0].mxu0
    %10530 = vmatprep.mubr.bf16.mxu0 0
    %10531 = vmatmul.mubr.bf16.gmra.mrb[0].mxu0 %v10398
    %v10532 = vpop.f32.mrb[0].mxu0
    %v10533 = vadd.f32 %v10424, %v10532
    %v10534 = vpop.f32.mrb[0].mxu0
    %v10535 = vpop.f32.mrb[0].mxu0
    %v10536 = vadd.f32 %v10424, %v10535
    %v10537 = vpop.f32.mrb[0].mxu0
    %10538 = vmatprep.mubr.bf16.mxu0 0
    %10539 = vmatmul.mubr.bf16.gmra.mrb[0].mxu0 %v10399
    %v10540 = vpop.f32.mrb[0].mxu0
    %v10541 = vadd.f32 %v10424, %v10540
    %v10542 = vpop.f32.mrb[0].mxu0
    %v10543 = vpop.f32.mrb[0].mxu0
    %v10544 = vadd.f32 %v10424, %v10543
    %v10545 = vpop.f32.mrb[0].mxu0
    %10546 = vmatprep.mubr.bf16.mxu0 0
    %10547 = vmatmul.mubr.bf16.gmra.mrb[0].mxu0 %v10400
    %v10548 = vpop.f32.mrb[0].mxu0
    %v10549 = vadd.f32 %v10424, %v10548
    %v10550 = vpop.f32.mrb[0].mxu0
    %v10551 = vpop.f32.mrb[0].mxu0
    %v10552 = vadd.f32 %v10424, %v10551
    %v10553 = vpop.f32.mrb[0].mxu0
    %10554 = vmatprep.mubr.bf16.mxu0 0
    %10555 = vmatmul.mubr.bf16.gmra.mrb[0].mxu0 %v10401
    %v10556 = vpop.f32.mrb[0].mxu0
    %v10557 = vadd.f32 %v10424, %v10556
    %v10558 = vpop.f32.mrb[0].mxu0
    %v10559 = vpop.f32.mrb[0].mxu0
    %v10560 = vadd.f32 %v10424, %v10559
    %v10561 = vpop.f32.mrb[0].mxu0
    %10562 = vmatprep.mubr.bf16.mxu0 0
    %10563 = vmatmul.mubr.bf16.gmra.mrb[0].mxu0 %v10402
    %v10564 = vpop.f32.mrb[0].mxu0
    %v10565 = vadd.f32 %v10424, %v10564
    %v10566 = vpop.f32.mrb[0].mxu0
    %v10567 = vpop.f32.mrb[0].mxu0
    %v10568 = vadd.f32 %v10424, %v10567
    %v10569 = vpop.f32.mrb[0].mxu0
    %10570 = vdwg.mxu0
    %v10571 = vsub.f32 0.0, %v10509
    %v10572 = vsub.f32 0.0, %v10512
    %v10573 = vsub.f32 0.0, %v10517
    %v10574 = vsub.f32 0.0, %v10520
    %v10575 = vsub.f32 0.0, %v10525
    %v10576 = vsub.f32 0.0, %v10528
    %v10577 = vsub.f32 0.0, %v10533
    %v10578 = vsub.f32 0.0, %v10536
    %v10579 = vsub.f32 0.0, %v10541
    %v10580 = vsub.f32 0.0, %v10544
    %v10581 = vsub.f32 0.0, %v10549
    %v10582 = vsub.f32 0.0, %v10552
    %v10583 = vsub.f32 0.0, %v10557
    %v10584 = vsub.f32 0.0, %v10560
    %v10585 = vsub.f32 0.0, %v10565
    %v10586 = vsub.f32 0.0, %v10568
    %v10587 = vmul.f32 %v10571, 1.442695
    %v10588 = vpow.pop %v10587
    %v10589 = vmul.f32 %v10572, 1.442695
    %v10590 = vpow.pop %v10589
    %v10591 = vmul.f32 %v10573, 1.442695
    %v10592 = vpow.pop %v10591
    %v10593 = vmul.f32 %v10574, 1.442695
    %v10594 = vpow.pop %v10593
    %v10595 = vmul.f32 %v10575, 1.442695
    %v10596 = vpow.pop %v10595
    %v10597 = vmul.f32 %v10576, 1.442695
    %v10598 = vpow.pop %v10597
    %v10599 = vmul.f32 %v10577, 1.442695
    %v10600 = vpow.pop %v10599
    %v10601 = vmul.f32 %v10578, 1.442695
    %v10602 = vpow.pop %v10601
    %v10603 = vmul.f32 %v10579, 1.442695
    %v10604 = vpow.pop %v10603
    %v10605 = vmul.f32 %v10580, 1.442695
    %v10606 = vpow.pop %v10605
    %v10607 = vmul.f32 %v10581, 1.442695
    %v10608 = vpow.pop %v10607
    %v10609 = vmul.f32 %v10582, 1.442695
    %v10610 = vpow.pop %v10609
    %v10611 = vmul.f32 %v10583, 1.442695
    %v10612 = vpow.pop %v10611
    %v10613 = vmul.f32 %v10584, 1.442695
    %v10614 = vpow.pop %v10613
    %v10615 = vmul.f32 %v10585, 1.442695
    %v10616 = vpow.pop %v10615
    %v10617 = vmul.f32 %v10586, 1.442695
    %v10618 = vpow.pop %v10617
    %v10619 = vadd.f32 %v10588, 1.0
    %v10620 = vadd.f32 %v10590, 1.0
    %v10621 = vadd.f32 %v10592, 1.0
    %v10622 = vadd.f32 %v10594, 1.0
    %v10623 = vadd.f32 %v10596, 1.0
    %v10624 = vadd.f32 %v10598, 1.0
    %v10625 = vadd.f32 %v10600, 1.0
    %v10626 = vadd.f32 %v10602, 1.0
    %v10627 = vadd.f32 %v10604, 1.0
    %v10628 = vadd.f32 %v10606, 1.0
    %v10629 = vadd.f32 %v10608, 1.0
    %v10630 = vadd.f32 %v10610, 1.0
    %v10631 = vadd.f32 %v10612, 1.0
    %v10632 = vadd.f32 %v10614, 1.0
    %v10633 = vadd.f32 %v10616, 1.0
    %v10634 = vadd.f32 %v10618, 1.0
    %v10635 = vrcp.pop %v10619
    %v10636 = vrcp.pop %v10620
    %v10637 = vrcp.pop %v10621
    %v10638 = vrcp.pop %v10622
    %v10639 = vrcp.pop %v10623
    %v10640 = vrcp.pop %v10624
    %v10641 = vrcp.pop %v10625
    %v10642 = vrcp.pop %v10626
    %v10643 = vrcp.pop %v10627
    %v10644 = vrcp.pop %v10628
    %v10645 = vrcp.pop %v10629
    %v10646 = vrcp.pop %v10630
    %v10647 = vrcp.pop %v10631
    %v10648 = vrcp.pop %v10632
    %v10649 = vrcp.pop %v10633
    %v10650 = vrcp.pop %v10634
    %v10651 = vpack.c.bf16 %v10636, %v10635
    %v10652 = vpack.c.bf16 %v10638, %v10637
    %v10653 = vpack.c.bf16 %v10640, %v10639
    %v10654 = vpack.c.bf16 %v10642, %v10641
    %v10655 = vpack.c.bf16 %v10644, %v10643
    %v10656 = vpack.c.bf16 %v10646, %v10645
    %v10657 = vpack.c.bf16 %v10648, %v10647
    %v10658 = vpack.c.bf16 %v10650, %v10649
    %v10667 = vunpack.c.l.b16 %v10651
    %v10668 = vunpack.c.h.b16 %v10651
    %v10669 = vunpack.c.l.b16 %v10652
    %v10670 = vunpack.c.h.b16 %v10652
    %v10671 = vunpack.c.l.b16 %v10653
    %v10672 = vunpack.c.h.b16 %v10653
    %v10673 = vunpack.c.l.b16 %v10654
    %v10674 = vunpack.c.h.b16 %v10654
    %v10675 = vunpack.c.l.b16 %v10655
    %v10676 = vunpack.c.h.b16 %v10655
    %v10677 = vunpack.c.l.b16 %v10656
    %v10678 = vunpack.c.h.b16 %v10656
    %v10679 = vunpack.c.l.b16 %v10657
    %v10680 = vunpack.c.h.b16 %v10657
    %v10681 = vunpack.c.l.b16 %v10658
    %v10682 = vunpack.c.h.b16 %v10658
    %v10683 = vpack.c.b16 %v10667, %v10667
    %v10684 = vpack.c.b16 %v10668, %v10668
    %v10685 = vpack.c.b16 %v10669, %v10669
    %v10686 = vpack.c.b16 %v10670, %v10670
    %v10687 = vpack.c.b16 %v10671, %v10671
    %v10688 = vpack.c.b16 %v10672, %v10672
    %v10689 = vpack.c.b16 %v10673, %v10673
    %v10690 = vpack.c.b16 %v10674, %v10674
    %v10691 = vpack.c.b16 %v10675, %v10675
    %v10692 = vpack.c.b16 %v10676, %v10676
    %v10693 = vpack.c.b16 %v10677, %v10677
    %v10694 = vpack.c.b16 %v10678, %v10678
    %v10695 = vpack.c.b16 %v10679, %v10679
    %v10696 = vpack.c.b16 %v10680, %v10680
    %v10697 = vpack.c.b16 %v10681, %v10681
    %v10698 = vpack.c.b16 %v10682, %v10682
    %10715 = vst [vmem:[%s13] sm:$0xf] %v10683
    %10716 = vst [vmem:[%s13 + $0x4] sm:$0xf] %v10684
    %10717 = vst [vmem:[%s13 + $0x8] sm:$0xf] %v10685
    %10718 = vst [vmem:[%s13 + $0xc] sm:$0xf] %v10686
    %10719 = vst [vmem:[%s13 + $0x10] sm:$0xf] %v10687
    %10720 = vst [vmem:[%s13 + $0x14] sm:$0xf] %v10688
    %10721 = vst [vmem:[%s13 + $0x18] sm:$0xf] %v10689
    %10722 = vst [vmem:[%s13 + $0x1c] sm:$0xf] %v10690
    %10723 = vst [vmem:[%s13 + $0x20] sm:$0xf] %v10691
    %10724 = vst [vmem:[%s13 + $0x24] sm:$0xf] %v10692
    %10725 = vst [vmem:[%s13 + $0x28] sm:$0xf] %v10693
    %10726 = vst [vmem:[%s13 + $0x2c] sm:$0xf] %v10694
    %10727 = vst [vmem:[%s13 + $0x30] sm:$0xf] %v10695
    %10728 = vst [vmem:[%s13 + $0x34] sm:$0xf] %v10696
    %10729 = vst [vmem:[%s13 + $0x38] sm:$0xf] %v10697
    %10730 = vst [vmem:[%s13 + $0x3c] sm:$0xf] %v10698
    // Predicated region
    $region102: #{fc_sigmoid_forward.1} parent=1 // pred_check
      _
    $region103: #{fc_sigmoid_forward.1} parent=1 // pred_check_branch
      %10732 = sbr.rel (0) target = $region105
    $region104: #{fc_sigmoid_forward.1} parent=1 // pred_region
      _
    $region105: #{fc_sigmoid_forward.1} parent=1 // pred_fallthru
      _
    // Predicated region
    $region106: #{fc_sigmoid_forward.1} parent=1 // pred_check
      _
    $region107: #{fc_sigmoid_forward.1} parent=1 // pred_check_branch
      %10734 = sbr.rel (0) target = $region109
    $region108: #{fc_sigmoid_forward.1} parent=1 // pred_region
      _
    $region109: #{fc_sigmoid_forward.1} parent=1 // pred_fallthru
      _
    %10735 = vsyncpa [#allocation3], 1
    %10736 = vsyncpa [#allocation5], 1
    %10737 = vsyncpa [#allocation8], 1
    %10738 = vsyncpa [#allocation11], 1
    %10739 = vsyncpa [#allocation14], 1
    %10740 = vsyncpa [#allocation17], 1
    %10741 = vsyncpa [#allocation20], 1

</llo_original>
